<compile_context>
chip_gen: v5e
topology: v5e:2x2
jax: 0.10.0
libtpu: 0.0.40
codegen_flags: <defaults>
</compile_context>

<pallas_src>
import functools
import math

import jax
import jax.numpy as jnp
from jax import lax
from jax.experimental import pallas as pl
from jax.experimental.pallas import tpu as pltpu

NEG_SLOPE = 0.2                  # FusedLeakyReLU negative slope
ACT_GAIN = math.sqrt(2.0)        # FusedLeakyReLU output scale (folded into weights/bias/noise)
OUT_GAIN = 1.0 / math.sqrt(2.0)  # (skip + res) / sqrt(2) (folded into conv2/skip weights)
EPS = 1e-8
K = 3                            # 3x3 styled convs


def _round_up(x, m):
    return (x + m - 1) // m * m


def _resblock_kernel(*refs, use_skip_conv, use_noise, pre, hr, conv_dtype):
    # refs (in order): x_flat, s1, s2, [n1, n2], w1, w2, b1, b2, [skip_w], out, scratch
    it = iter(refs)
    x_ref = next(it)                                  # (xrows, Cin)   bf16 (f32 if identity skip)
    s1_ref = next(it)                                 # (Cin, 1)       f32 per-sample modulation
    s2_ref = next(it)                                 # (Cout, 1)      f32
    n1_ref = next(it) if use_noise else None          # (H*(W+2), 1)   f32, pre-scaled
    n2_ref = next(it) if use_noise else None
    w1_ref = next(it)                                 # (9*Cin, Cout)  bf16, row = (dh*3+dw)*Cin + c
    w2_ref = next(it)                                 # (9*Cout, Cout) bf16
    b1_ref = next(it)                                 # (1, Cout)      f32, pre-scaled by ACT_GAIN
    b2_ref = next(it)                                 # (1, Cout)      f32 (ACT_GAIN*OUT_GAIN == 1)
    skip_ref = next(it) if use_skip_conv else None    # (Cin, Cout)    bf16, pre-scaled by OUT_GAIN
    out_ref = next(it)                                # (H, W, Cout)   f32
    scr_ref = next(it)                                # (srows, Cout)  bf16 padded-pitch conv1 act

    H, W, Cout = out_ref.shape
    Cin = x_ref.shape[-1]
    W2 = W + 2
    srows = scr_ref.shape[0]
    taps = [dh * W2 + dw for dh in range(K) for dw in range(K)]

    # ---- per-sample modulated + demodulated weights (f32 math, one bf16 copy per conv) ----
    s1_rep = jnp.tile(s1_ref[...], (K * K, 1))                               # (9*Cin, 1)
    w1 = w1_ref[...].astype(jnp.float32) * s1_rep
    d1 = lax.rsqrt(jnp.sum(w1 * w1, axis=0, keepdims=True) + EPS) * ACT_GAIN
    w1_bf = (w1 * d1).astype(conv_dtype)                                     # (9*Cin, Cout)

    s2_rep = jnp.tile(s2_ref[...], (K * K, 1))                               # (9*Cout, 1)
    w2 = w2_ref[...].astype(jnp.float32) * s2_rep
    d2 = lax.rsqrt(jnp.sum(w2 * w2, axis=0, keepdims=True) + EPS)            # ACT*OUT gain == 1
    w2_bf = (w2 * d2).astype(conv_dtype)                                     # (9*Cout, Cout)

    b1 = b1_ref[...]
    b2 = b2_ref[...]
    skip_w = skip_ref[...] if use_skip_conv else None

    # ---- zero only the scratch halo rows (interior fully rewritten below).  Done every grid
    # step so it stays correct when the batch axis is split across TensorCores ("parallel"). ----
    head = pre + W2 + 1
    scr_ref[pl.ds(0, head), :] = jnp.zeros((head, Cout), conv_dtype)
    tail = pre + (H + 1) * W2 + 1
    scr_ref[pl.ds(tail, srows - tail), :] = jnp.zeros((srows - tail, Cout), conv_dtype)

    # ---- conv1: x -> bf16 scratch (padded pitch), row-chunked, 9 contiguous-window matmuls ----
    # TODO(synk): for small Cin an im2col (chunk, 9*Cin) LHS + one matmul would fill the MXU
    # contraction depth better than 9 K=Cin matmuls.
    for h0 in range(0, H, hr):
        hc = min(hr, H - h0)
        c0, cm = h0 * W2, hc * W2
        acc = jnp.zeros((cm, Cout), jnp.float32)
        for k, off in enumerate(taps):
            src = x_ref[pl.ds(off + c0, cm), :]
            if src.dtype != conv_dtype:
                src = src.astype(conv_dtype)
            acc = acc + jnp.dot(src, w1_bf[k * Cin:(k + 1) * Cin, :],
                                preferred_element_type=jnp.float32)
        acc = acc + b1
        if use_noise:
            acc = acc + n1_ref[pl.ds(c0, cm), :]
        h1 = jnp.where(acc >= 0.0, acc, NEG_SLOPE * acc)            # gain folded into d1/b1/noise
        h1 = h1.reshape(hc, W2, Cout)
        wcol = lax.broadcasted_iota(jnp.int32, (hc, W2, 1), 1)
        h1 = jnp.where(wcol < W, h1, 0.0)                           # garbage pad cols -> 0
        scr_ref[pl.ds(pre + W2 + 1 + c0, cm), :] = h1.reshape(cm, Cout).astype(conv_dtype)

    # ---- conv2 (+ skip) -> output, row-chunked ----
    for h0 in range(0, H, hr):
        hc = min(hr, H - h0)
        c0, cm = h0 * W2, hc * W2
        acc = jnp.zeros((cm, Cout), jnp.float32)
        for k, off in enumerate(taps):
            src = scr_ref[pl.ds(pre + off + c0, cm), :]
            acc = acc + jnp.dot(src, w2_bf[k * Cout:(k + 1) * Cout, :],
                                preferred_element_type=jnp.float32)
        acc = acc + b2
        if use_noise:
            acc = acc + n2_ref[pl.ds(c0, cm), :]
        h2 = jnp.where(acc >= 0.0, acc, NEG_SLOPE * acc)            # ACT_GAIN*OUT_GAIN == 1 folded
        xc = x_ref[pl.ds(W2 + 1 + c0, cm), :]                       # center tap = skip input
        if use_skip_conv:
            skip = jnp.dot(xc, skip_w, preferred_element_type=jnp.float32)   # OUT_GAIN pre-folded
        else:
            skip = xc.astype(jnp.float32) * OUT_GAIN                # nn.Identity skip stays f32
        res = (skip + h2).reshape(hc, W2, Cout)
        out_ref[pl.ds(h0, hc), :, :] = res[:, :W, :].astype(out_ref.dtype)


def _padded_block_bytes(shape, dtype):
    dims = list(shape)
    dims[-1] = max(_round_up(dims[-1], 128), 128)
    if len(dims) >= 2:
        dims[-2] = max(_round_up(dims[-2], 8), 8)
    return math.prod(dims) * jnp.dtype(dtype).itemsize


def resnet_block_forward(x_nhwc, style, params, *, use_noise=False,
                         conv_dtype=jnp.bfloat16, chunk_target_rows=512):
    """x_nhwc: (B, H, W, Cin) f32; style: (B, S) f32."""
    B, H, W, Cin = x_nhwc.shape
    S = style.shape[1]
    Cout = params["w1"].shape[0]
    W2 = W + 2
    use_skip_conv = Cin != Cout

    sscale = 1.0 / math.sqrt(S)                 # EqualLinear scale (lr_mul=1)
    cs1 = 1.0 / math.sqrt(Cin * K * K)          # ModulatedConv2d scale, conv1
    cs2 = 1.0 / math.sqrt(Cout * K * K)         # ModulatedConv2d scale, conv2

    pre = (-(W + 3)) % 16                       # leading scratch rows -> aligned interior stores
    xrows = _round_up((H + 2) * W2 + 2, 8)      # +2: last tap window over-reads 2 (garbage) rows
    srows = _round_up(pre + (H + 2) * W2 + 2, 16)

    # image rows per chunk: target ~chunk_target_rows padded-pitch matmul rows, prefer 8-aligned
    hr = min(H, max(1, chunk_target_rows // W2))
    for cand in range(hr, 0, -1):
        if (cand * W2) % 8 == 0:
            hr = cand
            break

    # --- per-sample tensor packing (plain-JAX glue, runs once under jit) ---
    x_dtype = conv_dtype if use_skip_conv else jnp.float32   # keep f32 x for the identity skip
    x_pad = jnp.pad(x_nhwc.astype(jnp.float32), ((0, 0), (1, 1), (1, 1), (0, 0)))
    x_flat = x_pad.reshape(B, (H + 2) * W2, Cin)
    x_flat = jnp.pad(x_flat, ((0, 0), (0, xrows - (H + 2) * W2), (0, 0))).astype(x_dtype)

    style32 = style.astype(jnp.float32)
    s1 = (jnp.dot(style32, (params["mod1_w"] * sscale).T, precision=lax.Precision.HIGHEST)
          + params["mod1_b"][None, :])[..., None].astype(jnp.float32)        # (B, Cin, 1)
    s2 = (jnp.dot(style32, (params["mod2_w"] * sscale).T, precision=lax.Precision.HIGHEST)
          + params["mod2_b"][None, :])[..., None].astype(jnp.float32)        # (B, Cout, 1)

    # shared (replicated) tensors; base conv weights shipped bf16, row = (dh*3+dw)*C + c
    w1 = (cs1 * jnp.transpose(params["w1"], (2, 3, 1, 0))).reshape(K * K * Cin, Cout).astype(conv_dtype)
    w2 = (cs2 * jnp.transpose(params["w2"], (2, 3, 1, 0))).reshape(K * K * Cout, Cout).astype(conv_dtype)
    b1 = (params["act_b1"] * ACT_GAIN)[None, :].astype(jnp.float32)
    b2 = params["act_b2"][None, :].astype(jnp.float32)

    inputs = [x_flat, s1, s2]
    in_specs = [
        pl.BlockSpec((None, xrows, Cin), lambda b: (b, 0, 0)),
        pl.BlockSpec((None, Cin, 1), lambda b: (b, 0, 0)),
        pl.BlockSpec((None, Cout, 1), lambda b: (b, 0, 0)),
    ]
    if use_noise:
        def pack_noise(noise, scale):
            n = jnp.pad(noise.astype(jnp.float32) * scale, ((0, 0), (0, 0), (0, 2)))
            return n.reshape(B, H * W2, 1)
        inputs += [pack_noise(params["noise1"], params["noise_w1"] * ACT_GAIN),
                   pack_noise(params["noise2"], params["noise_w2"])]         # ACT*OUT gain == 1
        in_specs += [pl.BlockSpec((None, H * W2, 1), lambda b: (b, 0, 0)),
                     pl.BlockSpec((None, H * W2, 1), lambda b: (b, 0, 0))]
    inputs += [w1, w2, b1, b2]
    in_specs += [
        pl.BlockSpec((K * K * Cin, Cout), lambda b: (0, 0)),
        pl.BlockSpec((K * K * Cout, Cout), lambda b: (0, 0)),
        pl.BlockSpec((1, Cout), lambda b: (0, 0)),
        pl.BlockSpec((1, Cout), lambda b: (0, 0)),
    ]
    if use_skip_conv:
        skip_w = (params["skip_w"].T * (OUT_GAIN / math.sqrt(Cin))).astype(conv_dtype)
        inputs.append(skip_w)
        in_specs.append(pl.BlockSpec((Cin, Cout), lambda b: (0, 0)))

    # --- rough VMEM budget: double-buffered per-sample streams + replicated weights + scratch ---
    per_sample = (_padded_block_bytes((xrows, Cin), x_dtype)
                  + _padded_block_bytes((Cin, 1), jnp.float32)
                  + _padded_block_bytes((Cout, 1), jnp.float32)
                  + _padded_block_bytes((H, W, Cout), jnp.float32))
    if use_noise:
        per_sample += 2 * _padded_block_bytes((H * W2, 1), jnp.float32)
    shared = (_padded_block_bytes((K * K * Cin, Cout), conv_dtype)
              + _padded_block_bytes((K * K * Cout, Cout), conv_dtype)
              + 2 * _padded_block_bytes((1, Cout), jnp.float32))
    if use_skip_conv:
        shared += _padded_block_bytes((Cin, Cout), conv_dtype)
    transients = (3 * (_padded_block_bytes((K * K * Cin, Cout), jnp.float32)
                       + _padded_block_bytes((K * K * Cout, Cout), jnp.float32))
                  + 4 * _padded_block_bytes((hr * W2, Cout), jnp.float32))
    scratch_bytes = _padded_block_bytes((srows, Cout), conv_dtype)
    vmem_limit = int(min(max(2 * per_sample + 2 * shared + scratch_bytes + transients + (8 << 20),
                             32 << 20), 100 << 20))
    # TODO(synk): if the per-sample working set exceeds ~48 MiB (v7x VMEM), add a row-block grid
    # axis with a 2-row halo (marked "parallel") instead of keeping the whole sample resident.
    # TODO(synk): for Cout < 128 the channels-last layout underfills the 128 lanes; pack W (or
    # W*Cout) onto the lane axis / pad channels for small-channel blocks.

    kernel = functools.partial(_resblock_kernel, use_skip_conv=use_skip_conv,
                               use_noise=use_noise, pre=pre, hr=hr, conv_dtype=conv_dtype)

    out = pl.pallas_call(
        kernel,
        out_shape=jax.ShapeDtypeStruct((B, H, W, Cout), jnp.float32),
        grid_spec=pltpu.PrefetchScalarGridSpec(
            num_scalar_prefetch=0,
            grid=(B,),
            in_specs=in_specs,
            out_specs=pl.BlockSpec((None, H, W, Cout), lambda b: (b, 0, 0, 0)),
            scratch_shapes=[pltpu.VMEM((srows, Cout), conv_dtype)],
        ),
        compiler_params=pltpu.CompilerParams(
            dimension_semantics=("parallel",),        # batch axis: shard across TCs on v7x
            vmem_limit_bytes=vmem_limit,
        ),
    )(*inputs)
    return out


# ----------------------------- pure-JAX reference -----------------------------
def ref_forward(x_nhwc, style, params, *, use_noise, conv_dtype=jnp.float32):
    """Module math with the gains folded exactly as in the kernel (exact in f32); conv_dtype
    optionally rounds the same tensors the kernel's bf16 path rounds (accumulation stays f32)."""
    B, H, W, Cin = x_nhwc.shape
    S = style.shape[1]
    Cout = params["w1"].shape[0]
    sscale = 1.0 / math.sqrt(S)
    use_skip_conv = Cin != Cout
    style32 = style.astype(jnp.float32)

    def q(a):
        return a.astype(conv_dtype).astype(jnp.float32)

    def conv3(xin, w_hwio):
        def one(xi, wi):
            return lax.conv_general_dilated(
                xi[None], wi, (1, 1), "SAME",
                dimension_numbers=("NHWC", "HWIO", "NHWC"),
                precision=lax.Precision.HIGHEST)[0]
        return jax.vmap(one)(xin, w_hwio)

    def styled(xin, w_raw, mod_w, mod_b, cscale, gain, noise, nw, ab):
        s = (jnp.dot(style32, (mod_w * sscale).T, precision=lax.Precision.HIGHEST)
             + mod_b[None, :])                                              # (B, Ci)
        wq = q(cscale * w_raw)                                              # base weights as shipped
        w = wq[None] * s[:, None, :, None, None]                           # (B,Co,Ci,3,3)
        d = lax.rsqrt(jnp.sum(w * w, axis=(2, 3, 4)) + EPS) * gain
        w = q(w * d[:, :, None, None, None])
        w_hwio = jnp.transpose(w, (0, 3, 4, 2, 1))                         # (B,3,3,Ci,Co)
        o = conv3(q(xin), w_hwio)
        if use_noise:
            o = o + (nw * gain) * noise[..., None]
        o = o + (ab * gain)[None, None, None, :]
        return jnp.where(o >= 0, o, NEG_SLOPE * o)

    h1 = styled(x_nhwc, params["w1"], params["mod1_w"], params["mod1_b"],
                1.0 / math.sqrt(Cin * K * K), ACT_GAIN,
                params.get("noise1"), params.get("noise_w1"), params["act_b1"])
    h2 = styled(h1, params["w2"], params["mod2_w"], params["mod2_b"],
                1.0 / math.sqrt(Cout * K * K), ACT_GAIN * OUT_GAIN,
                params.get("noise2"), params.get("noise_w2"), params["act_b2"])
    if use_skip_conv:
        skip = jnp.einsum("bhwc,co->bhwo", q(x_nhwc),
                          q(params["skip_w"].T * (OUT_GAIN / math.sqrt(Cin))),
                          precision=lax.Precision.HIGHEST)
    else:
        skip = x_nhwc * OUT_GAIN
    return skip + h2


# ----------------------------- demo / self-test -----------------------------
def _make_params(key, Cin, Cout, S, H, W, B):
    ks = jax.random.split(key, 11)
    return dict(
        # StyledConv(inch, outch, 3, styledim) -> ModulatedConv2d + NoiseInjection + FusedLeakyReLU
        w1=jax.random.normal(ks[0], (Cout, Cin, K, K), jnp.float32),
        mod1_w=jax.random.normal(ks[1], (Cin, S), jnp.float32),
        mod1_b=1.0 + 0.1 * jax.random.normal(ks[2], (Cin,), jnp.float32),   # EqualLinear bias_init=1
        act_b1=0.1 * jax.random.normal(ks[3], (Cout,), jnp.float32),
        noise_w1=jnp.float32(0.1),
        w2=jax.random.normal(ks[4], (Cout, Cout, K, K), jnp.float32),
        mod2_w=jax.random.normal(ks[5], (Cout, S), jnp.float32),
        mod2_b=1.0 + 0.1 * jax.random.normal(ks[6], (Cout,), jnp.float32),
        act_b2=0.1 * jax.random.normal(ks[7], (Cout,), jnp.float32),
        noise_w2=jnp.float32(0.1),
        # ConvLayer(inch, outch, 1, activate=False, bias=False) skip (used when inch != outch)
        skip_w=jax.random.normal(ks[8], (Cout, Cin), jnp.float32),
        # deterministic stand-in for the torch.randn noise drawn in forward()
        noise1=jax.random.normal(ks[9], (B, H, W), jnp.float32),
        noise2=jax.random.normal(ks[10], (B, H, W), jnp.float32),
    )


def _run_and_check(key, B, Cin, Cout, S, H, W, use_noise, chunk_target_rows=512):
    kx, kst, kp = jax.random.split(key, 3)
    x_nchw = jax.random.normal(kx, (B, Cin, H, W), jnp.float32)    # PyTorch layout
    style = jax.random.normal(kst, (B, S), jnp.float32)
    params = _make_params(kp, Cin, Cout, S, H, W, B)

    x_nhwc = jnp.transpose(x_nchw, (0, 2, 3, 1))                   # NCHW -> NHWC for the kernel
    fwd = jax.jit(functools.partial(resnet_block_forward, use_noise=use_noise,
                                    chunk_target_rows=chunk_target_rows))
    out = fwd(x_nhwc, style, params)
    jax.block_until_ready(out)
    assert out.shape == (B, H, W, Cout)

    # tight check vs a reference rounded at the same tensors (bf16), loose check vs pure f32
    ref_bf = ref_forward(x_nhwc, style, params, use_noise=use_noise, conv_dtype=jnp.bfloat16)
    ref_f32 = ref_forward(x_nhwc, style, params, use_noise=use_noise, conv_dtype=jnp.float32)
    err_bf = float(jnp.max(jnp.abs(out - ref_bf)))
    err_f32 = float(jnp.max(jnp.abs(out - ref_f32)))
    assert err_bf < 3e-2, f"max abs err vs bf16-rounded reference: {err_bf}"
    assert err_f32 < 3e-1, f"max abs err vs f32 reference: {err_f32}"

    out_nchw = jnp.transpose(out, (0, 3, 1, 2))
    assert out_nchw.shape == (B, Cout, H, W)
    return out


if __name__ == "__main__":
    key = jax.random.PRNGKey(0)
    k1, k2 = jax.random.split(key, 2)
    # config A: inch != outch (1x1 skip conv), NoiseInjection enabled, single row-chunk
    _run_and_check(k1, B=2, Cin=4, Cout=8, S=8, H=16, W=16, use_noise=True)
    # config B: inch == outch (nn.Identity skip), noise disabled (netG_use_noise=False),
    # small chunk target to exercise the multi-chunk path
    _run_and_check(k2, B=2, Cin=8, Cout=8, S=8, H=8, W=8, use_noise=False, chunk_target_rows=48)
    print("KERNEL_OK")
</pallas_src>

<mosaic_0001>
module attributes {stable_mosaic.version = 11 : i64} {
  func.func @_resblock_kernel(%arg0: i32, %arg1: memref<1x328x4xbf16, #tpu.memory_space<vmem>>, %arg2: memref<1x4x1xf32, #tpu.memory_space<vmem>>, %arg3: memref<1x8x1xf32, #tpu.memory_space<vmem>>, %arg4: memref<1x288x1xf32, #tpu.memory_space<vmem>>, %arg5: memref<1x288x1xf32, #tpu.memory_space<vmem>>, %arg6: memref<36x8xbf16, #tpu.memory_space<vmem>>, %arg7: memref<72x8xbf16, #tpu.memory_space<vmem>>, %arg8: memref<1x8xf32, #tpu.memory_space<vmem>>, %arg9: memref<1x8xf32, #tpu.memory_space<vmem>>, %arg10: memref<4x8xbf16, #tpu.memory_space<vmem>>, %arg11: memref<1x16x16x8xf32, #tpu.memory_space<vmem>>, %arg12: memref<352x8xbf16, #tpu.memory_space<vmem>>) attributes {dimension_semantics = [#tpu.dimension_semantics<parallel>], iteration_bounds = array<i64: 2>, scalar_prefetch = 0 : i64, scratch_operands = 1 : i64, tpu.core_type = #tpu.core_type<tc>, window_params = [{transform_indices = @transform_0, window_bounds = array<i64: 1, 328, 4>}, {transform_indices = @transform_1, window_bounds = array<i64: 1, 4, 1>}, {transform_indices = @transform_2, window_bounds = array<i64: 1, 8, 1>}, {transform_indices = @transform_3, window_bounds = array<i64: 1, 288, 1>}, {transform_indices = @transform_4, window_bounds = array<i64: 1, 288, 1>}, {pipeline_mode = #tpu.pipeline_mode<synchronous>, transform_indices = @transform_5, window_bounds = array<i64: 36, 8>}, {pipeline_mode = #tpu.pipeline_mode<synchronous>, transform_indices = @transform_6, window_bounds = array<i64: 72, 8>}, {pipeline_mode = #tpu.pipeline_mode<synchronous>, transform_indices = @transform_7, window_bounds = array<i64: 1, 8>}, {pipeline_mode = #tpu.pipeline_mode<synchronous>, transform_indices = @transform_8, window_bounds = array<i64: 1, 8>}, {pipeline_mode = #tpu.pipeline_mode<synchronous>, transform_indices = @transform_9, window_bounds = array<i64: 4, 8>}, {transform_indices = @transform_10, window_bounds = array<i64: 1, 16, 16, 8>}]} {
    %c0 = arith.constant 0 : index
    %c0_0 = arith.constant 0 : index
    %c0_1 = arith.constant 0 : index
    %0 = vector.load %arg2[%c0, %c0_0, %c0_1] : memref<1x4x1xf32, #tpu.memory_space<vmem>>, vector<1x4x1xf32>
    %1 = vector.shape_cast %0 : vector<1x4x1xf32> to vector<4x1xf32>
    %2 = tpu.concatenate %1, %1, %1, %1, %1, %1, %1, %1, %1 in 0 : vector<4x1xf32>, vector<4x1xf32>, vector<4x1xf32>, vector<4x1xf32>, vector<4x1xf32>, vector<4x1xf32>, vector<4x1xf32>, vector<4x1xf32>, vector<4x1xf32> -> vector<36x1xf32>
    %c0_2 = arith.constant 0 : index
    %c0_3 = arith.constant 0 : index
    %3 = vector.load %arg6[%c0_2, %c0_3] : memref<36x8xbf16, #tpu.memory_space<vmem>>, vector<36x8xbf16>
    %4 = arith.extf %3 : vector<36x8xbf16> to vector<36x8xf32>
    %5 = vector.broadcast %2 : vector<36x1xf32> to vector<36x8xf32>
    %6 = arith.mulf %4, %5 : vector<36x8xf32>
    %7 = arith.mulf %6, %6 : vector<36x8xf32>
    %cst = arith.constant dense<0.000000e+00> : vector<8xf32>
    %8 = vector.multi_reduction <add>, %7, %cst [0] : vector<36x8xf32> to vector<8xf32>
    %9 = vector.shape_cast %8 : vector<8xf32> to vector<1x8xf32>
    %cst_4 = arith.constant 9.99999993E-9 : f32
    %10 = vector.broadcast %cst_4 : f32 to vector<1x8xf32>
    %11 = arith.addf %9, %10 : vector<1x8xf32>
    %12 = math.rsqrt %11 : vector<1x8xf32>
    %cst_5 = arith.constant 1.41421354 : f32
    %13 = vector.broadcast %cst_5 : f32 to vector<1x8xf32>
    %14 = arith.mulf %12, %13 : vector<1x8xf32>
    %15 = vector.broadcast %14 : vector<1x8xf32> to vector<36x8xf32>
    %16 = arith.mulf %6, %15 : vector<36x8xf32>
    %17 = arith.truncf %16 : vector<36x8xf32> to vector<36x8xbf16>
    %c0_6 = arith.constant 0 : index
    %c0_7 = arith.constant 0 : index
    %c0_8 = arith.constant 0 : index
    %18 = vector.load %arg3[%c0_6, %c0_7, %c0_8] : memref<1x8x1xf32, #tpu.memory_space<vmem>>, vector<1x8x1xf32>
    %19 = vector.shape_cast %18 : vector<1x8x1xf32> to vector<8x1xf32>
    %20 = tpu.concatenate %19, %19, %19, %19, %19, %19, %19, %19, %19 in 0 : vector<8x1xf32>, vector<8x1xf32>, vector<8x1xf32>, vector<8x1xf32>, vector<8x1xf32>, vector<8x1xf32>, vector<8x1xf32>, vector<8x1xf32>, vector<8x1xf32> -> vector<72x1xf32>
    %c0_9 = arith.constant 0 : index
    %c0_10 = arith.constant 0 : index
    %21 = vector.load %arg7[%c0_9, %c0_10] : memref<72x8xbf16, #tpu.memory_space<vmem>>, vector<72x8xbf16>
    %22 = arith.extf %21 : vector<72x8xbf16> to vector<72x8xf32>
    %23 = vector.broadcast %20 : vector<72x1xf32> to vector<72x8xf32>
    %24 = arith.mulf %22, %23 : vector<72x8xf32>
    %25 = arith.mulf %24, %24 : vector<72x8xf32>
    %cst_11 = arith.constant dense<0.000000e+00> : vector<8xf32>
    %26 = vector.multi_reduction <add>, %25, %cst_11 [0] : vector<72x8xf32> to vector<8xf32>
    %27 = vector.shape_cast %26 : vector<8xf32> to vector<1x8xf32>
    %cst_12 = arith.constant 9.99999993E-9 : f32
    %28 = vector.broadcast %cst_12 : f32 to vector<1x8xf32>
    %29 = arith.addf %27, %28 : vector<1x8xf32>
    %30 = math.rsqrt %29 : vector<1x8xf32>
    %31 = vector.broadcast %30 : vector<1x8xf32> to vector<72x8xf32>
    %32 = arith.mulf %24, %31 : vector<72x8xf32>
    %33 = arith.truncf %32 : vector<72x8xf32> to vector<72x8xbf16>
    %c0_13 = arith.constant 0 : index
    %c0_14 = arith.constant 0 : index
    %34 = vector.load %arg8[%c0_13, %c0_14] : memref<1x8xf32, #tpu.memory_space<vmem>>, vector<1x8xf32>
    %c0_15 = arith.constant 0 : index
    %c0_16 = arith.constant 0 : index
    %35 = vector.load %arg9[%c0_15, %c0_16] : memref<1x8xf32, #tpu.memory_space<vmem>>, vector<1x8xf32>
    %c0_17 = arith.constant 0 : index
    %c0_18 = arith.constant 0 : index
    %36 = vector.load %arg10[%c0_17, %c0_18] : memref<4x8xbf16, #tpu.memory_space<vmem>>, vector<4x8xbf16>
    %cst_19 = arith.constant 0.000000e+00 : bf16
    %37 = vector.broadcast %cst_19 : bf16 to vector<32x8xbf16>
    %c0_20 = arith.constant 0 : index
    %c0_21 = arith.constant 0 : index
    %38 = vector.load %arg12[%c0_20, %c0_21] : memref<352x8xbf16, #tpu.memory_space<vmem>>, vector<32x8xbf16>
    tpu.vector_store %arg12[%c0_20, %c0_21], %37 {strides = array<i32>} : memref<352x8xbf16, #tpu.memory_space<vmem>>, vector<32x8xbf16>,
    %cst_22 = arith.constant 0.000000e+00 : bf16
    %39 = vector.broadcast %cst_22 : bf16 to vector<32x8xbf16>
    %c320 = arith.constant 320 : index
    %c0_23 = arith.constant 0 : index
    %40 = vector.load %arg12[%c320, %c0_23] : memref<352x8xbf16, #tpu.memory_space<vmem>>, vector<32x8xbf16>
    tpu.vector_store %arg12[%c320, %c0_23], %39 {strides = array<i32>} : memref<352x8xbf16, #tpu.memory_space<vmem>>, vector<32x8xbf16>,
    %cst_24 = arith.constant 0.000000e+00 : f32
    %41 = vector.broadcast %cst_24 : f32 to vector<288x8xf32>
    %c0_25 = arith.constant 0 : index
    %c0_26 = arith.constant 0 : index
    %c0_27 = arith.constant 0 : index
    %42 = vector.load %arg1[%c0_25, %c0_26, %c0_27] : memref<1x328x4xbf16, #tpu.memory_space<vmem>>, vector<1x288x4xbf16>
    %43 = vector.shape_cast %42 : vector<1x288x4xbf16> to vector<288x4xbf16>
    %44 = vector.extract_strided_slice %17 {offsets = [0, 0], sizes = [4, 8], strides = [1, 1]} : vector<36x8xbf16> to vector<4x8xbf16>
    %cst_28 = arith.constant dense<0.000000e+00> : vector<288x8xf32>
    %45 = tpu.matmul %43, %44, %cst_28 {dimension_numbers = #tpu.dot_dimension_numbers<[1], [0], [0], [1], [0, 0, 1, 1], [], []>} : vector<288x4xbf16>, vector<4x8xbf16>, vector<288x8xf32> -> vector<288x8xf32>
    %46 = arith.addf %41, %45 : vector<288x8xf32>
    %c0_29 = arith.constant 0 : index
    %c1 = arith.constant 1 : index
    %c0_30 = arith.constant 0 : index
    %47 = vector.load %arg1[%c0_29, %c1, %c0_30] : memref<1x328x4xbf16, #tpu.memory_space<vmem>>, vector<1x288x4xbf16>
    %48 = vector.shape_cast %47 : vector<1x288x4xbf16> to vector<288x4xbf16>
    %49 = vector.extract_strided_slice %17 {offsets = [4, 0], sizes = [4, 8], strides = [1, 1]} : vector<36x8xbf16> to vector<4x8xbf16>
    %cst_31 = arith.constant dense<0.000000e+00> : vector<288x8xf32>
    %50 = tpu.matmul %48, %49, %cst_31 {dimension_numbers = #tpu.dot_dimension_numbers<[1], [0], [0], [1], [0, 0, 1, 1], [], []>} : vector<288x4xbf16>, vector<4x8xbf16>, vector<288x8xf32> -> vector<288x8xf32>
    %51 = arith.addf %46, %50 : vector<288x8xf32>
    %c0_32 = arith.constant 0 : index
    %c2 = arith.constant 2 : index
    %c0_33 = arith.constant 0 : index
    %52 = vector.load %arg1[%c0_32, %c2, %c0_33] : memref<1x328x4xbf16, #tpu.memory_space<vmem>>, vector<1x288x4xbf16>
    %53 = vector.shape_cast %52 : vector<1x288x4xbf16> to vector<288x4xbf16>
    %54 = vector.extract_strided_slice %17 {offsets = [8, 0], sizes = [4, 8], strides = [1, 1]} : vector<36x8xbf16> to vector<4x8xbf16>
    %cst_34 = arith.constant dense<0.000000e+00> : vector<288x8xf32>
    %55 = tpu.matmul %53, %54, %cst_34 {dimension_numbers = #tpu.dot_dimension_numbers<[1], [0], [0], [1], [0, 0, 1, 1], [], []>} : vector<288x4xbf16>, vector<4x8xbf16>, vector<288x8xf32> -> vector<288x8xf32>
    %56 = arith.addf %51, %55 : vector<288x8xf32>
    %c0_35 = arith.constant 0 : index
    %c18 = arith.constant 18 : index
    %c0_36 = arith.constant 0 : index
    %57 = vector.load %arg1[%c0_35, %c18, %c0_36] : memref<1x328x4xbf16, #tpu.memory_space<vmem>>, vector<1x288x4xbf16>
    %58 = vector.shape_cast %57 : vector<1x288x4xbf16> to vector<288x4xbf16>
    %59 = vector.extract_strided_slice %17 {offsets = [12, 0], sizes = [4, 8], strides = [1, 1]} : vector<36x8xbf16> to vector<4x8xbf16>
    %cst_37 = arith.constant dense<0.000000e+00> : vector<288x8xf32>
    %60 = tpu.matmul %58, %59, %cst_37 {dimension_numbers = #tpu.dot_dimension_numbers<[1], [0], [0], [1], [0, 0, 1, 1], [], []>} : vector<288x4xbf16>, vector<4x8xbf16>, vector<288x8xf32> -> vector<288x8xf32>
    %61 = arith.addf %56, %60 : vector<288x8xf32>
    %c0_38 = arith.constant 0 : index
    %c19 = arith.constant 19 : index
    %c0_39 = arith.constant 0 : index
    %62 = vector.load %arg1[%c0_38, %c19, %c0_39] : memref<1x328x4xbf16, #tpu.memory_space<vmem>>, vector<1x288x4xbf16>
    %63 = vector.shape_cast %62 : vector<1x288x4xbf16> to vector<288x4xbf16>
    %64 = vector.extract_strided_slice %17 {offsets = [16, 0], sizes = [4, 8], strides = [1, 1]} : vector<36x8xbf16> to vector<4x8xbf16>
    %cst_40 = arith.constant dense<0.000000e+00> : vector<288x8xf32>
    %65 = tpu.matmul %63, %64, %cst_40 {dimension_numbers = #tpu.dot_dimension_numbers<[1], [0], [0], [1], [0, 0, 1, 1], [], []>} : vector<288x4xbf16>, vector<4x8xbf16>, vector<288x8xf32> -> vector<288x8xf32>
    %66 = arith.addf %61, %65 : vector<288x8xf32>
    %c0_41 = arith.constant 0 : index
    %c20 = arith.constant 20 : index
    %c0_42 = arith.constant 0 : index
    %67 = vector.load %arg1[%c0_41, %c20, %c0_42] : memref<1x328x4xbf16, #tpu.memory_space<vmem>>, vector<1x288x4xbf16>
    %68 = vector.shape_cast %67 : vector<1x288x4xbf16> to vector<288x4xbf16>
    %69 = vector.extract_strided_slice %17 {offsets = [20, 0], sizes = [4, 8], strides = [1, 1]} : vector<36x8xbf16> to vector<4x8xbf16>
    %cst_43 = arith.constant dense<0.000000e+00> : vector<288x8xf32>
    %70 = tpu.matmul %68, %69, %cst_43 {dimension_numbers = #tpu.dot_dimension_numbers<[1], [0], [0], [1], [0, 0, 1, 1], [], []>} : vector<288x4xbf16>, vector<4x8xbf16>, vector<288x8xf32> -> vector<288x8xf32>
    %71 = arith.addf %66, %70 : vector<288x8xf32>
    %c0_44 = arith.constant 0 : index
    %c36 = arith.constant 36 : index
    %c0_45 = arith.constant 0 : index
    %72 = vector.load %arg1[%c0_44, %c36, %c0_45] : memref<1x328x4xbf16, #tpu.memory_space<vmem>>, vector<1x288x4xbf16>
    %73 = vector.shape_cast %72 : vector<1x288x4xbf16> to vector<288x4xbf16>
    %74 = vector.extract_strided_slice %17 {offsets = [24, 0], sizes = [4, 8], strides = [1, 1]} : vector<36x8xbf16> to vector<4x8xbf16>
    %cst_46 = arith.constant dense<0.000000e+00> : vector<288x8xf32>
    %75 = tpu.matmul %73, %74, %cst_46 {dimension_numbers = #tpu.dot_dimension_numbers<[1], [0], [0], [1], [0, 0, 1, 1], [], []>} : vector<288x4xbf16>, vector<4x8xbf16>, vector<288x8xf32> -> vector<288x8xf32>
    %76 = arith.addf %71, %75 : vector<288x8xf32>
    %c0_47 = arith.constant 0 : index
    %c37 = arith.constant 37 : index
    %c0_48 = arith.constant 0 : index
    %77 = vector.load %arg1[%c0_47, %c37, %c0_48] : memref<1x328x4xbf16, #tpu.memory_space<vmem>>, vector<1x288x4xbf16>
    %78 = vector.shape_cast %77 : vector<1x288x4xbf16> to vector<288x4xbf16>
    %79 = vector.extract_strided_slice %17 {offsets = [28, 0], sizes = [4, 8], strides = [1, 1]} : vector<36x8xbf16> to vector<4x8xbf16>
    %cst_49 = arith.constant dense<0.000000e+00> : vector<288x8xf32>
    %80 = tpu.matmul %78, %79, %cst_49 {dimension_numbers = #tpu.dot_dimension_numbers<[1], [0], [0], [1], [0, 0, 1, 1], [], []>} : vector<288x4xbf16>, vector<4x8xbf16>, vector<288x8xf32> -> vector<288x8xf32>
    %81 = arith.addf %76, %80 : vector<288x8xf32>
    %c0_50 = arith.constant 0 : index
    %c38 = arith.constant 38 : index
    %c0_51 = arith.constant 0 : index
    %82 = vector.load %arg1[%c0_50, %c38, %c0_51] : memref<1x328x4xbf16, #tpu.memory_space<vmem>>, vector<1x288x4xbf16>
    %83 = vector.shape_cast %82 : vector<1x288x4xbf16> to vector<288x4xbf16>
    %84 = vector.extract_strided_slice %17 {offsets = [32, 0], sizes = [4, 8], strides = [1, 1]} : vector<36x8xbf16> to vector<4x8xbf16>
    %cst_52 = arith.constant dense<0.000000e+00> : vector<288x8xf32>
    %85 = tpu.matmul %83, %84, %cst_52 {dimension_numbers = #tpu.dot_dimension_numbers<[1], [0], [0], [1], [0, 0, 1, 1], [], []>} : vector<288x4xbf16>, vector<4x8xbf16>, vector<288x8xf32> -> vector<288x8xf32>
    %86 = arith.addf %81, %85 : vector<288x8xf32>
    %87 = vector.broadcast %34 : vector<1x8xf32> to vector<288x8xf32>
    %88 = arith.addf %86, %87 : vector<288x8xf32>
    %c0_53 = arith.constant 0 : index
    %c0_54 = arith.constant 0 : index
    %c0_55 = arith.constant 0 : index
    %89 = vector.load %arg4[%c0_53, %c0_54, %c0_55] : memref<1x288x1xf32, #tpu.memory_space<vmem>>, vector<1x288x1xf32>
    %90 = vector.shape_cast %89 : vector<1x288x1xf32> to vector<288x1xf32>
    %91 = vector.broadcast %90 : vector<288x1xf32> to vector<288x8xf32>
    %92 = arith.addf %88, %91 : vector<288x8xf32>
    %cst_56 = arith.constant 0.000000e+00 : f32
    %93 = vector.broadcast %cst_56 : f32 to vector<288x8xf32>
    %94 = arith.cmpf oge, %92, %93 : vector<288x8xf32>
    %cst_57 = arith.constant 2.000000e-01 : f32
    %95 = vector.broadcast %cst_57 : f32 to vector<288x8xf32>
    %96 = arith.mulf %95, %92 : vector<288x8xf32>
    %97 = arith.select %94, %92, %96 : vector<288x8xi1>, vector<288x8xf32>
    %98 = vector.shape_cast %97 : vector<288x8xf32> to vector<16x18x8xf32>
    %99 = tpu.iota {dimensions = array<i32: 1>} : vector<16x18x1xi32>
    %c16_i32 = arith.constant 16 : i32
    %100 = vector.broadcast %c16_i32 : i32 to vector<16x18x1xi32>
    %101 = arith.cmpi slt, %99, %100 : vector<16x18x1xi32>
    %cst_58 = arith.constant 0.000000e+00 : f32
    %102 = vector.shape_cast %101 : vector<16x18x1xi1> to vector<16x18x1xi1>
    %103 = vector.broadcast %102 : vector<16x18x1xi1> to vector<16x18x8xi1>
    %104 = vector.broadcast %cst_58 : f32 to vector<16x18x8xf32>
    %105 = arith.select %103, %98, %104 : vector<16x18x8xi1>, vector<16x18x8xf32>
    %106 = vector.shape_cast %105 : vector<16x18x8xf32> to vector<288x8xf32>
    %107 = arith.truncf %106 : vector<288x8xf32> to vector<288x8xbf16>
    %c32 = arith.constant 32 : index
    %c0_59 = arith.constant 0 : index
    %108 = vector.load %arg12[%c32, %c0_59] : memref<352x8xbf16, #tpu.memory_space<vmem>>, vector<288x8xbf16>
    tpu.vector_store %arg12[%c32, %c0_59], %107 {strides = array<i32>} : memref<352x8xbf16, #tpu.memory_space<vmem>>, vector<288x8xbf16>,
    %cst_60 = arith.constant 0.000000e+00 : f32
    %109 = vector.broadcast %cst_60 : f32 to vector<288x8xf32>
    %c13 = arith.constant 13 : index
    %c0_61 = arith.constant 0 : index
    %110 = vector.load %arg12[%c13, %c0_61] : memref<352x8xbf16, #tpu.memory_space<vmem>>, vector<288x8xbf16>
    %111 = vector.extract_strided_slice %33 {offsets = [0, 0], sizes = [8, 8], strides = [1, 1]} : vector<72x8xbf16> to vector<8x8xbf16>
    %cst_62 = arith.constant dense<0.000000e+00> : vector<288x8xf32>
    %112 = tpu.matmul %110, %111, %cst_62 {dimension_numbers = #tpu.dot_dimension_numbers<[1], [0], [0], [1], [0, 0, 1, 1], [], []>} : vector<288x8xbf16>, vector<8x8xbf16>, vector<288x8xf32> -> vector<288x8xf32>
    %113 = arith.addf %109, %112 : vector<288x8xf32>
    %c14 = arith.constant 14 : index
    %c0_63 = arith.constant 0 : index
    %114 = vector.load %arg12[%c14, %c0_63] : memref<352x8xbf16, #tpu.memory_space<vmem>>, vector<288x8xbf16>
    %115 = vector.extract_strided_slice %33 {offsets = [8, 0], sizes = [8, 8], strides = [1, 1]} : vector<72x8xbf16> to vector<8x8xbf16>
    %cst_64 = arith.constant dense<0.000000e+00> : vector<288x8xf32>
    %116 = tpu.matmul %114, %115, %cst_64 {dimension_numbers = #tpu.dot_dimension_numbers<[1], [0], [0], [1], [0, 0, 1, 1], [], []>} : vector<288x8xbf16>, vector<8x8xbf16>, vector<288x8xf32> -> vector<288x8xf32>
    %117 = arith.addf %113, %116 : vector<288x8xf32>
    %c15 = arith.constant 15 : index
    %c0_65 = arith.constant 0 : index
    %118 = vector.load %arg12[%c15, %c0_65] : memref<352x8xbf16, #tpu.memory_space<vmem>>, vector<288x8xbf16>
    %119 = vector.extract_strided_slice %33 {offsets = [16, 0], sizes = [8, 8], strides = [1, 1]} : vector<72x8xbf16> to vector<8x8xbf16>
    %cst_66 = arith.constant dense<0.000000e+00> : vector<288x8xf32>
    %120 = tpu.matmul %118, %119, %cst_66 {dimension_numbers = #tpu.dot_dimension_numbers<[1], [0], [0], [1], [0, 0, 1, 1], [], []>} : vector<288x8xbf16>, vector<8x8xbf16>, vector<288x8xf32> -> vector<288x8xf32>
    %121 = arith.addf %117, %120 : vector<288x8xf32>
    %c31 = arith.constant 31 : index
    %c0_67 = arith.constant 0 : index
    %122 = vector.load %arg12[%c31, %c0_67] : memref<352x8xbf16, #tpu.memory_space<vmem>>, vector<288x8xbf16>
    %123 = vector.extract_strided_slice %33 {offsets = [24, 0], sizes = [8, 8], strides = [1, 1]} : vector<72x8xbf16> to vector<8x8xbf16>
    %cst_68 = arith.constant dense<0.000000e+00> : vector<288x8xf32>
    %124 = tpu.matmul %122, %123, %cst_68 {dimension_numbers = #tpu.dot_dimension_numbers<[1], [0], [0], [1], [0, 0, 1, 1], [], []>} : vector<288x8xbf16>, vector<8x8xbf16>, vector<288x8xf32> -> vector<288x8xf32>
    %125 = arith.addf %121, %124 : vector<288x8xf32>
    %c32_69 = arith.constant 32 : index
    %c0_70 = arith.constant 0 : index
    %126 = vector.load %arg12[%c32_69, %c0_70] : memref<352x8xbf16, #tpu.memory_space<vmem>>, vector<288x8xbf16>
    %127 = vector.extract_strided_slice %33 {offsets = [32, 0], sizes = [8, 8], strides = [1, 1]} : vector<72x8xbf16> to vector<8x8xbf16>
    %cst_71 = arith.constant dense<0.000000e+00> : vector<288x8xf32>
    %128 = tpu.matmul %126, %127, %cst_71 {dimension_numbers = #tpu.dot_dimension_numbers<[1], [0], [0], [1], [0, 0, 1, 1], [], []>} : vector<288x8xbf16>, vector<8x8xbf16>, vector<288x8xf32> -> vector<288x8xf32>
    %129 = arith.addf %125, %128 : vector<288x8xf32>
    %c33 = arith.constant 33 : index
    %c0_72 = arith.constant 0 : index
    %130 = vector.load %arg12[%c33, %c0_72] : memref<352x8xbf16, #tpu.memory_space<vmem>>, vector<288x8xbf16>
    %131 = vector.extract_strided_slice %33 {offsets = [40, 0], sizes = [8, 8], strides = [1, 1]} : vector<72x8xbf16> to vector<8x8xbf16>
    %cst_73 = arith.constant dense<0.000000e+00> : vector<288x8xf32>
    %132 = tpu.matmul %130, %131, %cst_73 {dimension_numbers = #tpu.dot_dimension_numbers<[1], [0], [0], [1], [0, 0, 1, 1], [], []>} : vector<288x8xbf16>, vector<8x8xbf16>, vector<288x8xf32> -> vector<288x8xf32>
    %133 = arith.addf %129, %132 : vector<288x8xf32>
    %c49 = arith.constant 49 : index
    %c0_74 = arith.constant 0 : index
    %134 = vector.load %arg12[%c49, %c0_74] : memref<352x8xbf16, #tpu.memory_space<vmem>>, vector<288x8xbf16>
    %135 = vector.extract_strided_slice %33 {offsets = [48, 0], sizes = [8, 8], strides = [1, 1]} : vector<72x8xbf16> to vector<8x8xbf16>
    %cst_75 = arith.constant dense<0.000000e+00> : vector<288x8xf32>
    %136 = tpu.matmul %134, %135, %cst_75 {dimension_numbers = #tpu.dot_dimension_numbers<[1], [0], [0], [1], [0, 0, 1, 1], [], []>} : vector<288x8xbf16>, vector<8x8xbf16>, vector<288x8xf32> -> vector<288x8xf32>
    %137 = arith.addf %133, %136 : vector<288x8xf32>
    %c50 = arith.constant 50 : index
    %c0_76 = arith.constant 0 : index
    %138 = vector.load %arg12[%c50, %c0_76] : memref<352x8xbf16, #tpu.memory_space<vmem>>, vector<288x8xbf16>
    %139 = vector.extract_strided_slice %33 {offsets = [56, 0], sizes = [8, 8], strides = [1, 1]} : vector<72x8xbf16> to vector<8x8xbf16>
    %cst_77 = arith.constant dense<0.000000e+00> : vector<288x8xf32>
    %140 = tpu.matmul %138, %139, %cst_77 {dimension_numbers = #tpu.dot_dimension_numbers<[1], [0], [0], [1], [0, 0, 1, 1], [], []>} : vector<288x8xbf16>, vector<8x8xbf16>, vector<288x8xf32> -> vector<288x8xf32>
    %141 = arith.addf %137, %140 : vector<288x8xf32>
    %c51 = arith.constant 51 : index
    %c0_78 = arith.constant 0 : index
    %142 = vector.load %arg12[%c51, %c0_78] : memref<352x8xbf16, #tpu.memory_space<vmem>>, vector<288x8xbf16>
    %143 = vector.extract_strided_slice %33 {offsets = [64, 0], sizes = [8, 8], strides = [1, 1]} : vector<72x8xbf16> to vector<8x8xbf16>
    %cst_79 = arith.constant dense<0.000000e+00> : vector<288x8xf32>
    %144 = tpu.matmul %142, %143, %cst_79 {dimension_numbers = #tpu.dot_dimension_numbers<[1], [0], [0], [1], [0, 0, 1, 1], [], []>} : vector<288x8xbf16>, vector<8x8xbf16>, vector<288x8xf32> -> vector<288x8xf32>
    %145 = arith.addf %141, %144 : vector<288x8xf32>
    %146 = vector.broadcast %35 : vector<1x8xf32> to vector<288x8xf32>
    %147 = arith.addf %145, %146 : vector<288x8xf32>
    %c0_80 = arith.constant 0 : index
    %c0_81 = arith.constant 0 : index
    %c0_82 = arith.constant 0 : index
    %148 = vector.load %arg5[%c0_80, %c0_81, %c0_82] : memref<1x288x1xf32, #tpu.memory_space<vmem>>, vector<1x288x1xf32>
    %149 = vector.shape_cast %148 : vector<1x288x1xf32> to vector<288x1xf32>
    %150 = vector.broadcast %149 : vector<288x1xf32> to vector<288x8xf32>
    %151 = arith.addf %147, %150 : vector<288x8xf32>
    %cst_83 = arith.constant 0.000000e+00 : f32
    %152 = vector.broadcast %cst_83 : f32 to vector<288x8xf32>
    %153 = arith.cmpf oge, %151, %152 : vector<288x8xf32>
    %cst_84 = arith.constant 2.000000e-01 : f32
    %154 = vector.broadcast %cst_84 : f32 to vector<288x8xf32>
    %155 = arith.mulf %154, %151 : vector<288x8xf32>
    %156 = arith.select %153, %151, %155 : vector<288x8xi1>, vector<288x8xf32>
    %c0_85 = arith.constant 0 : index
    %c19_86 = arith.constant 19 : index
    %c0_87 = arith.constant 0 : index
    %157 = vector.load %arg1[%c0_85, %c19_86, %c0_87] : memref<1x328x4xbf16, #tpu.memory_space<vmem>>, vector<1x288x4xbf16>
    %158 = vector.shape_cast %157 : vector<1x288x4xbf16> to vector<288x4xbf16>
    %cst_88 = arith.constant dense<0.000000e+00> : vector<288x8xf32>
    %159 = tpu.matmul %158, %36, %cst_88 {dimension_numbers = #tpu.dot_dimension_numbers<[1], [0], [0], [1], [0, 0, 1, 1], [], []>} : vector<288x4xbf16>, vector<4x8xbf16>, vector<288x8xf32> -> vector<288x8xf32>
    %160 = arith.addf %159, %156 : vector<288x8xf32>
    %161 = vector.shape_cast %160 : vector<288x8xf32> to vector<16x18x8xf32>
    %162 = vector.extract_strided_slice %161 {offsets = [0, 0, 0], sizes = [16, 16, 8], strides = [1, 1, 1]} : vector<16x18x8xf32> to vector<16x16x8xf32>
    %c0_89 = arith.constant 0 : index
    %c0_90 = arith.constant 0 : index
    %c0_91 = arith.constant 0 : index
    %c0_92 = arith.constant 0 : index
    %163 = vector.load %arg11[%c0_89, %c0_90, %c0_91, %c0_92] : memref<1x16x16x8xf32, #tpu.memory_space<vmem>>, vector<1x16x16x8xf32>
    %164 = vector.shape_cast %163 : vector<1x16x16x8xf32> to vector<16x16x8xf32>
    %165 = vector.shape_cast %162 : vector<16x16x8xf32> to vector<1x16x16x8xf32>
    tpu.vector_store %arg11[%c0_89, %c0_90, %c0_91, %c0_92], %165 {strides = array<i32>} : memref<1x16x16x8xf32, #tpu.memory_space<vmem>>, vector<1x16x16x8xf32>,
    return
  }
  func.func @transform_0(%arg0: i32) -> (i32, i32, i32) {
    %c0_i32 = arith.constant 0 : i32
    %c0_i32_0 = arith.constant 0 : i32
    %c0_i32_1 = arith.constant 0 : i32
    return %arg0, %c0_i32, %c0_i32_0 : i32, i32, i32
  }
  func.func @transform_1(%arg0: i32) -> (i32, i32, i32) {
    %c0_i32 = arith.constant 0 : i32
    %c0_i32_0 = arith.constant 0 : i32
    %c0_i32_1 = arith.constant 0 : i32
    return %arg0, %c0_i32, %c0_i32_0 : i32, i32, i32
  }
  func.func @transform_2(%arg0: i32) -> (i32, i32, i32) {
    %c0_i32 = arith.constant 0 : i32
    %c0_i32_0 = arith.constant 0 : i32
    %c0_i32_1 = arith.constant 0 : i32
    return %arg0, %c0_i32, %c0_i32_0 : i32, i32, i32
  }
  func.func @transform_3(%arg0: i32) -> (i32, i32, i32) {
    %c0_i32 = arith.constant 0 : i32
    %c0_i32_0 = arith.constant 0 : i32
    %c0_i32_1 = arith.constant 0 : i32
    return %arg0, %c0_i32, %c0_i32_0 : i32, i32, i32
  }
  func.func @transform_4(%arg0: i32) -> (i32, i32, i32) {
    %c0_i32 = arith.constant 0 : i32
    %c0_i32_0 = arith.constant 0 : i32
    %c0_i32_1 = arith.constant 0 : i32
    return %arg0, %c0_i32, %c0_i32_0 : i32, i32, i32
  }
  func.func @transform_5(%arg0: i32) -> (i32, i32) {
    %c0_i32 = arith.constant 0 : i32
    %c0_i32_0 = arith.constant 0 : i32
    %c0_i32_1 = arith.constant 0 : i32
    return %c0_i32, %c0_i32_0 : i32, i32
  }
  func.func @transform_6(%arg0: i32) -> (i32, i32) {
    %c0_i32 = arith.constant 0 : i32
    %c0_i32_0 = arith.constant 0 : i32
    %c0_i32_1 = arith.constant 0 : i32
    return %c0_i32, %c0_i32_0 : i32, i32
  }
  func.func @transform_7(%arg0: i32) -> (i32, i32) {
    %c0_i32 = arith.constant 0 : i32
    %c0_i32_0 = arith.constant 0 : i32
    %c0_i32_1 = arith.constant 0 : i32
    return %c0_i32, %c0_i32_0 : i32, i32
  }
  func.func @transform_8(%arg0: i32) -> (i32, i32) {
    %c0_i32 = arith.constant 0 : i32
    %c0_i32_0 = arith.constant 0 : i32
    %c0_i32_1 = arith.constant 0 : i32
    return %c0_i32, %c0_i32_0 : i32, i32
  }
  func.func @transform_9(%arg0: i32) -> (i32, i32) {
    %c0_i32 = arith.constant 0 : i32
    %c0_i32_0 = arith.constant 0 : i32
    %c0_i32_1 = arith.constant 0 : i32
    return %c0_i32, %c0_i32_0 : i32, i32
  }
  func.func @transform_10(%arg0: i32) -> (i32, i32, i32, i32) {
    %c0_i32 = arith.constant 0 : i32
    %c0_i32_0 = arith.constant 0 : i32
    %c0_i32_1 = arith.constant 0 : i32
    %c0_i32_2 = arith.constant 0 : i32
    return %arg0, %c0_i32, %c0_i32_0, %c0_i32_1 : i32, i32, i32, i32
  }
}

</mosaic_0001>

<llo_original>
// kernel: resnet_block_forward.1
$region0: #{resnet_block_forward.1}
  #allocation0 [shape = 'u32[]', space=smem, size = 0x4, offset = 0x4, fixed_abs, tag = 'smem constant byte address 0x4 - core index']
  #allocation1 [shape = 'u32[72,128]{1,0:T(1,128)}', space=vmem, size = 0x9000, scoped, tag = 'internal scratch']
  #allocation2 [shape = 'bf16[352,8]{1,0:T(8,128)(2,1)}', space=vmem, size = 0x16000, scoped, tag = 'scratch operand']
  %s0 = inlined_call_operand.vmem [shape: bf16[2,328,4], index: 0, kind: input, shape index: {}]
  %s1 = inlined_call_operand.vmem [shape: f32[2,4,1], index: 1, kind: input, shape index: {}]
  %s2 = inlined_call_operand.vmem [shape: f32[2,8,1], index: 2, kind: input, shape index: {}]
  %s3 = inlined_call_operand.vmem [shape: f32[2,288,1], index: 3, kind: input, shape index: {}]
  %s4 = inlined_call_operand.vmem [shape: f32[2,288,1], index: 4, kind: input, shape index: {}]
  %s5 = inlined_call_operand.vmem [shape: bf16[36,8], index: 5, kind: input, shape index: {}]
  %s6 = inlined_call_operand.vmem [shape: bf16[72,8], index: 6, kind: input, shape index: {}]
  %s7 = inlined_call_operand.vmem [shape: f32[1,8], index: 7, kind: input, shape index: {}]
  %s8 = inlined_call_operand.vmem [shape: f32[1,8], index: 8, kind: input, shape index: {}]
  %s9 = inlined_call_operand.vmem [shape: bf16[4,8], index: 9, kind: input, shape index: {}]
  %s10 = inlined_call_operand.vmem [shape: f32[2,16,16,8], index: 10, kind: output, shape index: {}]
  %s11 = sld [smem:[#allocation0]]
  $region73: #{resnet_block_forward.1} parent=0
    _
  %s13 = ssub.s32 1, %s11
  %s14 = scalar_select 0, %s13, %s11
  loop: start=0, step=1, limit=4
  $region2: #{resnet_block_forward.1} parent=0 // loop_pre_header
    _
  $region3: #{resnet_block_forward.1} parent=0 // loop_header
    %s16 = sphi 0, %s20
    %p17 = scmp.ge.s32.totalorder %s16, 4
    %s26 = sphi 0, %s28
    %s29 = sphi 0, %s26
    %s30 = sphi 0, %s29
    %s46 = sphi 0, %s30
    %s52 = sphi 0, %s54
    %s55 = sphi 0, %s52
    %s56 = sphi 0, %s55
    %s72 = sphi 0, %s56
    %s78 = sphi 0, %s80
    %s81 = sphi 0, %s78
    %s82 = sphi 0, %s81
    %s98 = sphi 0, %s82
    %s104 = sphi 0, %s106
    %s107 = sphi 0, %s104
    %s108 = sphi 0, %s107
    %s124 = sphi 0, %s108
    %s130 = sphi 0, %s132
    %s133 = sphi 0, %s130
    %s134 = sphi 0, %s133
    %s150 = sphi 0, %s134
    %s154 = sphi 0, %s154
    %s156 = sphi 0, %s154
    %s157 = sphi 0, %s156
    %s171 = sphi 0, %s157
    %s175 = sphi 0, %s175
    %s177 = sphi 0, %s175
    %s178 = sphi 0, %s177
    %s192 = sphi 0, %s178
    %s196 = sphi 0, %s196
    %s198 = sphi 0, %s196
    %s199 = sphi 0, %s198
    %s213 = sphi 0, %s199
    %s217 = sphi 0, %s217
    %s219 = sphi 0, %s217
    %s220 = sphi 0, %s219
    %s234 = sphi 0, %s220
    %s238 = sphi 0, %s238
    %s240 = sphi 0, %s238
    %s241 = sphi 0, %s240
    %s255 = sphi 0, %s241
    %s261 = sphi 0, %s263
    %s264 = sphi 0, %s261
    %s265 = sphi 0, %s264
    %s281 = sphi 0, %s265
  $region4: #{resnet_block_forward.1} parent=0 // loop_header_branch
    %19 = sbr.rel (%p17) target = $region8
  $region5: #{resnet_block_forward.1} parent=0 // loop_body
    %s21 = ssub.s32 %s16, 1
    %s22 = ssub.s32 %s16, 2
    %s23 = sadd.s32 %s16, 1
    %s24 = ssub.s32 %s16, %s23
    %p25 = scmp.eq.s32.totalorder %s24, 0
    %s27 = sadd.s32 %s26, 1
    %s28 = scalar_select %p25, %s26, %s27
    %p31 = pneg %p25
    %p32 = scmp.eq.s32.totalorder %s16, 1
    %p33 = por %p31, %p32
    %p34 = scmp.ne.s32.totalorder %s26, %s29
    %p35 = scmp.eq.s32.totalorder %s16, 0
    %p36 = por %p34, %p35
    %p37 = scmp.ne.s32.totalorder %s26, %s29
    %p38 = scmp.eq.s32.totalorder %s21, 1
    %p39 = por %p37, %p38
    %p40 = scmp.ne.s32.totalorder %s29, %s30
    %p41 = scmp.eq.s32.totalorder %s21, 0
    %p42 = por %p40, %p41
    %p43 = scmp.ne.s32.totalorder %s29, %s30
    %p44 = scmp.eq.s32.totalorder %s22, 1
    %p45 = por %p43, %p44
    %p47 = scmp.ne.s32.totalorder %s30, %s46
    %p48 = scmp.eq.s32.totalorder %s22, 0
    %p49 = por %p47, %p48
    %s50 = ssub.s32 %s16, %s23
    %p51 = scmp.eq.s32.totalorder %s50, 0
    %s53 = sadd.s32 %s52, 1
    %s54 = scalar_select %p51, %s52, %s53
    %p57 = pneg %p51
    %p58 = scmp.eq.s32.totalorder %s16, 1
    %p59 = por %p57, %p58
    %p60 = scmp.ne.s32.totalorder %s52, %s55
    %p61 = scmp.eq.s32.totalorder %s16, 0
    %p62 = por %p60, %p61
    %p63 = scmp.ne.s32.totalorder %s52, %s55
    %p64 = scmp.eq.s32.totalorder %s21, 1
    %p65 = por %p63, %p64
    %p66 = scmp.ne.s32.totalorder %s55, %s56
    %p67 = scmp.eq.s32.totalorder %s21, 0
    %p68 = por %p66, %p67
    %p69 = scmp.ne.s32.totalorder %s55, %s56
    %p70 = scmp.eq.s32.totalorder %s22, 1
    %p71 = por %p69, %p70
    %p73 = scmp.ne.s32.totalorder %s56, %s72
    %p74 = scmp.eq.s32.totalorder %s22, 0
    %p75 = por %p73, %p74
    %s76 = ssub.s32 %s16, %s23
    %p77 = scmp.eq.s32.totalorder %s76, 0
    %s79 = sadd.s32 %s78, 1
    %s80 = scalar_select %p77, %s78, %s79
    %p83 = pneg %p77
    %p84 = scmp.eq.s32.totalorder %s16, 1
    %p85 = por %p83, %p84
    %p86 = scmp.ne.s32.totalorder %s78, %s81
    %p87 = scmp.eq.s32.totalorder %s16, 0
    %p88 = por %p86, %p87
    %p89 = scmp.ne.s32.totalorder %s78, %s81
    %p90 = scmp.eq.s32.totalorder %s21, 1
    %p91 = por %p89, %p90
    %p92 = scmp.ne.s32.totalorder %s81, %s82
    %p93 = scmp.eq.s32.totalorder %s21, 0
    %p94 = por %p92, %p93
    %p95 = scmp.ne.s32.totalorder %s81, %s82
    %p96 = scmp.eq.s32.totalorder %s22, 1
    %p97 = por %p95, %p96
    %p99 = scmp.ne.s32.totalorder %s82, %s98
    %p100 = scmp.eq.s32.totalorder %s22, 0
    %p101 = por %p99, %p100
    %s102 = ssub.s32 %s16, %s23
    %p103 = scmp.eq.s32.totalorder %s102, 0
    %s105 = sadd.s32 %s104, 1
    %s106 = scalar_select %p103, %s104, %s105
    %p109 = pneg %p103
    %p110 = scmp.eq.s32.totalorder %s16, 1
    %p111 = por %p109, %p110
    %p112 = scmp.ne.s32.totalorder %s104, %s107
    %p113 = scmp.eq.s32.totalorder %s16, 0
    %p114 = por %p112, %p113
    %p115 = scmp.ne.s32.totalorder %s104, %s107
    %p116 = scmp.eq.s32.totalorder %s21, 1
    %p117 = por %p115, %p116
    %p118 = scmp.ne.s32.totalorder %s107, %s108
    %p119 = scmp.eq.s32.totalorder %s21, 0
    %p120 = por %p118, %p119
    %p121 = scmp.ne.s32.totalorder %s107, %s108
    %p122 = scmp.eq.s32.totalorder %s22, 1
    %p123 = por %p121, %p122
    %p125 = scmp.ne.s32.totalorder %s108, %s124
    %p126 = scmp.eq.s32.totalorder %s22, 0
    %p127 = por %p125, %p126
    %s128 = ssub.s32 %s16, %s23
    %p129 = scmp.eq.s32.totalorder %s128, 0
    %s131 = sadd.s32 %s130, 1
    %s132 = scalar_select %p129, %s130, %s131
    %p135 = pneg %p129
    %p136 = scmp.eq.s32.totalorder %s16, 1
    %p137 = por %p135, %p136
    %p138 = scmp.ne.s32.totalorder %s130, %s133
    %p139 = scmp.eq.s32.totalorder %s16, 0
    %p140 = por %p138, %p139
    %p141 = scmp.ne.s32.totalorder %s130, %s133
    %p142 = scmp.eq.s32.totalorder %s21, 1
    %p143 = por %p141, %p142
    %p144 = scmp.ne.s32.totalorder %s133, %s134
    %p145 = scmp.eq.s32.totalorder %s21, 0
    %p146 = por %p144, %p145
    %p147 = scmp.ne.s32.totalorder %s133, %s134
    %p148 = scmp.eq.s32.totalorder %s22, 1
    %p149 = por %p147, %p148
    %p151 = scmp.ne.s32.totalorder %s134, %s150
    %p152 = scmp.eq.s32.totalorder %s22, 0
    %p153 = por %p151, %p152
    %s155 = sadd.s32 %s154, 1
    %p158 = scmp.eq.s32.totalorder %s16, 1
    %p159 = scmp.ne.s32.totalorder %s154, %s156
    %p160 = scmp.eq.s32.totalorder %s16, 0
    %p161 = por %p159, %p160
    %p162 = scmp.ne.s32.totalorder %s154, %s156
    %p163 = scmp.eq.s32.totalorder %s21, 1
    %p164 = por %p162, %p163
    %p165 = scmp.ne.s32.totalorder %s156, %s157
    %p166 = scmp.eq.s32.totalorder %s21, 0
    %p167 = por %p165, %p166
    %p168 = scmp.ne.s32.totalorder %s156, %s157
    %p169 = scmp.eq.s32.totalorder %s22, 1
    %p170 = por %p168, %p169
    %p172 = scmp.ne.s32.totalorder %s157, %s171
    %p173 = scmp.eq.s32.totalorder %s22, 0
    %p174 = por %p172, %p173
    %s176 = sadd.s32 %s175, 1
    %p179 = scmp.eq.s32.totalorder %s16, 1
    %p180 = scmp.ne.s32.totalorder %s175, %s177
    %p181 = scmp.eq.s32.totalorder %s16, 0
    %p182 = por %p180, %p181
    %p183 = scmp.ne.s32.totalorder %s175, %s177
    %p184 = scmp.eq.s32.totalorder %s21, 1
    %p185 = por %p183, %p184
    %p186 = scmp.ne.s32.totalorder %s177, %s178
    %p187 = scmp.eq.s32.totalorder %s21, 0
    %p188 = por %p186, %p187
    %p189 = scmp.ne.s32.totalorder %s177, %s178
    %p190 = scmp.eq.s32.totalorder %s22, 1
    %p191 = por %p189, %p190
    %p193 = scmp.ne.s32.totalorder %s178, %s192
    %p194 = scmp.eq.s32.totalorder %s22, 0
    %p195 = por %p193, %p194
    %s197 = sadd.s32 %s196, 1
    %p200 = scmp.eq.s32.totalorder %s16, 1
    %p201 = scmp.ne.s32.totalorder %s196, %s198
    %p202 = scmp.eq.s32.totalorder %s16, 0
    %p203 = por %p201, %p202
    %p204 = scmp.ne.s32.totalorder %s196, %s198
    %p205 = scmp.eq.s32.totalorder %s21, 1
    %p206 = por %p204, %p205
    %p207 = scmp.ne.s32.totalorder %s198, %s199
    %p208 = scmp.eq.s32.totalorder %s21, 0
    %p209 = por %p207, %p208
    %p210 = scmp.ne.s32.totalorder %s198, %s199
    %p211 = scmp.eq.s32.totalorder %s22, 1
    %p212 = por %p210, %p211
    %p214 = scmp.ne.s32.totalorder %s199, %s213
    %p215 = scmp.eq.s32.totalorder %s22, 0
    %p216 = por %p214, %p215
    %s218 = sadd.s32 %s217, 1
    %p221 = scmp.eq.s32.totalorder %s16, 1
    %p222 = scmp.ne.s32.totalorder %s217, %s219
    %p223 = scmp.eq.s32.totalorder %s16, 0
    %p224 = por %p222, %p223
    %p225 = scmp.ne.s32.totalorder %s217, %s219
    %p226 = scmp.eq.s32.totalorder %s21, 1
    %p227 = por %p225, %p226
    %p228 = scmp.ne.s32.totalorder %s219, %s220
    %p229 = scmp.eq.s32.totalorder %s21, 0
    %p230 = por %p228, %p229
    %p231 = scmp.ne.s32.totalorder %s219, %s220
    %p232 = scmp.eq.s32.totalorder %s22, 1
    %p233 = por %p231, %p232
    %p235 = scmp.ne.s32.totalorder %s220, %s234
    %p236 = scmp.eq.s32.totalorder %s22, 0
    %p237 = por %p235, %p236
    %s239 = sadd.s32 %s238, 1
    %p242 = scmp.eq.s32.totalorder %s16, 1
    %p243 = scmp.ne.s32.totalorder %s238, %s240
    %p244 = scmp.eq.s32.totalorder %s16, 0
    %p245 = por %p243, %p244
    %p246 = scmp.ne.s32.totalorder %s238, %s240
    %p247 = scmp.eq.s32.totalorder %s21, 1
    %p248 = por %p246, %p247
    %p249 = scmp.ne.s32.totalorder %s240, %s241
    %p250 = scmp.eq.s32.totalorder %s21, 0
    %p251 = por %p249, %p250
    %p252 = scmp.ne.s32.totalorder %s240, %s241
    %p253 = scmp.eq.s32.totalorder %s22, 1
    %p254 = por %p252, %p253
    %p256 = scmp.ne.s32.totalorder %s241, %s255
    %p257 = scmp.eq.s32.totalorder %s22, 0
    %p258 = por %p256, %p257
    %s259 = ssub.s32 %s16, %s23
    %p260 = scmp.eq.s32.totalorder %s259, 0
    %s262 = sadd.s32 %s261, 1
    %s263 = scalar_select %p260, %s261, %s262
    %p266 = pneg %p260
    %p267 = scmp.eq.s32.totalorder %s16, 1
    %p268 = por %p266, %p267
    %p269 = scmp.ne.s32.totalorder %s261, %s264
    %p270 = scmp.eq.s32.totalorder %s16, 0
    %p271 = por %p269, %p270
    %p272 = scmp.ne.s32.totalorder %s261, %s264
    %p273 = scmp.eq.s32.totalorder %s21, 1
    %p274 = por %p272, %p273
    %p275 = scmp.ne.s32.totalorder %s264, %s265
    %p276 = scmp.eq.s32.totalorder %s21, 0
    %p277 = por %p275, %p276
    %p278 = scmp.ne.s32.totalorder %s264, %s265
    %p279 = scmp.eq.s32.totalorder %s22, 1
    %p280 = por %p278, %p279
    %p282 = scmp.ne.s32.totalorder %s265, %s281
    %p283 = scmp.eq.s32.totalorder %s22, 0
    %p284 = por %p282, %p283
    %p285 = scmp.le.s32.totalorder 1, %s16
    %p286 = scmp.lt.s32.totalorder %s16, 3
    %p287 = pnand %p285, %p286
    %p288 = pneg %p287
    // Predicated region
    $region9: #{resnet_block_forward.1} parent=5 // pred_check
      _
    $region10: #{resnet_block_forward.1} parent=5 // pred_check_branch
      %290 = sbr.rel (%p287) target = $region12
    $region11: #{resnet_block_forward.1} parent=5 // pred_region
      %s291 = ssub.s32 %s16, 1
      // Predicated region
      $region13: #{resnet_block_forward.1} parent=11 // pred_check
        %p292 = pneg %p167
      $region14: #{resnet_block_forward.1} parent=11 // pred_check_branch
        %294 = sbr.rel (%p292) target = $region16
      $region15: #{resnet_block_forward.1} parent=11 // pred_region
        _
      $region16: #{resnet_block_forward.1} parent=11 // pred_fallthru
        _
      // Predicated region
      $region17: #{resnet_block_forward.1} parent=11 // pred_check
        %p295 = pneg %p188
      $region18: #{resnet_block_forward.1} parent=11 // pred_check_branch
        %297 = sbr.rel (%p295) target = $region20
      $region19: #{resnet_block_forward.1} parent=11 // pred_region
        _
      $region20: #{resnet_block_forward.1} parent=11 // pred_fallthru
        _
      // Predicated region
      $region21: #{resnet_block_forward.1} parent=11 // pred_check
        %p298 = pneg %p209
      $region22: #{resnet_block_forward.1} parent=11 // pred_check_branch
        %300 = sbr.rel (%p298) target = $region24
      $region23: #{resnet_block_forward.1} parent=11 // pred_region
        _
      $region24: #{resnet_block_forward.1} parent=11 // pred_fallthru
        _
      // Predicated region
      $region25: #{resnet_block_forward.1} parent=11 // pred_check
        %p301 = pneg %p230
      $region26: #{resnet_block_forward.1} parent=11 // pred_check_branch
        %303 = sbr.rel (%p301) target = $region28
      $region27: #{resnet_block_forward.1} parent=11 // pred_region
        _
      $region28: #{resnet_block_forward.1} parent=11 // pred_fallthru
        _
      // Predicated region
      $region29: #{resnet_block_forward.1} parent=11 // pred_check
        %p304 = pneg %p251
      $region30: #{resnet_block_forward.1} parent=11 // pred_check_branch
        %306 = sbr.rel (%p304) target = $region32
      $region31: #{resnet_block_forward.1} parent=11 // pred_region
        _
      $region32: #{resnet_block_forward.1} parent=11 // pred_fallthru
        _
    $region12: #{resnet_block_forward.1} parent=5 // pred_fallthru
      _
    %p307 = scmp.lt.s32.totalorder %s16, 2
    // Predicated region
    $region33: #{resnet_block_forward.1} parent=5 // pred_check
      %p308 = pneg %p307
    $region34: #{resnet_block_forward.1} parent=5 // pred_check_branch
      %310 = sbr.rel (%p308) target = $region36
    $region35: #{resnet_block_forward.1} parent=5 // pred_region
      // Predicated region
      $region37: #{resnet_block_forward.1} parent=35 // pred_check
        %p311 = pneg %p36
      $region38: #{resnet_block_forward.1} parent=35 // pred_check_branch
        %313 = sbr.rel (%p311) target = $region40
      $region39: #{resnet_block_forward.1} parent=35 // pred_region
        %p314 = scmp.lt.s32.totalorder %s16, 1
        %s315 = scalar_select %p314, %s16, 1
        %s316 = smul.addr %s315, 41
        %s317 = smul.addr %s316, 4
        %s318 = scalar_lea.vmem %s0, %s317
      $region40: #{resnet_block_forward.1} parent=35 // pred_fallthru
        _
      // Predicated region
      $region41: #{resnet_block_forward.1} parent=35 // pred_check
        %p319 = pneg %p62
      $region42: #{resnet_block_forward.1} parent=35 // pred_check_branch
        %321 = sbr.rel (%p319) target = $region44
      $region43: #{resnet_block_forward.1} parent=35 // pred_region
        %p322 = scmp.lt.s32.totalorder %s16, 1
        %s323 = scalar_select %p322, %s16, 1
        %s324 = smul.addr %s323, 4
        %s325 = scalar_lea.vmem %s1, %s324
      $region44: #{resnet_block_forward.1} parent=35 // pred_fallthru
        _
      // Predicated region
      $region45: #{resnet_block_forward.1} parent=35 // pred_check
        %p326 = pneg %p88
      $region46: #{resnet_block_forward.1} parent=35 // pred_check_branch
        %328 = sbr.rel (%p326) target = $region48
      $region47: #{resnet_block_forward.1} parent=35 // pred_region
        %p329 = scmp.lt.s32.totalorder %s16, 1
        %s330 = scalar_select %p329, %s16, 1
        %s331 = smul.addr %s330, 8
        %s332 = scalar_lea.vmem %s2, %s331
      $region48: #{resnet_block_forward.1} parent=35 // pred_fallthru
        _
      // Predicated region
      $region49: #{resnet_block_forward.1} parent=35 // pred_check
        %p333 = pneg %p114
      $region50: #{resnet_block_forward.1} parent=35 // pred_check_branch
        %335 = sbr.rel (%p333) target = $region52
      $region51: #{resnet_block_forward.1} parent=35 // pred_region
        %p336 = scmp.lt.s32.totalorder %s16, 1
        %s337 = scalar_select %p336, %s16, 1
        %s338 = smul.addr %s337, 36
        %s339 = smul.addr %s338, 8
        %s340 = scalar_lea.vmem %s3, %s339
      $region52: #{resnet_block_forward.1} parent=35 // pred_fallthru
        _
      // Predicated region
      $region53: #{resnet_block_forward.1} parent=35 // pred_check
        %p341 = pneg %p140
      $region54: #{resnet_block_forward.1} parent=35 // pred_check_branch
        %343 = sbr.rel (%p341) target = $region56
      $region55: #{resnet_block_forward.1} parent=35 // pred_region
        %p344 = scmp.lt.s32.totalorder %s16, 1
        %s345 = scalar_select %p344, %s16, 1
        %s346 = smul.addr %s345, 36
        %s347 = smul.addr %s346, 8
        %s348 = scalar_lea.vmem %s4, %s347
      $region56: #{resnet_block_forward.1} parent=35 // pred_fallthru
        _
    $region36: #{resnet_block_forward.1} parent=5 // pred_fallthru
      _
    %p349 = scmp.le.s32.totalorder 1, %s16
    %p350 = scmp.lt.s32.totalorder %s16, 3
    %p351 = pnand %p349, %p350
    %p352 = pneg %p351
    // Predicated region
    $region57: #{resnet_block_forward.1} parent=5 // pred_check
      _
    $region58: #{resnet_block_forward.1} parent=5 // pred_check_branch
      %354 = sbr.rel (%p351) target = $region60
    $region59: #{resnet_block_forward.1} parent=5 // pred_region
      %s355 = ssub.s32 %s16, 1
      %p356 = scmp.lt.s32.totalorder %s21, 1
      %s357 = scalar_select %p356, %s21, 1
      %s358 = smul.addr %s357, 41
      %s359 = smul.addr %s358, 4
      %s360 = scalar_lea.vmem %s0, %s359
      %p361 = pneg %p42
      %p362 = pneg %p39
      %p363 = scmp.lt.s32.totalorder %s21, 1
      %s364 = scalar_select %p363, %s21, 1
      %s365 = smul.addr %s364, 4
      %s366 = scalar_lea.vmem %s1, %s365
      %p367 = pneg %p68
      %p368 = pneg %p65
      %p369 = scmp.lt.s32.totalorder %s21, 1
      %s370 = scalar_select %p369, %s21, 1
      %s371 = smul.addr %s370, 8
      %s372 = scalar_lea.vmem %s2, %s371
      %p373 = pneg %p94
      %p374 = pneg %p91
      %p375 = scmp.lt.s32.totalorder %s21, 1
      %s376 = scalar_select %p375, %s21, 1
      %s377 = smul.addr %s376, 36
      %s378 = smul.addr %s377, 8
      %s379 = scalar_lea.vmem %s3, %s378
      %p380 = pneg %p120
      %p381 = pneg %p117
      %p382 = scmp.lt.s32.totalorder %s21, 1
      %s383 = scalar_select %p382, %s21, 1
      %s384 = smul.addr %s383, 36
      %s385 = smul.addr %s384, 8
      %s386 = scalar_lea.vmem %s4, %s385
      %p387 = pneg %p146
      %p388 = pneg %p143
      %p389 = pneg %p167
      %p390 = pneg %p164
      %p391 = pneg %p188
      %p392 = pneg %p185
      %p393 = pneg %p209
      %p394 = pneg %p206
      %p395 = pneg %p230
      %p396 = pneg %p227
      %p397 = pneg %p251
      %p398 = pneg %p248
      %p399 = pneg %p277
      %p400 = pneg %p274
      %p401 = scmp.lt.s32.totalorder %s21, 1
      %s402 = scalar_select %p401, %s21, 1
      %s403 = smul.addr %s402, 32
      %s404 = smul.addr %s403, 8
      %s405 = scalar_lea.vmem %s10, %s404
      %p406 = scmp.lt.s32.totalorder %s21, 1
      %s407 = scalar_select %p406, %s21, 1
      %s408 = smul.addr %s407, 41
      %s409 = smul.addr %s408, 4
      %s410 = scalar_lea.vmem %s0, %s409
      %p411 = scmp.lt.s32.totalorder %s21, 1
      %s412 = scalar_select %p411, %s21, 1
      %s413 = smul.addr %s412, 4
      %s414 = scalar_lea.vmem %s1, %s413
      %p415 = scmp.lt.s32.totalorder %s21, 1
      %s416 = scalar_select %p415, %s21, 1
      %s417 = smul.addr %s416, 8
      %s418 = scalar_lea.vmem %s2, %s417
      %p419 = scmp.lt.s32.totalorder %s21, 1
      %s420 = scalar_select %p419, %s21, 1
      %s421 = smul.addr %s420, 36
      %s422 = smul.addr %s421, 8
      %s423 = scalar_lea.vmem %s3, %s422
      %p424 = scmp.lt.s32.totalorder %s21, 1
      %s425 = scalar_select %p424, %s21, 1
      %s426 = smul.addr %s425, 36
      %s427 = smul.addr %s426, 8
      %s428 = scalar_lea.vmem %s4, %s427
      %p429 = scmp.lt.s32.totalorder %s21, 1
      %s430 = scalar_select %p429, %s21, 1
      %s431 = smul.addr %s430, 32
      %s432 = smul.addr %s431, 8
      %s433 = scalar_lea.vmem %s10, %s432
      %v435 = vld [vmem:[%s414] sm:$0xf]
      %v437 = vrot.slane %v435, 4
      %vm439 = vcmask 1043456
      %v440 = vsel %vm439, %v435, %v437
      %v441 = vld [vmem:[%s5] sm:$0xf]
      %v442 = vld [vmem:[%s5 + $0x4] sm:$0xf]
      %v443 = vld [vmem:[%s5 + $0x8] sm:$0xf]
      %v444 = vld [vmem:[%s5 + $0xc] sm:$0xf]
      %v445 = vld [vmem:[%s5 + $0x10] sm:$0x3]
      %v446 = vunpack.c.l.bf16 %v441
      %v447 = vunpack.c.l.bf16 %v442
      %v448 = vunpack.c.l.bf16 %v443
      %v449 = vunpack.c.l.bf16 %v444
      %v450 = vunpack.c.l.bf16 %v445
      %452 = vset.pattern.permute.xlu0 0
      %453 = vperm.xlu0 %452, %v440
      %v454 = vpop.permute.xlu0 %453
      %456 = vset.pattern.permute.xlu0 0
      %457 = vperm.xlu0 %456, %v435
      %v458 = vpop.permute.xlu0 %457
      %v460 = vmul.f32 %v446, %v454
      %v461 = vmul.f32 %v447, %v454
      %v462 = vmul.f32 %v448, %v454
      %v463 = vmul.f32 %v449, %v454
      %v464 = vmul.f32 %v450, %v458
      %v465 = vmul.f32 %v460, %v460
      %v466 = vmul.f32 %v461, %v461
      %v467 = vmul.f32 %v462, %v462
      %v468 = vmul.f32 %v463, %v463
      %v469 = vmul.f32 %v464, %v464
      %vm470 = vcmask 64512
      %v471 = vsel %vm470, %v465, 0.0
      %v472 = vsel %vm470, %v466, 0.0
      %v473 = vadd.f32 %v471, %v472
      %v474 = vsel %vm470, %v467, 0.0
      %v475 = vadd.f32 %v473, %v474
      %v476 = vsel %vm470, %v468, 0.0
      %v477 = vadd.f32 %v475, %v476
      %vm478 = vcmask 60416
      %v479 = vsel %vm478, %v469, 0.0
      %v480 = vadd.f32 %v477, %v479
      %v481 = vrot.slane %v480, 4
      %v482 = vadd.f32 %v480, %v481
      %v483 = vrot.slane %v482, 2
      %v484 = vadd.f32 %v482, %v483
      %v485 = vrot.slane %v484, 1
      %v486 = vadd.f32 %v484, %v485
      %v487 = vadd.f32 %v486, 1e-08
      %v488 = vrsqrt.pop %v487
      %v489 = vmul.f32 %v488, %v487
      %v490 = vmul.f32 %v489, %v488
      %v491 = vmul.f32 0.5, %v490
      %v492 = vsub.f32 1.5, %v491
      %v493 = vmul.f32 %v488, %v492
      %vm494 = vweird.f32 %v487
      %vm495 = vweird.f32 %v488
      %vm496 = vmor %vm494, %vm495
      %v497 = vsel %vm496, %v488, %v493
      %v498 = vmul.f32 %v497, 1.4142135
      %v499 = vmul.f32 %v460, %v498
      %v500 = vmul.f32 %v461, %v498
      %v501 = vmul.f32 %v462, %v498
      %v502 = vmul.f32 %v463, %v498
      %v503 = vmul.f32 %v464, %v498
      %v504 = vpack.c.bf16 %v499, %v499
      %v505 = vpack.c.bf16 %v500, %v500
      %v506 = vpack.c.bf16 %v501, %v501
      %v507 = vpack.c.bf16 %v502, %v502
      %v508 = vpack.c.bf16 %v503, %v503
      %v509 = vld [vmem:[%s418] sm:$0xff]
      %v510 = vld [vmem:[%s6] sm:$0xf]
      %v511 = vld [vmem:[%s6 + $0x4] sm:$0xf]
      %v512 = vld [vmem:[%s6 + $0x8] sm:$0xf]
      %v513 = vld [vmem:[%s6 + $0xc] sm:$0xf]
      %v514 = vld [vmem:[%s6 + $0x10] sm:$0xf]
      %v515 = vld [vmem:[%s6 + $0x14] sm:$0xf]
      %v516 = vld [vmem:[%s6 + $0x18] sm:$0xf]
      %v517 = vld [vmem:[%s6 + $0x1c] sm:$0xf]
      %v518 = vld [vmem:[%s6 + $0x20] sm:$0xf]
      %v519 = vunpack.c.l.bf16 %v510
      %v520 = vunpack.c.l.bf16 %v511
      %v521 = vunpack.c.l.bf16 %v512
      %v522 = vunpack.c.l.bf16 %v513
      %v523 = vunpack.c.l.bf16 %v514
      %v524 = vunpack.c.l.bf16 %v515
      %v525 = vunpack.c.l.bf16 %v516
      %v526 = vunpack.c.l.bf16 %v517
      %v527 = vunpack.c.l.bf16 %v518
      %529 = vset.pattern.permute.xlu0 0
      %530 = vperm.xlu0 %529, %v509
      %v531 = vpop.permute.xlu0 %530
      %v533 = vmul.f32 %v519, %v531
      %v534 = vmul.f32 %v520, %v531
      %v535 = vmul.f32 %v521, %v531
      %v536 = vmul.f32 %v522, %v531
      %v537 = vmul.f32 %v523, %v531
      %v538 = vmul.f32 %v524, %v531
      %v539 = vmul.f32 %v525, %v531
      %v540 = vmul.f32 %v526, %v531
      %v541 = vmul.f32 %v527, %v531
      %v542 = vmul.f32 %v533, %v533
      %v543 = vmul.f32 %v534, %v534
      %v544 = vmul.f32 %v535, %v535
      %v545 = vmul.f32 %v536, %v536
      %v546 = vmul.f32 %v537, %v537
      %v547 = vmul.f32 %v538, %v538
      %v548 = vmul.f32 %v539, %v539
      %v549 = vmul.f32 %v540, %v540
      %v550 = vmul.f32 %v541, %v541
      %v551 = vsel %vm470, %v542, 0.0
      %v552 = vsel %vm470, %v543, 0.0
      %v553 = vadd.f32 %v551, %v552
      %v554 = vsel %vm470, %v544, 0.0
      %v555 = vadd.f32 %v553, %v554
      %v556 = vsel %vm470, %v545, 0.0
      %v557 = vadd.f32 %v555, %v556
      %v558 = vsel %vm470, %v546, 0.0
      %v559 = vadd.f32 %v557, %v558
      %v560 = vsel %vm470, %v547, 0.0
      %v561 = vadd.f32 %v559, %v560
      %v562 = vsel %vm470, %v548, 0.0
      %v563 = vadd.f32 %v561, %v562
      %v564 = vsel %vm470, %v549, 0.0
      %v565 = vadd.f32 %v563, %v564
      %v566 = vsel %vm470, %v550, 0.0
      %v567 = vadd.f32 %v565, %v566
      %v568 = vrot.slane %v567, 4
      %v569 = vadd.f32 %v567, %v568
      %v570 = vrot.slane %v569, 2
      %v571 = vadd.f32 %v569, %v570
      %v572 = vrot.slane %v571, 1
      %v573 = vadd.f32 %v571, %v572
      %v574 = vadd.f32 %v573, 1e-08
      %v575 = vrsqrt.pop %v574
      %v576 = vmul.f32 %v575, %v574
      %v577 = vmul.f32 %v576, %v575
      %v578 = vmul.f32 0.5, %v577
      %v579 = vsub.f32 1.5, %v578
      %v580 = vmul.f32 %v575, %v579
      %vm581 = vweird.f32 %v574
      %vm582 = vweird.f32 %v575
      %vm583 = vmor %vm581, %vm582
      %v584 = vsel %vm583, %v575, %v580
      %v585 = vmul.f32 %v533, %v584
      %v586 = vmul.f32 %v534, %v584
      %v587 = vmul.f32 %v535, %v584
      %v588 = vmul.f32 %v536, %v584
      %v589 = vmul.f32 %v537, %v584
      %v590 = vmul.f32 %v538, %v584
      %v591 = vmul.f32 %v539, %v584
      %v592 = vmul.f32 %v540, %v584
      %v593 = vmul.f32 %v541, %v584
      %v594 = vpack.c.bf16 %v585, %v585
      %v595 = vpack.c.bf16 %v586, %v586
      %v596 = vpack.c.bf16 %v587, %v587
      %v597 = vpack.c.bf16 %v588, %v588
      %v598 = vpack.c.bf16 %v589, %v589
      %v599 = vpack.c.bf16 %v590, %v590
      %v600 = vpack.c.bf16 %v591, %v591
      %v601 = vpack.c.bf16 %v592, %v592
      %v602 = vpack.c.bf16 %v593, %v593
      %v603 = vld [vmem:[%s7] sm:$0x1]
      %v604 = vld [vmem:[%s8] sm:$0x1]
      %v605 = vld [vmem:[%s9] sm:$0x3]
      %606 = vst.msk [vmem:[#allocation2] sm:$0xf] %vm478, 0
      %607 = vst.msk [vmem:[#allocation2 + $0x4] sm:$0xf] %vm478, 0
      %608 = vst.msk [vmem:[#allocation2 + $0x8] sm:$0xf] %vm478, 0
      %609 = vst.msk [vmem:[#allocation2 + $0xc] sm:$0xf] %vm478, 0
      %610 = vst.msk [vmem:[#allocation2 + $0xa0] sm:$0xf] %vm478, 0
      %611 = vst.msk [vmem:[#allocation2 + $0xa4] sm:$0xf] %vm478, 0
      %612 = vst.msk [vmem:[#allocation2 + $0xa8] sm:$0xf] %vm478, 0
      %613 = vst.msk [vmem:[#allocation2 + $0xac] sm:$0xf] %vm478, 0
      %v614 = vld [vmem:[%s410] sm:$0xf]
      %v615 = vld [vmem:[%s410 + $0x4] sm:$0xf]
      %v616 = vld [vmem:[%s410 + $0x8] sm:$0xf]
      %v617 = vld [vmem:[%s410 + $0xc] sm:$0xf]
      %v618 = vld [vmem:[%s410 + $0x10] sm:$0xf]
      %v619 = vld [vmem:[%s410 + $0x14] sm:$0xf]
      %v620 = vld [vmem:[%s410 + $0x18] sm:$0xf]
      %v621 = vld [vmem:[%s410 + $0x1c] sm:$0xf]
      %v622 = vld [vmem:[%s410 + $0x20] sm:$0xf]
      %v623 = vld [vmem:[%s410 + $0x24] sm:$0xf]
      %v624 = vld [vmem:[%s410 + $0x28] sm:$0xf]
      %v625 = vld [vmem:[%s410 + $0x2c] sm:$0xf]
      %v626 = vld [vmem:[%s410 + $0x30] sm:$0xf]
      %v627 = vld [vmem:[%s410 + $0x34] sm:$0xf]
      %v628 = vld [vmem:[%s410 + $0x38] sm:$0xf]
      %v629 = vld [vmem:[%s410 + $0x3c] sm:$0xf]
      %v630 = vld [vmem:[%s410 + $0x40] sm:$0xf]
      %v631 = vld [vmem:[%s410 + $0x44] sm:$0xf]
      %v632 = vld [vmem:[%s410 + $0x48] sm:$0xf]
      %v633 = vld [vmem:[%s410 + $0x4c] sm:$0xf]
      %v634 = vld [vmem:[%s410 + $0x50] sm:$0xf]
      %v635 = vld [vmem:[%s410 + $0x54] sm:$0xf]
      %v636 = vld [vmem:[%s410 + $0x58] sm:$0xf]
      %v637 = vld [vmem:[%s410 + $0x5c] sm:$0xf]
      %v638 = vld [vmem:[%s410 + $0x60] sm:$0xf]
      %v639 = vld [vmem:[%s410 + $0x64] sm:$0xf]
      %v640 = vld [vmem:[%s410 + $0x68] sm:$0xf]
      %v641 = vld [vmem:[%s410 + $0x6c] sm:$0xf]
      %v642 = vld [vmem:[%s410 + $0x70] sm:$0xf]
      %v643 = vld [vmem:[%s410 + $0x74] sm:$0xf]
      %v644 = vld [vmem:[%s410 + $0x78] sm:$0xf]
      %v645 = vld [vmem:[%s410 + $0x7c] sm:$0xf]
      %v646 = vld [vmem:[%s410 + $0x80] sm:$0xf]
      %v647 = vld [vmem:[%s410 + $0x84] sm:$0xf]
      %v648 = vld [vmem:[%s410 + $0x88] sm:$0xf]
      %v649 = vld [vmem:[%s410 + $0x8c] sm:$0xf]
      %v650 = vld [vmem:[%s410 + $0x90] sm:$0x1]
      %v688 = vunpack.c.l.b16 %v614
      %v689 = vunpack.c.l.b16 %v615
      %v690 = vunpack.c.l.b16 %v616
      %v691 = vunpack.c.l.b16 %v617
      %v692 = vunpack.c.l.b16 %v618
      %v693 = vunpack.c.l.b16 %v619
      %v694 = vunpack.c.l.b16 %v620
      %v695 = vunpack.c.l.b16 %v621
      %v696 = vunpack.c.l.b16 %v622
      %v697 = vunpack.c.l.b16 %v623
      %v698 = vunpack.c.l.b16 %v624
      %v699 = vunpack.c.l.b16 %v625
      %v700 = vunpack.c.l.b16 %v626
      %v701 = vunpack.c.l.b16 %v627
      %v702 = vunpack.c.l.b16 %v628
      %v703 = vunpack.c.l.b16 %v629
      %v704 = vunpack.c.l.b16 %v630
      %v705 = vunpack.c.l.b16 %v631
      %v706 = vunpack.c.l.b16 %v632
      %v707 = vunpack.c.l.b16 %v633
      %v708 = vunpack.c.l.b16 %v634
      %v709 = vunpack.c.l.b16 %v635
      %v710 = vunpack.c.l.b16 %v636
      %v711 = vunpack.c.l.b16 %v637
      %v712 = vunpack.c.l.b16 %v638
      %v713 = vunpack.c.l.b16 %v639
      %v714 = vunpack.c.l.b16 %v640
      %v715 = vunpack.c.l.b16 %v641
      %v716 = vunpack.c.l.b16 %v642
      %v717 = vunpack.c.l.b16 %v643
      %v718 = vunpack.c.l.b16 %v644
      %v719 = vunpack.c.l.b16 %v645
      %v720 = vunpack.c.l.b16 %v646
      %v721 = vunpack.c.l.b16 %v647
      %v722 = vunpack.c.l.b16 %v648
      %v723 = vunpack.c.l.b16 %v649
      %v724 = vunpack.c.l.b16 %v650
      %v725 = vpack.c.b16 %v689, %v688
      %v726 = vpack.c.b16 %v691, %v690
      %v727 = vpack.c.b16 %v693, %v692
      %v728 = vpack.c.b16 %v695, %v694
      %v729 = vpack.c.b16 %v697, %v696
      %v730 = vpack.c.b16 %v699, %v698
      %v731 = vpack.c.b16 %v701, %v700
      %v732 = vpack.c.b16 %v703, %v702
      %v733 = vpack.c.b16 %v705, %v704
      %v734 = vpack.c.b16 %v707, %v706
      %v735 = vpack.c.b16 %v709, %v708
      %v736 = vpack.c.b16 %v711, %v710
      %v737 = vpack.c.b16 %v713, %v712
      %v738 = vpack.c.b16 %v715, %v714
      %v739 = vpack.c.b16 %v717, %v716
      %v740 = vpack.c.b16 %v719, %v718
      %v741 = vpack.c.b16 %v721, %v720
      %v742 = vpack.c.b16 %v723, %v722
      %v743 = vpack.c.b16 %v724, %v724
      %vm744 = vsmask.f32 7424
      %v746 = vshrl.u32 %v725, 16
      %v748 = vshll.u32 %v725, 16
      %v750 = vrot.slane %v748, 1
      %v751 = vor.u32 %v746, %v750
      %v753 = vshll.u32 %v726, 16
      %v755 = vrot.slane %v753, 1
      %v756 = vsel %vm744, %v751, %v755
      %v757 = vshrl.u32 %v726, 16
      %v759 = vor.u32 %v757, %v755
      %v761 = vshll.u32 %v727, 16
      %v763 = vrot.slane %v761, 1
      %v764 = vsel %vm744, %v759, %v763
      %v765 = vshrl.u32 %v727, 16
      %v767 = vor.u32 %v765, %v763
      %v769 = vshll.u32 %v728, 16
      %v771 = vrot.slane %v769, 1
      %v772 = vsel %vm744, %v767, %v771
      %v773 = vshrl.u32 %v728, 16
      %v775 = vor.u32 %v773, %v771
      %v777 = vshll.u32 %v729, 16
      %v779 = vrot.slane %v777, 1
      %v780 = vsel %vm744, %v775, %v779
      %v781 = vshrl.u32 %v729, 16
      %v783 = vor.u32 %v781, %v779
      %v785 = vshll.u32 %v730, 16
      %v787 = vrot.slane %v785, 1
      %v788 = vsel %vm744, %v783, %v787
      %v789 = vshrl.u32 %v730, 16
      %v791 = vor.u32 %v789, %v787
      %v793 = vshll.u32 %v731, 16
      %v795 = vrot.slane %v793, 1
      %v796 = vsel %vm744, %v791, %v795
      %v797 = vshrl.u32 %v731, 16
      %v799 = vor.u32 %v797, %v795
      %v801 = vshll.u32 %v732, 16
      %v803 = vrot.slane %v801, 1
      %v804 = vsel %vm744, %v799, %v803
      %v805 = vshrl.u32 %v732, 16
      %v807 = vor.u32 %v805, %v803
      %v809 = vshll.u32 %v733, 16
      %v811 = vrot.slane %v809, 1
      %v812 = vsel %vm744, %v807, %v811
      %v813 = vshrl.u32 %v733, 16
      %v815 = vor.u32 %v813, %v811
      %v817 = vshll.u32 %v734, 16
      %v819 = vrot.slane %v817, 1
      %v820 = vsel %vm744, %v815, %v819
      %v821 = vshrl.u32 %v734, 16
      %v823 = vor.u32 %v821, %v819
      %v825 = vshll.u32 %v735, 16
      %v827 = vrot.slane %v825, 1
      %v828 = vsel %vm744, %v823, %v827
      %v829 = vshrl.u32 %v735, 16
      %v831 = vor.u32 %v829, %v827
      %v833 = vshll.u32 %v736, 16
      %v835 = vrot.slane %v833, 1
      %v836 = vsel %vm744, %v831, %v835
      %v837 = vshrl.u32 %v736, 16
      %v839 = vor.u32 %v837, %v835
      %v841 = vshll.u32 %v737, 16
      %v843 = vrot.slane %v841, 1
      %v844 = vsel %vm744, %v839, %v843
      %v845 = vshrl.u32 %v737, 16
      %v847 = vor.u32 %v845, %v843
      %v849 = vshll.u32 %v738, 16
      %v851 = vrot.slane %v849, 1
      %v852 = vsel %vm744, %v847, %v851
      %v853 = vshrl.u32 %v738, 16
      %v855 = vor.u32 %v853, %v851
      %v857 = vshll.u32 %v739, 16
      %v859 = vrot.slane %v857, 1
      %v860 = vsel %vm744, %v855, %v859
      %v861 = vshrl.u32 %v739, 16
      %v863 = vor.u32 %v861, %v859
      %v865 = vshll.u32 %v740, 16
      %v867 = vrot.slane %v865, 1
      %v868 = vsel %vm744, %v863, %v867
      %v869 = vshrl.u32 %v740, 16
      %v871 = vor.u32 %v869, %v867
      %v873 = vshll.u32 %v741, 16
      %v875 = vrot.slane %v873, 1
      %v876 = vsel %vm744, %v871, %v875
      %v877 = vshrl.u32 %v741, 16
      %v879 = vor.u32 %v877, %v875
      %v881 = vshll.u32 %v742, 16
      %v883 = vrot.slane %v881, 1
      %v884 = vsel %vm744, %v879, %v883
      %v885 = vshrl.u32 %v742, 16
      %v887 = vor.u32 %v885, %v883
      %v889 = vshll.u32 %v743, 16
      %v891 = vrot.slane %v889, 1
      %v892 = vsel %vm744, %v887, %v891
      %v894 = vunpack.c.l.b16 %v504
      %v895 = vpack.c.b16 %v894, %v894
      %v896 = vrot.slane %v895, 2
      %vm897 = vcmask 31744
      %v899 = vsel %vm897, %v756, 0
      %v902 = vsel %vm897, %v764, 0
      %v905 = vsel %vm897, %v772, 0
      %v908 = vsel %vm897, %v780, 0
      %v911 = vsel %vm897, %v788, 0
      %v914 = vsel %vm897, %v796, 0
      %v917 = vsel %vm897, %v804, 0
      %v920 = vsel %vm897, %v812, 0
      %v923 = vsel %vm897, %v820, 0
      %v926 = vsel %vm897, %v828, 0
      %v929 = vsel %vm897, %v836, 0
      %v932 = vsel %vm897, %v844, 0
      %v935 = vsel %vm897, %v852, 0
      %v938 = vsel %vm897, %v860, 0
      %v941 = vsel %vm897, %v868, 0
      %v944 = vsel %vm897, %v876, 0
      %v947 = vsel %vm897, %v884, 0
      %v950 = vsel %vm897, %v892, 0
      %vm952 = vcmask 1041408
      %v954 = vsel %vm952, %v896, 0
      %956 = vmatpush.bf16.msra.mxu0 0
      %957 = vmatpush.bf16.msra.mxu0 0
      %958 = vmatpush.bf16.msra.mxu0 0
      %959 = vmatpush.bf16.msra.mxu0 0
      %960 = vmatpush.bf16.msra.mxu0 0
      %961 = vmatpush.bf16.msra.mxu0 0
      %962 = vmatpush.bf16.msra.mxu0 0
      %963 = vmatpush.bf16.msra.mxu0 %v954
      %964 = vmatmul.bf16.gmra.mxu0 %v899
      %v965 = vpop.f32.mrf.mxu0
      %v966 = vadd.f32 0.0, %v965
      %v967 = vpop.f32.mrf.mxu0
      %v968 = vadd.f32 0.0, %v967
      %969 = vmatmul.bf16.gmra.mxu0 %v902
      %v970 = vpop.f32.mrf.mxu0
      %v971 = vadd.f32 0.0, %v970
      %v972 = vpop.f32.mrf.mxu0
      %v973 = vadd.f32 0.0, %v972
      %974 = vmatmul.bf16.gmra.mxu0 %v905
      %v975 = vpop.f32.mrf.mxu0
      %v976 = vadd.f32 0.0, %v975
      %v977 = vpop.f32.mrf.mxu0
      %v978 = vadd.f32 0.0, %v977
      %979 = vmatmul.bf16.gmra.mxu0 %v908
      %v980 = vpop.f32.mrf.mxu0
      %v981 = vadd.f32 0.0, %v980
      %v982 = vpop.f32.mrf.mxu0
      %v983 = vadd.f32 0.0, %v982
      %984 = vmatmul.bf16.gmra.mxu0 %v911
      %v985 = vpop.f32.mrf.mxu0
      %v986 = vadd.f32 0.0, %v985
      %v987 = vpop.f32.mrf.mxu0
      %v988 = vadd.f32 0.0, %v987
      %989 = vmatmul.bf16.gmra.mxu0 %v914
      %v990 = vpop.f32.mrf.mxu0
      %v991 = vadd.f32 0.0, %v990
      %v992 = vpop.f32.mrf.mxu0
      %v993 = vadd.f32 0.0, %v992
      %994 = vmatmul.bf16.gmra.mxu0 %v917
      %v995 = vpop.f32.mrf.mxu0
      %v996 = vadd.f32 0.0, %v995
      %v997 = vpop.f32.mrf.mxu0
      %v998 = vadd.f32 0.0, %v997
      %999 = vmatmul.bf16.gmra.mxu0 %v920
      %v1000 = vpop.f32.mrf.mxu0
      %v1001 = vadd.f32 0.0, %v1000
      %v1002 = vpop.f32.mrf.mxu0
      %v1003 = vadd.f32 0.0, %v1002
      %1004 = vmatmul.bf16.gmra.mxu0 %v923
      %v1005 = vpop.f32.mrf.mxu0
      %v1006 = vadd.f32 0.0, %v1005
      %v1007 = vpop.f32.mrf.mxu0
      %v1008 = vadd.f32 0.0, %v1007
      %1009 = vmatmul.bf16.gmra.mxu0 %v926
      %v1010 = vpop.f32.mrf.mxu0
      %v1011 = vadd.f32 0.0, %v1010
      %v1012 = vpop.f32.mrf.mxu0
      %v1013 = vadd.f32 0.0, %v1012
      %1014 = vmatmul.bf16.gmra.mxu0 %v929
      %v1015 = vpop.f32.mrf.mxu0
      %v1016 = vadd.f32 0.0, %v1015
      %v1017 = vpop.f32.mrf.mxu0
      %v1018 = vadd.f32 0.0, %v1017
      %1019 = vmatmul.bf16.gmra.mxu0 %v932
      %v1020 = vpop.f32.mrf.mxu0
      %v1021 = vadd.f32 0.0, %v1020
      %v1022 = vpop.f32.mrf.mxu0
      %v1023 = vadd.f32 0.0, %v1022
      %1024 = vmatmul.bf16.gmra.mxu0 %v935
      %v1025 = vpop.f32.mrf.mxu0
      %v1026 = vadd.f32 0.0, %v1025
      %v1027 = vpop.f32.mrf.mxu0
      %v1028 = vadd.f32 0.0, %v1027
      %1029 = vmatmul.bf16.gmra.mxu0 %v938
      %v1030 = vpop.f32.mrf.mxu0
      %v1031 = vadd.f32 0.0, %v1030
      %v1032 = vpop.f32.mrf.mxu0
      %v1033 = vadd.f32 0.0, %v1032
      %1034 = vmatmul.bf16.gmra.mxu0 %v941
      %v1035 = vpop.f32.mrf.mxu0
      %v1036 = vadd.f32 0.0, %v1035
      %v1037 = vpop.f32.mrf.mxu0
      %v1038 = vadd.f32 0.0, %v1037
      %1039 = vmatmul.bf16.gmra.mxu0 %v944
      %v1040 = vpop.f32.mrf.mxu0
      %v1041 = vadd.f32 0.0, %v1040
      %v1042 = vpop.f32.mrf.mxu0
      %v1043 = vadd.f32 0.0, %v1042
      %1044 = vmatmul.bf16.gmra.mxu0 %v947
      %v1045 = vpop.f32.mrf.mxu0
      %v1046 = vadd.f32 0.0, %v1045
      %v1047 = vpop.f32.mrf.mxu0
      %v1048 = vadd.f32 0.0, %v1047
      %1049 = vmatmul.bf16.gmra.mxu0 %v950
      %v1050 = vpop.f32.mrf.mxu0
      %v1051 = vadd.f32 0.0, %v1050
      %v1052 = vpop.f32.mrf.mxu0
      %v1053 = vadd.f32 0.0, %v1052
      %1054 = vdwg.mxu0
      %v1055 = vsel %vm897, %v725, 0
      %v1057 = vsel %vm897, %v726, 0
      %v1059 = vsel %vm897, %v727, 0
      %v1061 = vsel %vm897, %v728, 0
      %v1063 = vsel %vm897, %v729, 0
      %v1065 = vsel %vm897, %v730, 0
      %v1067 = vsel %vm897, %v731, 0
      %v1069 = vsel %vm897, %v732, 0
      %v1071 = vsel %vm897, %v733, 0
      %v1073 = vsel %vm897, %v734, 0
      %v1075 = vsel %vm897, %v735, 0
      %v1077 = vsel %vm897, %v736, 0
      %v1079 = vsel %vm897, %v737, 0
      %v1081 = vsel %vm897, %v738, 0
      %v1083 = vsel %vm897, %v739, 0
      %v1085 = vsel %vm897, %v740, 0
      %v1087 = vsel %vm897, %v741, 0
      %v1089 = vsel %vm897, %v742, 0
      %v1092 = vsel %vm952, %v504, 0
      %1094 = vmatpush.bf16.msra.mxu0 0
      %1095 = vmatpush.bf16.msra.mxu0 0
      %1096 = vmatpush.bf16.msra.mxu0 0
      %1097 = vmatpush.bf16.msra.mxu0 0
      %1098 = vmatpush.bf16.msra.mxu0 0
      %1099 = vmatpush.bf16.msra.mxu0 0
      %1100 = vmatpush.bf16.msra.mxu0 0
      %1101 = vmatpush.bf16.msra.mxu0 %v1092
      %1102 = vmatmul.bf16.gmra.mxu0 %v1055
      %v1103 = vpop.f32.mrf.mxu0
      %v1104 = vadd.f32 %v966, %v1103
      %v1105 = vpop.f32.mrf.mxu0
      %v1106 = vadd.f32 %v968, %v1105
      %1107 = vmatmul.bf16.gmra.mxu0 %v1057
      %v1108 = vpop.f32.mrf.mxu0
      %v1109 = vadd.f32 %v971, %v1108
      %v1110 = vpop.f32.mrf.mxu0
      %v1111 = vadd.f32 %v973, %v1110
      %1112 = vmatmul.bf16.gmra.mxu0 %v1059
      %v1113 = vpop.f32.mrf.mxu0
      %v1114 = vadd.f32 %v976, %v1113
      %v1115 = vpop.f32.mrf.mxu0
      %v1116 = vadd.f32 %v978, %v1115
      %1117 = vmatmul.bf16.gmra.mxu0 %v1061
      %v1118 = vpop.f32.mrf.mxu0
      %v1119 = vadd.f32 %v981, %v1118
      %v1120 = vpop.f32.mrf.mxu0
      %v1121 = vadd.f32 %v983, %v1120
      %1122 = vmatmul.bf16.gmra.mxu0 %v1063
      %v1123 = vpop.f32.mrf.mxu0
      %v1124 = vadd.f32 %v986, %v1123
      %v1125 = vpop.f32.mrf.mxu0
      %v1126 = vadd.f32 %v988, %v1125
      %1127 = vmatmul.bf16.gmra.mxu0 %v1065
      %v1128 = vpop.f32.mrf.mxu0
      %v1129 = vadd.f32 %v991, %v1128
      %v1130 = vpop.f32.mrf.mxu0
      %v1131 = vadd.f32 %v993, %v1130
      %1132 = vmatmul.bf16.gmra.mxu0 %v1067
      %v1133 = vpop.f32.mrf.mxu0
      %v1134 = vadd.f32 %v996, %v1133
      %v1135 = vpop.f32.mrf.mxu0
      %v1136 = vadd.f32 %v998, %v1135
      %1137 = vmatmul.bf16.gmra.mxu0 %v1069
      %v1138 = vpop.f32.mrf.mxu0
      %v1139 = vadd.f32 %v1001, %v1138
      %v1140 = vpop.f32.mrf.mxu0
      %v1141 = vadd.f32 %v1003, %v1140
      %1142 = vmatmul.bf16.gmra.mxu0 %v1071
      %v1143 = vpop.f32.mrf.mxu0
      %v1144 = vadd.f32 %v1006, %v1143
      %v1145 = vpop.f32.mrf.mxu0
      %v1146 = vadd.f32 %v1008, %v1145
      %1147 = vmatmul.bf16.gmra.mxu0 %v1073
      %v1148 = vpop.f32.mrf.mxu0
      %v1149 = vadd.f32 %v1011, %v1148
      %v1150 = vpop.f32.mrf.mxu0
      %v1151 = vadd.f32 %v1013, %v1150
      %1152 = vmatmul.bf16.gmra.mxu0 %v1075
      %v1153 = vpop.f32.mrf.mxu0
      %v1154 = vadd.f32 %v1016, %v1153
      %v1155 = vpop.f32.mrf.mxu0
      %v1156 = vadd.f32 %v1018, %v1155
      %1157 = vmatmul.bf16.gmra.mxu0 %v1077
      %v1158 = vpop.f32.mrf.mxu0
      %v1159 = vadd.f32 %v1021, %v1158
      %v1160 = vpop.f32.mrf.mxu0
      %v1161 = vadd.f32 %v1023, %v1160
      %1162 = vmatmul.bf16.gmra.mxu0 %v1079
      %v1163 = vpop.f32.mrf.mxu0
      %v1164 = vadd.f32 %v1026, %v1163
      %v1165 = vpop.f32.mrf.mxu0
      %v1166 = vadd.f32 %v1028, %v1165
      %1167 = vmatmul.bf16.gmra.mxu0 %v1081
      %v1168 = vpop.f32.mrf.mxu0
      %v1169 = vadd.f32 %v1031, %v1168
      %v1170 = vpop.f32.mrf.mxu0
      %v1171 = vadd.f32 %v1033, %v1170
      %1172 = vmatmul.bf16.gmra.mxu0 %v1083
      %v1173 = vpop.f32.mrf.mxu0
      %v1174 = vadd.f32 %v1036, %v1173
      %v1175 = vpop.f32.mrf.mxu0
      %v1176 = vadd.f32 %v1038, %v1175
      %1177 = vmatmul.bf16.gmra.mxu0 %v1085
      %v1178 = vpop.f32.mrf.mxu0
      %v1179 = vadd.f32 %v1041, %v1178
      %v1180 = vpop.f32.mrf.mxu0
      %v1181 = vadd.f32 %v1043, %v1180
      %1182 = vmatmul.bf16.gmra.mxu0 %v1087
      %v1183 = vpop.f32.mrf.mxu0
      %v1184 = vadd.f32 %v1046, %v1183
      %v1185 = vpop.f32.mrf.mxu0
      %v1186 = vadd.f32 %v1048, %v1185
      %1187 = vmatmul.bf16.gmra.mxu0 %v1089
      %v1188 = vpop.f32.mrf.mxu0
      %v1189 = vadd.f32 %v1051, %v1188
      %v1190 = vpop.f32.mrf.mxu0
      %v1191 = vadd.f32 %v1053, %v1190
      %1192 = vdwg.mxu0
      %v1193 = vld [vmem:[%s410] sm:$0xe]
      %v1195 = vunpack.c.l.b16 %v1193
      %v1196 = vpack.c.b16 %v689, %v1195
      %vm1197 = vcmask 1046528
      %v1198 = vrot.slane %v1196, 1
      %v1199 = vrot.slane %v726, 1
      %v1200 = vsel %vm1197, %v1198, %v1199
      %v1201 = vrot.slane %v727, 1
      %v1202 = vsel %vm1197, %v1199, %v1201
      %v1203 = vrot.slane %v728, 1
      %v1204 = vsel %vm1197, %v1201, %v1203
      %v1205 = vrot.slane %v729, 1
      %v1206 = vsel %vm1197, %v1203, %v1205
      %v1207 = vrot.slane %v730, 1
      %v1208 = vsel %vm1197, %v1205, %v1207
      %v1209 = vrot.slane %v731, 1
      %v1210 = vsel %vm1197, %v1207, %v1209
      %v1211 = vrot.slane %v732, 1
      %v1212 = vsel %vm1197, %v1209, %v1211
      %v1213 = vrot.slane %v733, 1
      %v1214 = vsel %vm1197, %v1211, %v1213
      %v1215 = vrot.slane %v734, 1
      %v1216 = vsel %vm1197, %v1213, %v1215
      %v1217 = vrot.slane %v735, 1
      %v1218 = vsel %vm1197, %v1215, %v1217
      %v1219 = vrot.slane %v736, 1
      %v1220 = vsel %vm1197, %v1217, %v1219
      %v1221 = vrot.slane %v737, 1
      %v1222 = vsel %vm1197, %v1219, %v1221
      %v1223 = vrot.slane %v738, 1
      %v1224 = vsel %vm1197, %v1221, %v1223
      %v1225 = vrot.slane %v739, 1
      %v1226 = vsel %vm1197, %v1223, %v1225
      %v1227 = vrot.slane %v740, 1
      %v1228 = vsel %vm1197, %v1225, %v1227
      %v1229 = vrot.slane %v741, 1
      %v1230 = vsel %vm1197, %v1227, %v1229
      %v1231 = vrot.slane %v742, 1
      %v1232 = vsel %vm1197, %v1229, %v1231
      %v1233 = vrot.slane %v743, 1
      %v1234 = vsel %vm1197, %v1231, %v1233
      %v1236 = vsel %vm897, %v1200, 0
      %v1239 = vsel %vm897, %v1202, 0
      %v1242 = vsel %vm897, %v1204, 0
      %v1245 = vsel %vm897, %v1206, 0
      %v1248 = vsel %vm897, %v1208, 0
      %v1251 = vsel %vm897, %v1210, 0
      %v1254 = vsel %vm897, %v1212, 0
      %v1257 = vsel %vm897, %v1214, 0
      %v1260 = vsel %vm897, %v1216, 0
      %v1263 = vsel %vm897, %v1218, 0
      %v1266 = vsel %vm897, %v1220, 0
      %v1269 = vsel %vm897, %v1222, 0
      %v1272 = vsel %vm897, %v1224, 0
      %v1275 = vsel %vm897, %v1226, 0
      %v1278 = vsel %vm897, %v1228, 0
      %v1281 = vsel %vm897, %v1230, 0
      %v1284 = vsel %vm897, %v1232, 0
      %v1287 = vsel %vm897, %v1234, 0
      %v1290 = vsel %vm952, %v505, 0
      %1292 = vmatpush.bf16.msra.mxu0 0
      %1293 = vmatpush.bf16.msra.mxu0 0
      %1294 = vmatpush.bf16.msra.mxu0 0
      %1295 = vmatpush.bf16.msra.mxu0 0
      %1296 = vmatpush.bf16.msra.mxu0 0
      %1297 = vmatpush.bf16.msra.mxu0 0
      %1298 = vmatpush.bf16.msra.mxu0 0
      %1299 = vmatpush.bf16.msra.mxu0 %v1290
      %1300 = vmatmul.bf16.gmra.mxu0 %v1236
      %v1301 = vpop.f32.mrf.mxu0
      %v1302 = vadd.f32 0.0, %v1301
      %v1303 = vpop.f32.mrf.mxu0
      %v1304 = vadd.f32 0.0, %v1303
      %1305 = vmatmul.bf16.gmra.mxu0 %v1239
      %v1306 = vpop.f32.mrf.mxu0
      %v1307 = vadd.f32 0.0, %v1306
      %v1308 = vpop.f32.mrf.mxu0
      %v1309 = vadd.f32 0.0, %v1308
      %1310 = vmatmul.bf16.gmra.mxu0 %v1242
      %v1311 = vpop.f32.mrf.mxu0
      %v1312 = vadd.f32 0.0, %v1311
      %v1313 = vpop.f32.mrf.mxu0
      %v1314 = vadd.f32 0.0, %v1313
      %1315 = vmatmul.bf16.gmra.mxu0 %v1245
      %v1316 = vpop.f32.mrf.mxu0
      %v1317 = vadd.f32 0.0, %v1316
      %v1318 = vpop.f32.mrf.mxu0
      %v1319 = vadd.f32 0.0, %v1318
      %1320 = vmatmul.bf16.gmra.mxu0 %v1248
      %v1321 = vpop.f32.mrf.mxu0
      %v1322 = vadd.f32 0.0, %v1321
      %v1323 = vpop.f32.mrf.mxu0
      %v1324 = vadd.f32 0.0, %v1323
      %1325 = vmatmul.bf16.gmra.mxu0 %v1251
      %v1326 = vpop.f32.mrf.mxu0
      %v1327 = vadd.f32 0.0, %v1326
      %v1328 = vpop.f32.mrf.mxu0
      %v1329 = vadd.f32 0.0, %v1328
      %1330 = vmatmul.bf16.gmra.mxu0 %v1254
      %v1331 = vpop.f32.mrf.mxu0
      %v1332 = vadd.f32 0.0, %v1331
      %v1333 = vpop.f32.mrf.mxu0
      %v1334 = vadd.f32 0.0, %v1333
      %1335 = vmatmul.bf16.gmra.mxu0 %v1257
      %v1336 = vpop.f32.mrf.mxu0
      %v1337 = vadd.f32 0.0, %v1336
      %v1338 = vpop.f32.mrf.mxu0
      %v1339 = vadd.f32 0.0, %v1338
      %1340 = vmatmul.bf16.gmra.mxu0 %v1260
      %v1341 = vpop.f32.mrf.mxu0
      %v1342 = vadd.f32 0.0, %v1341
      %v1343 = vpop.f32.mrf.mxu0
      %v1344 = vadd.f32 0.0, %v1343
      %1345 = vmatmul.bf16.gmra.mxu0 %v1263
      %v1346 = vpop.f32.mrf.mxu0
      %v1347 = vadd.f32 0.0, %v1346
      %v1348 = vpop.f32.mrf.mxu0
      %v1349 = vadd.f32 0.0, %v1348
      %1350 = vmatmul.bf16.gmra.mxu0 %v1266
      %v1351 = vpop.f32.mrf.mxu0
      %v1352 = vadd.f32 0.0, %v1351
      %v1353 = vpop.f32.mrf.mxu0
      %v1354 = vadd.f32 0.0, %v1353
      %1355 = vmatmul.bf16.gmra.mxu0 %v1269
      %v1356 = vpop.f32.mrf.mxu0
      %v1357 = vadd.f32 0.0, %v1356
      %v1358 = vpop.f32.mrf.mxu0
      %v1359 = vadd.f32 0.0, %v1358
      %1360 = vmatmul.bf16.gmra.mxu0 %v1272
      %v1361 = vpop.f32.mrf.mxu0
      %v1362 = vadd.f32 0.0, %v1361
      %v1363 = vpop.f32.mrf.mxu0
      %v1364 = vadd.f32 0.0, %v1363
      %1365 = vmatmul.bf16.gmra.mxu0 %v1275
      %v1366 = vpop.f32.mrf.mxu0
      %v1367 = vadd.f32 0.0, %v1366
      %v1368 = vpop.f32.mrf.mxu0
      %v1369 = vadd.f32 0.0, %v1368
      %1370 = vmatmul.bf16.gmra.mxu0 %v1278
      %v1371 = vpop.f32.mrf.mxu0
      %v1372 = vadd.f32 0.0, %v1371
      %v1373 = vpop.f32.mrf.mxu0
      %v1374 = vadd.f32 0.0, %v1373
      %1375 = vmatmul.bf16.gmra.mxu0 %v1281
      %v1376 = vpop.f32.mrf.mxu0
      %v1377 = vadd.f32 0.0, %v1376
      %v1378 = vpop.f32.mrf.mxu0
      %v1379 = vadd.f32 0.0, %v1378
      %1380 = vmatmul.bf16.gmra.mxu0 %v1284
      %v1381 = vpop.f32.mrf.mxu0
      %v1382 = vadd.f32 0.0, %v1381
      %v1383 = vpop.f32.mrf.mxu0
      %v1384 = vadd.f32 0.0, %v1383
      %1385 = vmatmul.bf16.gmra.mxu0 %v1287
      %v1386 = vpop.f32.mrf.mxu0
      %v1387 = vadd.f32 0.0, %v1386
      %v1388 = vpop.f32.mrf.mxu0
      %v1389 = vadd.f32 0.0, %v1388
      %1390 = vdwg.mxu0
      %v1391 = vadd.f32 %v1104, %v1302
      %v1392 = vadd.f32 %v1106, %v1304
      %v1393 = vadd.f32 %v1109, %v1307
      %v1394 = vadd.f32 %v1111, %v1309
      %v1395 = vadd.f32 %v1114, %v1312
      %v1396 = vadd.f32 %v1116, %v1314
      %v1397 = vadd.f32 %v1119, %v1317
      %v1398 = vadd.f32 %v1121, %v1319
      %v1399 = vadd.f32 %v1124, %v1322
      %v1400 = vadd.f32 %v1126, %v1324
      %v1401 = vadd.f32 %v1129, %v1327
      %v1402 = vadd.f32 %v1131, %v1329
      %v1403 = vadd.f32 %v1134, %v1332
      %v1404 = vadd.f32 %v1136, %v1334
      %v1405 = vadd.f32 %v1139, %v1337
      %v1406 = vadd.f32 %v1141, %v1339
      %v1407 = vadd.f32 %v1144, %v1342
      %v1408 = vadd.f32 %v1146, %v1344
      %v1409 = vadd.f32 %v1149, %v1347
      %v1410 = vadd.f32 %v1151, %v1349
      %v1411 = vadd.f32 %v1154, %v1352
      %v1412 = vadd.f32 %v1156, %v1354
      %v1413 = vadd.f32 %v1159, %v1357
      %v1414 = vadd.f32 %v1161, %v1359
      %v1415 = vadd.f32 %v1164, %v1362
      %v1416 = vadd.f32 %v1166, %v1364
      %v1417 = vadd.f32 %v1169, %v1367
      %v1418 = vadd.f32 %v1171, %v1369
      %v1419 = vadd.f32 %v1174, %v1372
      %v1420 = vadd.f32 %v1176, %v1374
      %v1421 = vadd.f32 %v1179, %v1377
      %v1422 = vadd.f32 %v1181, %v1379
      %v1423 = vadd.f32 %v1184, %v1382
      %v1424 = vadd.f32 %v1186, %v1384
      %v1425 = vadd.f32 %v1189, %v1387
      %v1426 = vadd.f32 %v1191, %v1389
      %v1427 = vld [vmem:[%s410 + $0x8] sm:$0xe]
      %v1428 = vld [vmem:[%s410 + $0xc] sm:$0xf]
      %v1429 = vld [vmem:[%s410 + $0x10] sm:$0xf]
      %v1430 = vld [vmem:[%s410 + $0x14] sm:$0xf]
      %v1431 = vld [vmem:[%s410 + $0x18] sm:$0xf]
      %v1432 = vld [vmem:[%s410 + $0x1c] sm:$0xf]
      %v1433 = vld [vmem:[%s410 + $0x20] sm:$0xf]
      %v1434 = vld [vmem:[%s410 + $0x24] sm:$0xf]
      %v1435 = vld [vmem:[%s410 + $0x28] sm:$0xf]
      %v1436 = vld [vmem:[%s410 + $0x2c] sm:$0xf]
      %v1437 = vld [vmem:[%s410 + $0x30] sm:$0xf]
      %v1438 = vld [vmem:[%s410 + $0x34] sm:$0xf]
      %v1439 = vld [vmem:[%s410 + $0x38] sm:$0xf]
      %v1440 = vld [vmem:[%s410 + $0x3c] sm:$0xf]
      %v1441 = vld [vmem:[%s410 + $0x40] sm:$0xf]
      %v1442 = vld [vmem:[%s410 + $0x44] sm:$0xf]
      %v1443 = vld [vmem:[%s410 + $0x48] sm:$0xf]
      %v1444 = vld [vmem:[%s410 + $0x4c] sm:$0xf]
      %v1445 = vld [vmem:[%s410 + $0x50] sm:$0xf]
      %v1446 = vld [vmem:[%s410 + $0x54] sm:$0xf]
      %v1447 = vld [vmem:[%s410 + $0x58] sm:$0xf]
      %v1448 = vld [vmem:[%s410 + $0x5c] sm:$0xf]
      %v1449 = vld [vmem:[%s410 + $0x60] sm:$0xf]
      %v1450 = vld [vmem:[%s410 + $0x64] sm:$0xf]
      %v1451 = vld [vmem:[%s410 + $0x68] sm:$0xf]
      %v1452 = vld [vmem:[%s410 + $0x6c] sm:$0xf]
      %v1453 = vld [vmem:[%s410 + $0x70] sm:$0xf]
      %v1454 = vld [vmem:[%s410 + $0x74] sm:$0xf]
      %v1455 = vld [vmem:[%s410 + $0x78] sm:$0xf]
      %v1456 = vld [vmem:[%s410 + $0x7c] sm:$0xf]
      %v1457 = vld [vmem:[%s410 + $0x80] sm:$0xf]
      %v1458 = vld [vmem:[%s410 + $0x84] sm:$0xf]
      %v1459 = vld [vmem:[%s410 + $0x88] sm:$0xf]
      %v1460 = vld [vmem:[%s410 + $0x8c] sm:$0xf]
      %v1461 = vld [vmem:[%s410 + $0x90] sm:$0xf]
      %v1462 = vld [vmem:[%s410 + $0x94] sm:$0xf]
      %v1463 = vld [vmem:[%s410 + $0x98] sm:$0x1]
      %v1501 = vunpack.c.l.b16 %v1427
      %v1502 = vunpack.c.l.b16 %v1428
      %v1503 = vunpack.c.l.b16 %v1429
      %v1504 = vunpack.c.l.b16 %v1430
      %v1505 = vunpack.c.l.b16 %v1431
      %v1506 = vunpack.c.l.b16 %v1432
      %v1507 = vunpack.c.l.b16 %v1433
      %v1508 = vunpack.c.l.b16 %v1434
      %v1509 = vunpack.c.l.b16 %v1435
      %v1510 = vunpack.c.l.b16 %v1436
      %v1511 = vunpack.c.l.b16 %v1437
      %v1512 = vunpack.c.l.b16 %v1438
      %v1513 = vunpack.c.l.b16 %v1439
      %v1514 = vunpack.c.l.b16 %v1440
      %v1515 = vunpack.c.l.b16 %v1441
      %v1516 = vunpack.c.l.b16 %v1442
      %v1517 = vunpack.c.l.b16 %v1443
      %v1518 = vunpack.c.l.b16 %v1444
      %v1519 = vunpack.c.l.b16 %v1445
      %v1520 = vunpack.c.l.b16 %v1446
      %v1521 = vunpack.c.l.b16 %v1447
      %v1522 = vunpack.c.l.b16 %v1448
      %v1523 = vunpack.c.l.b16 %v1449
      %v1524 = vunpack.c.l.b16 %v1450
      %v1525 = vunpack.c.l.b16 %v1451
      %v1526 = vunpack.c.l.b16 %v1452
      %v1527 = vunpack.c.l.b16 %v1453
      %v1528 = vunpack.c.l.b16 %v1454
      %v1529 = vunpack.c.l.b16 %v1455
      %v1530 = vunpack.c.l.b16 %v1456
      %v1531 = vunpack.c.l.b16 %v1457
      %v1532 = vunpack.c.l.b16 %v1458
      %v1533 = vunpack.c.l.b16 %v1459
      %v1534 = vunpack.c.l.b16 %v1460
      %v1535 = vunpack.c.l.b16 %v1461
      %v1536 = vunpack.c.l.b16 %v1462
      %v1537 = vunpack.c.l.b16 %v1463
      %v1538 = vpack.c.b16 %v1502, %v1501
      %v1539 = vpack.c.b16 %v1504, %v1503
      %v1540 = vpack.c.b16 %v1506, %v1505
      %v1541 = vpack.c.b16 %v1508, %v1507
      %v1542 = vpack.c.b16 %v1510, %v1509
      %v1543 = vpack.c.b16 %v1512, %v1511
      %v1544 = vpack.c.b16 %v1514, %v1513
      %v1545 = vpack.c.b16 %v1516, %v1515
      %v1546 = vpack.c.b16 %v1518, %v1517
      %v1547 = vpack.c.b16 %v1520, %v1519
      %v1548 = vpack.c.b16 %v1522, %v1521
      %v1549 = vpack.c.b16 %v1524, %v1523
      %v1550 = vpack.c.b16 %v1526, %v1525
      %v1551 = vpack.c.b16 %v1528, %v1527
      %v1552 = vpack.c.b16 %v1530, %v1529
      %v1553 = vpack.c.b16 %v1532, %v1531
      %v1554 = vpack.c.b16 %v1534, %v1533
      %v1555 = vpack.c.b16 %v1536, %v1535
      %v1556 = vpack.c.b16 %v1537, %v1537
      %v1557 = vrot.slane %v1538, 1
      %v1558 = vrot.slane %v1539, 1
      %v1559 = vsel %vm1197, %v1557, %v1558
      %v1560 = vrot.slane %v1540, 1
      %v1561 = vsel %vm1197, %v1558, %v1560
      %v1562 = vrot.slane %v1541, 1
      %v1563 = vsel %vm1197, %v1560, %v1562
      %v1564 = vrot.slane %v1542, 1
      %v1565 = vsel %vm1197, %v1562, %v1564
      %v1566 = vrot.slane %v1543, 1
      %v1567 = vsel %vm1197, %v1564, %v1566
      %v1568 = vrot.slane %v1544, 1
      %v1569 = vsel %vm1197, %v1566, %v1568
      %v1570 = vrot.slane %v1545, 1
      %v1571 = vsel %vm1197, %v1568, %v1570
      %v1572 = vrot.slane %v1546, 1
      %v1573 = vsel %vm1197, %v1570, %v1572
      %v1574 = vrot.slane %v1547, 1
      %v1575 = vsel %vm1197, %v1572, %v1574
      %v1576 = vrot.slane %v1548, 1
      %v1577 = vsel %vm1197, %v1574, %v1576
      %v1578 = vrot.slane %v1549, 1
      %v1579 = vsel %vm1197, %v1576, %v1578
      %v1580 = vrot.slane %v1550, 1
      %v1581 = vsel %vm1197, %v1578, %v1580
      %v1582 = vrot.slane %v1551, 1
      %v1583 = vsel %vm1197, %v1580, %v1582
      %v1584 = vrot.slane %v1552, 1
      %v1585 = vsel %vm1197, %v1582, %v1584
      %v1586 = vrot.slane %v1553, 1
      %v1587 = vsel %vm1197, %v1584, %v1586
      %v1588 = vrot.slane %v1554, 1
      %v1589 = vsel %vm1197, %v1586, %v1588
      %v1590 = vrot.slane %v1555, 1
      %v1591 = vsel %vm1197, %v1588, %v1590
      %v1592 = vrot.slane %v1556, 1
      %v1593 = vsel %vm1197, %v1590, %v1592
      %v1595 = vunpack.c.l.b16 %v505
      %v1596 = vpack.c.b16 %v1595, %v1595
      %v1597 = vrot.slane %v1596, 2
      %v1599 = vsel %vm897, %v1559, 0
      %v1602 = vsel %vm897, %v1561, 0
      %v1605 = vsel %vm897, %v1563, 0
      %v1608 = vsel %vm897, %v1565, 0
      %v1611 = vsel %vm897, %v1567, 0
      %v1614 = vsel %vm897, %v1569, 0
      %v1617 = vsel %vm897, %v1571, 0
      %v1620 = vsel %vm897, %v1573, 0
      %v1623 = vsel %vm897, %v1575, 0
      %v1626 = vsel %vm897, %v1577, 0
      %v1629 = vsel %vm897, %v1579, 0
      %v1632 = vsel %vm897, %v1581, 0
      %v1635 = vsel %vm897, %v1583, 0
      %v1638 = vsel %vm897, %v1585, 0
      %v1641 = vsel %vm897, %v1587, 0
      %v1644 = vsel %vm897, %v1589, 0
      %v1647 = vsel %vm897, %v1591, 0
      %v1650 = vsel %vm897, %v1593, 0
      %v1653 = vsel %vm952, %v1597, 0
      %1655 = vmatpush.bf16.msra.mxu0 0
      %1656 = vmatpush.bf16.msra.mxu0 0
      %1657 = vmatpush.bf16.msra.mxu0 0
      %1658 = vmatpush.bf16.msra.mxu0 0
      %1659 = vmatpush.bf16.msra.mxu0 0
      %1660 = vmatpush.bf16.msra.mxu0 0
      %1661 = vmatpush.bf16.msra.mxu0 0
      %1662 = vmatpush.bf16.msra.mxu0 %v1653
      %1663 = vmatmul.bf16.gmra.mxu0 %v1599
      %v1664 = vpop.f32.mrf.mxu0
      %v1665 = vadd.f32 0.0, %v1664
      %v1666 = vpop.f32.mrf.mxu0
      %v1667 = vadd.f32 0.0, %v1666
      %1668 = vmatmul.bf16.gmra.mxu0 %v1602
      %v1669 = vpop.f32.mrf.mxu0
      %v1670 = vadd.f32 0.0, %v1669
      %v1671 = vpop.f32.mrf.mxu0
      %v1672 = vadd.f32 0.0, %v1671
      %1673 = vmatmul.bf16.gmra.mxu0 %v1605
      %v1674 = vpop.f32.mrf.mxu0
      %v1675 = vadd.f32 0.0, %v1674
      %v1676 = vpop.f32.mrf.mxu0
      %v1677 = vadd.f32 0.0, %v1676
      %1678 = vmatmul.bf16.gmra.mxu0 %v1608
      %v1679 = vpop.f32.mrf.mxu0
      %v1680 = vadd.f32 0.0, %v1679
      %v1681 = vpop.f32.mrf.mxu0
      %v1682 = vadd.f32 0.0, %v1681
      %1683 = vmatmul.bf16.gmra.mxu0 %v1611
      %v1684 = vpop.f32.mrf.mxu0
      %v1685 = vadd.f32 0.0, %v1684
      %v1686 = vpop.f32.mrf.mxu0
      %v1687 = vadd.f32 0.0, %v1686
      %1688 = vmatmul.bf16.gmra.mxu0 %v1614
      %v1689 = vpop.f32.mrf.mxu0
      %v1690 = vadd.f32 0.0, %v1689
      %v1691 = vpop.f32.mrf.mxu0
      %v1692 = vadd.f32 0.0, %v1691
      %1693 = vmatmul.bf16.gmra.mxu0 %v1617
      %v1694 = vpop.f32.mrf.mxu0
      %v1695 = vadd.f32 0.0, %v1694
      %v1696 = vpop.f32.mrf.mxu0
      %v1697 = vadd.f32 0.0, %v1696
      %1698 = vmatmul.bf16.gmra.mxu0 %v1620
      %v1699 = vpop.f32.mrf.mxu0
      %v1700 = vadd.f32 0.0, %v1699
      %v1701 = vpop.f32.mrf.mxu0
      %v1702 = vadd.f32 0.0, %v1701
      %1703 = vmatmul.bf16.gmra.mxu0 %v1623
      %v1704 = vpop.f32.mrf.mxu0
      %v1705 = vadd.f32 0.0, %v1704
      %v1706 = vpop.f32.mrf.mxu0
      %v1707 = vadd.f32 0.0, %v1706
      %1708 = vmatmul.bf16.gmra.mxu0 %v1626
      %v1709 = vpop.f32.mrf.mxu0
      %v1710 = vadd.f32 0.0, %v1709
      %v1711 = vpop.f32.mrf.mxu0
      %v1712 = vadd.f32 0.0, %v1711
      %1713 = vmatmul.bf16.gmra.mxu0 %v1629
      %v1714 = vpop.f32.mrf.mxu0
      %v1715 = vadd.f32 0.0, %v1714
      %v1716 = vpop.f32.mrf.mxu0
      %v1717 = vadd.f32 0.0, %v1716
      %1718 = vmatmul.bf16.gmra.mxu0 %v1632
      %v1719 = vpop.f32.mrf.mxu0
      %v1720 = vadd.f32 0.0, %v1719
      %v1721 = vpop.f32.mrf.mxu0
      %v1722 = vadd.f32 0.0, %v1721
      %1723 = vmatmul.bf16.gmra.mxu0 %v1635
      %v1724 = vpop.f32.mrf.mxu0
      %v1725 = vadd.f32 0.0, %v1724
      %v1726 = vpop.f32.mrf.mxu0
      %v1727 = vadd.f32 0.0, %v1726
      %1728 = vmatmul.bf16.gmra.mxu0 %v1638
      %v1729 = vpop.f32.mrf.mxu0
      %v1730 = vadd.f32 0.0, %v1729
      %v1731 = vpop.f32.mrf.mxu0
      %v1732 = vadd.f32 0.0, %v1731
      %1733 = vmatmul.bf16.gmra.mxu0 %v1641
      %v1734 = vpop.f32.mrf.mxu0
      %v1735 = vadd.f32 0.0, %v1734
      %v1736 = vpop.f32.mrf.mxu0
      %v1737 = vadd.f32 0.0, %v1736
      %1738 = vmatmul.bf16.gmra.mxu0 %v1644
      %v1739 = vpop.f32.mrf.mxu0
      %v1740 = vadd.f32 0.0, %v1739
      %v1741 = vpop.f32.mrf.mxu0
      %v1742 = vadd.f32 0.0, %v1741
      %1743 = vmatmul.bf16.gmra.mxu0 %v1647
      %v1744 = vpop.f32.mrf.mxu0
      %v1745 = vadd.f32 0.0, %v1744
      %v1746 = vpop.f32.mrf.mxu0
      %v1747 = vadd.f32 0.0, %v1746
      %1748 = vmatmul.bf16.gmra.mxu0 %v1650
      %v1749 = vpop.f32.mrf.mxu0
      %v1750 = vadd.f32 0.0, %v1749
      %v1751 = vpop.f32.mrf.mxu0
      %v1752 = vadd.f32 0.0, %v1751
      %1753 = vdwg.mxu0
      %v1754 = vadd.f32 %v1391, %v1665
      %v1755 = vadd.f32 %v1392, %v1667
      %v1756 = vadd.f32 %v1393, %v1670
      %v1757 = vadd.f32 %v1394, %v1672
      %v1758 = vadd.f32 %v1395, %v1675
      %v1759 = vadd.f32 %v1396, %v1677
      %v1760 = vadd.f32 %v1397, %v1680
      %v1761 = vadd.f32 %v1398, %v1682
      %v1762 = vadd.f32 %v1399, %v1685
      %v1763 = vadd.f32 %v1400, %v1687
      %v1764 = vadd.f32 %v1401, %v1690
      %v1765 = vadd.f32 %v1402, %v1692
      %v1766 = vadd.f32 %v1403, %v1695
      %v1767 = vadd.f32 %v1404, %v1697
      %v1768 = vadd.f32 %v1405, %v1700
      %v1769 = vadd.f32 %v1406, %v1702
      %v1770 = vadd.f32 %v1407, %v1705
      %v1771 = vadd.f32 %v1408, %v1707
      %v1772 = vadd.f32 %v1409, %v1710
      %v1773 = vadd.f32 %v1410, %v1712
      %v1774 = vadd.f32 %v1411, %v1715
      %v1775 = vadd.f32 %v1412, %v1717
      %v1776 = vadd.f32 %v1413, %v1720
      %v1777 = vadd.f32 %v1414, %v1722
      %v1778 = vadd.f32 %v1415, %v1725
      %v1779 = vadd.f32 %v1416, %v1727
      %v1780 = vadd.f32 %v1417, %v1730
      %v1781 = vadd.f32 %v1418, %v1732
      %v1782 = vadd.f32 %v1419, %v1735
      %v1783 = vadd.f32 %v1420, %v1737
      %v1784 = vadd.f32 %v1421, %v1740
      %v1785 = vadd.f32 %v1422, %v1742
      %v1786 = vadd.f32 %v1423, %v1745
      %v1787 = vadd.f32 %v1424, %v1747
      %v1788 = vadd.f32 %v1425, %v1750
      %v1789 = vadd.f32 %v1426, %v1752
      %v1790 = vld [vmem:[%s410 + $0x98] sm:$0x3]
      %v1792 = vunpack.c.l.b16 %v1790
      %v1793 = vpack.c.b16 %v1792, %v1792
      %vm1794 = vsmask.f32 6400
      %v1796 = vshrl.u32 %v1538, 16
      %v1798 = vrot.slane %v1796, 1
      %v1799 = vshll.u32 %v1538, 16
      %v1801 = vrot.slane %v1799, 2
      %v1802 = vor.u32 %v1798, %v1801
      %v1804 = vshrl.u32 %v1539, 16
      %v1806 = vrot.slane %v1804, 1
      %v1807 = vshll.u32 %v1539, 16
      %v1809 = vrot.slane %v1807, 2
      %v1810 = vor.u32 %v1806, %v1809
      %v1811 = vsel %vm1794, %v1802, %v1810
      %v1813 = vshrl.u32 %v1540, 16
      %v1815 = vrot.slane %v1813, 1
      %v1816 = vshll.u32 %v1540, 16
      %v1818 = vrot.slane %v1816, 2
      %v1819 = vor.u32 %v1815, %v1818
      %v1820 = vsel %vm1794, %v1810, %v1819
      %v1822 = vshrl.u32 %v1541, 16
      %v1824 = vrot.slane %v1822, 1
      %v1825 = vshll.u32 %v1541, 16
      %v1827 = vrot.slane %v1825, 2
      %v1828 = vor.u32 %v1824, %v1827
      %v1829 = vsel %vm1794, %v1819, %v1828
      %v1831 = vshrl.u32 %v1542, 16
      %v1833 = vrot.slane %v1831, 1
      %v1834 = vshll.u32 %v1542, 16
      %v1836 = vrot.slane %v1834, 2
      %v1837 = vor.u32 %v1833, %v1836
      %v1838 = vsel %vm1794, %v1828, %v1837
      %v1840 = vshrl.u32 %v1543, 16
      %v1842 = vrot.slane %v1840, 1
      %v1843 = vshll.u32 %v1543, 16
      %v1845 = vrot.slane %v1843, 2
      %v1846 = vor.u32 %v1842, %v1845
      %v1847 = vsel %vm1794, %v1837, %v1846
      %v1849 = vshrl.u32 %v1544, 16
      %v1851 = vrot.slane %v1849, 1
      %v1852 = vshll.u32 %v1544, 16
      %v1854 = vrot.slane %v1852, 2
      %v1855 = vor.u32 %v1851, %v1854
      %v1856 = vsel %vm1794, %v1846, %v1855
      %v1858 = vshrl.u32 %v1545, 16
      %v1860 = vrot.slane %v1858, 1
      %v1861 = vshll.u32 %v1545, 16
      %v1863 = vrot.slane %v1861, 2
      %v1864 = vor.u32 %v1860, %v1863
      %v1865 = vsel %vm1794, %v1855, %v1864
      %v1867 = vshrl.u32 %v1546, 16
      %v1869 = vrot.slane %v1867, 1
      %v1870 = vshll.u32 %v1546, 16
      %v1872 = vrot.slane %v1870, 2
      %v1873 = vor.u32 %v1869, %v1872
      %v1874 = vsel %vm1794, %v1864, %v1873
      %v1876 = vshrl.u32 %v1547, 16
      %v1878 = vrot.slane %v1876, 1
      %v1879 = vshll.u32 %v1547, 16
      %v1881 = vrot.slane %v1879, 2
      %v1882 = vor.u32 %v1878, %v1881
      %v1883 = vsel %vm1794, %v1873, %v1882
      %v1885 = vshrl.u32 %v1548, 16
      %v1887 = vrot.slane %v1885, 1
      %v1888 = vshll.u32 %v1548, 16
      %v1890 = vrot.slane %v1888, 2
      %v1891 = vor.u32 %v1887, %v1890
      %v1892 = vsel %vm1794, %v1882, %v1891
      %v1894 = vshrl.u32 %v1549, 16
      %v1896 = vrot.slane %v1894, 1
      %v1897 = vshll.u32 %v1549, 16
      %v1899 = vrot.slane %v1897, 2
      %v1900 = vor.u32 %v1896, %v1899
      %v1901 = vsel %vm1794, %v1891, %v1900
      %v1903 = vshrl.u32 %v1550, 16
      %v1905 = vrot.slane %v1903, 1
      %v1906 = vshll.u32 %v1550, 16
      %v1908 = vrot.slane %v1906, 2
      %v1909 = vor.u32 %v1905, %v1908
      %v1910 = vsel %vm1794, %v1900, %v1909
      %v1912 = vshrl.u32 %v1551, 16
      %v1914 = vrot.slane %v1912, 1
      %v1915 = vshll.u32 %v1551, 16
      %v1917 = vrot.slane %v1915, 2
      %v1918 = vor.u32 %v1914, %v1917
      %v1919 = vsel %vm1794, %v1909, %v1918
      %v1921 = vshrl.u32 %v1552, 16
      %v1923 = vrot.slane %v1921, 1
      %v1924 = vshll.u32 %v1552, 16
      %v1926 = vrot.slane %v1924, 2
      %v1927 = vor.u32 %v1923, %v1926
      %v1928 = vsel %vm1794, %v1918, %v1927
      %v1930 = vshrl.u32 %v1553, 16
      %v1932 = vrot.slane %v1930, 1
      %v1933 = vshll.u32 %v1553, 16
      %v1935 = vrot.slane %v1933, 2
      %v1936 = vor.u32 %v1932, %v1935
      %v1937 = vsel %vm1794, %v1927, %v1936
      %v1939 = vshrl.u32 %v1554, 16
      %v1941 = vrot.slane %v1939, 1
      %v1942 = vshll.u32 %v1554, 16
      %v1944 = vrot.slane %v1942, 2
      %v1945 = vor.u32 %v1941, %v1944
      %v1946 = vsel %vm1794, %v1936, %v1945
      %v1948 = vshrl.u32 %v1555, 16
      %v1950 = vrot.slane %v1948, 1
      %v1951 = vshll.u32 %v1555, 16
      %v1953 = vrot.slane %v1951, 2
      %v1954 = vor.u32 %v1950, %v1953
      %v1955 = vsel %vm1794, %v1945, %v1954
      %v1957 = vshrl.u32 %v1793, 16
      %v1959 = vrot.slane %v1957, 1
      %v1960 = vshll.u32 %v1793, 16
      %v1962 = vrot.slane %v1960, 2
      %v1963 = vor.u32 %v1959, %v1962
      %v1964 = vsel %vm1794, %v1954, %v1963
      %v1966 = vsel %vm897, %v1811, 0
      %v1969 = vsel %vm897, %v1820, 0
      %v1972 = vsel %vm897, %v1829, 0
      %v1975 = vsel %vm897, %v1838, 0
      %v1978 = vsel %vm897, %v1847, 0
      %v1981 = vsel %vm897, %v1856, 0
      %v1984 = vsel %vm897, %v1865, 0
      %v1987 = vsel %vm897, %v1874, 0
      %v1990 = vsel %vm897, %v1883, 0
      %v1993 = vsel %vm897, %v1892, 0
      %v1996 = vsel %vm897, %v1901, 0
      %v1999 = vsel %vm897, %v1910, 0
      %v2002 = vsel %vm897, %v1919, 0
      %v2005 = vsel %vm897, %v1928, 0
      %v2008 = vsel %vm897, %v1937, 0
      %v2011 = vsel %vm897, %v1946, 0
      %v2014 = vsel %vm897, %v1955, 0
      %v2017 = vsel %vm897, %v1964, 0
      %v2020 = vsel %vm952, %v506, 0
      %2022 = vmatpush.bf16.msra.mxu0 0
      %2023 = vmatpush.bf16.msra.mxu0 0
      %2024 = vmatpush.bf16.msra.mxu0 0
      %2025 = vmatpush.bf16.msra.mxu0 0
      %2026 = vmatpush.bf16.msra.mxu0 0
      %2027 = vmatpush.bf16.msra.mxu0 0
      %2028 = vmatpush.bf16.msra.mxu0 0
      %2029 = vmatpush.bf16.msra.mxu0 %v2020
      %2030 = vmatmul.bf16.gmra.mxu0 %v1966
      %v2031 = vpop.f32.mrf.mxu0
      %v2032 = vadd.f32 0.0, %v2031
      %v2033 = vpop.f32.mrf.mxu0
      %v2034 = vadd.f32 0.0, %v2033
      %2035 = vmatmul.bf16.gmra.mxu0 %v1969
      %v2036 = vpop.f32.mrf.mxu0
      %v2037 = vadd.f32 0.0, %v2036
      %v2038 = vpop.f32.mrf.mxu0
      %v2039 = vadd.f32 0.0, %v2038
      %2040 = vmatmul.bf16.gmra.mxu0 %v1972
      %v2041 = vpop.f32.mrf.mxu0
      %v2042 = vadd.f32 0.0, %v2041
      %v2043 = vpop.f32.mrf.mxu0
      %v2044 = vadd.f32 0.0, %v2043
      %2045 = vmatmul.bf16.gmra.mxu0 %v1975
      %v2046 = vpop.f32.mrf.mxu0
      %v2047 = vadd.f32 0.0, %v2046
      %v2048 = vpop.f32.mrf.mxu0
      %v2049 = vadd.f32 0.0, %v2048
      %2050 = vmatmul.bf16.gmra.mxu0 %v1978
      %v2051 = vpop.f32.mrf.mxu0
      %v2052 = vadd.f32 0.0, %v2051
      %v2053 = vpop.f32.mrf.mxu0
      %v2054 = vadd.f32 0.0, %v2053
      %2055 = vmatmul.bf16.gmra.mxu0 %v1981
      %v2056 = vpop.f32.mrf.mxu0
      %v2057 = vadd.f32 0.0, %v2056
      %v2058 = vpop.f32.mrf.mxu0
      %v2059 = vadd.f32 0.0, %v2058
      %2060 = vmatmul.bf16.gmra.mxu0 %v1984
      %v2061 = vpop.f32.mrf.mxu0
      %v2062 = vadd.f32 0.0, %v2061
      %v2063 = vpop.f32.mrf.mxu0
      %v2064 = vadd.f32 0.0, %v2063
      %2065 = vmatmul.bf16.gmra.mxu0 %v1987
      %v2066 = vpop.f32.mrf.mxu0
      %v2067 = vadd.f32 0.0, %v2066
      %v2068 = vpop.f32.mrf.mxu0
      %v2069 = vadd.f32 0.0, %v2068
      %2070 = vmatmul.bf16.gmra.mxu0 %v1990
      %v2071 = vpop.f32.mrf.mxu0
      %v2072 = vadd.f32 0.0, %v2071
      %v2073 = vpop.f32.mrf.mxu0
      %v2074 = vadd.f32 0.0, %v2073
      %2075 = vmatmul.bf16.gmra.mxu0 %v1993
      %v2076 = vpop.f32.mrf.mxu0
      %v2077 = vadd.f32 0.0, %v2076
      %v2078 = vpop.f32.mrf.mxu0
      %v2079 = vadd.f32 0.0, %v2078
      %2080 = vmatmul.bf16.gmra.mxu0 %v1996
      %v2081 = vpop.f32.mrf.mxu0
      %v2082 = vadd.f32 0.0, %v2081
      %v2083 = vpop.f32.mrf.mxu0
      %v2084 = vadd.f32 0.0, %v2083
      %2085 = vmatmul.bf16.gmra.mxu0 %v1999
      %v2086 = vpop.f32.mrf.mxu0
      %v2087 = vadd.f32 0.0, %v2086
      %v2088 = vpop.f32.mrf.mxu0
      %v2089 = vadd.f32 0.0, %v2088
      %2090 = vmatmul.bf16.gmra.mxu0 %v2002
      %v2091 = vpop.f32.mrf.mxu0
      %v2092 = vadd.f32 0.0, %v2091
      %v2093 = vpop.f32.mrf.mxu0
      %v2094 = vadd.f32 0.0, %v2093
      %2095 = vmatmul.bf16.gmra.mxu0 %v2005
      %v2096 = vpop.f32.mrf.mxu0
      %v2097 = vadd.f32 0.0, %v2096
      %v2098 = vpop.f32.mrf.mxu0
      %v2099 = vadd.f32 0.0, %v2098
      %2100 = vmatmul.bf16.gmra.mxu0 %v2008
      %v2101 = vpop.f32.mrf.mxu0
      %v2102 = vadd.f32 0.0, %v2101
      %v2103 = vpop.f32.mrf.mxu0
      %v2104 = vadd.f32 0.0, %v2103
      %2105 = vmatmul.bf16.gmra.mxu0 %v2011
      %v2106 = vpop.f32.mrf.mxu0
      %v2107 = vadd.f32 0.0, %v2106
      %v2108 = vpop.f32.mrf.mxu0
      %v2109 = vadd.f32 0.0, %v2108
      %2110 = vmatmul.bf16.gmra.mxu0 %v2014
      %v2111 = vpop.f32.mrf.mxu0
      %v2112 = vadd.f32 0.0, %v2111
      %v2113 = vpop.f32.mrf.mxu0
      %v2114 = vadd.f32 0.0, %v2113
      %2115 = vmatmul.bf16.gmra.mxu0 %v2017
      %v2116 = vpop.f32.mrf.mxu0
      %v2117 = vadd.f32 0.0, %v2116
      %v2118 = vpop.f32.mrf.mxu0
      %v2119 = vadd.f32 0.0, %v2118
      %2120 = vdwg.mxu0
      %v2121 = vadd.f32 %v1754, %v2032
      %v2122 = vadd.f32 %v1755, %v2034
      %v2123 = vadd.f32 %v1756, %v2037
      %v2124 = vadd.f32 %v1757, %v2039
      %v2125 = vadd.f32 %v1758, %v2042
      %v2126 = vadd.f32 %v1759, %v2044
      %v2127 = vadd.f32 %v1760, %v2047
      %v2128 = vadd.f32 %v1761, %v2049
      %v2129 = vadd.f32 %v1762, %v2052
      %v2130 = vadd.f32 %v1763, %v2054
      %v2131 = vadd.f32 %v1764, %v2057
      %v2132 = vadd.f32 %v1765, %v2059
      %v2133 = vadd.f32 %v1766, %v2062
      %v2134 = vadd.f32 %v1767, %v2064
      %v2135 = vadd.f32 %v1768, %v2067
      %v2136 = vadd.f32 %v1769, %v2069
      %v2137 = vadd.f32 %v1770, %v2072
      %v2138 = vadd.f32 %v1771, %v2074
      %v2139 = vadd.f32 %v1772, %v2077
      %v2140 = vadd.f32 %v1773, %v2079
      %v2141 = vadd.f32 %v1774, %v2082
      %v2142 = vadd.f32 %v1775, %v2084
      %v2143 = vadd.f32 %v1776, %v2087
      %v2144 = vadd.f32 %v1777, %v2089
      %v2145 = vadd.f32 %v1778, %v2092
      %v2146 = vadd.f32 %v1779, %v2094
      %v2147 = vadd.f32 %v1780, %v2097
      %v2148 = vadd.f32 %v1781, %v2099
      %v2149 = vadd.f32 %v1782, %v2102
      %v2150 = vadd.f32 %v1783, %v2104
      %v2151 = vadd.f32 %v1784, %v2107
      %v2152 = vadd.f32 %v1785, %v2109
      %v2153 = vadd.f32 %v1786, %v2112
      %v2154 = vadd.f32 %v1787, %v2114
      %v2155 = vadd.f32 %v1788, %v2117
      %v2156 = vadd.f32 %v1789, %v2119
      %v2157 = vld [vmem:[%s410 + $0x8] sm:$0xc]
      %v2159 = vunpack.c.l.b16 %v2157
      %v2160 = vpack.c.b16 %v1502, %v2159
      %vm2161 = vcmask 1045504
      %v2162 = vrot.slane %v2160, 2
      %v2163 = vrot.slane %v1539, 2
      %v2164 = vsel %vm2161, %v2162, %v2163
      %v2165 = vrot.slane %v1540, 2
      %v2166 = vsel %vm2161, %v2163, %v2165
      %v2167 = vrot.slane %v1541, 2
      %v2168 = vsel %vm2161, %v2165, %v2167
      %v2169 = vrot.slane %v1542, 2
      %v2170 = vsel %vm2161, %v2167, %v2169
      %v2171 = vrot.slane %v1543, 2
      %v2172 = vsel %vm2161, %v2169, %v2171
      %v2173 = vrot.slane %v1544, 2
      %v2174 = vsel %vm2161, %v2171, %v2173
      %v2175 = vrot.slane %v1545, 2
      %v2176 = vsel %vm2161, %v2173, %v2175
      %v2177 = vrot.slane %v1546, 2
      %v2178 = vsel %vm2161, %v2175, %v2177
      %v2179 = vrot.slane %v1547, 2
      %v2180 = vsel %vm2161, %v2177, %v2179
      %v2181 = vrot.slane %v1548, 2
      %v2182 = vsel %vm2161, %v2179, %v2181
      %v2183 = vrot.slane %v1549, 2
      %v2184 = vsel %vm2161, %v2181, %v2183
      %v2185 = vrot.slane %v1550, 2
      %v2186 = vsel %vm2161, %v2183, %v2185
      %v2187 = vrot.slane %v1551, 2
      %v2188 = vsel %vm2161, %v2185, %v2187
      %v2189 = vrot.slane %v1552, 2
      %v2190 = vsel %vm2161, %v2187, %v2189
      %v2191 = vrot.slane %v1553, 2
      %v2192 = vsel %vm2161, %v2189, %v2191
      %v2193 = vrot.slane %v1554, 2
      %v2194 = vsel %vm2161, %v2191, %v2193
      %v2195 = vrot.slane %v1555, 2
      %v2196 = vsel %vm2161, %v2193, %v2195
      %v2197 = vrot.slane %v1793, 2
      %v2198 = vsel %vm2161, %v2195, %v2197
      %v2200 = vunpack.c.l.b16 %v506
      %v2201 = vpack.c.b16 %v2200, %v2200
      %v2202 = vrot.slane %v2201, 2
      %v2204 = vsel %vm897, %v2164, 0
      %v2207 = vsel %vm897, %v2166, 0
      %v2210 = vsel %vm897, %v2168, 0
      %v2213 = vsel %vm897, %v2170, 0
      %v2216 = vsel %vm897, %v2172, 0
      %v2219 = vsel %vm897, %v2174, 0
      %v2222 = vsel %vm897, %v2176, 0
      %v2225 = vsel %vm897, %v2178, 0
      %v2228 = vsel %vm897, %v2180, 0
      %v2231 = vsel %vm897, %v2182, 0
      %v2234 = vsel %vm897, %v2184, 0
      %v2237 = vsel %vm897, %v2186, 0
      %v2240 = vsel %vm897, %v2188, 0
      %v2243 = vsel %vm897, %v2190, 0
      %v2246 = vsel %vm897, %v2192, 0
      %v2249 = vsel %vm897, %v2194, 0
      %v2252 = vsel %vm897, %v2196, 0
      %v2255 = vsel %vm897, %v2198, 0
      %v2258 = vsel %vm952, %v2202, 0
      %2260 = vmatpush.bf16.msra.mxu0 0
      %2261 = vmatpush.bf16.msra.mxu0 0
      %2262 = vmatpush.bf16.msra.mxu0 0
      %2263 = vmatpush.bf16.msra.mxu0 0
      %2264 = vmatpush.bf16.msra.mxu0 0
      %2265 = vmatpush.bf16.msra.mxu0 0
      %2266 = vmatpush.bf16.msra.mxu0 0
      %2267 = vmatpush.bf16.msra.mxu0 %v2258
      %2268 = vmatmul.bf16.gmra.mxu0 %v2204
      %v2269 = vpop.f32.mrf.mxu0
      %v2270 = vadd.f32 0.0, %v2269
      %v2271 = vpop.f32.mrf.mxu0
      %v2272 = vadd.f32 0.0, %v2271
      %2273 = vmatmul.bf16.gmra.mxu0 %v2207
      %v2274 = vpop.f32.mrf.mxu0
      %v2275 = vadd.f32 0.0, %v2274
      %v2276 = vpop.f32.mrf.mxu0
      %v2277 = vadd.f32 0.0, %v2276
      %2278 = vmatmul.bf16.gmra.mxu0 %v2210
      %v2279 = vpop.f32.mrf.mxu0
      %v2280 = vadd.f32 0.0, %v2279
      %v2281 = vpop.f32.mrf.mxu0
      %v2282 = vadd.f32 0.0, %v2281
      %2283 = vmatmul.bf16.gmra.mxu0 %v2213
      %v2284 = vpop.f32.mrf.mxu0
      %v2285 = vadd.f32 0.0, %v2284
      %v2286 = vpop.f32.mrf.mxu0
      %v2287 = vadd.f32 0.0, %v2286
      %2288 = vmatmul.bf16.gmra.mxu0 %v2216
      %v2289 = vpop.f32.mrf.mxu0
      %v2290 = vadd.f32 0.0, %v2289
      %v2291 = vpop.f32.mrf.mxu0
      %v2292 = vadd.f32 0.0, %v2291
      %2293 = vmatmul.bf16.gmra.mxu0 %v2219
      %v2294 = vpop.f32.mrf.mxu0
      %v2295 = vadd.f32 0.0, %v2294
      %v2296 = vpop.f32.mrf.mxu0
      %v2297 = vadd.f32 0.0, %v2296
      %2298 = vmatmul.bf16.gmra.mxu0 %v2222
      %v2299 = vpop.f32.mrf.mxu0
      %v2300 = vadd.f32 0.0, %v2299
      %v2301 = vpop.f32.mrf.mxu0
      %v2302 = vadd.f32 0.0, %v2301
      %2303 = vmatmul.bf16.gmra.mxu0 %v2225
      %v2304 = vpop.f32.mrf.mxu0
      %v2305 = vadd.f32 0.0, %v2304
      %v2306 = vpop.f32.mrf.mxu0
      %v2307 = vadd.f32 0.0, %v2306
      %2308 = vmatmul.bf16.gmra.mxu0 %v2228
      %v2309 = vpop.f32.mrf.mxu0
      %v2310 = vadd.f32 0.0, %v2309
      %v2311 = vpop.f32.mrf.mxu0
      %v2312 = vadd.f32 0.0, %v2311
      %2313 = vmatmul.bf16.gmra.mxu0 %v2231
      %v2314 = vpop.f32.mrf.mxu0
      %v2315 = vadd.f32 0.0, %v2314
      %v2316 = vpop.f32.mrf.mxu0
      %v2317 = vadd.f32 0.0, %v2316
      %2318 = vmatmul.bf16.gmra.mxu0 %v2234
      %v2319 = vpop.f32.mrf.mxu0
      %v2320 = vadd.f32 0.0, %v2319
      %v2321 = vpop.f32.mrf.mxu0
      %v2322 = vadd.f32 0.0, %v2321
      %2323 = vmatmul.bf16.gmra.mxu0 %v2237
      %v2324 = vpop.f32.mrf.mxu0
      %v2325 = vadd.f32 0.0, %v2324
      %v2326 = vpop.f32.mrf.mxu0
      %v2327 = vadd.f32 0.0, %v2326
      %2328 = vmatmul.bf16.gmra.mxu0 %v2240
      %v2329 = vpop.f32.mrf.mxu0
      %v2330 = vadd.f32 0.0, %v2329
      %v2331 = vpop.f32.mrf.mxu0
      %v2332 = vadd.f32 0.0, %v2331
      %2333 = vmatmul.bf16.gmra.mxu0 %v2243
      %v2334 = vpop.f32.mrf.mxu0
      %v2335 = vadd.f32 0.0, %v2334
      %v2336 = vpop.f32.mrf.mxu0
      %v2337 = vadd.f32 0.0, %v2336
      %2338 = vmatmul.bf16.gmra.mxu0 %v2246
      %v2339 = vpop.f32.mrf.mxu0
      %v2340 = vadd.f32 0.0, %v2339
      %v2341 = vpop.f32.mrf.mxu0
      %v2342 = vadd.f32 0.0, %v2341
      %2343 = vmatmul.bf16.gmra.mxu0 %v2249
      %v2344 = vpop.f32.mrf.mxu0
      %v2345 = vadd.f32 0.0, %v2344
      %v2346 = vpop.f32.mrf.mxu0
      %v2347 = vadd.f32 0.0, %v2346
      %2348 = vmatmul.bf16.gmra.mxu0 %v2252
      %v2349 = vpop.f32.mrf.mxu0
      %v2350 = vadd.f32 0.0, %v2349
      %v2351 = vpop.f32.mrf.mxu0
      %v2352 = vadd.f32 0.0, %v2351
      %2353 = vmatmul.bf16.gmra.mxu0 %v2255
      %v2354 = vpop.f32.mrf.mxu0
      %v2355 = vadd.f32 0.0, %v2354
      %v2356 = vpop.f32.mrf.mxu0
      %v2357 = vadd.f32 0.0, %v2356
      %2358 = vdwg.mxu0
      %v2359 = vadd.f32 %v2121, %v2270
      %v2360 = vadd.f32 %v2122, %v2272
      %v2361 = vadd.f32 %v2123, %v2275
      %v2362 = vadd.f32 %v2124, %v2277
      %v2363 = vadd.f32 %v2125, %v2280
      %v2364 = vadd.f32 %v2126, %v2282
      %v2365 = vadd.f32 %v2127, %v2285
      %v2366 = vadd.f32 %v2128, %v2287
      %v2367 = vadd.f32 %v2129, %v2290
      %v2368 = vadd.f32 %v2130, %v2292
      %v2369 = vadd.f32 %v2131, %v2295
      %v2370 = vadd.f32 %v2132, %v2297
      %v2371 = vadd.f32 %v2133, %v2300
      %v2372 = vadd.f32 %v2134, %v2302
      %v2373 = vadd.f32 %v2135, %v2305
      %v2374 = vadd.f32 %v2136, %v2307
      %v2375 = vadd.f32 %v2137, %v2310
      %v2376 = vadd.f32 %v2138, %v2312
      %v2377 = vadd.f32 %v2139, %v2315
      %v2378 = vadd.f32 %v2140, %v2317
      %v2379 = vadd.f32 %v2141, %v2320
      %v2380 = vadd.f32 %v2142, %v2322
      %v2381 = vadd.f32 %v2143, %v2325
      %v2382 = vadd.f32 %v2144, %v2327
      %v2383 = vadd.f32 %v2145, %v2330
      %v2384 = vadd.f32 %v2146, %v2332
      %v2385 = vadd.f32 %v2147, %v2335
      %v2386 = vadd.f32 %v2148, %v2337
      %v2387 = vadd.f32 %v2149, %v2340
      %v2388 = vadd.f32 %v2150, %v2342
      %v2389 = vadd.f32 %v2151, %v2345
      %v2390 = vadd.f32 %v2152, %v2347
      %v2391 = vadd.f32 %v2153, %v2350
      %v2392 = vadd.f32 %v2154, %v2352
      %v2393 = vadd.f32 %v2155, %v2355
      %v2394 = vadd.f32 %v2156, %v2357
      %v2395 = vld [vmem:[%s410 + $0x10] sm:$0xc]
      %v2396 = vld [vmem:[%s410 + $0x14] sm:$0xf]
      %v2397 = vld [vmem:[%s410 + $0x18] sm:$0xf]
      %v2398 = vld [vmem:[%s410 + $0x1c] sm:$0xf]
      %v2399 = vld [vmem:[%s410 + $0x20] sm:$0xf]
      %v2400 = vld [vmem:[%s410 + $0x24] sm:$0xf]
      %v2401 = vld [vmem:[%s410 + $0x28] sm:$0xf]
      %v2402 = vld [vmem:[%s410 + $0x2c] sm:$0xf]
      %v2403 = vld [vmem:[%s410 + $0x30] sm:$0xf]
      %v2404 = vld [vmem:[%s410 + $0x34] sm:$0xf]
      %v2405 = vld [vmem:[%s410 + $0x38] sm:$0xf]
      %v2406 = vld [vmem:[%s410 + $0x3c] sm:$0xf]
      %v2407 = vld [vmem:[%s410 + $0x40] sm:$0xf]
      %v2408 = vld [vmem:[%s410 + $0x44] sm:$0xf]
      %v2409 = vld [vmem:[%s410 + $0x48] sm:$0xf]
      %v2410 = vld [vmem:[%s410 + $0x4c] sm:$0xf]
      %v2411 = vld [vmem:[%s410 + $0x50] sm:$0xf]
      %v2412 = vld [vmem:[%s410 + $0x54] sm:$0xf]
      %v2413 = vld [vmem:[%s410 + $0x58] sm:$0xf]
      %v2414 = vld [vmem:[%s410 + $0x5c] sm:$0xf]
      %v2415 = vld [vmem:[%s410 + $0x60] sm:$0xf]
      %v2416 = vld [vmem:[%s410 + $0x64] sm:$0xf]
      %v2417 = vld [vmem:[%s410 + $0x68] sm:$0xf]
      %v2418 = vld [vmem:[%s410 + $0x6c] sm:$0xf]
      %v2419 = vld [vmem:[%s410 + $0x70] sm:$0xf]
      %v2420 = vld [vmem:[%s410 + $0x74] sm:$0xf]
      %v2421 = vld [vmem:[%s410 + $0x78] sm:$0xf]
      %v2422 = vld [vmem:[%s410 + $0x7c] sm:$0xf]
      %v2423 = vld [vmem:[%s410 + $0x80] sm:$0xf]
      %v2424 = vld [vmem:[%s410 + $0x84] sm:$0xf]
      %v2425 = vld [vmem:[%s410 + $0x88] sm:$0xf]
      %v2426 = vld [vmem:[%s410 + $0x8c] sm:$0xf]
      %v2427 = vld [vmem:[%s410 + $0x90] sm:$0xf]
      %v2428 = vld [vmem:[%s410 + $0x94] sm:$0xf]
      %v2429 = vld [vmem:[%s410 + $0x98] sm:$0xf]
      %v2430 = vld [vmem:[%s410 + $0x9c] sm:$0xf]
      %v2431 = vld [vmem:[%s410 + $0xa0] sm:$0x3]
      %v2469 = vunpack.c.l.b16 %v2395
      %v2470 = vunpack.c.l.b16 %v2396
      %v2471 = vunpack.c.l.b16 %v2397
      %v2472 = vunpack.c.l.b16 %v2398
      %v2473 = vunpack.c.l.b16 %v2399
      %v2474 = vunpack.c.l.b16 %v2400
      %v2475 = vunpack.c.l.b16 %v2401
      %v2476 = vunpack.c.l.b16 %v2402
      %v2477 = vunpack.c.l.b16 %v2403
      %v2478 = vunpack.c.l.b16 %v2404
      %v2479 = vunpack.c.l.b16 %v2405
      %v2480 = vunpack.c.l.b16 %v2406
      %v2481 = vunpack.c.l.b16 %v2407
      %v2482 = vunpack.c.l.b16 %v2408
      %v2483 = vunpack.c.l.b16 %v2409
      %v2484 = vunpack.c.l.b16 %v2410
      %v2485 = vunpack.c.l.b16 %v2411
      %v2486 = vunpack.c.l.b16 %v2412
      %v2487 = vunpack.c.l.b16 %v2413
      %v2488 = vunpack.c.l.b16 %v2414
      %v2489 = vunpack.c.l.b16 %v2415
      %v2490 = vunpack.c.l.b16 %v2416
      %v2491 = vunpack.c.l.b16 %v2417
      %v2492 = vunpack.c.l.b16 %v2418
      %v2493 = vunpack.c.l.b16 %v2419
      %v2494 = vunpack.c.l.b16 %v2420
      %v2495 = vunpack.c.l.b16 %v2421
      %v2496 = vunpack.c.l.b16 %v2422
      %v2497 = vunpack.c.l.b16 %v2423
      %v2498 = vunpack.c.l.b16 %v2424
      %v2499 = vunpack.c.l.b16 %v2425
      %v2500 = vunpack.c.l.b16 %v2426
      %v2501 = vunpack.c.l.b16 %v2427
      %v2502 = vunpack.c.l.b16 %v2428
      %v2503 = vunpack.c.l.b16 %v2429
      %v2504 = vunpack.c.l.b16 %v2430
      %v2505 = vunpack.c.l.b16 %v2431
      %v2506 = vpack.c.b16 %v2470, %v2469
      %v2507 = vpack.c.b16 %v2472, %v2471
      %v2508 = vpack.c.b16 %v2474, %v2473
      %v2509 = vpack.c.b16 %v2476, %v2475
      %v2510 = vpack.c.b16 %v2478, %v2477
      %v2511 = vpack.c.b16 %v2480, %v2479
      %v2512 = vpack.c.b16 %v2482, %v2481
      %v2513 = vpack.c.b16 %v2484, %v2483
      %v2514 = vpack.c.b16 %v2486, %v2485
      %v2515 = vpack.c.b16 %v2488, %v2487
      %v2516 = vpack.c.b16 %v2490, %v2489
      %v2517 = vpack.c.b16 %v2492, %v2491
      %v2518 = vpack.c.b16 %v2494, %v2493
      %v2519 = vpack.c.b16 %v2496, %v2495
      %v2520 = vpack.c.b16 %v2498, %v2497
      %v2521 = vpack.c.b16 %v2500, %v2499
      %v2522 = vpack.c.b16 %v2502, %v2501
      %v2523 = vpack.c.b16 %v2504, %v2503
      %v2524 = vpack.c.b16 %v2505, %v2505
      %v2525 = vrot.slane %v2506, 2
      %v2526 = vrot.slane %v2507, 2
      %v2527 = vsel %vm2161, %v2525, %v2526
      %v2528 = vrot.slane %v2508, 2
      %v2529 = vsel %vm2161, %v2526, %v2528
      %v2530 = vrot.slane %v2509, 2
      %v2531 = vsel %vm2161, %v2528, %v2530
      %v2532 = vrot.slane %v2510, 2
      %v2533 = vsel %vm2161, %v2530, %v2532
      %v2534 = vrot.slane %v2511, 2
      %v2535 = vsel %vm2161, %v2532, %v2534
      %v2536 = vrot.slane %v2512, 2
      %v2537 = vsel %vm2161, %v2534, %v2536
      %v2538 = vrot.slane %v2513, 2
      %v2539 = vsel %vm2161, %v2536, %v2538
      %v2540 = vrot.slane %v2514, 2
      %v2541 = vsel %vm2161, %v2538, %v2540
      %v2542 = vrot.slane %v2515, 2
      %v2543 = vsel %vm2161, %v2540, %v2542
      %v2544 = vrot.slane %v2516, 2
      %v2545 = vsel %vm2161, %v2542, %v2544
      %v2546 = vrot.slane %v2517, 2
      %v2547 = vsel %vm2161, %v2544, %v2546
      %v2548 = vrot.slane %v2518, 2
      %v2549 = vsel %vm2161, %v2546, %v2548
      %v2550 = vrot.slane %v2519, 2
      %v2551 = vsel %vm2161, %v2548, %v2550
      %v2552 = vrot.slane %v2520, 2
      %v2553 = vsel %vm2161, %v2550, %v2552
      %v2554 = vrot.slane %v2521, 2
      %v2555 = vsel %vm2161, %v2552, %v2554
      %v2556 = vrot.slane %v2522, 2
      %v2557 = vsel %vm2161, %v2554, %v2556
      %v2558 = vrot.slane %v2523, 2
      %v2559 = vsel %vm2161, %v2556, %v2558
      %v2560 = vrot.slane %v2524, 2
      %v2561 = vsel %vm2161, %v2558, %v2560
      %v2563 = vsel %vm897, %v2527, 0
      %v2566 = vsel %vm897, %v2529, 0
      %v2569 = vsel %vm897, %v2531, 0
      %v2572 = vsel %vm897, %v2533, 0
      %v2575 = vsel %vm897, %v2535, 0
      %v2578 = vsel %vm897, %v2537, 0
      %v2581 = vsel %vm897, %v2539, 0
      %v2584 = vsel %vm897, %v2541, 0
      %v2587 = vsel %vm897, %v2543, 0
      %v2590 = vsel %vm897, %v2545, 0
      %v2593 = vsel %vm897, %v2547, 0
      %v2596 = vsel %vm897, %v2549, 0
      %v2599 = vsel %vm897, %v2551, 0
      %v2602 = vsel %vm897, %v2553, 0
      %v2605 = vsel %vm897, %v2555, 0
      %v2608 = vsel %vm897, %v2557, 0
      %v2611 = vsel %vm897, %v2559, 0
      %v2614 = vsel %vm897, %v2561, 0
      %v2617 = vsel %vm952, %v507, 0
      %2619 = vmatpush.bf16.msra.mxu0 0
      %2620 = vmatpush.bf16.msra.mxu0 0
      %2621 = vmatpush.bf16.msra.mxu0 0
      %2622 = vmatpush.bf16.msra.mxu0 0
      %2623 = vmatpush.bf16.msra.mxu0 0
      %2624 = vmatpush.bf16.msra.mxu0 0
      %2625 = vmatpush.bf16.msra.mxu0 0
      %2626 = vmatpush.bf16.msra.mxu0 %v2617
      %2627 = vmatmul.bf16.gmra.mxu0 %v2563
      %v2628 = vpop.f32.mrf.mxu0
      %v2629 = vadd.f32 0.0, %v2628
      %v2630 = vpop.f32.mrf.mxu0
      %v2631 = vadd.f32 0.0, %v2630
      %2632 = vmatmul.bf16.gmra.mxu0 %v2566
      %v2633 = vpop.f32.mrf.mxu0
      %v2634 = vadd.f32 0.0, %v2633
      %v2635 = vpop.f32.mrf.mxu0
      %v2636 = vadd.f32 0.0, %v2635
      %2637 = vmatmul.bf16.gmra.mxu0 %v2569
      %v2638 = vpop.f32.mrf.mxu0
      %v2639 = vadd.f32 0.0, %v2638
      %v2640 = vpop.f32.mrf.mxu0
      %v2641 = vadd.f32 0.0, %v2640
      %2642 = vmatmul.bf16.gmra.mxu0 %v2572
      %v2643 = vpop.f32.mrf.mxu0
      %v2644 = vadd.f32 0.0, %v2643
      %v2645 = vpop.f32.mrf.mxu0
      %v2646 = vadd.f32 0.0, %v2645
      %2647 = vmatmul.bf16.gmra.mxu0 %v2575
      %v2648 = vpop.f32.mrf.mxu0
      %v2649 = vadd.f32 0.0, %v2648
      %v2650 = vpop.f32.mrf.mxu0
      %v2651 = vadd.f32 0.0, %v2650
      %2652 = vmatmul.bf16.gmra.mxu0 %v2578
      %v2653 = vpop.f32.mrf.mxu0
      %v2654 = vadd.f32 0.0, %v2653
      %v2655 = vpop.f32.mrf.mxu0
      %v2656 = vadd.f32 0.0, %v2655
      %2657 = vmatmul.bf16.gmra.mxu0 %v2581
      %v2658 = vpop.f32.mrf.mxu0
      %v2659 = vadd.f32 0.0, %v2658
      %v2660 = vpop.f32.mrf.mxu0
      %v2661 = vadd.f32 0.0, %v2660
      %2662 = vmatmul.bf16.gmra.mxu0 %v2584
      %v2663 = vpop.f32.mrf.mxu0
      %v2664 = vadd.f32 0.0, %v2663
      %v2665 = vpop.f32.mrf.mxu0
      %v2666 = vadd.f32 0.0, %v2665
      %2667 = vmatmul.bf16.gmra.mxu0 %v2587
      %v2668 = vpop.f32.mrf.mxu0
      %v2669 = vadd.f32 0.0, %v2668
      %v2670 = vpop.f32.mrf.mxu0
      %v2671 = vadd.f32 0.0, %v2670
      %2672 = vmatmul.bf16.gmra.mxu0 %v2590
      %v2673 = vpop.f32.mrf.mxu0
      %v2674 = vadd.f32 0.0, %v2673
      %v2675 = vpop.f32.mrf.mxu0
      %v2676 = vadd.f32 0.0, %v2675
      %2677 = vmatmul.bf16.gmra.mxu0 %v2593
      %v2678 = vpop.f32.mrf.mxu0
      %v2679 = vadd.f32 0.0, %v2678
      %v2680 = vpop.f32.mrf.mxu0
      %v2681 = vadd.f32 0.0, %v2680
      %2682 = vmatmul.bf16.gmra.mxu0 %v2596
      %v2683 = vpop.f32.mrf.mxu0
      %v2684 = vadd.f32 0.0, %v2683
      %v2685 = vpop.f32.mrf.mxu0
      %v2686 = vadd.f32 0.0, %v2685
      %2687 = vmatmul.bf16.gmra.mxu0 %v2599
      %v2688 = vpop.f32.mrf.mxu0
      %v2689 = vadd.f32 0.0, %v2688
      %v2690 = vpop.f32.mrf.mxu0
      %v2691 = vadd.f32 0.0, %v2690
      %2692 = vmatmul.bf16.gmra.mxu0 %v2602
      %v2693 = vpop.f32.mrf.mxu0
      %v2694 = vadd.f32 0.0, %v2693
      %v2695 = vpop.f32.mrf.mxu0
      %v2696 = vadd.f32 0.0, %v2695
      %2697 = vmatmul.bf16.gmra.mxu0 %v2605
      %v2698 = vpop.f32.mrf.mxu0
      %v2699 = vadd.f32 0.0, %v2698
      %v2700 = vpop.f32.mrf.mxu0
      %v2701 = vadd.f32 0.0, %v2700
      %2702 = vmatmul.bf16.gmra.mxu0 %v2608
      %v2703 = vpop.f32.mrf.mxu0
      %v2704 = vadd.f32 0.0, %v2703
      %v2705 = vpop.f32.mrf.mxu0
      %v2706 = vadd.f32 0.0, %v2705
      %2707 = vmatmul.bf16.gmra.mxu0 %v2611
      %v2708 = vpop.f32.mrf.mxu0
      %v2709 = vadd.f32 0.0, %v2708
      %v2710 = vpop.f32.mrf.mxu0
      %v2711 = vadd.f32 0.0, %v2710
      %2712 = vmatmul.bf16.gmra.mxu0 %v2614
      %v2713 = vpop.f32.mrf.mxu0
      %v2714 = vadd.f32 0.0, %v2713
      %v2715 = vpop.f32.mrf.mxu0
      %v2716 = vadd.f32 0.0, %v2715
      %2717 = vdwg.mxu0
      %v2718 = vadd.f32 %v2359, %v2629
      %v2719 = vadd.f32 %v2360, %v2631
      %v2720 = vadd.f32 %v2361, %v2634
      %v2721 = vadd.f32 %v2362, %v2636
      %v2722 = vadd.f32 %v2363, %v2639
      %v2723 = vadd.f32 %v2364, %v2641
      %v2724 = vadd.f32 %v2365, %v2644
      %v2725 = vadd.f32 %v2366, %v2646
      %v2726 = vadd.f32 %v2367, %v2649
      %v2727 = vadd.f32 %v2368, %v2651
      %v2728 = vadd.f32 %v2369, %v2654
      %v2729 = vadd.f32 %v2370, %v2656
      %v2730 = vadd.f32 %v2371, %v2659
      %v2731 = vadd.f32 %v2372, %v2661
      %v2732 = vadd.f32 %v2373, %v2664
      %v2733 = vadd.f32 %v2374, %v2666
      %v2734 = vadd.f32 %v2375, %v2669
      %v2735 = vadd.f32 %v2376, %v2671
      %v2736 = vadd.f32 %v2377, %v2674
      %v2737 = vadd.f32 %v2378, %v2676
      %v2738 = vadd.f32 %v2379, %v2679
      %v2739 = vadd.f32 %v2380, %v2681
      %v2740 = vadd.f32 %v2381, %v2684
      %v2741 = vadd.f32 %v2382, %v2686
      %v2742 = vadd.f32 %v2383, %v2689
      %v2743 = vadd.f32 %v2384, %v2691
      %v2744 = vadd.f32 %v2385, %v2694
      %v2745 = vadd.f32 %v2386, %v2696
      %v2746 = vadd.f32 %v2387, %v2699
      %v2747 = vadd.f32 %v2388, %v2701
      %v2748 = vadd.f32 %v2389, %v2704
      %v2749 = vadd.f32 %v2390, %v2706
      %v2750 = vadd.f32 %v2391, %v2709
      %v2751 = vadd.f32 %v2392, %v2711
      %v2752 = vadd.f32 %v2393, %v2714
      %v2753 = vadd.f32 %v2394, %v2716
      %v2754 = vld [vmem:[%s410 + $0xa0] sm:$0x7]
      %v2756 = vunpack.c.l.b16 %v2754
      %v2757 = vpack.c.b16 %v2756, %v2756
      %vm2758 = vsmask.f32 5376
      %v2760 = vshrl.u32 %v2506, 16
      %v2762 = vrot.slane %v2760, 2
      %v2763 = vshll.u32 %v2506, 16
      %v2765 = vrot.slane %v2763, 3
      %v2766 = vor.u32 %v2762, %v2765
      %v2768 = vshrl.u32 %v2507, 16
      %v2770 = vrot.slane %v2768, 2
      %v2771 = vshll.u32 %v2507, 16
      %v2773 = vrot.slane %v2771, 3
      %v2774 = vor.u32 %v2770, %v2773
      %v2775 = vsel %vm2758, %v2766, %v2774
      %v2777 = vshrl.u32 %v2508, 16
      %v2779 = vrot.slane %v2777, 2
      %v2780 = vshll.u32 %v2508, 16
      %v2782 = vrot.slane %v2780, 3
      %v2783 = vor.u32 %v2779, %v2782
      %v2784 = vsel %vm2758, %v2774, %v2783
      %v2786 = vshrl.u32 %v2509, 16
      %v2788 = vrot.slane %v2786, 2
      %v2789 = vshll.u32 %v2509, 16
      %v2791 = vrot.slane %v2789, 3
      %v2792 = vor.u32 %v2788, %v2791
      %v2793 = vsel %vm2758, %v2783, %v2792
      %v2795 = vshrl.u32 %v2510, 16
      %v2797 = vrot.slane %v2795, 2
      %v2798 = vshll.u32 %v2510, 16
      %v2800 = vrot.slane %v2798, 3
      %v2801 = vor.u32 %v2797, %v2800
      %v2802 = vsel %vm2758, %v2792, %v2801
      %v2804 = vshrl.u32 %v2511, 16
      %v2806 = vrot.slane %v2804, 2
      %v2807 = vshll.u32 %v2511, 16
      %v2809 = vrot.slane %v2807, 3
      %v2810 = vor.u32 %v2806, %v2809
      %v2811 = vsel %vm2758, %v2801, %v2810
      %v2813 = vshrl.u32 %v2512, 16
      %v2815 = vrot.slane %v2813, 2
      %v2816 = vshll.u32 %v2512, 16
      %v2818 = vrot.slane %v2816, 3
      %v2819 = vor.u32 %v2815, %v2818
      %v2820 = vsel %vm2758, %v2810, %v2819
      %v2822 = vshrl.u32 %v2513, 16
      %v2824 = vrot.slane %v2822, 2
      %v2825 = vshll.u32 %v2513, 16
      %v2827 = vrot.slane %v2825, 3
      %v2828 = vor.u32 %v2824, %v2827
      %v2829 = vsel %vm2758, %v2819, %v2828
      %v2831 = vshrl.u32 %v2514, 16
      %v2833 = vrot.slane %v2831, 2
      %v2834 = vshll.u32 %v2514, 16
      %v2836 = vrot.slane %v2834, 3
      %v2837 = vor.u32 %v2833, %v2836
      %v2838 = vsel %vm2758, %v2828, %v2837
      %v2840 = vshrl.u32 %v2515, 16
      %v2842 = vrot.slane %v2840, 2
      %v2843 = vshll.u32 %v2515, 16
      %v2845 = vrot.slane %v2843, 3
      %v2846 = vor.u32 %v2842, %v2845
      %v2847 = vsel %vm2758, %v2837, %v2846
      %v2849 = vshrl.u32 %v2516, 16
      %v2851 = vrot.slane %v2849, 2
      %v2852 = vshll.u32 %v2516, 16
      %v2854 = vrot.slane %v2852, 3
      %v2855 = vor.u32 %v2851, %v2854
      %v2856 = vsel %vm2758, %v2846, %v2855
      %v2858 = vshrl.u32 %v2517, 16
      %v2860 = vrot.slane %v2858, 2
      %v2861 = vshll.u32 %v2517, 16
      %v2863 = vrot.slane %v2861, 3
      %v2864 = vor.u32 %v2860, %v2863
      %v2865 = vsel %vm2758, %v2855, %v2864
      %v2867 = vshrl.u32 %v2518, 16
      %v2869 = vrot.slane %v2867, 2
      %v2870 = vshll.u32 %v2518, 16
      %v2872 = vrot.slane %v2870, 3
      %v2873 = vor.u32 %v2869, %v2872
      %v2874 = vsel %vm2758, %v2864, %v2873
      %v2876 = vshrl.u32 %v2519, 16
      %v2878 = vrot.slane %v2876, 2
      %v2879 = vshll.u32 %v2519, 16
      %v2881 = vrot.slane %v2879, 3
      %v2882 = vor.u32 %v2878, %v2881
      %v2883 = vsel %vm2758, %v2873, %v2882
      %v2885 = vshrl.u32 %v2520, 16
      %v2887 = vrot.slane %v2885, 2
      %v2888 = vshll.u32 %v2520, 16
      %v2890 = vrot.slane %v2888, 3
      %v2891 = vor.u32 %v2887, %v2890
      %v2892 = vsel %vm2758, %v2882, %v2891
      %v2894 = vshrl.u32 %v2521, 16
      %v2896 = vrot.slane %v2894, 2
      %v2897 = vshll.u32 %v2521, 16
      %v2899 = vrot.slane %v2897, 3
      %v2900 = vor.u32 %v2896, %v2899
      %v2901 = vsel %vm2758, %v2891, %v2900
      %v2903 = vshrl.u32 %v2522, 16
      %v2905 = vrot.slane %v2903, 2
      %v2906 = vshll.u32 %v2522, 16
      %v2908 = vrot.slane %v2906, 3
      %v2909 = vor.u32 %v2905, %v2908
      %v2910 = vsel %vm2758, %v2900, %v2909
      %v2912 = vshrl.u32 %v2523, 16
      %v2914 = vrot.slane %v2912, 2
      %v2915 = vshll.u32 %v2523, 16
      %v2917 = vrot.slane %v2915, 3
      %v2918 = vor.u32 %v2914, %v2917
      %v2919 = vsel %vm2758, %v2909, %v2918
      %v2921 = vshrl.u32 %v2757, 16
      %v2923 = vrot.slane %v2921, 2
      %v2924 = vshll.u32 %v2757, 16
      %v2926 = vrot.slane %v2924, 3
      %v2927 = vor.u32 %v2923, %v2926
      %v2928 = vsel %vm2758, %v2918, %v2927
      %v2930 = vunpack.c.l.b16 %v507
      %v2931 = vpack.c.b16 %v2930, %v2930
      %v2932 = vrot.slane %v2931, 2
      %v2934 = vsel %vm897, %v2775, 0
      %v2937 = vsel %vm897, %v2784, 0
      %v2940 = vsel %vm897, %v2793, 0
      %v2943 = vsel %vm897, %v2802, 0
      %v2946 = vsel %vm897, %v2811, 0
      %v2949 = vsel %vm897, %v2820, 0
      %v2952 = vsel %vm897, %v2829, 0
      %v2955 = vsel %vm897, %v2838, 0
      %v2958 = vsel %vm897, %v2847, 0
      %v2961 = vsel %vm897, %v2856, 0
      %v2964 = vsel %vm897, %v2865, 0
      %v2967 = vsel %vm897, %v2874, 0
      %v2970 = vsel %vm897, %v2883, 0
      %v2973 = vsel %vm897, %v2892, 0
      %v2976 = vsel %vm897, %v2901, 0
      %v2979 = vsel %vm897, %v2910, 0
      %v2982 = vsel %vm897, %v2919, 0
      %v2985 = vsel %vm897, %v2928, 0
      %v2988 = vsel %vm952, %v2932, 0
      %2990 = vmatpush.bf16.msra.mxu0 0
      %2991 = vmatpush.bf16.msra.mxu0 0
      %2992 = vmatpush.bf16.msra.mxu0 0
      %2993 = vmatpush.bf16.msra.mxu0 0
      %2994 = vmatpush.bf16.msra.mxu0 0
      %2995 = vmatpush.bf16.msra.mxu0 0
      %2996 = vmatpush.bf16.msra.mxu0 0
      %2997 = vmatpush.bf16.msra.mxu0 %v2988
      %2998 = vmatmul.bf16.gmra.mxu0 %v2934
      %v2999 = vpop.f32.mrf.mxu0
      %v3000 = vadd.f32 0.0, %v2999
      %v3001 = vpop.f32.mrf.mxu0
      %v3002 = vadd.f32 0.0, %v3001
      %3003 = vmatmul.bf16.gmra.mxu0 %v2937
      %v3004 = vpop.f32.mrf.mxu0
      %v3005 = vadd.f32 0.0, %v3004
      %v3006 = vpop.f32.mrf.mxu0
      %v3007 = vadd.f32 0.0, %v3006
      %3008 = vmatmul.bf16.gmra.mxu0 %v2940
      %v3009 = vpop.f32.mrf.mxu0
      %v3010 = vadd.f32 0.0, %v3009
      %v3011 = vpop.f32.mrf.mxu0
      %v3012 = vadd.f32 0.0, %v3011
      %3013 = vmatmul.bf16.gmra.mxu0 %v2943
      %v3014 = vpop.f32.mrf.mxu0
      %v3015 = vadd.f32 0.0, %v3014
      %v3016 = vpop.f32.mrf.mxu0
      %v3017 = vadd.f32 0.0, %v3016
      %3018 = vmatmul.bf16.gmra.mxu0 %v2946
      %v3019 = vpop.f32.mrf.mxu0
      %v3020 = vadd.f32 0.0, %v3019
      %v3021 = vpop.f32.mrf.mxu0
      %v3022 = vadd.f32 0.0, %v3021
      %3023 = vmatmul.bf16.gmra.mxu0 %v2949
      %v3024 = vpop.f32.mrf.mxu0
      %v3025 = vadd.f32 0.0, %v3024
      %v3026 = vpop.f32.mrf.mxu0
      %v3027 = vadd.f32 0.0, %v3026
      %3028 = vmatmul.bf16.gmra.mxu0 %v2952
      %v3029 = vpop.f32.mrf.mxu0
      %v3030 = vadd.f32 0.0, %v3029
      %v3031 = vpop.f32.mrf.mxu0
      %v3032 = vadd.f32 0.0, %v3031
      %3033 = vmatmul.bf16.gmra.mxu0 %v2955
      %v3034 = vpop.f32.mrf.mxu0
      %v3035 = vadd.f32 0.0, %v3034
      %v3036 = vpop.f32.mrf.mxu0
      %v3037 = vadd.f32 0.0, %v3036
      %3038 = vmatmul.bf16.gmra.mxu0 %v2958
      %v3039 = vpop.f32.mrf.mxu0
      %v3040 = vadd.f32 0.0, %v3039
      %v3041 = vpop.f32.mrf.mxu0
      %v3042 = vadd.f32 0.0, %v3041
      %3043 = vmatmul.bf16.gmra.mxu0 %v2961
      %v3044 = vpop.f32.mrf.mxu0
      %v3045 = vadd.f32 0.0, %v3044
      %v3046 = vpop.f32.mrf.mxu0
      %v3047 = vadd.f32 0.0, %v3046
      %3048 = vmatmul.bf16.gmra.mxu0 %v2964
      %v3049 = vpop.f32.mrf.mxu0
      %v3050 = vadd.f32 0.0, %v3049
      %v3051 = vpop.f32.mrf.mxu0
      %v3052 = vadd.f32 0.0, %v3051
      %3053 = vmatmul.bf16.gmra.mxu0 %v2967
      %v3054 = vpop.f32.mrf.mxu0
      %v3055 = vadd.f32 0.0, %v3054
      %v3056 = vpop.f32.mrf.mxu0
      %v3057 = vadd.f32 0.0, %v3056
      %3058 = vmatmul.bf16.gmra.mxu0 %v2970
      %v3059 = vpop.f32.mrf.mxu0
      %v3060 = vadd.f32 0.0, %v3059
      %v3061 = vpop.f32.mrf.mxu0
      %v3062 = vadd.f32 0.0, %v3061
      %3063 = vmatmul.bf16.gmra.mxu0 %v2973
      %v3064 = vpop.f32.mrf.mxu0
      %v3065 = vadd.f32 0.0, %v3064
      %v3066 = vpop.f32.mrf.mxu0
      %v3067 = vadd.f32 0.0, %v3066
      %3068 = vmatmul.bf16.gmra.mxu0 %v2976
      %v3069 = vpop.f32.mrf.mxu0
      %v3070 = vadd.f32 0.0, %v3069
      %v3071 = vpop.f32.mrf.mxu0
      %v3072 = vadd.f32 0.0, %v3071
      %3073 = vmatmul.bf16.gmra.mxu0 %v2979
      %v3074 = vpop.f32.mrf.mxu0
      %v3075 = vadd.f32 0.0, %v3074
      %v3076 = vpop.f32.mrf.mxu0
      %v3077 = vadd.f32 0.0, %v3076
      %3078 = vmatmul.bf16.gmra.mxu0 %v2982
      %v3079 = vpop.f32.mrf.mxu0
      %v3080 = vadd.f32 0.0, %v3079
      %v3081 = vpop.f32.mrf.mxu0
      %v3082 = vadd.f32 0.0, %v3081
      %3083 = vmatmul.bf16.gmra.mxu0 %v2985
      %v3084 = vpop.f32.mrf.mxu0
      %v3085 = vadd.f32 0.0, %v3084
      %v3086 = vpop.f32.mrf.mxu0
      %v3087 = vadd.f32 0.0, %v3086
      %3088 = vdwg.mxu0
      %v3089 = vadd.f32 %v2718, %v3000
      %v3090 = vadd.f32 %v2719, %v3002
      %v3091 = vadd.f32 %v2720, %v3005
      %v3092 = vadd.f32 %v2721, %v3007
      %v3093 = vadd.f32 %v2722, %v3010
      %v3094 = vadd.f32 %v2723, %v3012
      %v3095 = vadd.f32 %v2724, %v3015
      %v3096 = vadd.f32 %v2725, %v3017
      %v3097 = vadd.f32 %v2726, %v3020
      %v3098 = vadd.f32 %v2727, %v3022
      %v3099 = vadd.f32 %v2728, %v3025
      %v3100 = vadd.f32 %v2729, %v3027
      %v3101 = vadd.f32 %v2730, %v3030
      %v3102 = vadd.f32 %v2731, %v3032
      %v3103 = vadd.f32 %v2732, %v3035
      %v3104 = vadd.f32 %v2733, %v3037
      %v3105 = vadd.f32 %v2734, %v3040
      %v3106 = vadd.f32 %v2735, %v3042
      %v3107 = vadd.f32 %v2736, %v3045
      %v3108 = vadd.f32 %v2737, %v3047
      %v3109 = vadd.f32 %v2738, %v3050
      %v3110 = vadd.f32 %v2739, %v3052
      %v3111 = vadd.f32 %v2740, %v3055
      %v3112 = vadd.f32 %v2741, %v3057
      %v3113 = vadd.f32 %v2742, %v3060
      %v3114 = vadd.f32 %v2743, %v3062
      %v3115 = vadd.f32 %v2744, %v3065
      %v3116 = vadd.f32 %v2745, %v3067
      %v3117 = vadd.f32 %v2746, %v3070
      %v3118 = vadd.f32 %v2747, %v3072
      %v3119 = vadd.f32 %v2748, %v3075
      %v3120 = vadd.f32 %v2749, %v3077
      %v3121 = vadd.f32 %v2750, %v3080
      %v3122 = vadd.f32 %v2751, %v3082
      %v3123 = vadd.f32 %v2752, %v3085
      %v3124 = vadd.f32 %v2753, %v3087
      %v3125 = vld [vmem:[%s410 + $0x10] sm:$0x8]
      %v3127 = vunpack.c.l.b16 %v3125
      %v3128 = vpack.c.b16 %v2470, %v3127
      %vm3129 = vcmask 1044480
      %v3130 = vrot.slane %v3128, 3
      %v3131 = vrot.slane %v2507, 3
      %v3132 = vsel %vm3129, %v3130, %v3131
      %v3133 = vrot.slane %v2508, 3
      %v3134 = vsel %vm3129, %v3131, %v3133
      %v3135 = vrot.slane %v2509, 3
      %v3136 = vsel %vm3129, %v3133, %v3135
      %v3137 = vrot.slane %v2510, 3
      %v3138 = vsel %vm3129, %v3135, %v3137
      %v3139 = vrot.slane %v2511, 3
      %v3140 = vsel %vm3129, %v3137, %v3139
      %v3141 = vrot.slane %v2512, 3
      %v3142 = vsel %vm3129, %v3139, %v3141
      %v3143 = vrot.slane %v2513, 3
      %v3144 = vsel %vm3129, %v3141, %v3143
      %v3145 = vrot.slane %v2514, 3
      %v3146 = vsel %vm3129, %v3143, %v3145
      %v3147 = vrot.slane %v2515, 3
      %v3148 = vsel %vm3129, %v3145, %v3147
      %v3149 = vrot.slane %v2516, 3
      %v3150 = vsel %vm3129, %v3147, %v3149
      %v3151 = vrot.slane %v2517, 3
      %v3152 = vsel %vm3129, %v3149, %v3151
      %v3153 = vrot.slane %v2518, 3
      %v3154 = vsel %vm3129, %v3151, %v3153
      %v3155 = vrot.slane %v2519, 3
      %v3156 = vsel %vm3129, %v3153, %v3155
      %v3157 = vrot.slane %v2520, 3
      %v3158 = vsel %vm3129, %v3155, %v3157
      %v3159 = vrot.slane %v2521, 3
      %v3160 = vsel %vm3129, %v3157, %v3159
      %v3161 = vrot.slane %v2522, 3
      %v3162 = vsel %vm3129, %v3159, %v3161
      %v3163 = vrot.slane %v2523, 3
      %v3164 = vsel %vm3129, %v3161, %v3163
      %v3165 = vrot.slane %v2757, 3
      %v3166 = vsel %vm3129, %v3163, %v3165
      %v3168 = vsel %vm897, %v3132, 0
      %v3171 = vsel %vm897, %v3134, 0
      %v3174 = vsel %vm897, %v3136, 0
      %v3177 = vsel %vm897, %v3138, 0
      %v3180 = vsel %vm897, %v3140, 0
      %v3183 = vsel %vm897, %v3142, 0
      %v3186 = vsel %vm897, %v3144, 0
      %v3189 = vsel %vm897, %v3146, 0
      %v3192 = vsel %vm897, %v3148, 0
      %v3195 = vsel %vm897, %v3150, 0
      %v3198 = vsel %vm897, %v3152, 0
      %v3201 = vsel %vm897, %v3154, 0
      %v3204 = vsel %vm897, %v3156, 0
      %v3207 = vsel %vm897, %v3158, 0
      %v3210 = vsel %vm897, %v3160, 0
      %v3213 = vsel %vm897, %v3162, 0
      %v3216 = vsel %vm897, %v3164, 0
      %v3219 = vsel %vm897, %v3166, 0
      %v3222 = vsel %vm952, %v508, 0
      %3224 = vmatpush.bf16.msra.mxu0 0
      %3225 = vmatpush.bf16.msra.mxu0 0
      %3226 = vmatpush.bf16.msra.mxu0 0
      %3227 = vmatpush.bf16.msra.mxu0 0
      %3228 = vmatpush.bf16.msra.mxu0 0
      %3229 = vmatpush.bf16.msra.mxu0 0
      %3230 = vmatpush.bf16.msra.mxu0 0
      %3231 = vmatpush.bf16.msra.mxu0 %v3222
      %3232 = vmatmul.bf16.gmra.mxu0 %v3168
      %v3233 = vpop.f32.mrf.mxu0
      %v3234 = vadd.f32 0.0, %v3233
      %v3235 = vpop.f32.mrf.mxu0
      %v3236 = vadd.f32 0.0, %v3235
      %3237 = vmatmul.bf16.gmra.mxu0 %v3171
      %v3238 = vpop.f32.mrf.mxu0
      %v3239 = vadd.f32 0.0, %v3238
      %v3240 = vpop.f32.mrf.mxu0
      %v3241 = vadd.f32 0.0, %v3240
      %3242 = vmatmul.bf16.gmra.mxu0 %v3174
      %v3243 = vpop.f32.mrf.mxu0
      %v3244 = vadd.f32 0.0, %v3243
      %v3245 = vpop.f32.mrf.mxu0
      %v3246 = vadd.f32 0.0, %v3245
      %3247 = vmatmul.bf16.gmra.mxu0 %v3177
      %v3248 = vpop.f32.mrf.mxu0
      %v3249 = vadd.f32 0.0, %v3248
      %v3250 = vpop.f32.mrf.mxu0
      %v3251 = vadd.f32 0.0, %v3250
      %3252 = vmatmul.bf16.gmra.mxu0 %v3180
      %v3253 = vpop.f32.mrf.mxu0
      %v3254 = vadd.f32 0.0, %v3253
      %v3255 = vpop.f32.mrf.mxu0
      %v3256 = vadd.f32 0.0, %v3255
      %3257 = vmatmul.bf16.gmra.mxu0 %v3183
      %v3258 = vpop.f32.mrf.mxu0
      %v3259 = vadd.f32 0.0, %v3258
      %v3260 = vpop.f32.mrf.mxu0
      %v3261 = vadd.f32 0.0, %v3260
      %3262 = vmatmul.bf16.gmra.mxu0 %v3186
      %v3263 = vpop.f32.mrf.mxu0
      %v3264 = vadd.f32 0.0, %v3263
      %v3265 = vpop.f32.mrf.mxu0
      %v3266 = vadd.f32 0.0, %v3265
      %3267 = vmatmul.bf16.gmra.mxu0 %v3189
      %v3268 = vpop.f32.mrf.mxu0
      %v3269 = vadd.f32 0.0, %v3268
      %v3270 = vpop.f32.mrf.mxu0
      %v3271 = vadd.f32 0.0, %v3270
      %3272 = vmatmul.bf16.gmra.mxu0 %v3192
      %v3273 = vpop.f32.mrf.mxu0
      %v3274 = vadd.f32 0.0, %v3273
      %v3275 = vpop.f32.mrf.mxu0
      %v3276 = vadd.f32 0.0, %v3275
      %3277 = vmatmul.bf16.gmra.mxu0 %v3195
      %v3278 = vpop.f32.mrf.mxu0
      %v3279 = vadd.f32 0.0, %v3278
      %v3280 = vpop.f32.mrf.mxu0
      %v3281 = vadd.f32 0.0, %v3280
      %3282 = vmatmul.bf16.gmra.mxu0 %v3198
      %v3283 = vpop.f32.mrf.mxu0
      %v3284 = vadd.f32 0.0, %v3283
      %v3285 = vpop.f32.mrf.mxu0
      %v3286 = vadd.f32 0.0, %v3285
      %3287 = vmatmul.bf16.gmra.mxu0 %v3201
      %v3288 = vpop.f32.mrf.mxu0
      %v3289 = vadd.f32 0.0, %v3288
      %v3290 = vpop.f32.mrf.mxu0
      %v3291 = vadd.f32 0.0, %v3290
      %3292 = vmatmul.bf16.gmra.mxu0 %v3204
      %v3293 = vpop.f32.mrf.mxu0
      %v3294 = vadd.f32 0.0, %v3293
      %v3295 = vpop.f32.mrf.mxu0
      %v3296 = vadd.f32 0.0, %v3295
      %3297 = vmatmul.bf16.gmra.mxu0 %v3207
      %v3298 = vpop.f32.mrf.mxu0
      %v3299 = vadd.f32 0.0, %v3298
      %v3300 = vpop.f32.mrf.mxu0
      %v3301 = vadd.f32 0.0, %v3300
      %3302 = vmatmul.bf16.gmra.mxu0 %v3210
      %v3303 = vpop.f32.mrf.mxu0
      %v3304 = vadd.f32 0.0, %v3303
      %v3305 = vpop.f32.mrf.mxu0
      %v3306 = vadd.f32 0.0, %v3305
      %3307 = vmatmul.bf16.gmra.mxu0 %v3213
      %v3308 = vpop.f32.mrf.mxu0
      %v3309 = vadd.f32 0.0, %v3308
      %v3310 = vpop.f32.mrf.mxu0
      %v3311 = vadd.f32 0.0, %v3310
      %3312 = vmatmul.bf16.gmra.mxu0 %v3216
      %v3313 = vpop.f32.mrf.mxu0
      %v3314 = vadd.f32 0.0, %v3313
      %v3315 = vpop.f32.mrf.mxu0
      %v3316 = vadd.f32 0.0, %v3315
      %3317 = vmatmul.bf16.gmra.mxu0 %v3219
      %v3318 = vpop.f32.mrf.mxu0
      %v3319 = vadd.f32 0.0, %v3318
      %v3320 = vpop.f32.mrf.mxu0
      %v3321 = vadd.f32 0.0, %v3320
      %3322 = vdwg.mxu0
      %v3323 = vadd.f32 %v3089, %v3234
      %v3324 = vadd.f32 %v3090, %v3236
      %v3325 = vadd.f32 %v3091, %v3239
      %v3326 = vadd.f32 %v3092, %v3241
      %v3327 = vadd.f32 %v3093, %v3244
      %v3328 = vadd.f32 %v3094, %v3246
      %v3329 = vadd.f32 %v3095, %v3249
      %v3330 = vadd.f32 %v3096, %v3251
      %v3331 = vadd.f32 %v3097, %v3254
      %v3332 = vadd.f32 %v3098, %v3256
      %v3333 = vadd.f32 %v3099, %v3259
      %v3334 = vadd.f32 %v3100, %v3261
      %v3335 = vadd.f32 %v3101, %v3264
      %v3336 = vadd.f32 %v3102, %v3266
      %v3337 = vadd.f32 %v3103, %v3269
      %v3338 = vadd.f32 %v3104, %v3271
      %v3339 = vadd.f32 %v3105, %v3274
      %v3340 = vadd.f32 %v3106, %v3276
      %v3341 = vadd.f32 %v3107, %v3279
      %v3342 = vadd.f32 %v3108, %v3281
      %v3343 = vadd.f32 %v3109, %v3284
      %v3344 = vadd.f32 %v3110, %v3286
      %v3345 = vadd.f32 %v3111, %v3289
      %v3346 = vadd.f32 %v3112, %v3291
      %v3347 = vadd.f32 %v3113, %v3294
      %v3348 = vadd.f32 %v3114, %v3296
      %v3349 = vadd.f32 %v3115, %v3299
      %v3350 = vadd.f32 %v3116, %v3301
      %v3351 = vadd.f32 %v3117, %v3304
      %v3352 = vadd.f32 %v3118, %v3306
      %v3353 = vadd.f32 %v3119, %v3309
      %v3354 = vadd.f32 %v3120, %v3311
      %v3355 = vadd.f32 %v3121, %v3314
      %v3356 = vadd.f32 %v3122, %v3316
      %v3357 = vadd.f32 %v3123, %v3319
      %v3358 = vadd.f32 %v3124, %v3321
      %v3360 = vperm.slane %v603, 0
      %v3362 = vadd.f32 %v3323, %v3360
      %v3363 = vadd.f32 %v3324, %v3360
      %v3364 = vadd.f32 %v3325, %v3360
      %v3365 = vadd.f32 %v3326, %v3360
      %v3366 = vadd.f32 %v3327, %v3360
      %v3367 = vadd.f32 %v3328, %v3360
      %v3368 = vadd.f32 %v3329, %v3360
      %v3369 = vadd.f32 %v3330, %v3360
      %v3370 = vadd.f32 %v3331, %v3360
      %v3371 = vadd.f32 %v3332, %v3360
      %v3372 = vadd.f32 %v3333, %v3360
      %v3373 = vadd.f32 %v3334, %v3360
      %v3374 = vadd.f32 %v3335, %v3360
      %v3375 = vadd.f32 %v3336, %v3360
      %v3376 = vadd.f32 %v3337, %v3360
      %v3377 = vadd.f32 %v3338, %v3360
      %v3378 = vadd.f32 %v3339, %v3360
      %v3379 = vadd.f32 %v3340, %v3360
      %v3380 = vadd.f32 %v3341, %v3360
      %v3381 = vadd.f32 %v3342, %v3360
      %v3382 = vadd.f32 %v3343, %v3360
      %v3383 = vadd.f32 %v3344, %v3360
      %v3384 = vadd.f32 %v3345, %v3360
      %v3385 = vadd.f32 %v3346, %v3360
      %v3386 = vadd.f32 %v3347, %v3360
      %v3387 = vadd.f32 %v3348, %v3360
      %v3388 = vadd.f32 %v3349, %v3360
      %v3389 = vadd.f32 %v3350, %v3360
      %v3390 = vadd.f32 %v3351, %v3360
      %v3391 = vadd.f32 %v3352, %v3360
      %v3392 = vadd.f32 %v3353, %v3360
      %v3393 = vadd.f32 %v3354, %v3360
      %v3394 = vadd.f32 %v3355, %v3360
      %v3395 = vadd.f32 %v3356, %v3360
      %v3396 = vadd.f32 %v3357, %v3360
      %v3397 = vadd.f32 %v3358, %v3360
      %v3398 = vld [vmem:[%s423] sm:$0xff]
      %v3399 = vld [vmem:[%s423 + $0x8] sm:$0xff]
      %v3400 = vld [vmem:[%s423 + $0x10] sm:$0xff]
      %v3401 = vld [vmem:[%s423 + $0x18] sm:$0xff]
      %v3402 = vld [vmem:[%s423 + $0x20] sm:$0xff]
      %v3403 = vld [vmem:[%s423 + $0x28] sm:$0xff]
      %v3404 = vld [vmem:[%s423 + $0x30] sm:$0xff]
      %v3405 = vld [vmem:[%s423 + $0x38] sm:$0xff]
      %v3406 = vld [vmem:[%s423 + $0x40] sm:$0xff]
      %v3407 = vld [vmem:[%s423 + $0x48] sm:$0xff]
      %v3408 = vld [vmem:[%s423 + $0x50] sm:$0xff]
      %v3409 = vld [vmem:[%s423 + $0x58] sm:$0xff]
      %v3410 = vld [vmem:[%s423 + $0x60] sm:$0xff]
      %v3411 = vld [vmem:[%s423 + $0x68] sm:$0xff]
      %v3412 = vld [vmem:[%s423 + $0x70] sm:$0xff]
      %v3413 = vld [vmem:[%s423 + $0x78] sm:$0xff]
      %v3414 = vld [vmem:[%s423 + $0x80] sm:$0xff]
      %v3415 = vld [vmem:[%s423 + $0x88] sm:$0xff]
      %v3416 = vld [vmem:[%s423 + $0x90] sm:$0xff]
      %v3417 = vld [vmem:[%s423 + $0x98] sm:$0xff]
      %v3418 = vld [vmem:[%s423 + $0xa0] sm:$0xff]
      %v3419 = vld [vmem:[%s423 + $0xa8] sm:$0xff]
      %v3420 = vld [vmem:[%s423 + $0xb0] sm:$0xff]
      %v3421 = vld [vmem:[%s423 + $0xb8] sm:$0xff]
      %v3422 = vld [vmem:[%s423 + $0xc0] sm:$0xff]
      %v3423 = vld [vmem:[%s423 + $0xc8] sm:$0xff]
      %v3424 = vld [vmem:[%s423 + $0xd0] sm:$0xff]
      %v3425 = vld [vmem:[%s423 + $0xd8] sm:$0xff]
      %v3426 = vld [vmem:[%s423 + $0xe0] sm:$0xff]
      %v3427 = vld [vmem:[%s423 + $0xe8] sm:$0xff]
      %v3428 = vld [vmem:[%s423 + $0xf0] sm:$0xff]
      %v3429 = vld [vmem:[%s423 + $0xf8] sm:$0xff]
      %v3430 = vld [vmem:[%s423 + $0x100] sm:$0xff]
      %v3431 = vld [vmem:[%s423 + $0x108] sm:$0xff]
      %v3432 = vld [vmem:[%s423 + $0x110] sm:$0xff]
      %v3433 = vld [vmem:[%s423 + $0x118] sm:$0xff]
      %3435 = vset.pattern.permute.xlu0 0
      %3436 = vperm.xlu0 %3435, %v3398
      %v3437 = vpop.permute.xlu0 %3436
      %3440 = vset.pattern.permute.xlu0 0
      %3441 = vperm.xlu0 %3440, %v3399
      %v3442 = vpop.permute.xlu0 %3441
      %3445 = vset.pattern.permute.xlu0 0
      %3446 = vperm.xlu0 %3445, %v3400
      %v3447 = vpop.permute.xlu0 %3446
      %3450 = vset.pattern.permute.xlu0 0
      %3451 = vperm.xlu0 %3450, %v3401
      %v3452 = vpop.permute.xlu0 %3451
      %3455 = vset.pattern.permute.xlu0 0
      %3456 = vperm.xlu0 %3455, %v3402
      %v3457 = vpop.permute.xlu0 %3456
      %3460 = vset.pattern.permute.xlu0 0
      %3461 = vperm.xlu0 %3460, %v3403
      %v3462 = vpop.permute.xlu0 %3461
      %3465 = vset.pattern.permute.xlu0 0
      %3466 = vperm.xlu0 %3465, %v3404
      %v3467 = vpop.permute.xlu0 %3466
      %3470 = vset.pattern.permute.xlu0 0
      %3471 = vperm.xlu0 %3470, %v3405
      %v3472 = vpop.permute.xlu0 %3471
      %3475 = vset.pattern.permute.xlu0 0
      %3476 = vperm.xlu0 %3475, %v3406
      %v3477 = vpop.permute.xlu0 %3476
      %3480 = vset.pattern.permute.xlu0 0
      %3481 = vperm.xlu0 %3480, %v3407
      %v3482 = vpop.permute.xlu0 %3481
      %3485 = vset.pattern.permute.xlu0 0
      %3486 = vperm.xlu0 %3485, %v3408
      %v3487 = vpop.permute.xlu0 %3486
      %3490 = vset.pattern.permute.xlu0 0
      %3491 = vperm.xlu0 %3490, %v3409
      %v3492 = vpop.permute.xlu0 %3491
      %3495 = vset.pattern.permute.xlu0 0
      %3496 = vperm.xlu0 %3495, %v3410
      %v3497 = vpop.permute.xlu0 %3496
      %3500 = vset.pattern.permute.xlu0 0
      %3501 = vperm.xlu0 %3500, %v3411
      %v3502 = vpop.permute.xlu0 %3501
      %3505 = vset.pattern.permute.xlu0 0
      %3506 = vperm.xlu0 %3505, %v3412
      %v3507 = vpop.permute.xlu0 %3506
      %3510 = vset.pattern.permute.xlu0 0
      %3511 = vperm.xlu0 %3510, %v3413
      %v3512 = vpop.permute.xlu0 %3511
      %3515 = vset.pattern.permute.xlu0 0
      %3516 = vperm.xlu0 %3515, %v3414
      %v3517 = vpop.permute.xlu0 %3516
      %3520 = vset.pattern.permute.xlu0 0
      %3521 = vperm.xlu0 %3520, %v3415
      %v3522 = vpop.permute.xlu0 %3521
      %3525 = vset.pattern.permute.xlu0 0
      %3526 = vperm.xlu0 %3525, %v3416
      %v3527 = vpop.permute.xlu0 %3526
      %3530 = vset.pattern.permute.xlu0 0
      %3531 = vperm.xlu0 %3530, %v3417
      %v3532 = vpop.permute.xlu0 %3531
      %3535 = vset.pattern.permute.xlu0 0
      %3536 = vperm.xlu0 %3535, %v3418
      %v3537 = vpop.permute.xlu0 %3536
      %3540 = vset.pattern.permute.xlu0 0
      %3541 = vperm.xlu0 %3540, %v3419
      %v3542 = vpop.permute.xlu0 %3541
      %3545 = vset.pattern.permute.xlu0 0
      %3546 = vperm.xlu0 %3545, %v3420
      %v3547 = vpop.permute.xlu0 %3546
      %3550 = vset.pattern.permute.xlu0 0
      %3551 = vperm.xlu0 %3550, %v3421
      %v3552 = vpop.permute.xlu0 %3551
      %3555 = vset.pattern.permute.xlu0 0
      %3556 = vperm.xlu0 %3555, %v3422
      %v3557 = vpop.permute.xlu0 %3556
      %3560 = vset.pattern.permute.xlu0 0
      %3561 = vperm.xlu0 %3560, %v3423
      %v3562 = vpop.permute.xlu0 %3561
      %3565 = vset.pattern.permute.xlu0 0
      %3566 = vperm.xlu0 %3565, %v3424
      %v3567 = vpop.permute.xlu0 %3566
      %3570 = vset.pattern.permute.xlu0 0
      %3571 = vperm.xlu0 %3570, %v3425
      %v3572 = vpop.permute.xlu0 %3571
      %3575 = vset.pattern.permute.xlu0 0
      %3576 = vperm.xlu0 %3575, %v3426
      %v3577 = vpop.permute.xlu0 %3576
      %3580 = vset.pattern.permute.xlu0 0
      %3581 = vperm.xlu0 %3580, %v3427
      %v3582 = vpop.permute.xlu0 %3581
      %3585 = vset.pattern.permute.xlu0 0
      %3586 = vperm.xlu0 %3585, %v3428
      %v3587 = vpop.permute.xlu0 %3586
      %3590 = vset.pattern.permute.xlu0 0
      %3591 = vperm.xlu0 %3590, %v3429
      %v3592 = vpop.permute.xlu0 %3591
      %3595 = vset.pattern.permute.xlu0 0
      %3596 = vperm.xlu0 %3595, %v3430
      %v3597 = vpop.permute.xlu0 %3596
      %3600 = vset.pattern.permute.xlu0 0
      %3601 = vperm.xlu0 %3600, %v3431
      %v3602 = vpop.permute.xlu0 %3601
      %3605 = vset.pattern.permute.xlu0 0
      %3606 = vperm.xlu0 %3605, %v3432
      %v3607 = vpop.permute.xlu0 %3606
      %3610 = vset.pattern.permute.xlu0 0
      %3611 = vperm.xlu0 %3610, %v3433
      %v3612 = vpop.permute.xlu0 %3611
      %v3614 = vadd.f32 %v3362, %v3437
      %v3615 = vadd.f32 %v3363, %v3442
      %v3616 = vadd.f32 %v3364, %v3447
      %v3617 = vadd.f32 %v3365, %v3452
      %v3618 = vadd.f32 %v3366, %v3457
      %v3619 = vadd.f32 %v3367, %v3462
      %v3620 = vadd.f32 %v3368, %v3467
      %v3621 = vadd.f32 %v3369, %v3472
      %v3622 = vadd.f32 %v3370, %v3477
      %v3623 = vadd.f32 %v3371, %v3482
      %v3624 = vadd.f32 %v3372, %v3487
      %v3625 = vadd.f32 %v3373, %v3492
      %v3626 = vadd.f32 %v3374, %v3497
      %v3627 = vadd.f32 %v3375, %v3502
      %v3628 = vadd.f32 %v3376, %v3507
      %v3629 = vadd.f32 %v3377, %v3512
      %v3630 = vadd.f32 %v3378, %v3517
      %v3631 = vadd.f32 %v3379, %v3522
      %v3632 = vadd.f32 %v3380, %v3527
      %v3633 = vadd.f32 %v3381, %v3532
      %v3634 = vadd.f32 %v3382, %v3537
      %v3635 = vadd.f32 %v3383, %v3542
      %v3636 = vadd.f32 %v3384, %v3547
      %v3637 = vadd.f32 %v3385, %v3552
      %v3638 = vadd.f32 %v3386, %v3557
      %v3639 = vadd.f32 %v3387, %v3562
      %v3640 = vadd.f32 %v3388, %v3567
      %v3641 = vadd.f32 %v3389, %v3572
      %v3642 = vadd.f32 %v3390, %v3577
      %v3643 = vadd.f32 %v3391, %v3582
      %v3644 = vadd.f32 %v3392, %v3587
      %v3645 = vadd.f32 %v3393, %v3592
      %v3646 = vadd.f32 %v3394, %v3597
      %v3647 = vadd.f32 %v3395, %v3602
      %v3648 = vadd.f32 %v3396, %v3607
      %v3649 = vadd.f32 %v3397, %v3612
      %vm3650 = vcmp.ge.f32.partialorder %v3614, 0.0
      %vm3651 = vcmp.ge.f32.partialorder %v3615, 0.0
      %vm3652 = vcmp.ge.f32.partialorder %v3616, 0.0
      %vm3653 = vcmp.ge.f32.partialorder %v3617, 0.0
      %vm3654 = vcmp.ge.f32.partialorder %v3618, 0.0
      %vm3655 = vcmp.ge.f32.partialorder %v3619, 0.0
      %vm3656 = vcmp.ge.f32.partialorder %v3620, 0.0
      %vm3657 = vcmp.ge.f32.partialorder %v3621, 0.0
      %vm3658 = vcmp.ge.f32.partialorder %v3622, 0.0
      %vm3659 = vcmp.ge.f32.partialorder %v3623, 0.0
      %vm3660 = vcmp.ge.f32.partialorder %v3624, 0.0
      %vm3661 = vcmp.ge.f32.partialorder %v3625, 0.0
      %vm3662 = vcmp.ge.f32.partialorder %v3626, 0.0
      %vm3663 = vcmp.ge.f32.partialorder %v3627, 0.0
      %vm3664 = vcmp.ge.f32.partialorder %v3628, 0.0
      %vm3665 = vcmp.ge.f32.partialorder %v3629, 0.0
      %vm3666 = vcmp.ge.f32.partialorder %v3630, 0.0
      %vm3667 = vcmp.ge.f32.partialorder %v3631, 0.0
      %vm3668 = vcmp.ge.f32.partialorder %v3632, 0.0
      %vm3669 = vcmp.ge.f32.partialorder %v3633, 0.0
      %vm3670 = vcmp.ge.f32.partialorder %v3634, 0.0
      %vm3671 = vcmp.ge.f32.partialorder %v3635, 0.0
      %vm3672 = vcmp.ge.f32.partialorder %v3636, 0.0
      %vm3673 = vcmp.ge.f32.partialorder %v3637, 0.0
      %vm3674 = vcmp.ge.f32.partialorder %v3638, 0.0
      %vm3675 = vcmp.ge.f32.partialorder %v3639, 0.0
      %vm3676 = vcmp.ge.f32.partialorder %v3640, 0.0
      %vm3677 = vcmp.ge.f32.partialorder %v3641, 0.0
      %vm3678 = vcmp.ge.f32.partialorder %v3642, 0.0
      %vm3679 = vcmp.ge.f32.partialorder %v3643, 0.0
      %vm3680 = vcmp.ge.f32.partialorder %v3644, 0.0
      %vm3681 = vcmp.ge.f32.partialorder %v3645, 0.0
      %vm3682 = vcmp.ge.f32.partialorder %v3646, 0.0
      %vm3683 = vcmp.ge.f32.partialorder %v3647, 0.0
      %vm3684 = vcmp.ge.f32.partialorder %v3648, 0.0
      %vm3685 = vcmp.ge.f32.partialorder %v3649, 0.0
      %v3686 = vmul.f32 %v3614, 0.2
      %v3687 = vmul.f32 %v3615, 0.2
      %v3688 = vmul.f32 %v3616, 0.2
      %v3689 = vmul.f32 %v3617, 0.2
      %v3690 = vmul.f32 %v3618, 0.2
      %v3691 = vmul.f32 %v3619, 0.2
      %v3692 = vmul.f32 %v3620, 0.2
      %v3693 = vmul.f32 %v3621, 0.2
      %v3694 = vmul.f32 %v3622, 0.2
      %v3695 = vmul.f32 %v3623, 0.2
      %v3696 = vmul.f32 %v3624, 0.2
      %v3697 = vmul.f32 %v3625, 0.2
      %v3698 = vmul.f32 %v3626, 0.2
      %v3699 = vmul.f32 %v3627, 0.2
      %v3700 = vmul.f32 %v3628, 0.2
      %v3701 = vmul.f32 %v3629, 0.2
      %v3702 = vmul.f32 %v3630, 0.2
      %v3703 = vmul.f32 %v3631, 0.2
      %v3704 = vmul.f32 %v3632, 0.2
      %v3705 = vmul.f32 %v3633, 0.2
      %v3706 = vmul.f32 %v3634, 0.2
      %v3707 = vmul.f32 %v3635, 0.2
      %v3708 = vmul.f32 %v3636, 0.2
      %v3709 = vmul.f32 %v3637, 0.2
      %v3710 = vmul.f32 %v3638, 0.2
      %v3711 = vmul.f32 %v3639, 0.2
      %v3712 = vmul.f32 %v3640, 0.2
      %v3713 = vmul.f32 %v3641, 0.2
      %v3714 = vmul.f32 %v3642, 0.2
      %v3715 = vmul.f32 %v3643, 0.2
      %v3716 = vmul.f32 %v3644, 0.2
      %v3717 = vmul.f32 %v3645, 0.2
      %v3718 = vmul.f32 %v3646, 0.2
      %v3719 = vmul.f32 %v3647, 0.2
      %v3720 = vmul.f32 %v3648, 0.2
      %v3721 = vmul.f32 %v3649, 0.2
      %v3722 = vsel %vm3650, %v3614, %v3686
      %v3723 = vsel %vm3651, %v3615, %v3687
      %v3724 = vsel %vm3652, %v3616, %v3688
      %v3725 = vsel %vm3653, %v3617, %v3689
      %v3726 = vsel %vm3654, %v3618, %v3690
      %v3727 = vsel %vm3655, %v3619, %v3691
      %v3728 = vsel %vm3656, %v3620, %v3692
      %v3729 = vsel %vm3657, %v3621, %v3693
      %v3730 = vsel %vm3658, %v3622, %v3694
      %v3731 = vsel %vm3659, %v3623, %v3695
      %v3732 = vsel %vm3660, %v3624, %v3696
      %v3733 = vsel %vm3661, %v3625, %v3697
      %v3734 = vsel %vm3662, %v3626, %v3698
      %v3735 = vsel %vm3663, %v3627, %v3699
      %v3736 = vsel %vm3664, %v3628, %v3700
      %v3737 = vsel %vm3665, %v3629, %v3701
      %v3738 = vsel %vm3666, %v3630, %v3702
      %v3739 = vsel %vm3667, %v3631, %v3703
      %v3740 = vsel %vm3668, %v3632, %v3704
      %v3741 = vsel %vm3669, %v3633, %v3705
      %v3742 = vsel %vm3670, %v3634, %v3706
      %v3743 = vsel %vm3671, %v3635, %v3707
      %v3744 = vsel %vm3672, %v3636, %v3708
      %v3745 = vsel %vm3673, %v3637, %v3709
      %v3746 = vsel %vm3674, %v3638, %v3710
      %v3747 = vsel %vm3675, %v3639, %v3711
      %v3748 = vsel %vm3676, %v3640, %v3712
      %v3749 = vsel %vm3677, %v3641, %v3713
      %v3750 = vsel %vm3678, %v3642, %v3714
      %v3751 = vsel %vm3679, %v3643, %v3715
      %v3752 = vsel %vm3680, %v3644, %v3716
      %v3753 = vsel %vm3681, %v3645, %v3717
      %v3754 = vsel %vm3682, %v3646, %v3718
      %v3755 = vsel %vm3683, %v3647, %v3719
      %v3756 = vsel %vm3684, %v3648, %v3720
      %v3757 = vsel %vm3685, %v3649, %v3721
      %v3794 = vrot.slane %v3722, 2
      %v3795 = vrot.slane %v3722, 4
      %v3796 = vrot.slane %v3722, 6
      %v3797 = vrot.slane %v3723, 2
      %v3798 = vrot.slane %v3723, 4
      %v3799 = vrot.slane %v3723, 6
      %v3800 = vrot.slane %v3724, 2
      %v3801 = vrot.slane %v3724, 4
      %v3802 = vrot.slane %v3724, 6
      %v3803 = vrot.slane %v3725, 2
      %v3804 = vrot.slane %v3725, 4
      %v3805 = vrot.slane %v3725, 6
      %v3806 = vrot.slane %v3726, 2
      %v3807 = vrot.slane %v3726, 4
      %v3808 = vrot.slane %v3726, 6
      %v3809 = vrot.slane %v3727, 2
      %v3810 = vrot.slane %v3727, 4
      %v3811 = vrot.slane %v3727, 6
      %v3812 = vrot.slane %v3728, 2
      %v3813 = vrot.slane %v3728, 4
      %v3814 = vrot.slane %v3728, 6
      %v3815 = vrot.slane %v3729, 2
      %v3816 = vrot.slane %v3729, 4
      %v3817 = vrot.slane %v3729, 6
      %v3818 = vrot.slane %v3730, 2
      %v3819 = vrot.slane %v3730, 4
      %v3820 = vrot.slane %v3730, 6
      %v3821 = vrot.slane %v3731, 2
      %v3822 = vrot.slane %v3731, 4
      %v3823 = vrot.slane %v3731, 6
      %v3824 = vrot.slane %v3732, 2
      %v3825 = vrot.slane %v3732, 4
      %v3826 = vrot.slane %v3732, 6
      %v3827 = vrot.slane %v3733, 2
      %v3828 = vrot.slane %v3733, 4
      %v3829 = vrot.slane %v3733, 6
      %v3830 = vrot.slane %v3734, 2
      %v3831 = vrot.slane %v3734, 4
      %v3832 = vrot.slane %v3734, 6
      %v3833 = vrot.slane %v3735, 2
      %v3834 = vrot.slane %v3735, 4
      %v3835 = vrot.slane %v3735, 6
      %v3836 = vrot.slane %v3736, 2
      %v3837 = vrot.slane %v3736, 4
      %v3838 = vrot.slane %v3736, 6
      %v3839 = vrot.slane %v3737, 2
      %v3840 = vrot.slane %v3737, 4
      %v3841 = vrot.slane %v3737, 6
      %v3842 = vrot.slane %v3738, 2
      %v3843 = vrot.slane %v3738, 4
      %v3844 = vrot.slane %v3738, 6
      %v3845 = vrot.slane %v3739, 2
      %v3846 = vrot.slane %v3739, 4
      %v3847 = vrot.slane %v3739, 6
      %v3848 = vrot.slane %v3740, 2
      %v3849 = vrot.slane %v3740, 4
      %v3850 = vrot.slane %v3740, 6
      %v3851 = vrot.slane %v3741, 2
      %v3852 = vrot.slane %v3741, 4
      %v3853 = vrot.slane %v3741, 6
      %v3854 = vrot.slane %v3742, 2
      %v3855 = vrot.slane %v3742, 4
      %v3856 = vrot.slane %v3742, 6
      %v3857 = vrot.slane %v3743, 2
      %v3858 = vrot.slane %v3743, 4
      %v3859 = vrot.slane %v3743, 6
      %v3860 = vrot.slane %v3744, 2
      %v3861 = vrot.slane %v3744, 4
      %v3862 = vrot.slane %v3744, 6
      %v3863 = vrot.slane %v3745, 2
      %v3864 = vrot.slane %v3745, 4
      %v3865 = vrot.slane %v3745, 6
      %v3866 = vrot.slane %v3746, 2
      %v3867 = vrot.slane %v3746, 4
      %v3868 = vrot.slane %v3746, 6
      %v3869 = vrot.slane %v3747, 2
      %v3870 = vrot.slane %v3747, 4
      %v3871 = vrot.slane %v3747, 6
      %v3872 = vrot.slane %v3748, 2
      %v3873 = vrot.slane %v3748, 4
      %v3874 = vrot.slane %v3748, 6
      %v3875 = vrot.slane %v3749, 2
      %v3876 = vrot.slane %v3749, 4
      %v3877 = vrot.slane %v3749, 6
      %v3878 = vrot.slane %v3750, 2
      %v3879 = vrot.slane %v3750, 4
      %v3880 = vrot.slane %v3750, 6
      %v3881 = vrot.slane %v3751, 2
      %v3882 = vrot.slane %v3751, 4
      %v3883 = vrot.slane %v3751, 6
      %v3884 = vrot.slane %v3752, 2
      %v3885 = vrot.slane %v3752, 4
      %v3886 = vrot.slane %v3752, 6
      %v3887 = vrot.slane %v3753, 2
      %v3888 = vrot.slane %v3753, 4
      %v3889 = vrot.slane %v3753, 6
      %v3890 = vrot.slane %v3754, 2
      %v3891 = vrot.slane %v3754, 4
      %v3892 = vrot.slane %v3754, 6
      %v3893 = vrot.slane %v3755, 2
      %v3894 = vrot.slane %v3755, 4
      %v3895 = vrot.slane %v3755, 6
      %v3896 = vrot.slane %v3756, 2
      %v3897 = vrot.slane %v3756, 4
      %v3898 = vrot.slane %v3756, 6
      %v3899 = vrot.slane %v3757, 2
      %v3900 = vrot.slane %v3757, 4
      %v3901 = vrot.slane %v3757, 6
      %v3902 = vlaneseq
      %v3903 = vshrl.u32 %v3902, 7
      %v3904 = vadd.s32 %v3903, 8
      %v3905 = vadd.s32 %v3903, 16
      %vm3906 = vcmp.lt.s32.totalorder %v3903, 16
      %vm3907 = vcmp.lt.s32.totalorder %v3904, 16
      %vm3908 = vcmp.lt.s32.totalorder %v3905, 16
      %v3909 = vsel %vm3906, 1, 0
      %v3910 = vsel %vm3907, 1, 0
      %v3911 = vsel %vm3908, 1, 0
      %vm3912 = vcmp.eq.s32.totalorder %v3909, 1
      %vm3913 = vcmp.eq.s32.totalorder %v3910, 1
      %vm3914 = vcmp.eq.s32.totalorder %v3911, 1
      %3915 = vst [vmem:[#allocation1] ss:$4 sm:$0xff] %v3722
      %s3916 = scalar_lea.vmem [#allocation1], 1
      %3917 = vst [vmem:[%s3916] ss:$4 sm:$0xff] %v3794
      %s3918 = scalar_lea.vmem [#allocation1], 2
      %3919 = vst [vmem:[%s3918] ss:$4 sm:$0xff] %v3795
      %s3920 = scalar_lea.vmem [#allocation1], 3
      %3921 = vst [vmem:[%s3920] ss:$4 sm:$0xff] %v3796
      %s3922 = scalar_lea.vmem [#allocation1], 32
      %3923 = vst [vmem:[%s3922] ss:$4 sm:$0xff] %v3723
      %s3924 = scalar_lea.vmem [#allocation1], 33
      %3925 = vst [vmem:[%s3924] ss:$4 sm:$0xff] %v3797
      %s3926 = scalar_lea.vmem [#allocation1], 34
      %3927 = vst [vmem:[%s3926] ss:$4 sm:$0xff] %v3798
      %s3928 = scalar_lea.vmem [#allocation1], 35
      %3929 = vst [vmem:[%s3928] ss:$4 sm:$0xff] %v3799
      %v3930 = vld.sshfl [vmem:[#allocation1] sm:$0xff pattern:$0x73625140]
      %v3931 = vld.sshfl [vmem:[#allocation1 + $0x20] sm:$0xff pattern:$0x73625140]
      %3932 = vst [vmem:[#allocation1] ss:$4 sm:$0xff] %v3724
      %v3933 = vld.sshfl [vmem:[#allocation1] sm:$0xff pattern:$0x73625140]
      %3934 = vst [vmem:[%s3922] ss:$4 sm:$0xff] %v3800
      %3935 = vst [vmem:[%s3924] ss:$4 sm:$0xff] %v3801
      %3936 = vst [vmem:[%s3926] ss:$4 sm:$0xff] %v3802
      %3937 = vst [vmem:[%s3928] ss:$4 sm:$0xff] %v3725
      %v3938 = vld.sshfl [vmem:[#allocation1 + $0x20] sm:$0xff pattern:$0x73625140]
      %3939 = vst [vmem:[#allocation1] ss:$4 sm:$0xff] %v3803
      %3940 = vst [vmem:[%s3916] ss:$4 sm:$0xff] %v3804
      %3941 = vst [vmem:[%s3918] ss:$4 sm:$0xff] %v3805
      %3942 = vst [vmem:[%s3920] ss:$4 sm:$0xff] %v3726
      %3943 = vst [vmem:[%s3922] ss:$4 sm:$0xff] %v3806
      %v3944 = vld.sshfl [vmem:[#allocation1] sm:$0xff pattern:$0x73625140]
      %v3945 = vld.sshfl [vmem:[#allocation1 + $0x20] sm:$0xff pattern:$0x73625140]
      %3946 = vst [vmem:[#allocation1] ss:$4 sm:$0xff] %v3807
      %3947 = vst [vmem:[%s3916] ss:$4 sm:$0xff] %v3808
      %3948 = vst [vmem:[%s3918] ss:$4 sm:$0xff] %v3727
      %3949 = vst [vmem:[%s3920] ss:$4 sm:$0xff] %v3809
      %3950 = vst [vmem:[%s3922] ss:$4 sm:$0xff] %v3810
      %3951 = vst [vmem:[%s3924] ss:$4 sm:$0xff] %v3811
      %3952 = vst [vmem:[%s3926] ss:$4 sm:$0xff] %v3728
      %3953 = vst [vmem:[%s3928] ss:$4 sm:$0xff] %v3812
      %v3954 = vld.sshfl [vmem:[#allocation1] sm:$0xff pattern:$0x73625140]
      %v3955 = vld.sshfl [vmem:[#allocation1 + $0x20] sm:$0xff pattern:$0x73625140]
      %3956 = vst [vmem:[#allocation1] ss:$4 sm:$0xff] %v3813
      %v3957 = vld.sshfl [vmem:[#allocation1] sm:$0xff pattern:$0x73625140]
      %3958 = vst [vmem:[%s3922] ss:$4 sm:$0xff] %v3814
      %3959 = vst [vmem:[%s3924] ss:$4 sm:$0xff] %v3729
      %3960 = vst [vmem:[%s3926] ss:$4 sm:$0xff] %v3815
      %3961 = vst [vmem:[%s3928] ss:$4 sm:$0xff] %v3816
      %v3962 = vld.sshfl [vmem:[#allocation1 + $0x20] sm:$0xff pattern:$0x73625140]
      %3963 = vst [vmem:[#allocation1] ss:$4 sm:$0xff] %v3817
      %3964 = vst [vmem:[%s3916] ss:$4 sm:$0xff] %v3730
      %3965 = vst [vmem:[%s3918] ss:$4 sm:$0xff] %v3818
      %3966 = vst [vmem:[%s3920] ss:$4 sm:$0xff] %v3819
      %3967 = vst [vmem:[%s3922] ss:$4 sm:$0xff] %v3820
      %v3968 = vld.sshfl [vmem:[#allocation1] sm:$0xff pattern:$0x73625140]
      %v3969 = vld.sshfl [vmem:[#allocation1 + $0x20] sm:$0xff pattern:$0x73625140]
      %3970 = vst [vmem:[#allocation1] ss:$4 sm:$0xff] %v3731
      %3971 = vst [vmem:[%s3916] ss:$4 sm:$0xff] %v3821
      %3972 = vst [vmem:[%s3918] ss:$4 sm:$0xff] %v3822
      %3973 = vst [vmem:[%s3920] ss:$4 sm:$0xff] %v3823
      %3974 = vst [vmem:[%s3922] ss:$4 sm:$0xff] %v3732
      %3975 = vst [vmem:[%s3924] ss:$4 sm:$0xff] %v3824
      %3976 = vst [vmem:[%s3926] ss:$4 sm:$0xff] %v3825
      %3977 = vst [vmem:[%s3928] ss:$4 sm:$0xff] %v3826
      %v3978 = vld.sshfl [vmem:[#allocation1] sm:$0xff pattern:$0x73625140]
      %v3979 = vld.sshfl [vmem:[#allocation1 + $0x20] sm:$0xff pattern:$0x73625140]
      %3980 = vst [vmem:[#allocation1] ss:$4 sm:$0xff] %v3733
      %v3981 = vld.sshfl [vmem:[#allocation1] sm:$0xff pattern:$0x73625140]
      %3982 = vst [vmem:[%s3922] ss:$4 sm:$0xff] %v3827
      %3983 = vst [vmem:[%s3924] ss:$4 sm:$0xff] %v3828
      %3984 = vst [vmem:[%s3926] ss:$4 sm:$0xff] %v3829
      %3985 = vst [vmem:[%s3928] ss:$4 sm:$0xff] %v3734
      %v3986 = vld.sshfl [vmem:[#allocation1 + $0x20] sm:$0xff pattern:$0x73625140]
      %3987 = vst [vmem:[#allocation1] ss:$4 sm:$0xff] %v3830
      %3988 = vst [vmem:[%s3916] ss:$4 sm:$0xff] %v3831
      %3989 = vst [vmem:[%s3918] ss:$4 sm:$0xff] %v3832
      %3990 = vst [vmem:[%s3920] ss:$4 sm:$0xff] %v3735
      %3991 = vst [vmem:[%s3922] ss:$4 sm:$0xff] %v3833
      %v3992 = vld.sshfl [vmem:[#allocation1] sm:$0xff pattern:$0x73625140]
      %v3993 = vld.sshfl [vmem:[#allocation1 + $0x20] sm:$0xff pattern:$0x73625140]
      %3994 = vst [vmem:[#allocation1] ss:$4 sm:$0xff] %v3834
      %3995 = vst [vmem:[%s3916] ss:$4 sm:$0xff] %v3835
      %3996 = vst [vmem:[%s3918] ss:$4 sm:$0xff] %v3736
      %3997 = vst [vmem:[%s3920] ss:$4 sm:$0xff] %v3836
      %3998 = vst [vmem:[%s3922] ss:$4 sm:$0xff] %v3837
      %3999 = vst [vmem:[%s3924] ss:$4 sm:$0xff] %v3838
      %4000 = vst [vmem:[%s3926] ss:$4 sm:$0xff] %v3737
      %4001 = vst [vmem:[%s3928] ss:$4 sm:$0xff] %v3839
      %v4002 = vld.sshfl [vmem:[#allocation1] sm:$0xff pattern:$0x73625140]
      %v4003 = vld.sshfl [vmem:[#allocation1 + $0x20] sm:$0xff pattern:$0x73625140]
      %4004 = vst [vmem:[#allocation1] ss:$4 sm:$0xff] %v3840
      %v4005 = vld.sshfl [vmem:[#allocation1] sm:$0xff pattern:$0x73625140]
      %4006 = vst [vmem:[%s3922] ss:$4 sm:$0xff] %v3841
      %4007 = vst [vmem:[%s3924] ss:$4 sm:$0xff] %v3738
      %4008 = vst [vmem:[%s3926] ss:$4 sm:$0xff] %v3842
      %4009 = vst [vmem:[%s3928] ss:$4 sm:$0xff] %v3843
      %v4010 = vld.sshfl [vmem:[#allocation1 + $0x20] sm:$0xff pattern:$0x73625140]
      %4011 = vst [vmem:[#allocation1] ss:$4 sm:$0xff] %v3844
      %4012 = vst [vmem:[%s3916] ss:$4 sm:$0xff] %v3739
      %4013 = vst [vmem:[%s3918] ss:$4 sm:$0xff] %v3845
      %4014 = vst [vmem:[%s3920] ss:$4 sm:$0xff] %v3846
      %4015 = vst [vmem:[%s3922] ss:$4 sm:$0xff] %v3847
      %v4016 = vld.sshfl [vmem:[#allocation1] sm:$0xff pattern:$0x73625140]
      %v4017 = vld.sshfl [vmem:[#allocation1 + $0x20] sm:$0xff pattern:$0x73625140]
      %4018 = vst [vmem:[#allocation1] ss:$4 sm:$0xff] %v3740
      %4019 = vst [vmem:[%s3916] ss:$4 sm:$0xff] %v3848
      %4020 = vst [vmem:[%s3918] ss:$4 sm:$0xff] %v3849
      %4021 = vst [vmem:[%s3920] ss:$4 sm:$0xff] %v3850
      %4022 = vst [vmem:[%s3922] ss:$4 sm:$0xff] %v3741
      %4023 = vst [vmem:[%s3924] ss:$4 sm:$0xff] %v3851
      %4024 = vst [vmem:[%s3926] ss:$4 sm:$0xff] %v3852
      %4025 = vst [vmem:[%s3928] ss:$4 sm:$0xff] %v3853
      %v4026 = vld.sshfl [vmem:[#allocation1] sm:$0xff pattern:$0x73625140]
      %v4027 = vld.sshfl [vmem:[#allocation1 + $0x20] sm:$0xff pattern:$0x73625140]
      %4028 = vst [vmem:[#allocation1] ss:$4 sm:$0xff] %v3742
      %v4029 = vld.sshfl [vmem:[#allocation1] sm:$0xff pattern:$0x73625140]
      %4030 = vst [vmem:[%s3922] ss:$4 sm:$0xff] %v3854
      %4031 = vst [vmem:[%s3924] ss:$4 sm:$0xff] %v3855
      %4032 = vst [vmem:[%s3926] ss:$4 sm:$0xff] %v3856
      %4033 = vst [vmem:[%s3928] ss:$4 sm:$0xff] %v3743
      %v4034 = vld.sshfl [vmem:[#allocation1 + $0x20] sm:$0xff pattern:$0x73625140]
      %4035 = vst [vmem:[#allocation1] ss:$4 sm:$0xff] %v3857
      %4036 = vst [vmem:[%s3916] ss:$4 sm:$0xff] %v3858
      %4037 = vst [vmem:[%s3918] ss:$4 sm:$0xff] %v3859
      %4038 = vst [vmem:[%s3920] ss:$4 sm:$0xff] %v3744
      %4039 = vst [vmem:[%s3922] ss:$4 sm:$0xff] %v3860
      %v4040 = vld.sshfl [vmem:[#allocation1] sm:$0xff pattern:$0x73625140]
      %v4041 = vld.sshfl [vmem:[#allocation1 + $0x20] sm:$0xff pattern:$0x73625140]
      %4042 = vst [vmem:[#allocation1] ss:$4 sm:$0xff] %v3861
      %4043 = vst [vmem:[%s3916] ss:$4 sm:$0xff] %v3862
      %4044 = vst [vmem:[%s3918] ss:$4 sm:$0xff] %v3745
      %4045 = vst [vmem:[%s3920] ss:$4 sm:$0xff] %v3863
      %4046 = vst [vmem:[%s3922] ss:$4 sm:$0xff] %v3864
      %4047 = vst [vmem:[%s3924] ss:$4 sm:$0xff] %v3865
      %4048 = vst [vmem:[%s3926] ss:$4 sm:$0xff] %v3746
      %4049 = vst [vmem:[%s3928] ss:$4 sm:$0xff] %v3866
      %v4050 = vld.sshfl [vmem:[#allocation1] sm:$0xff pattern:$0x73625140]
      %v4051 = vld.sshfl [vmem:[#allocation1 + $0x20] sm:$0xff pattern:$0x73625140]
      %4052 = vst [vmem:[#allocation1] ss:$4 sm:$0xff] %v3867
      %v4053 = vld.sshfl [vmem:[#allocation1] sm:$0xff pattern:$0x73625140]
      %4054 = vst [vmem:[%s3922] ss:$4 sm:$0xff] %v3868
      %4055 = vst [vmem:[%s3924] ss:$4 sm:$0xff] %v3747
      %4056 = vst [vmem:[%s3926] ss:$4 sm:$0xff] %v3869
      %4057 = vst [vmem:[%s3928] ss:$4 sm:$0xff] %v3870
      %v4058 = vld.sshfl [vmem:[#allocation1 + $0x20] sm:$0xff pattern:$0x73625140]
      %4059 = vst [vmem:[#allocation1] ss:$4 sm:$0xff] %v3871
      %4060 = vst [vmem:[%s3916] ss:$4 sm:$0xff] %v3748
      %4061 = vst [vmem:[%s3918] ss:$4 sm:$0xff] %v3872
      %4062 = vst [vmem:[%s3920] ss:$4 sm:$0xff] %v3873
      %4063 = vst [vmem:[%s3922] ss:$4 sm:$0xff] %v3874
      %v4064 = vld.sshfl [vmem:[#allocation1] sm:$0xff pattern:$0x73625140]
      %v4065 = vld.sshfl [vmem:[#allocation1 + $0x20] sm:$0xff pattern:$0x73625140]
      %4066 = vst [vmem:[#allocation1] ss:$4 sm:$0xff] %v3749
      %4067 = vst [vmem:[%s3916] ss:$4 sm:$0xff] %v3875
      %4068 = vst [vmem:[%s3918] ss:$4 sm:$0xff] %v3876
      %4069 = vst [vmem:[%s3920] ss:$4 sm:$0xff] %v3877
      %4070 = vst [vmem:[%s3922] ss:$4 sm:$0xff] %v3750
      %4071 = vst [vmem:[%s3924] ss:$4 sm:$0xff] %v3878
      %4072 = vst [vmem:[%s3926] ss:$4 sm:$0xff] %v3879
      %4073 = vst [vmem:[%s3928] ss:$4 sm:$0xff] %v3880
      %v4074 = vld.sshfl [vmem:[#allocation1] sm:$0xff pattern:$0x73625140]
      %v4075 = vld.sshfl [vmem:[#allocation1 + $0x20] sm:$0xff pattern:$0x73625140]
      %4076 = vst [vmem:[#allocation1] ss:$4 sm:$0xff] %v3751
      %v4077 = vld.sshfl [vmem:[#allocation1] sm:$0xff pattern:$0x73625140]
      %4078 = vst [vmem:[%s3922] ss:$4 sm:$0xff] %v3881
      %4079 = vst [vmem:[%s3924] ss:$4 sm:$0xff] %v3882
      %4080 = vst [vmem:[%s3926] ss:$4 sm:$0xff] %v3883
      %4081 = vst [vmem:[%s3928] ss:$4 sm:$0xff] %v3752
      %v4082 = vld.sshfl [vmem:[#allocation1 + $0x20] sm:$0xff pattern:$0x73625140]
      %4083 = vst [vmem:[#allocation1] ss:$4 sm:$0xff] %v3884
      %4084 = vst [vmem:[%s3916] ss:$4 sm:$0xff] %v3885
      %4085 = vst [vmem:[%s3918] ss:$4 sm:$0xff] %v3886
      %4086 = vst [vmem:[%s3920] ss:$4 sm:$0xff] %v3753
      %4087 = vst [vmem:[%s3922] ss:$4 sm:$0xff] %v3887
      %v4088 = vld.sshfl [vmem:[#allocation1] sm:$0xff pattern:$0x73625140]
      %v4089 = vld.sshfl [vmem:[#allocation1 + $0x20] sm:$0xff pattern:$0x73625140]
      %4090 = vst [vmem:[#allocation1] ss:$4 sm:$0xff] %v3888
      %4091 = vst [vmem:[%s3916] ss:$4 sm:$0xff] %v3889
      %4092 = vst [vmem:[%s3918] ss:$4 sm:$0xff] %v3754
      %4093 = vst [vmem:[%s3920] ss:$4 sm:$0xff] %v3890
      %4094 = vst [vmem:[%s3922] ss:$4 sm:$0xff] %v3891
      %4095 = vst [vmem:[%s3924] ss:$4 sm:$0xff] %v3892
      %4096 = vst [vmem:[%s3926] ss:$4 sm:$0xff] %v3755
      %4097 = vst [vmem:[%s3928] ss:$4 sm:$0xff] %v3893
      %v4098 = vld.sshfl [vmem:[#allocation1] sm:$0xff pattern:$0x73625140]
      %v4099 = vld.sshfl [vmem:[#allocation1 + $0x20] sm:$0xff pattern:$0x73625140]
      %4100 = vst [vmem:[#allocation1] ss:$4 sm:$0xff] %v3894
      %v4101 = vld.sshfl [vmem:[#allocation1] sm:$0xff pattern:$0x73625140]
      %4102 = vst [vmem:[%s3922] ss:$4 sm:$0xff] %v3895
      %4103 = vst [vmem:[%s3924] ss:$4 sm:$0xff] %v3756
      %4104 = vst [vmem:[%s3926] ss:$4 sm:$0xff] %v3896
      %4105 = vst [vmem:[%s3928] ss:$4 sm:$0xff] %v3897
      %v4106 = vld.sshfl [vmem:[#allocation1 + $0x20] sm:$0xff pattern:$0x73625140]
      %4107 = vst [vmem:[#allocation1] ss:$4 sm:$0xff] %v3898
      %4108 = vst [vmem:[%s3916] ss:$4 sm:$0xff] %v3757
      %4109 = vst [vmem:[%s3918] ss:$4 sm:$0xff] %v3899
      %4110 = vst [vmem:[%s3920] ss:$4 sm:$0xff] %v3900
      %4111 = vst [vmem:[%s3922] ss:$4 sm:$0xff] %v3901
      %v4112 = vld.sshfl [vmem:[#allocation1] sm:$0xff pattern:$0x73625140]
      %v4113 = vld.sshfl [vmem:[#allocation1 + $0x20] sm:$0xff pattern:$0x73625140]
      %v4162 = vsel %vm3912, %v3930, 0.0
      %v4163 = vsel %vm3913, %v3931, 0.0
      %v4164 = vsel %vm3914, %v3933, 0.0
      %v4165 = vsel %vm3912, %v3938, 0.0
      %v4166 = vsel %vm3913, %v3944, 0.0
      %v4167 = vsel %vm3914, %v3945, 0.0
      %v4168 = vsel %vm3912, %v3954, 0.0
      %v4169 = vsel %vm3913, %v3955, 0.0
      %v4170 = vsel %vm3914, %v3957, 0.0
      %v4171 = vsel %vm3912, %v3962, 0.0
      %v4172 = vsel %vm3913, %v3968, 0.0
      %v4173 = vsel %vm3914, %v3969, 0.0
      %v4174 = vsel %vm3912, %v3978, 0.0
      %v4175 = vsel %vm3913, %v3979, 0.0
      %v4176 = vsel %vm3914, %v3981, 0.0
      %v4177 = vsel %vm3912, %v3986, 0.0
      %v4178 = vsel %vm3913, %v3992, 0.0
      %v4179 = vsel %vm3914, %v3993, 0.0
      %v4180 = vsel %vm3912, %v4002, 0.0
      %v4181 = vsel %vm3913, %v4003, 0.0
      %v4182 = vsel %vm3914, %v4005, 0.0
      %v4183 = vsel %vm3912, %v4010, 0.0
      %v4184 = vsel %vm3913, %v4016, 0.0
      %v4185 = vsel %vm3914, %v4017, 0.0
      %v4186 = vsel %vm3912, %v4026, 0.0
      %v4187 = vsel %vm3913, %v4027, 0.0
      %v4188 = vsel %vm3914, %v4029, 0.0
      %v4189 = vsel %vm3912, %v4034, 0.0
      %v4190 = vsel %vm3913, %v4040, 0.0
      %v4191 = vsel %vm3914, %v4041, 0.0
      %v4192 = vsel %vm3912, %v4050, 0.0
      %v4193 = vsel %vm3913, %v4051, 0.0
      %v4194 = vsel %vm3914, %v4053, 0.0
      %v4195 = vsel %vm3912, %v4058, 0.0
      %v4196 = vsel %vm3913, %v4064, 0.0
      %v4197 = vsel %vm3914, %v4065, 0.0
      %v4198 = vsel %vm3912, %v4074, 0.0
      %v4199 = vsel %vm3913, %v4075, 0.0
      %v4200 = vsel %vm3914, %v4077, 0.0
      %v4201 = vsel %vm3912, %v4082, 0.0
      %v4202 = vsel %vm3913, %v4088, 0.0
      %v4203 = vsel %vm3914, %v4089, 0.0
      %v4204 = vsel %vm3912, %v4098, 0.0
      %v4205 = vsel %vm3913, %v4099, 0.0
      %v4206 = vsel %vm3914, %v4101, 0.0
      %v4207 = vsel %vm3912, %v4106, 0.0
      %v4208 = vsel %vm3913, %v4112, 0.0
      %v4209 = vsel %vm3914, %v4113, 0.0
      %v4258 = vrot.slane %v4162, 2
      %v4259 = vrot.slane %v4162, 4
      %v4260 = vrot.slane %v4162, 6
      %v4261 = vrot.slane %v4163, 2
      %v4262 = vrot.slane %v4163, 4
      %v4263 = vrot.slane %v4163, 6
      %v4264 = vrot.slane %v4165, 2
      %v4265 = vrot.slane %v4165, 4
      %v4266 = vrot.slane %v4165, 6
      %v4267 = vrot.slane %v4166, 2
      %v4268 = vrot.slane %v4166, 4
      %v4269 = vrot.slane %v4166, 6
      %v4270 = vrot.slane %v4168, 2
      %v4271 = vrot.slane %v4168, 4
      %v4272 = vrot.slane %v4168, 6
      %v4273 = vrot.slane %v4169, 2
      %v4274 = vrot.slane %v4169, 4
      %v4275 = vrot.slane %v4169, 6
      %v4276 = vrot.slane %v4171, 2
      %v4277 = vrot.slane %v4171, 4
      %v4278 = vrot.slane %v4171, 6
      %v4279 = vrot.slane %v4172, 2
      %v4280 = vrot.slane %v4172, 4
      %v4281 = vrot.slane %v4172, 6
      %v4282 = vrot.slane %v4174, 2
      %v4283 = vrot.slane %v4174, 4
      %v4284 = vrot.slane %v4174, 6
      %v4285 = vrot.slane %v4175, 2
      %v4286 = vrot.slane %v4175, 4
      %v4287 = vrot.slane %v4175, 6
      %v4288 = vrot.slane %v4177, 2
      %v4289 = vrot.slane %v4177, 4
      %v4290 = vrot.slane %v4177, 6
      %v4291 = vrot.slane %v4178, 2
      %v4292 = vrot.slane %v4178, 4
      %v4293 = vrot.slane %v4178, 6
      %v4294 = vrot.slane %v4180, 2
      %v4295 = vrot.slane %v4180, 4
      %v4296 = vrot.slane %v4180, 6
      %v4297 = vrot.slane %v4181, 2
      %v4298 = vrot.slane %v4181, 4
      %v4299 = vrot.slane %v4181, 6
      %v4300 = vrot.slane %v4183, 2
      %v4301 = vrot.slane %v4183, 4
      %v4302 = vrot.slane %v4183, 6
      %v4303 = vrot.slane %v4184, 2
      %v4304 = vrot.slane %v4184, 4
      %v4305 = vrot.slane %v4184, 6
      %v4306 = vrot.slane %v4186, 2
      %v4307 = vrot.slane %v4186, 4
      %v4308 = vrot.slane %v4186, 6
      %v4309 = vrot.slane %v4187, 2
      %v4310 = vrot.slane %v4187, 4
      %v4311 = vrot.slane %v4187, 6
      %v4312 = vrot.slane %v4189, 2
      %v4313 = vrot.slane %v4189, 4
      %v4314 = vrot.slane %v4189, 6
      %v4315 = vrot.slane %v4190, 2
      %v4316 = vrot.slane %v4190, 4
      %v4317 = vrot.slane %v4190, 6
      %v4318 = vrot.slane %v4192, 2
      %v4319 = vrot.slane %v4192, 4
      %v4320 = vrot.slane %v4192, 6
      %v4321 = vrot.slane %v4193, 2
      %v4322 = vrot.slane %v4193, 4
      %v4323 = vrot.slane %v4193, 6
      %v4324 = vrot.slane %v4195, 2
      %v4325 = vrot.slane %v4195, 4
      %v4326 = vrot.slane %v4195, 6
      %v4327 = vrot.slane %v4196, 2
      %v4328 = vrot.slane %v4196, 4
      %v4329 = vrot.slane %v4196, 6
      %v4330 = vrot.slane %v4198, 2
      %v4331 = vrot.slane %v4198, 4
      %v4332 = vrot.slane %v4198, 6
      %v4333 = vrot.slane %v4199, 2
      %v4334 = vrot.slane %v4199, 4
      %v4335 = vrot.slane %v4199, 6
      %v4336 = vrot.slane %v4201, 2
      %v4337 = vrot.slane %v4201, 4
      %v4338 = vrot.slane %v4201, 6
      %v4339 = vrot.slane %v4202, 2
      %v4340 = vrot.slane %v4202, 4
      %v4341 = vrot.slane %v4202, 6
      %v4342 = vrot.slane %v4204, 2
      %v4343 = vrot.slane %v4204, 4
      %v4344 = vrot.slane %v4204, 6
      %v4345 = vrot.slane %v4205, 2
      %v4346 = vrot.slane %v4205, 4
      %v4347 = vrot.slane %v4205, 6
      %v4348 = vrot.slane %v4207, 2
      %v4349 = vrot.slane %v4207, 4
      %v4350 = vrot.slane %v4207, 6
      %v4351 = vrot.slane %v4208, 2
      %v4352 = vrot.slane %v4208, 4
      %v4353 = vrot.slane %v4208, 6
      %4354 = vst [vmem:[#allocation1] ss:$4 sm:$0xff] %v4162
      %s4355 = scalar_lea.vmem [#allocation1], 1
      %4356 = vst [vmem:[%s4355] ss:$4 sm:$0xff] %v4258
      %s4357 = scalar_lea.vmem [#allocation1], 2
      %4358 = vst [vmem:[%s4357] ss:$4 sm:$0xff] %v4259
      %s4359 = scalar_lea.vmem [#allocation1], 3
      %4360 = vst [vmem:[%s4359] ss:$4 sm:$0xff] %v4260
      %s4361 = scalar_lea.vmem [#allocation1], 32
      %4362 = vst [vmem:[%s4361] ss:$4 sm:$0xff] %v4163
      %s4363 = scalar_lea.vmem [#allocation1], 33
      %4364 = vst [vmem:[%s4363] ss:$4 sm:$0xff] %v4261
      %s4365 = scalar_lea.vmem [#allocation1], 34
      %4366 = vst [vmem:[%s4365] ss:$4 sm:$0xff] %v4262
      %s4367 = scalar_lea.vmem [#allocation1], 35
      %4368 = vst [vmem:[%s4367] ss:$4 sm:$0xff] %v4263
      %v4369 = vld.sshfl [vmem:[#allocation1] sm:$0xff pattern:$0x73625140]
      %v4370 = vld.sshfl [vmem:[#allocation1 + $0x20] sm:$0xff pattern:$0x73625140]
      %4371 = vst [vmem:[#allocation1] ss:$4 sm:$0xff] %v4164
      %4372 = vst [vmem:[%s4355] ss:$4 sm:$0xff] %v4165
      %4373 = vst [vmem:[%s4357] ss:$4 sm:$0xff] %v4264
      %4374 = vst [vmem:[%s4359] ss:$4 sm:$0xff] %v4265
      %4375 = vst [vmem:[%s4361] ss:$4 sm:$0xff] %v4266
      %4376 = vst [vmem:[%s4363] ss:$4 sm:$0xff] %v4166
      %4377 = vst [vmem:[%s4365] ss:$4 sm:$0xff] %v4267
      %4378 = vst [vmem:[%s4367] ss:$4 sm:$0xff] %v4268
      %v4379 = vld.sshfl [vmem:[#allocation1] sm:$0xff pattern:$0x73625140]
      %v4380 = vld.sshfl [vmem:[#allocation1 + $0x20] sm:$0xff pattern:$0x73625140]
      %4381 = vst [vmem:[#allocation1] ss:$4 sm:$0xff] %v4269
      %4382 = vst [vmem:[%s4355] ss:$4 sm:$0xff] %v4167
      %4383 = vst [vmem:[%s4357] ss:$4 sm:$0xff] %v4168
      %4384 = vst [vmem:[%s4359] ss:$4 sm:$0xff] %v4270
      %4385 = vst [vmem:[%s4361] ss:$4 sm:$0xff] %v4271
      %4386 = vst [vmem:[%s4363] ss:$4 sm:$0xff] %v4272
      %4387 = vst [vmem:[%s4365] ss:$4 sm:$0xff] %v4169
      %4388 = vst [vmem:[%s4367] ss:$4 sm:$0xff] %v4273
      %v4389 = vld.sshfl [vmem:[#allocation1] sm:$0xff pattern:$0x73625140]
      %v4390 = vld.sshfl [vmem:[#allocation1 + $0x20] sm:$0xff pattern:$0x73625140]
      %4391 = vst [vmem:[#allocation1] ss:$4 sm:$0xff] %v4274
      %4392 = vst [vmem:[%s4355] ss:$4 sm:$0xff] %v4275
      %4393 = vst [vmem:[%s4357] ss:$4 sm:$0xff] %v4170
      %4394 = vst [vmem:[%s4359] ss:$4 sm:$0xff] %v4171
      %4395 = vst [vmem:[%s4361] ss:$4 sm:$0xff] %v4276
      %4396 = vst [vmem:[%s4363] ss:$4 sm:$0xff] %v4277
      %4397 = vst [vmem:[%s4365] ss:$4 sm:$0xff] %v4278
      %4398 = vst [vmem:[%s4367] ss:$4 sm:$0xff] %v4172
      %v4399 = vld.sshfl [vmem:[#allocation1] sm:$0xff pattern:$0x73625140]
      %v4400 = vld.sshfl [vmem:[#allocation1 + $0x20] sm:$0xff pattern:$0x73625140]
      %4401 = vst [vmem:[#allocation1] ss:$4 sm:$0xff] %v4279
      %4402 = vst [vmem:[%s4355] ss:$4 sm:$0xff] %v4280
      %4403 = vst [vmem:[%s4357] ss:$4 sm:$0xff] %v4281
      %4404 = vst [vmem:[%s4359] ss:$4 sm:$0xff] %v4173
      %4405 = vst [vmem:[%s4361] ss:$4 sm:$0xff] %v4174
      %4406 = vst [vmem:[%s4363] ss:$4 sm:$0xff] %v4282
      %4407 = vst [vmem:[%s4365] ss:$4 sm:$0xff] %v4283
      %4408 = vst [vmem:[%s4367] ss:$4 sm:$0xff] %v4284
      %v4409 = vld.sshfl [vmem:[#allocation1] sm:$0xff pattern:$0x73625140]
      %v4410 = vld.sshfl [vmem:[#allocation1 + $0x20] sm:$0xff pattern:$0x73625140]
      %4411 = vst [vmem:[#allocation1] ss:$4 sm:$0xff] %v4175
      %4412 = vst [vmem:[%s4355] ss:$4 sm:$0xff] %v4285
      %4413 = vst [vmem:[%s4357] ss:$4 sm:$0xff] %v4286
      %4414 = vst [vmem:[%s4359] ss:$4 sm:$0xff] %v4287
      %4415 = vst [vmem:[%s4361] ss:$4 sm:$0xff] %v4176
      %4416 = vst [vmem:[%s4363] ss:$4 sm:$0xff] %v4177
      %4417 = vst [vmem:[%s4365] ss:$4 sm:$0xff] %v4288
      %4418 = vst [vmem:[%s4367] ss:$4 sm:$0xff] %v4289
      %v4419 = vld.sshfl [vmem:[#allocation1] sm:$0xff pattern:$0x73625140]
      %v4420 = vld.sshfl [vmem:[#allocation1 + $0x20] sm:$0xff pattern:$0x73625140]
      %4421 = vst [vmem:[#allocation1] ss:$4 sm:$0xff] %v4290
      %4422 = vst [vmem:[%s4355] ss:$4 sm:$0xff] %v4178
      %4423 = vst [vmem:[%s4357] ss:$4 sm:$0xff] %v4291
      %4424 = vst [vmem:[%s4359] ss:$4 sm:$0xff] %v4292
      %4425 = vst [vmem:[%s4361] ss:$4 sm:$0xff] %v4293
      %4426 = vst [vmem:[%s4363] ss:$4 sm:$0xff] %v4179
      %4427 = vst [vmem:[%s4365] ss:$4 sm:$0xff] %v4180
      %4428 = vst [vmem:[%s4367] ss:$4 sm:$0xff] %v4294
      %v4429 = vld.sshfl [vmem:[#allocation1] sm:$0xff pattern:$0x73625140]
      %v4430 = vld.sshfl [vmem:[#allocation1 + $0x20] sm:$0xff pattern:$0x73625140]
      %4431 = vst [vmem:[#allocation1] ss:$4 sm:$0xff] %v4295
      %4432 = vst [vmem:[%s4355] ss:$4 sm:$0xff] %v4296
      %4433 = vst [vmem:[%s4357] ss:$4 sm:$0xff] %v4181
      %4434 = vst [vmem:[%s4359] ss:$4 sm:$0xff] %v4297
      %4435 = vst [vmem:[%s4361] ss:$4 sm:$0xff] %v4298
      %4436 = vst [vmem:[%s4363] ss:$4 sm:$0xff] %v4299
      %4437 = vst [vmem:[%s4365] ss:$4 sm:$0xff] %v4182
      %4438 = vst [vmem:[%s4367] ss:$4 sm:$0xff] %v4183
      %v4439 = vld.sshfl [vmem:[#allocation1] sm:$0xff pattern:$0x73625140]
      %v4440 = vld.sshfl [vmem:[#allocation1 + $0x20] sm:$0xff pattern:$0x73625140]
      %4441 = vst [vmem:[#allocation1] ss:$4 sm:$0xff] %v4300
      %4442 = vst [vmem:[%s4355] ss:$4 sm:$0xff] %v4301
      %4443 = vst [vmem:[%s4357] ss:$4 sm:$0xff] %v4302
      %4444 = vst [vmem:[%s4359] ss:$4 sm:$0xff] %v4184
      %4445 = vst [vmem:[%s4361] ss:$4 sm:$0xff] %v4303
      %4446 = vst [vmem:[%s4363] ss:$4 sm:$0xff] %v4304
      %4447 = vst [vmem:[%s4365] ss:$4 sm:$0xff] %v4305
      %4448 = vst [vmem:[%s4367] ss:$4 sm:$0xff] %v4185
      %v4449 = vld.sshfl [vmem:[#allocation1] sm:$0xff pattern:$0x73625140]
      %v4450 = vld.sshfl [vmem:[#allocation1 + $0x20] sm:$0xff pattern:$0x73625140]
      %4451 = vst [vmem:[#allocation1] ss:$4 sm:$0xff] %v4186
      %4452 = vst [vmem:[%s4355] ss:$4 sm:$0xff] %v4306
      %4453 = vst [vmem:[%s4357] ss:$4 sm:$0xff] %v4307
      %4454 = vst [vmem:[%s4359] ss:$4 sm:$0xff] %v4308
      %4455 = vst [vmem:[%s4361] ss:$4 sm:$0xff] %v4187
      %4456 = vst [vmem:[%s4363] ss:$4 sm:$0xff] %v4309
      %4457 = vst [vmem:[%s4365] ss:$4 sm:$0xff] %v4310
      %4458 = vst [vmem:[%s4367] ss:$4 sm:$0xff] %v4311
      %v4459 = vld.sshfl [vmem:[#allocation1] sm:$0xff pattern:$0x73625140]
      %v4460 = vld.sshfl [vmem:[#allocation1 + $0x20] sm:$0xff pattern:$0x73625140]
      %4461 = vst [vmem:[#allocation1] ss:$4 sm:$0xff] %v4188
      %4462 = vst [vmem:[%s4355] ss:$4 sm:$0xff] %v4189
      %4463 = vst [vmem:[%s4357] ss:$4 sm:$0xff] %v4312
      %4464 = vst [vmem:[%s4359] ss:$4 sm:$0xff] %v4313
      %4465 = vst [vmem:[%s4361] ss:$4 sm:$0xff] %v4314
      %4466 = vst [vmem:[%s4363] ss:$4 sm:$0xff] %v4190
      %4467 = vst [vmem:[%s4365] ss:$4 sm:$0xff] %v4315
      %4468 = vst [vmem:[%s4367] ss:$4 sm:$0xff] %v4316
      %v4469 = vld.sshfl [vmem:[#allocation1] sm:$0xff pattern:$0x73625140]
      %v4470 = vld.sshfl [vmem:[#allocation1 + $0x20] sm:$0xff pattern:$0x73625140]
      %4471 = vst [vmem:[#allocation1] ss:$4 sm:$0xff] %v4317
      %4472 = vst [vmem:[%s4355] ss:$4 sm:$0xff] %v4191
      %4473 = vst [vmem:[%s4357] ss:$4 sm:$0xff] %v4192
      %4474 = vst [vmem:[%s4359] ss:$4 sm:$0xff] %v4318
      %4475 = vst [vmem:[%s4361] ss:$4 sm:$0xff] %v4319
      %4476 = vst [vmem:[%s4363] ss:$4 sm:$0xff] %v4320
      %4477 = vst [vmem:[%s4365] ss:$4 sm:$0xff] %v4193
      %4478 = vst [vmem:[%s4367] ss:$4 sm:$0xff] %v4321
      %v4479 = vld.sshfl [vmem:[#allocation1] sm:$0xff pattern:$0x73625140]
      %v4480 = vld.sshfl [vmem:[#allocation1 + $0x20] sm:$0xff pattern:$0x73625140]
      %4481 = vst [vmem:[#allocation1] ss:$4 sm:$0xff] %v4322
      %4482 = vst [vmem:[%s4355] ss:$4 sm:$0xff] %v4323
      %4483 = vst [vmem:[%s4357] ss:$4 sm:$0xff] %v4194
      %4484 = vst [vmem:[%s4359] ss:$4 sm:$0xff] %v4195
      %4485 = vst [vmem:[%s4361] ss:$4 sm:$0xff] %v4324
      %4486 = vst [vmem:[%s4363] ss:$4 sm:$0xff] %v4325
      %4487 = vst [vmem:[%s4365] ss:$4 sm:$0xff] %v4326
      %4488 = vst [vmem:[%s4367] ss:$4 sm:$0xff] %v4196
      %v4489 = vld.sshfl [vmem:[#allocation1] sm:$0xff pattern:$0x73625140]
      %v4490 = vld.sshfl [vmem:[#allocation1 + $0x20] sm:$0xff pattern:$0x73625140]
      %4491 = vst [vmem:[#allocation1] ss:$4 sm:$0xff] %v4327
      %4492 = vst [vmem:[%s4355] ss:$4 sm:$0xff] %v4328
      %4493 = vst [vmem:[%s4357] ss:$4 sm:$0xff] %v4329
      %4494 = vst [vmem:[%s4359] ss:$4 sm:$0xff] %v4197
      %4495 = vst [vmem:[%s4361] ss:$4 sm:$0xff] %v4198
      %4496 = vst [vmem:[%s4363] ss:$4 sm:$0xff] %v4330
      %4497 = vst [vmem:[%s4365] ss:$4 sm:$0xff] %v4331
      %4498 = vst [vmem:[%s4367] ss:$4 sm:$0xff] %v4332
      %v4499 = vld.sshfl [vmem:[#allocation1] sm:$0xff pattern:$0x73625140]
      %v4500 = vld.sshfl [vmem:[#allocation1 + $0x20] sm:$0xff pattern:$0x73625140]
      %4501 = vst [vmem:[#allocation1] ss:$4 sm:$0xff] %v4199
      %4502 = vst [vmem:[%s4355] ss:$4 sm:$0xff] %v4333
      %4503 = vst [vmem:[%s4357] ss:$4 sm:$0xff] %v4334
      %4504 = vst [vmem:[%s4359] ss:$4 sm:$0xff] %v4335
      %4505 = vst [vmem:[%s4361] ss:$4 sm:$0xff] %v4200
      %4506 = vst [vmem:[%s4363] ss:$4 sm:$0xff] %v4201
      %4507 = vst [vmem:[%s4365] ss:$4 sm:$0xff] %v4336
      %4508 = vst [vmem:[%s4367] ss:$4 sm:$0xff] %v4337
      %v4509 = vld.sshfl [vmem:[#allocation1] sm:$0xff pattern:$0x73625140]
      %v4510 = vld.sshfl [vmem:[#allocation1 + $0x20] sm:$0xff pattern:$0x73625140]
      %4511 = vst [vmem:[#allocation1] ss:$4 sm:$0xff] %v4338
      %4512 = vst [vmem:[%s4355] ss:$4 sm:$0xff] %v4202
      %4513 = vst [vmem:[%s4357] ss:$4 sm:$0xff] %v4339
      %4514 = vst [vmem:[%s4359] ss:$4 sm:$0xff] %v4340
      %4515 = vst [vmem:[%s4361] ss:$4 sm:$0xff] %v4341
      %4516 = vst [vmem:[%s4363] ss:$4 sm:$0xff] %v4203
      %4517 = vst [vmem:[%s4365] ss:$4 sm:$0xff] %v4204
      %4518 = vst [vmem:[%s4367] ss:$4 sm:$0xff] %v4342
      %v4519 = vld.sshfl [vmem:[#allocation1] sm:$0xff pattern:$0x73625140]
      %v4520 = vld.sshfl [vmem:[#allocation1 + $0x20] sm:$0xff pattern:$0x73625140]
      %4521 = vst [vmem:[#allocation1] ss:$4 sm:$0xff] %v4343
      %4522 = vst [vmem:[%s4355] ss:$4 sm:$0xff] %v4344
      %4523 = vst [vmem:[%s4357] ss:$4 sm:$0xff] %v4205
      %4524 = vst [vmem:[%s4359] ss:$4 sm:$0xff] %v4345
      %4525 = vst [vmem:[%s4361] ss:$4 sm:$0xff] %v4346
      %4526 = vst [vmem:[%s4363] ss:$4 sm:$0xff] %v4347
      %4527 = vst [vmem:[%s4365] ss:$4 sm:$0xff] %v4206
      %4528 = vst [vmem:[%s4367] ss:$4 sm:$0xff] %v4207
      %v4529 = vld.sshfl [vmem:[#allocation1] sm:$0xff pattern:$0x73625140]
      %v4530 = vld.sshfl [vmem:[#allocation1 + $0x20] sm:$0xff pattern:$0x73625140]
      %4531 = vst [vmem:[#allocation1] ss:$4 sm:$0xff] %v4348
      %4532 = vst [vmem:[%s4355] ss:$4 sm:$0xff] %v4349
      %4533 = vst [vmem:[%s4357] ss:$4 sm:$0xff] %v4350
      %4534 = vst [vmem:[%s4359] ss:$4 sm:$0xff] %v4208
      %4535 = vst [vmem:[%s4361] ss:$4 sm:$0xff] %v4351
      %4536 = vst [vmem:[%s4363] ss:$4 sm:$0xff] %v4352
      %4537 = vst [vmem:[%s4365] ss:$4 sm:$0xff] %v4353
      %4538 = vst [vmem:[%s4367] ss:$4 sm:$0xff] %v4209
      %v4539 = vld.sshfl [vmem:[#allocation1] sm:$0xff pattern:$0x73625140]
      %v4540 = vld.sshfl [vmem:[#allocation1 + $0x20] sm:$0xff pattern:$0x73625140]
      %v4577 = vpack.c.bf16 %v4369, %v4369
      %v4578 = vpack.c.bf16 %v4370, %v4370
      %v4579 = vpack.c.bf16 %v4379, %v4379
      %v4580 = vpack.c.bf16 %v4380, %v4380
      %v4581 = vpack.c.bf16 %v4389, %v4389
      %v4582 = vpack.c.bf16 %v4390, %v4390
      %v4583 = vpack.c.bf16 %v4399, %v4399
      %v4584 = vpack.c.bf16 %v4400, %v4400
      %v4585 = vpack.c.bf16 %v4409, %v4409
      %v4586 = vpack.c.bf16 %v4410, %v4410
      %v4587 = vpack.c.bf16 %v4419, %v4419
      %v4588 = vpack.c.bf16 %v4420, %v4420
      %v4589 = vpack.c.bf16 %v4429, %v4429
      %v4590 = vpack.c.bf16 %v4430, %v4430
      %v4591 = vpack.c.bf16 %v4439, %v4439
      %v4592 = vpack.c.bf16 %v4440, %v4440
      %v4593 = vpack.c.bf16 %v4449, %v4449
      %v4594 = vpack.c.bf16 %v4450, %v4450
      %v4595 = vpack.c.bf16 %v4459, %v4459
      %v4596 = vpack.c.bf16 %v4460, %v4460
      %v4597 = vpack.c.bf16 %v4469, %v4469
      %v4598 = vpack.c.bf16 %v4470, %v4470
      %v4599 = vpack.c.bf16 %v4479, %v4479
      %v4600 = vpack.c.bf16 %v4480, %v4480
      %v4601 = vpack.c.bf16 %v4489, %v4489
      %v4602 = vpack.c.bf16 %v4490, %v4490
      %v4603 = vpack.c.bf16 %v4499, %v4499
      %v4604 = vpack.c.bf16 %v4500, %v4500
      %v4605 = vpack.c.bf16 %v4509, %v4509
      %v4606 = vpack.c.bf16 %v4510, %v4510
      %v4607 = vpack.c.bf16 %v4519, %v4519
      %v4608 = vpack.c.bf16 %v4520, %v4520
      %v4609 = vpack.c.bf16 %v4529, %v4529
      %v4610 = vpack.c.bf16 %v4530, %v4530
      %v4611 = vpack.c.bf16 %v4539, %v4539
      %v4612 = vpack.c.bf16 %v4540, %v4540
      %4613 = vst.msk [vmem:[#allocation2 + $0x10] sm:$0xf] %vm478, %v4577
      %4614 = vst.msk [vmem:[#allocation2 + $0x14] sm:$0xf] %vm478, %v4578
      %4615 = vst.msk [vmem:[#allocation2 + $0x18] sm:$0xf] %vm478, %v4579
      %4616 = vst.msk [vmem:[#allocation2 + $0x1c] sm:$0xf] %vm478, %v4580
      %4617 = vst.msk [vmem:[#allocation2 + $0x20] sm:$0xf] %vm478, %v4581
      %4618 = vst.msk [vmem:[#allocation2 + $0x24] sm:$0xf] %vm478, %v4582
      %4619 = vst.msk [vmem:[#allocation2 + $0x28] sm:$0xf] %vm478, %v4583
      %4620 = vst.msk [vmem:[#allocation2 + $0x2c] sm:$0xf] %vm478, %v4584
      %4621 = vst.msk [vmem:[#allocation2 + $0x30] sm:$0xf] %vm478, %v4585
      %4622 = vst.msk [vmem:[#allocation2 + $0x34] sm:$0xf] %vm478, %v4586
      %4623 = vst.msk [vmem:[#allocation2 + $0x38] sm:$0xf] %vm478, %v4587
      %4624 = vst.msk [vmem:[#allocation2 + $0x3c] sm:$0xf] %vm478, %v4588
      %4625 = vst.msk [vmem:[#allocation2 + $0x40] sm:$0xf] %vm478, %v4589
      %4626 = vst.msk [vmem:[#allocation2 + $0x44] sm:$0xf] %vm478, %v4590
      %4627 = vst.msk [vmem:[#allocation2 + $0x48] sm:$0xf] %vm478, %v4591
      %4628 = vst.msk [vmem:[#allocation2 + $0x4c] sm:$0xf] %vm478, %v4592
      %4629 = vst.msk [vmem:[#allocation2 + $0x50] sm:$0xf] %vm478, %v4593
      %4630 = vst.msk [vmem:[#allocation2 + $0x54] sm:$0xf] %vm478, %v4594
      %4631 = vst.msk [vmem:[#allocation2 + $0x58] sm:$0xf] %vm478, %v4595
      %4632 = vst.msk [vmem:[#allocation2 + $0x5c] sm:$0xf] %vm478, %v4596
      %4633 = vst.msk [vmem:[#allocation2 + $0x60] sm:$0xf] %vm478, %v4597
      %4634 = vst.msk [vmem:[#allocation2 + $0x64] sm:$0xf] %vm478, %v4598
      %4635 = vst.msk [vmem:[#allocation2 + $0x68] sm:$0xf] %vm478, %v4599
      %4636 = vst.msk [vmem:[#allocation2 + $0x6c] sm:$0xf] %vm478, %v4600
      %4637 = vst.msk [vmem:[#allocation2 + $0x70] sm:$0xf] %vm478, %v4601
      %4638 = vst.msk [vmem:[#allocation2 + $0x74] sm:$0xf] %vm478, %v4602
      %4639 = vst.msk [vmem:[#allocation2 + $0x78] sm:$0xf] %vm478, %v4603
      %4640 = vst.msk [vmem:[#allocation2 + $0x7c] sm:$0xf] %vm478, %v4604
      %4641 = vst.msk [vmem:[#allocation2 + $0x80] sm:$0xf] %vm478, %v4605
      %4642 = vst.msk [vmem:[#allocation2 + $0x84] sm:$0xf] %vm478, %v4606
      %4643 = vst.msk [vmem:[#allocation2 + $0x88] sm:$0xf] %vm478, %v4607
      %4644 = vst.msk [vmem:[#allocation2 + $0x8c] sm:$0xf] %vm478, %v4608
      %4645 = vst.msk [vmem:[#allocation2 + $0x90] sm:$0xf] %vm478, %v4609
      %4646 = vst.msk [vmem:[#allocation2 + $0x94] sm:$0xf] %vm478, %v4610
      %4647 = vst.msk [vmem:[#allocation2 + $0x98] sm:$0xf] %vm478, %v4611
      %4648 = vst.msk [vmem:[#allocation2 + $0x9c] sm:$0xf] %vm478, %v4612
      %v4649 = vld [vmem:[#allocation2 + $0x4] sm:$0xc]
      %v4650 = vld [vmem:[#allocation2 + $0x8] sm:$0xf]
      %v4651 = vld [vmem:[#allocation2 + $0xc] sm:$0xf]
      %v4652 = vld [vmem:[#allocation2 + $0x10] sm:$0xf]
      %v4653 = vld [vmem:[#allocation2 + $0x14] sm:$0xf]
      %v4654 = vld [vmem:[#allocation2 + $0x18] sm:$0xf]
      %v4655 = vld [vmem:[#allocation2 + $0x1c] sm:$0xf]
      %v4656 = vld [vmem:[#allocation2 + $0x20] sm:$0xf]
      %v4657 = vld [vmem:[#allocation2 + $0x24] sm:$0xf]
      %v4658 = vld [vmem:[#allocation2 + $0x28] sm:$0xf]
      %v4659 = vld [vmem:[#allocation2 + $0x2c] sm:$0xf]
      %v4660 = vld [vmem:[#allocation2 + $0x30] sm:$0xf]
      %v4661 = vld [vmem:[#allocation2 + $0x34] sm:$0xf]
      %v4662 = vld [vmem:[#allocation2 + $0x38] sm:$0xf]
      %v4663 = vld [vmem:[#allocation2 + $0x3c] sm:$0xf]
      %v4664 = vld [vmem:[#allocation2 + $0x40] sm:$0xf]
      %v4665 = vld [vmem:[#allocation2 + $0x44] sm:$0xf]
      %v4666 = vld [vmem:[#allocation2 + $0x48] sm:$0xf]
      %v4667 = vld [vmem:[#allocation2 + $0x4c] sm:$0xf]
      %v4668 = vld [vmem:[#allocation2 + $0x50] sm:$0xf]
      %v4669 = vld [vmem:[#allocation2 + $0x54] sm:$0xf]
      %v4670 = vld [vmem:[#allocation2 + $0x58] sm:$0xf]
      %v4671 = vld [vmem:[#allocation2 + $0x5c] sm:$0xf]
      %v4672 = vld [vmem:[#allocation2 + $0x60] sm:$0xf]
      %v4673 = vld [vmem:[#allocation2 + $0x64] sm:$0xf]
      %v4674 = vld [vmem:[#allocation2 + $0x68] sm:$0xf]
      %v4675 = vld [vmem:[#allocation2 + $0x6c] sm:$0xf]
      %v4676 = vld [vmem:[#allocation2 + $0x70] sm:$0xf]
      %v4677 = vld [vmem:[#allocation2 + $0x74] sm:$0xf]
      %v4678 = vld [vmem:[#allocation2 + $0x78] sm:$0xf]
      %v4679 = vld [vmem:[#allocation2 + $0x7c] sm:$0xf]
      %v4680 = vld [vmem:[#allocation2 + $0x80] sm:$0xf]
      %v4681 = vld [vmem:[#allocation2 + $0x84] sm:$0xf]
      %v4682 = vld [vmem:[#allocation2 + $0x88] sm:$0xf]
      %v4683 = vld [vmem:[#allocation2 + $0x8c] sm:$0xf]
      %v4684 = vld [vmem:[#allocation2 + $0x90] sm:$0xf]
      %v4685 = vld [vmem:[#allocation2 + $0x94] sm:$0x7]
      %v4686 = vld [vmem:[#allocation2 + $0x4] sm:$0x8]
      %v4724 = vunpack.c.l.b16 %v4686
      %v4725 = vunpack.c.l.b16 %v4650
      %v4726 = vunpack.c.l.b16 %v4651
      %v4727 = vunpack.c.l.b16 %v4652
      %v4728 = vunpack.c.l.b16 %v4653
      %v4729 = vunpack.c.l.b16 %v4654
      %v4730 = vunpack.c.l.b16 %v4655
      %v4731 = vunpack.c.l.b16 %v4656
      %v4732 = vunpack.c.l.b16 %v4657
      %v4733 = vunpack.c.l.b16 %v4658
      %v4734 = vunpack.c.l.b16 %v4659
      %v4735 = vunpack.c.l.b16 %v4660
      %v4736 = vunpack.c.l.b16 %v4661
      %v4737 = vunpack.c.l.b16 %v4662
      %v4738 = vunpack.c.l.b16 %v4663
      %v4739 = vunpack.c.l.b16 %v4664
      %v4740 = vunpack.c.l.b16 %v4665
      %v4741 = vunpack.c.l.b16 %v4666
      %v4742 = vunpack.c.l.b16 %v4667
      %v4743 = vunpack.c.l.b16 %v4668
      %v4744 = vunpack.c.l.b16 %v4669
      %v4745 = vunpack.c.l.b16 %v4670
      %v4746 = vunpack.c.l.b16 %v4671
      %v4747 = vunpack.c.l.b16 %v4672
      %v4748 = vunpack.c.l.b16 %v4673
      %v4749 = vunpack.c.l.b16 %v4674
      %v4750 = vunpack.c.l.b16 %v4675
      %v4751 = vunpack.c.l.b16 %v4676
      %v4752 = vunpack.c.l.b16 %v4677
      %v4753 = vunpack.c.l.b16 %v4678
      %v4754 = vunpack.c.l.b16 %v4679
      %v4755 = vunpack.c.l.b16 %v4680
      %v4756 = vunpack.c.l.b16 %v4681
      %v4757 = vunpack.c.l.b16 %v4682
      %v4758 = vunpack.c.l.b16 %v4683
      %v4759 = vunpack.c.l.b16 %v4684
      %v4760 = vunpack.c.l.b16 %v4685
      %v4761 = vpack.c.b16 %v4725, %v4724
      %v4762 = vpack.c.b16 %v4727, %v4726
      %v4763 = vpack.c.b16 %v4729, %v4728
      %v4764 = vpack.c.b16 %v4731, %v4730
      %v4765 = vpack.c.b16 %v4733, %v4732
      %v4766 = vpack.c.b16 %v4735, %v4734
      %v4767 = vpack.c.b16 %v4737, %v4736
      %v4768 = vpack.c.b16 %v4739, %v4738
      %v4769 = vpack.c.b16 %v4741, %v4740
      %v4770 = vpack.c.b16 %v4743, %v4742
      %v4771 = vpack.c.b16 %v4745, %v4744
      %v4772 = vpack.c.b16 %v4747, %v4746
      %v4773 = vpack.c.b16 %v4749, %v4748
      %v4774 = vpack.c.b16 %v4751, %v4750
      %v4775 = vpack.c.b16 %v4753, %v4752
      %v4776 = vpack.c.b16 %v4755, %v4754
      %v4777 = vpack.c.b16 %v4757, %v4756
      %v4778 = vpack.c.b16 %v4759, %v4758
      %v4779 = vpack.c.b16 %v4760, %v4760
      %v4780 = vrot.slane %v4761, 3
      %v4781 = vrot.slane %v4762, 3
      %v4782 = vsel %vm3129, %v4780, %v4781
      %v4783 = vrot.slane %v4763, 3
      %v4784 = vsel %vm3129, %v4781, %v4783
      %v4785 = vrot.slane %v4764, 3
      %v4786 = vsel %vm3129, %v4783, %v4785
      %v4787 = vrot.slane %v4765, 3
      %v4788 = vsel %vm3129, %v4785, %v4787
      %v4789 = vrot.slane %v4766, 3
      %v4790 = vsel %vm3129, %v4787, %v4789
      %v4791 = vrot.slane %v4767, 3
      %v4792 = vsel %vm3129, %v4789, %v4791
      %v4793 = vrot.slane %v4768, 3
      %v4794 = vsel %vm3129, %v4791, %v4793
      %v4795 = vrot.slane %v4769, 3
      %v4796 = vsel %vm3129, %v4793, %v4795
      %v4797 = vrot.slane %v4770, 3
      %v4798 = vsel %vm3129, %v4795, %v4797
      %v4799 = vrot.slane %v4771, 3
      %v4800 = vsel %vm3129, %v4797, %v4799
      %v4801 = vrot.slane %v4772, 3
      %v4802 = vsel %vm3129, %v4799, %v4801
      %v4803 = vrot.slane %v4773, 3
      %v4804 = vsel %vm3129, %v4801, %v4803
      %v4805 = vrot.slane %v4774, 3
      %v4806 = vsel %vm3129, %v4803, %v4805
      %v4807 = vrot.slane %v4775, 3
      %v4808 = vsel %vm3129, %v4805, %v4807
      %v4809 = vrot.slane %v4776, 3
      %v4810 = vsel %vm3129, %v4807, %v4809
      %v4811 = vrot.slane %v4777, 3
      %v4812 = vsel %vm3129, %v4809, %v4811
      %v4813 = vrot.slane %v4778, 3
      %v4814 = vsel %vm3129, %v4811, %v4813
      %v4815 = vrot.slane %v4779, 3
      %v4816 = vsel %vm3129, %v4813, %v4815
      %v4818 = vsel %vm470, %v4782, 0
      %v4821 = vsel %vm470, %v4784, 0
      %v4824 = vsel %vm470, %v4786, 0
      %v4827 = vsel %vm470, %v4788, 0
      %v4830 = vsel %vm470, %v4790, 0
      %v4833 = vsel %vm470, %v4792, 0
      %v4836 = vsel %vm470, %v4794, 0
      %v4839 = vsel %vm470, %v4796, 0
      %v4842 = vsel %vm470, %v4798, 0
      %v4845 = vsel %vm470, %v4800, 0
      %v4848 = vsel %vm470, %v4802, 0
      %v4851 = vsel %vm470, %v4804, 0
      %v4854 = vsel %vm470, %v4806, 0
      %v4857 = vsel %vm470, %v4808, 0
      %v4860 = vsel %vm470, %v4810, 0
      %v4863 = vsel %vm470, %v4812, 0
      %v4866 = vsel %vm470, %v4814, 0
      %v4869 = vsel %vm470, %v4816, 0
      %v4872 = vsel %vm439, %v595, 0
      %4874 = vmatpush.bf16.msra.mxu0 0
      %4875 = vmatpush.bf16.msra.mxu0 0
      %4876 = vmatpush.bf16.msra.mxu0 0
      %4877 = vmatpush.bf16.msra.mxu0 0
      %4878 = vmatpush.bf16.msra.mxu0 0
      %4879 = vmatpush.bf16.msra.mxu0 0
      %4880 = vmatpush.bf16.msra.mxu0 0
      %4881 = vmatpush.bf16.msra.mxu0 %v4872
      %4882 = vmatmul.bf16.gmra.mxu0 %v4818
      %v4883 = vpop.f32.mrf.mxu0
      %v4884 = vadd.f32 0.0, %v4883
      %v4885 = vpop.f32.mrf.mxu0
      %v4886 = vadd.f32 0.0, %v4885
      %4887 = vmatmul.bf16.gmra.mxu0 %v4821
      %v4888 = vpop.f32.mrf.mxu0
      %v4889 = vadd.f32 0.0, %v4888
      %v4890 = vpop.f32.mrf.mxu0
      %v4891 = vadd.f32 0.0, %v4890
      %4892 = vmatmul.bf16.gmra.mxu0 %v4824
      %v4893 = vpop.f32.mrf.mxu0
      %v4894 = vadd.f32 0.0, %v4893
      %v4895 = vpop.f32.mrf.mxu0
      %v4896 = vadd.f32 0.0, %v4895
      %4897 = vmatmul.bf16.gmra.mxu0 %v4827
      %v4898 = vpop.f32.mrf.mxu0
      %v4899 = vadd.f32 0.0, %v4898
      %v4900 = vpop.f32.mrf.mxu0
      %v4901 = vadd.f32 0.0, %v4900
      %4902 = vmatmul.bf16.gmra.mxu0 %v4830
      %v4903 = vpop.f32.mrf.mxu0
      %v4904 = vadd.f32 0.0, %v4903
      %v4905 = vpop.f32.mrf.mxu0
      %v4906 = vadd.f32 0.0, %v4905
      %4907 = vmatmul.bf16.gmra.mxu0 %v4833
      %v4908 = vpop.f32.mrf.mxu0
      %v4909 = vadd.f32 0.0, %v4908
      %v4910 = vpop.f32.mrf.mxu0
      %v4911 = vadd.f32 0.0, %v4910
      %4912 = vmatmul.bf16.gmra.mxu0 %v4836
      %v4913 = vpop.f32.mrf.mxu0
      %v4914 = vadd.f32 0.0, %v4913
      %v4915 = vpop.f32.mrf.mxu0
      %v4916 = vadd.f32 0.0, %v4915
      %4917 = vmatmul.bf16.gmra.mxu0 %v4839
      %v4918 = vpop.f32.mrf.mxu0
      %v4919 = vadd.f32 0.0, %v4918
      %v4920 = vpop.f32.mrf.mxu0
      %v4921 = vadd.f32 0.0, %v4920
      %4922 = vmatmul.bf16.gmra.mxu0 %v4842
      %v4923 = vpop.f32.mrf.mxu0
      %v4924 = vadd.f32 0.0, %v4923
      %v4925 = vpop.f32.mrf.mxu0
      %v4926 = vadd.f32 0.0, %v4925
      %4927 = vmatmul.bf16.gmra.mxu0 %v4845
      %v4928 = vpop.f32.mrf.mxu0
      %v4929 = vadd.f32 0.0, %v4928
      %v4930 = vpop.f32.mrf.mxu0
      %v4931 = vadd.f32 0.0, %v4930
      %4932 = vmatmul.bf16.gmra.mxu0 %v4848
      %v4933 = vpop.f32.mrf.mxu0
      %v4934 = vadd.f32 0.0, %v4933
      %v4935 = vpop.f32.mrf.mxu0
      %v4936 = vadd.f32 0.0, %v4935
      %4937 = vmatmul.bf16.gmra.mxu0 %v4851
      %v4938 = vpop.f32.mrf.mxu0
      %v4939 = vadd.f32 0.0, %v4938
      %v4940 = vpop.f32.mrf.mxu0
      %v4941 = vadd.f32 0.0, %v4940
      %4942 = vmatmul.bf16.gmra.mxu0 %v4854
      %v4943 = vpop.f32.mrf.mxu0
      %v4944 = vadd.f32 0.0, %v4943
      %v4945 = vpop.f32.mrf.mxu0
      %v4946 = vadd.f32 0.0, %v4945
      %4947 = vmatmul.bf16.gmra.mxu0 %v4857
      %v4948 = vpop.f32.mrf.mxu0
      %v4949 = vadd.f32 0.0, %v4948
      %v4950 = vpop.f32.mrf.mxu0
      %v4951 = vadd.f32 0.0, %v4950
      %4952 = vmatmul.bf16.gmra.mxu0 %v4860
      %v4953 = vpop.f32.mrf.mxu0
      %v4954 = vadd.f32 0.0, %v4953
      %v4955 = vpop.f32.mrf.mxu0
      %v4956 = vadd.f32 0.0, %v4955
      %4957 = vmatmul.bf16.gmra.mxu0 %v4863
      %v4958 = vpop.f32.mrf.mxu0
      %v4959 = vadd.f32 0.0, %v4958
      %v4960 = vpop.f32.mrf.mxu0
      %v4961 = vadd.f32 0.0, %v4960
      %4962 = vmatmul.bf16.gmra.mxu0 %v4866
      %v4963 = vpop.f32.mrf.mxu0
      %v4964 = vadd.f32 0.0, %v4963
      %v4965 = vpop.f32.mrf.mxu0
      %v4966 = vadd.f32 0.0, %v4965
      %4967 = vmatmul.bf16.gmra.mxu0 %v4869
      %v4968 = vpop.f32.mrf.mxu0
      %v4969 = vadd.f32 0.0, %v4968
      %v4970 = vpop.f32.mrf.mxu0
      %v4971 = vadd.f32 0.0, %v4970
      %4972 = vdwg.mxu0
      %v4974 = vunpack.c.l.b16 %v4649
      %v4975 = vpack.c.b16 %v4725, %v4974
      %v4977 = vshrl.u32 %v4975, 16
      %v4979 = vrot.slane %v4977, 2
      %v4980 = vshll.u32 %v4975, 16
      %v4982 = vrot.slane %v4980, 3
      %v4983 = vor.u32 %v4979, %v4982
      %v4985 = vshrl.u32 %v4762, 16
      %v4987 = vrot.slane %v4985, 2
      %v4988 = vshll.u32 %v4762, 16
      %v4990 = vrot.slane %v4988, 3
      %v4991 = vor.u32 %v4987, %v4990
      %v4992 = vsel %vm2758, %v4983, %v4991
      %v4994 = vshrl.u32 %v4763, 16
      %v4996 = vrot.slane %v4994, 2
      %v4997 = vshll.u32 %v4763, 16
      %v4999 = vrot.slane %v4997, 3
      %v5000 = vor.u32 %v4996, %v4999
      %v5001 = vsel %vm2758, %v4991, %v5000
      %v5003 = vshrl.u32 %v4764, 16
      %v5005 = vrot.slane %v5003, 2
      %v5006 = vshll.u32 %v4764, 16
      %v5008 = vrot.slane %v5006, 3
      %v5009 = vor.u32 %v5005, %v5008
      %v5010 = vsel %vm2758, %v5000, %v5009
      %v5012 = vshrl.u32 %v4765, 16
      %v5014 = vrot.slane %v5012, 2
      %v5015 = vshll.u32 %v4765, 16
      %v5017 = vrot.slane %v5015, 3
      %v5018 = vor.u32 %v5014, %v5017
      %v5019 = vsel %vm2758, %v5009, %v5018
      %v5021 = vshrl.u32 %v4766, 16
      %v5023 = vrot.slane %v5021, 2
      %v5024 = vshll.u32 %v4766, 16
      %v5026 = vrot.slane %v5024, 3
      %v5027 = vor.u32 %v5023, %v5026
      %v5028 = vsel %vm2758, %v5018, %v5027
      %v5030 = vshrl.u32 %v4767, 16
      %v5032 = vrot.slane %v5030, 2
      %v5033 = vshll.u32 %v4767, 16
      %v5035 = vrot.slane %v5033, 3
      %v5036 = vor.u32 %v5032, %v5035
      %v5037 = vsel %vm2758, %v5027, %v5036
      %v5039 = vshrl.u32 %v4768, 16
      %v5041 = vrot.slane %v5039, 2
      %v5042 = vshll.u32 %v4768, 16
      %v5044 = vrot.slane %v5042, 3
      %v5045 = vor.u32 %v5041, %v5044
      %v5046 = vsel %vm2758, %v5036, %v5045
      %v5048 = vshrl.u32 %v4769, 16
      %v5050 = vrot.slane %v5048, 2
      %v5051 = vshll.u32 %v4769, 16
      %v5053 = vrot.slane %v5051, 3
      %v5054 = vor.u32 %v5050, %v5053
      %v5055 = vsel %vm2758, %v5045, %v5054
      %v5057 = vshrl.u32 %v4770, 16
      %v5059 = vrot.slane %v5057, 2
      %v5060 = vshll.u32 %v4770, 16
      %v5062 = vrot.slane %v5060, 3
      %v5063 = vor.u32 %v5059, %v5062
      %v5064 = vsel %vm2758, %v5054, %v5063
      %v5066 = vshrl.u32 %v4771, 16
      %v5068 = vrot.slane %v5066, 2
      %v5069 = vshll.u32 %v4771, 16
      %v5071 = vrot.slane %v5069, 3
      %v5072 = vor.u32 %v5068, %v5071
      %v5073 = vsel %vm2758, %v5063, %v5072
      %v5075 = vshrl.u32 %v4772, 16
      %v5077 = vrot.slane %v5075, 2
      %v5078 = vshll.u32 %v4772, 16
      %v5080 = vrot.slane %v5078, 3
      %v5081 = vor.u32 %v5077, %v5080
      %v5082 = vsel %vm2758, %v5072, %v5081
      %v5084 = vshrl.u32 %v4773, 16
      %v5086 = vrot.slane %v5084, 2
      %v5087 = vshll.u32 %v4773, 16
      %v5089 = vrot.slane %v5087, 3
      %v5090 = vor.u32 %v5086, %v5089
      %v5091 = vsel %vm2758, %v5081, %v5090
      %v5093 = vshrl.u32 %v4774, 16
      %v5095 = vrot.slane %v5093, 2
      %v5096 = vshll.u32 %v4774, 16
      %v5098 = vrot.slane %v5096, 3
      %v5099 = vor.u32 %v5095, %v5098
      %v5100 = vsel %vm2758, %v5090, %v5099
      %v5102 = vshrl.u32 %v4775, 16
      %v5104 = vrot.slane %v5102, 2
      %v5105 = vshll.u32 %v4775, 16
      %v5107 = vrot.slane %v5105, 3
      %v5108 = vor.u32 %v5104, %v5107
      %v5109 = vsel %vm2758, %v5099, %v5108
      %v5111 = vshrl.u32 %v4776, 16
      %v5113 = vrot.slane %v5111, 2
      %v5114 = vshll.u32 %v4776, 16
      %v5116 = vrot.slane %v5114, 3
      %v5117 = vor.u32 %v5113, %v5116
      %v5118 = vsel %vm2758, %v5108, %v5117
      %v5120 = vshrl.u32 %v4777, 16
      %v5122 = vrot.slane %v5120, 2
      %v5123 = vshll.u32 %v4777, 16
      %v5125 = vrot.slane %v5123, 3
      %v5126 = vor.u32 %v5122, %v5125
      %v5127 = vsel %vm2758, %v5117, %v5126
      %v5129 = vshrl.u32 %v4778, 16
      %v5131 = vrot.slane %v5129, 2
      %v5132 = vshll.u32 %v4778, 16
      %v5134 = vrot.slane %v5132, 3
      %v5135 = vor.u32 %v5131, %v5134
      %v5136 = vsel %vm2758, %v5126, %v5135
      %v5138 = vshrl.u32 %v4779, 16
      %v5140 = vrot.slane %v5138, 2
      %v5141 = vshll.u32 %v4779, 16
      %v5143 = vrot.slane %v5141, 3
      %v5144 = vor.u32 %v5140, %v5143
      %v5145 = vsel %vm2758, %v5135, %v5144
      %v5147 = vsel %vm470, %v4992, 0
      %v5150 = vsel %vm470, %v5001, 0
      %v5153 = vsel %vm470, %v5010, 0
      %v5156 = vsel %vm470, %v5019, 0
      %v5159 = vsel %vm470, %v5028, 0
      %v5162 = vsel %vm470, %v5037, 0
      %v5165 = vsel %vm470, %v5046, 0
      %v5168 = vsel %vm470, %v5055, 0
      %v5171 = vsel %vm470, %v5064, 0
      %v5174 = vsel %vm470, %v5073, 0
      %v5177 = vsel %vm470, %v5082, 0
      %v5180 = vsel %vm470, %v5091, 0
      %v5183 = vsel %vm470, %v5100, 0
      %v5186 = vsel %vm470, %v5109, 0
      %v5189 = vsel %vm470, %v5118, 0
      %v5192 = vsel %vm470, %v5127, 0
      %v5195 = vsel %vm470, %v5136, 0
      %v5198 = vsel %vm470, %v5145, 0
      %v5201 = vsel %vm439, %v594, 0
      %5203 = vmatpush.bf16.msra.mxu0 0
      %5204 = vmatpush.bf16.msra.mxu0 0
      %5205 = vmatpush.bf16.msra.mxu0 0
      %5206 = vmatpush.bf16.msra.mxu0 0
      %5207 = vmatpush.bf16.msra.mxu0 0
      %5208 = vmatpush.bf16.msra.mxu0 0
      %5209 = vmatpush.bf16.msra.mxu0 0
      %5210 = vmatpush.bf16.msra.mxu0 %v5201
      %5211 = vmatmul.bf16.gmra.mxu0 %v5147
      %v5212 = vpop.f32.mrf.mxu0
      %v5213 = vadd.f32 %v4884, %v5212
      %v5214 = vpop.f32.mrf.mxu0
      %v5215 = vadd.f32 %v4886, %v5214
      %5216 = vmatmul.bf16.gmra.mxu0 %v5150
      %v5217 = vpop.f32.mrf.mxu0
      %v5218 = vadd.f32 %v4889, %v5217
      %v5219 = vpop.f32.mrf.mxu0
      %v5220 = vadd.f32 %v4891, %v5219
      %5221 = vmatmul.bf16.gmra.mxu0 %v5153
      %v5222 = vpop.f32.mrf.mxu0
      %v5223 = vadd.f32 %v4894, %v5222
      %v5224 = vpop.f32.mrf.mxu0
      %v5225 = vadd.f32 %v4896, %v5224
      %5226 = vmatmul.bf16.gmra.mxu0 %v5156
      %v5227 = vpop.f32.mrf.mxu0
      %v5228 = vadd.f32 %v4899, %v5227
      %v5229 = vpop.f32.mrf.mxu0
      %v5230 = vadd.f32 %v4901, %v5229
      %5231 = vmatmul.bf16.gmra.mxu0 %v5159
      %v5232 = vpop.f32.mrf.mxu0
      %v5233 = vadd.f32 %v4904, %v5232
      %v5234 = vpop.f32.mrf.mxu0
      %v5235 = vadd.f32 %v4906, %v5234
      %5236 = vmatmul.bf16.gmra.mxu0 %v5162
      %v5237 = vpop.f32.mrf.mxu0
      %v5238 = vadd.f32 %v4909, %v5237
      %v5239 = vpop.f32.mrf.mxu0
      %v5240 = vadd.f32 %v4911, %v5239
      %5241 = vmatmul.bf16.gmra.mxu0 %v5165
      %v5242 = vpop.f32.mrf.mxu0
      %v5243 = vadd.f32 %v4914, %v5242
      %v5244 = vpop.f32.mrf.mxu0
      %v5245 = vadd.f32 %v4916, %v5244
      %5246 = vmatmul.bf16.gmra.mxu0 %v5168
      %v5247 = vpop.f32.mrf.mxu0
      %v5248 = vadd.f32 %v4919, %v5247
      %v5249 = vpop.f32.mrf.mxu0
      %v5250 = vadd.f32 %v4921, %v5249
      %5251 = vmatmul.bf16.gmra.mxu0 %v5171
      %v5252 = vpop.f32.mrf.mxu0
      %v5253 = vadd.f32 %v4924, %v5252
      %v5254 = vpop.f32.mrf.mxu0
      %v5255 = vadd.f32 %v4926, %v5254
      %5256 = vmatmul.bf16.gmra.mxu0 %v5174
      %v5257 = vpop.f32.mrf.mxu0
      %v5258 = vadd.f32 %v4929, %v5257
      %v5259 = vpop.f32.mrf.mxu0
      %v5260 = vadd.f32 %v4931, %v5259
      %5261 = vmatmul.bf16.gmra.mxu0 %v5177
      %v5262 = vpop.f32.mrf.mxu0
      %v5263 = vadd.f32 %v4934, %v5262
      %v5264 = vpop.f32.mrf.mxu0
      %v5265 = vadd.f32 %v4936, %v5264
      %5266 = vmatmul.bf16.gmra.mxu0 %v5180
      %v5267 = vpop.f32.mrf.mxu0
      %v5268 = vadd.f32 %v4939, %v5267
      %v5269 = vpop.f32.mrf.mxu0
      %v5270 = vadd.f32 %v4941, %v5269
      %5271 = vmatmul.bf16.gmra.mxu0 %v5183
      %v5272 = vpop.f32.mrf.mxu0
      %v5273 = vadd.f32 %v4944, %v5272
      %v5274 = vpop.f32.mrf.mxu0
      %v5275 = vadd.f32 %v4946, %v5274
      %5276 = vmatmul.bf16.gmra.mxu0 %v5186
      %v5277 = vpop.f32.mrf.mxu0
      %v5278 = vadd.f32 %v4949, %v5277
      %v5279 = vpop.f32.mrf.mxu0
      %v5280 = vadd.f32 %v4951, %v5279
      %5281 = vmatmul.bf16.gmra.mxu0 %v5189
      %v5282 = vpop.f32.mrf.mxu0
      %v5283 = vadd.f32 %v4954, %v5282
      %v5284 = vpop.f32.mrf.mxu0
      %v5285 = vadd.f32 %v4956, %v5284
      %5286 = vmatmul.bf16.gmra.mxu0 %v5192
      %v5287 = vpop.f32.mrf.mxu0
      %v5288 = vadd.f32 %v4959, %v5287
      %v5289 = vpop.f32.mrf.mxu0
      %v5290 = vadd.f32 %v4961, %v5289
      %5291 = vmatmul.bf16.gmra.mxu0 %v5195
      %v5292 = vpop.f32.mrf.mxu0
      %v5293 = vadd.f32 %v4964, %v5292
      %v5294 = vpop.f32.mrf.mxu0
      %v5295 = vadd.f32 %v4966, %v5294
      %5296 = vmatmul.bf16.gmra.mxu0 %v5198
      %v5297 = vpop.f32.mrf.mxu0
      %v5298 = vadd.f32 %v4969, %v5297
      %v5299 = vpop.f32.mrf.mxu0
      %v5300 = vadd.f32 %v4971, %v5299
      %5301 = vdwg.mxu0
      %v5302 = vld [vmem:[#allocation2 + $0x94] sm:$0xf]
      %v5304 = vunpack.c.l.b16 %v5302
      %v5305 = vpack.c.b16 %v5304, %v5304
      %vm5306 = vsmask.f32 4352
      %v5308 = vshrl.u32 %v4761, 16
      %v5310 = vrot.slane %v5308, 3
      %v5311 = vshll.u32 %v4761, 16
      %v5313 = vrot.slane %v5311, 4
      %v5314 = vor.u32 %v5310, %v5313
      %v5315 = vrot.slane %v4985, 3
      %v5316 = vrot.slane %v4988, 4
      %v5317 = vor.u32 %v5315, %v5316
      %v5318 = vsel %vm5306, %v5314, %v5317
      %v5319 = vrot.slane %v4994, 3
      %v5320 = vrot.slane %v4997, 4
      %v5321 = vor.u32 %v5319, %v5320
      %v5322 = vsel %vm5306, %v5317, %v5321
      %v5323 = vrot.slane %v5003, 3
      %v5324 = vrot.slane %v5006, 4
      %v5325 = vor.u32 %v5323, %v5324
      %v5326 = vsel %vm5306, %v5321, %v5325
      %v5327 = vrot.slane %v5012, 3
      %v5328 = vrot.slane %v5015, 4
      %v5329 = vor.u32 %v5327, %v5328
      %v5330 = vsel %vm5306, %v5325, %v5329
      %v5331 = vrot.slane %v5021, 3
      %v5332 = vrot.slane %v5024, 4
      %v5333 = vor.u32 %v5331, %v5332
      %v5334 = vsel %vm5306, %v5329, %v5333
      %v5335 = vrot.slane %v5030, 3
      %v5336 = vrot.slane %v5033, 4
      %v5337 = vor.u32 %v5335, %v5336
      %v5338 = vsel %vm5306, %v5333, %v5337
      %v5339 = vrot.slane %v5039, 3
      %v5340 = vrot.slane %v5042, 4
      %v5341 = vor.u32 %v5339, %v5340
      %v5342 = vsel %vm5306, %v5337, %v5341
      %v5343 = vrot.slane %v5048, 3
      %v5344 = vrot.slane %v5051, 4
      %v5345 = vor.u32 %v5343, %v5344
      %v5346 = vsel %vm5306, %v5341, %v5345
      %v5347 = vrot.slane %v5057, 3
      %v5348 = vrot.slane %v5060, 4
      %v5349 = vor.u32 %v5347, %v5348
      %v5350 = vsel %vm5306, %v5345, %v5349
      %v5351 = vrot.slane %v5066, 3
      %v5352 = vrot.slane %v5069, 4
      %v5353 = vor.u32 %v5351, %v5352
      %v5354 = vsel %vm5306, %v5349, %v5353
      %v5355 = vrot.slane %v5075, 3
      %v5356 = vrot.slane %v5078, 4
      %v5357 = vor.u32 %v5355, %v5356
      %v5358 = vsel %vm5306, %v5353, %v5357
      %v5359 = vrot.slane %v5084, 3
      %v5360 = vrot.slane %v5087, 4
      %v5361 = vor.u32 %v5359, %v5360
      %v5362 = vsel %vm5306, %v5357, %v5361
      %v5363 = vrot.slane %v5093, 3
      %v5364 = vrot.slane %v5096, 4
      %v5365 = vor.u32 %v5363, %v5364
      %v5366 = vsel %vm5306, %v5361, %v5365
      %v5367 = vrot.slane %v5102, 3
      %v5368 = vrot.slane %v5105, 4
      %v5369 = vor.u32 %v5367, %v5368
      %v5370 = vsel %vm5306, %v5365, %v5369
      %v5371 = vrot.slane %v5111, 3
      %v5372 = vrot.slane %v5114, 4
      %v5373 = vor.u32 %v5371, %v5372
      %v5374 = vsel %vm5306, %v5369, %v5373
      %v5375 = vrot.slane %v5120, 3
      %v5376 = vrot.slane %v5123, 4
      %v5377 = vor.u32 %v5375, %v5376
      %v5378 = vsel %vm5306, %v5373, %v5377
      %v5379 = vrot.slane %v5129, 3
      %v5380 = vrot.slane %v5132, 4
      %v5381 = vor.u32 %v5379, %v5380
      %v5382 = vsel %vm5306, %v5377, %v5381
      %v5384 = vshrl.u32 %v5305, 16
      %v5386 = vrot.slane %v5384, 3
      %v5387 = vshll.u32 %v5305, 16
      %v5389 = vrot.slane %v5387, 4
      %v5390 = vor.u32 %v5386, %v5389
      %v5391 = vsel %vm5306, %v5381, %v5390
      %v5393 = vsel %vm470, %v5318, 0
      %v5396 = vsel %vm470, %v5322, 0
      %v5399 = vsel %vm470, %v5326, 0
      %v5402 = vsel %vm470, %v5330, 0
      %v5405 = vsel %vm470, %v5334, 0
      %v5408 = vsel %vm470, %v5338, 0
      %v5411 = vsel %vm470, %v5342, 0
      %v5414 = vsel %vm470, %v5346, 0
      %v5417 = vsel %vm470, %v5350, 0
      %v5420 = vsel %vm470, %v5354, 0
      %v5423 = vsel %vm470, %v5358, 0
      %v5426 = vsel %vm470, %v5362, 0
      %v5429 = vsel %vm470, %v5366, 0
      %v5432 = vsel %vm470, %v5370, 0
      %v5435 = vsel %vm470, %v5374, 0
      %v5438 = vsel %vm470, %v5378, 0
      %v5441 = vsel %vm470, %v5382, 0
      %v5444 = vsel %vm470, %v5391, 0
      %v5447 = vsel %vm439, %v596, 0
      %5449 = vmatpush.bf16.msra.mxu0 0
      %5450 = vmatpush.bf16.msra.mxu0 0
      %5451 = vmatpush.bf16.msra.mxu0 0
      %5452 = vmatpush.bf16.msra.mxu0 0
      %5453 = vmatpush.bf16.msra.mxu0 0
      %5454 = vmatpush.bf16.msra.mxu0 0
      %5455 = vmatpush.bf16.msra.mxu0 0
      %5456 = vmatpush.bf16.msra.mxu0 %v5447
      %5457 = vmatmul.bf16.gmra.mxu0 %v5393
      %v5458 = vpop.f32.mrf.mxu0
      %v5459 = vadd.f32 0.0, %v5458
      %v5460 = vpop.f32.mrf.mxu0
      %v5461 = vadd.f32 0.0, %v5460
      %5462 = vmatmul.bf16.gmra.mxu0 %v5396
      %v5463 = vpop.f32.mrf.mxu0
      %v5464 = vadd.f32 0.0, %v5463
      %v5465 = vpop.f32.mrf.mxu0
      %v5466 = vadd.f32 0.0, %v5465
      %5467 = vmatmul.bf16.gmra.mxu0 %v5399
      %v5468 = vpop.f32.mrf.mxu0
      %v5469 = vadd.f32 0.0, %v5468
      %v5470 = vpop.f32.mrf.mxu0
      %v5471 = vadd.f32 0.0, %v5470
      %5472 = vmatmul.bf16.gmra.mxu0 %v5402
      %v5473 = vpop.f32.mrf.mxu0
      %v5474 = vadd.f32 0.0, %v5473
      %v5475 = vpop.f32.mrf.mxu0
      %v5476 = vadd.f32 0.0, %v5475
      %5477 = vmatmul.bf16.gmra.mxu0 %v5405
      %v5478 = vpop.f32.mrf.mxu0
      %v5479 = vadd.f32 0.0, %v5478
      %v5480 = vpop.f32.mrf.mxu0
      %v5481 = vadd.f32 0.0, %v5480
      %5482 = vmatmul.bf16.gmra.mxu0 %v5408
      %v5483 = vpop.f32.mrf.mxu0
      %v5484 = vadd.f32 0.0, %v5483
      %v5485 = vpop.f32.mrf.mxu0
      %v5486 = vadd.f32 0.0, %v5485
      %5487 = vmatmul.bf16.gmra.mxu0 %v5411
      %v5488 = vpop.f32.mrf.mxu0
      %v5489 = vadd.f32 0.0, %v5488
      %v5490 = vpop.f32.mrf.mxu0
      %v5491 = vadd.f32 0.0, %v5490
      %5492 = vmatmul.bf16.gmra.mxu0 %v5414
      %v5493 = vpop.f32.mrf.mxu0
      %v5494 = vadd.f32 0.0, %v5493
      %v5495 = vpop.f32.mrf.mxu0
      %v5496 = vadd.f32 0.0, %v5495
      %5497 = vmatmul.bf16.gmra.mxu0 %v5417
      %v5498 = vpop.f32.mrf.mxu0
      %v5499 = vadd.f32 0.0, %v5498
      %v5500 = vpop.f32.mrf.mxu0
      %v5501 = vadd.f32 0.0, %v5500
      %5502 = vmatmul.bf16.gmra.mxu0 %v5420
      %v5503 = vpop.f32.mrf.mxu0
      %v5504 = vadd.f32 0.0, %v5503
      %v5505 = vpop.f32.mrf.mxu0
      %v5506 = vadd.f32 0.0, %v5505
      %5507 = vmatmul.bf16.gmra.mxu0 %v5423
      %v5508 = vpop.f32.mrf.mxu0
      %v5509 = vadd.f32 0.0, %v5508
      %v5510 = vpop.f32.mrf.mxu0
      %v5511 = vadd.f32 0.0, %v5510
      %5512 = vmatmul.bf16.gmra.mxu0 %v5426
      %v5513 = vpop.f32.mrf.mxu0
      %v5514 = vadd.f32 0.0, %v5513
      %v5515 = vpop.f32.mrf.mxu0
      %v5516 = vadd.f32 0.0, %v5515
      %5517 = vmatmul.bf16.gmra.mxu0 %v5429
      %v5518 = vpop.f32.mrf.mxu0
      %v5519 = vadd.f32 0.0, %v5518
      %v5520 = vpop.f32.mrf.mxu0
      %v5521 = vadd.f32 0.0, %v5520
      %5522 = vmatmul.bf16.gmra.mxu0 %v5432
      %v5523 = vpop.f32.mrf.mxu0
      %v5524 = vadd.f32 0.0, %v5523
      %v5525 = vpop.f32.mrf.mxu0
      %v5526 = vadd.f32 0.0, %v5525
      %5527 = vmatmul.bf16.gmra.mxu0 %v5435
      %v5528 = vpop.f32.mrf.mxu0
      %v5529 = vadd.f32 0.0, %v5528
      %v5530 = vpop.f32.mrf.mxu0
      %v5531 = vadd.f32 0.0, %v5530
      %5532 = vmatmul.bf16.gmra.mxu0 %v5438
      %v5533 = vpop.f32.mrf.mxu0
      %v5534 = vadd.f32 0.0, %v5533
      %v5535 = vpop.f32.mrf.mxu0
      %v5536 = vadd.f32 0.0, %v5535
      %5537 = vmatmul.bf16.gmra.mxu0 %v5441
      %v5538 = vpop.f32.mrf.mxu0
      %v5539 = vadd.f32 0.0, %v5538
      %v5540 = vpop.f32.mrf.mxu0
      %v5541 = vadd.f32 0.0, %v5540
      %5542 = vmatmul.bf16.gmra.mxu0 %v5444
      %v5543 = vpop.f32.mrf.mxu0
      %v5544 = vadd.f32 0.0, %v5543
      %v5545 = vpop.f32.mrf.mxu0
      %v5546 = vadd.f32 0.0, %v5545
      %5547 = vdwg.mxu0
      %v5548 = vadd.f32 %v5213, %v5459
      %v5549 = vadd.f32 %v5215, %v5461
      %v5550 = vadd.f32 %v5218, %v5464
      %v5551 = vadd.f32 %v5220, %v5466
      %v5552 = vadd.f32 %v5223, %v5469
      %v5553 = vadd.f32 %v5225, %v5471
      %v5554 = vadd.f32 %v5228, %v5474
      %v5555 = vadd.f32 %v5230, %v5476
      %v5556 = vadd.f32 %v5233, %v5479
      %v5557 = vadd.f32 %v5235, %v5481
      %v5558 = vadd.f32 %v5238, %v5484
      %v5559 = vadd.f32 %v5240, %v5486
      %v5560 = vadd.f32 %v5243, %v5489
      %v5561 = vadd.f32 %v5245, %v5491
      %v5562 = vadd.f32 %v5248, %v5494
      %v5563 = vadd.f32 %v5250, %v5496
      %v5564 = vadd.f32 %v5253, %v5499
      %v5565 = vadd.f32 %v5255, %v5501
      %v5566 = vadd.f32 %v5258, %v5504
      %v5567 = vadd.f32 %v5260, %v5506
      %v5568 = vadd.f32 %v5263, %v5509
      %v5569 = vadd.f32 %v5265, %v5511
      %v5570 = vadd.f32 %v5268, %v5514
      %v5571 = vadd.f32 %v5270, %v5516
      %v5572 = vadd.f32 %v5273, %v5519
      %v5573 = vadd.f32 %v5275, %v5521
      %v5574 = vadd.f32 %v5278, %v5524
      %v5575 = vadd.f32 %v5280, %v5526
      %v5576 = vadd.f32 %v5283, %v5529
      %v5577 = vadd.f32 %v5285, %v5531
      %v5578 = vadd.f32 %v5288, %v5534
      %v5579 = vadd.f32 %v5290, %v5536
      %v5580 = vadd.f32 %v5293, %v5539
      %v5581 = vadd.f32 %v5295, %v5541
      %v5582 = vadd.f32 %v5298, %v5544
      %v5583 = vadd.f32 %v5300, %v5546
      %v5584 = vld [vmem:[#allocation2 + $0xc] sm:$0x8]
      %v5585 = vld [vmem:[#allocation2 + $0x10] sm:$0xf]
      %v5586 = vld [vmem:[#allocation2 + $0x14] sm:$0xf]
      %v5587 = vld [vmem:[#allocation2 + $0x18] sm:$0xf]
      %v5588 = vld [vmem:[#allocation2 + $0x1c] sm:$0xf]
      %v5589 = vld [vmem:[#allocation2 + $0x20] sm:$0xf]
      %v5590 = vld [vmem:[#allocation2 + $0x24] sm:$0xf]
      %v5591 = vld [vmem:[#allocation2 + $0x28] sm:$0xf]
      %v5592 = vld [vmem:[#allocation2 + $0x2c] sm:$0xf]
      %v5593 = vld [vmem:[#allocation2 + $0x30] sm:$0xf]
      %v5594 = vld [vmem:[#allocation2 + $0x34] sm:$0xf]
      %v5595 = vld [vmem:[#allocation2 + $0x38] sm:$0xf]
      %v5596 = vld [vmem:[#allocation2 + $0x3c] sm:$0xf]
      %v5597 = vld [vmem:[#allocation2 + $0x40] sm:$0xf]
      %v5598 = vld [vmem:[#allocation2 + $0x44] sm:$0xf]
      %v5599 = vld [vmem:[#allocation2 + $0x48] sm:$0xf]
      %v5600 = vld [vmem:[#allocation2 + $0x4c] sm:$0xf]
      %v5601 = vld [vmem:[#allocation2 + $0x50] sm:$0xf]
      %v5602 = vld [vmem:[#allocation2 + $0x54] sm:$0xf]
      %v5603 = vld [vmem:[#allocation2 + $0x58] sm:$0xf]
      %v5604 = vld [vmem:[#allocation2 + $0x5c] sm:$0xf]
      %v5605 = vld [vmem:[#allocation2 + $0x60] sm:$0xf]
      %v5606 = vld [vmem:[#allocation2 + $0x64] sm:$0xf]
      %v5607 = vld [vmem:[#allocation2 + $0x68] sm:$0xf]
      %v5608 = vld [vmem:[#allocation2 + $0x6c] sm:$0xf]
      %v5609 = vld [vmem:[#allocation2 + $0x70] sm:$0xf]
      %v5610 = vld [vmem:[#allocation2 + $0x74] sm:$0xf]
      %v5611 = vld [vmem:[#allocation2 + $0x78] sm:$0xf]
      %v5612 = vld [vmem:[#allocation2 + $0x7c] sm:$0xf]
      %v5613 = vld [vmem:[#allocation2 + $0x80] sm:$0xf]
      %v5614 = vld [vmem:[#allocation2 + $0x84] sm:$0xf]
      %v5615 = vld [vmem:[#allocation2 + $0x88] sm:$0xf]
      %v5616 = vld [vmem:[#allocation2 + $0x8c] sm:$0xf]
      %v5617 = vld [vmem:[#allocation2 + $0x90] sm:$0xf]
      %v5618 = vld [vmem:[#allocation2 + $0x94] sm:$0xf]
      %v5619 = vld [vmem:[#allocation2 + $0x98] sm:$0xf]
      %v5620 = vld [vmem:[#allocation2 + $0x9c] sm:$0xf]
      %v5658 = vunpack.c.l.b16 %v5584
      %v5659 = vunpack.c.l.b16 %v5585
      %v5660 = vunpack.c.l.b16 %v5586
      %v5661 = vunpack.c.l.b16 %v5587
      %v5662 = vunpack.c.l.b16 %v5588
      %v5663 = vunpack.c.l.b16 %v5589
      %v5664 = vunpack.c.l.b16 %v5590
      %v5665 = vunpack.c.l.b16 %v5591
      %v5666 = vunpack.c.l.b16 %v5592
      %v5667 = vunpack.c.l.b16 %v5593
      %v5668 = vunpack.c.l.b16 %v5594
      %v5669 = vunpack.c.l.b16 %v5595
      %v5670 = vunpack.c.l.b16 %v5596
      %v5671 = vunpack.c.l.b16 %v5597
      %v5672 = vunpack.c.l.b16 %v5598
      %v5673 = vunpack.c.l.b16 %v5599
      %v5674 = vunpack.c.l.b16 %v5600
      %v5675 = vunpack.c.l.b16 %v5601
      %v5676 = vunpack.c.l.b16 %v5602
      %v5677 = vunpack.c.l.b16 %v5603
      %v5678 = vunpack.c.l.b16 %v5604
      %v5679 = vunpack.c.l.b16 %v5605
      %v5680 = vunpack.c.l.b16 %v5606
      %v5681 = vunpack.c.l.b16 %v5607
      %v5682 = vunpack.c.l.b16 %v5608
      %v5683 = vunpack.c.l.b16 %v5609
      %v5684 = vunpack.c.l.b16 %v5610
      %v5685 = vunpack.c.l.b16 %v5611
      %v5686 = vunpack.c.l.b16 %v5612
      %v5687 = vunpack.c.l.b16 %v5613
      %v5688 = vunpack.c.l.b16 %v5614
      %v5689 = vunpack.c.l.b16 %v5615
      %v5690 = vunpack.c.l.b16 %v5616
      %v5691 = vunpack.c.l.b16 %v5617
      %v5692 = vunpack.c.l.b16 %v5618
      %v5693 = vunpack.c.l.b16 %v5619
      %v5694 = vunpack.c.l.b16 %v5620
      %v5695 = vpack.c.b16 %v5659, %v5658
      %v5696 = vpack.c.b16 %v5661, %v5660
      %v5697 = vpack.c.b16 %v5663, %v5662
      %v5698 = vpack.c.b16 %v5665, %v5664
      %v5699 = vpack.c.b16 %v5667, %v5666
      %v5700 = vpack.c.b16 %v5669, %v5668
      %v5701 = vpack.c.b16 %v5671, %v5670
      %v5702 = vpack.c.b16 %v5673, %v5672
      %v5703 = vpack.c.b16 %v5675, %v5674
      %v5704 = vpack.c.b16 %v5677, %v5676
      %v5705 = vpack.c.b16 %v5679, %v5678
      %v5706 = vpack.c.b16 %v5681, %v5680
      %v5707 = vpack.c.b16 %v5683, %v5682
      %v5708 = vpack.c.b16 %v5685, %v5684
      %v5709 = vpack.c.b16 %v5687, %v5686
      %v5710 = vpack.c.b16 %v5689, %v5688
      %v5711 = vpack.c.b16 %v5691, %v5690
      %v5712 = vpack.c.b16 %v5693, %v5692
      %v5713 = vpack.c.b16 %v5694, %v5694
      %v5715 = vshrl.u32 %v5695, 16
      %v5717 = vrot.slane %v5715, 3
      %v5718 = vshll.u32 %v5695, 16
      %v5720 = vrot.slane %v5718, 4
      %v5721 = vor.u32 %v5717, %v5720
      %v5723 = vshrl.u32 %v5696, 16
      %v5725 = vrot.slane %v5723, 3
      %v5726 = vshll.u32 %v5696, 16
      %v5728 = vrot.slane %v5726, 4
      %v5729 = vor.u32 %v5725, %v5728
      %v5730 = vsel %vm5306, %v5721, %v5729
      %v5732 = vshrl.u32 %v5697, 16
      %v5734 = vrot.slane %v5732, 3
      %v5735 = vshll.u32 %v5697, 16
      %v5737 = vrot.slane %v5735, 4
      %v5738 = vor.u32 %v5734, %v5737
      %v5739 = vsel %vm5306, %v5729, %v5738
      %v5741 = vshrl.u32 %v5698, 16
      %v5743 = vrot.slane %v5741, 3
      %v5744 = vshll.u32 %v5698, 16
      %v5746 = vrot.slane %v5744, 4
      %v5747 = vor.u32 %v5743, %v5746
      %v5748 = vsel %vm5306, %v5738, %v5747
      %v5750 = vshrl.u32 %v5699, 16
      %v5752 = vrot.slane %v5750, 3
      %v5753 = vshll.u32 %v5699, 16
      %v5755 = vrot.slane %v5753, 4
      %v5756 = vor.u32 %v5752, %v5755
      %v5757 = vsel %vm5306, %v5747, %v5756
      %v5759 = vshrl.u32 %v5700, 16
      %v5761 = vrot.slane %v5759, 3
      %v5762 = vshll.u32 %v5700, 16
      %v5764 = vrot.slane %v5762, 4
      %v5765 = vor.u32 %v5761, %v5764
      %v5766 = vsel %vm5306, %v5756, %v5765
      %v5768 = vshrl.u32 %v5701, 16
      %v5770 = vrot.slane %v5768, 3
      %v5771 = vshll.u32 %v5701, 16
      %v5773 = vrot.slane %v5771, 4
      %v5774 = vor.u32 %v5770, %v5773
      %v5775 = vsel %vm5306, %v5765, %v5774
      %v5777 = vshrl.u32 %v5702, 16
      %v5779 = vrot.slane %v5777, 3
      %v5780 = vshll.u32 %v5702, 16
      %v5782 = vrot.slane %v5780, 4
      %v5783 = vor.u32 %v5779, %v5782
      %v5784 = vsel %vm5306, %v5774, %v5783
      %v5786 = vshrl.u32 %v5703, 16
      %v5788 = vrot.slane %v5786, 3
      %v5789 = vshll.u32 %v5703, 16
      %v5791 = vrot.slane %v5789, 4
      %v5792 = vor.u32 %v5788, %v5791
      %v5793 = vsel %vm5306, %v5783, %v5792
      %v5795 = vshrl.u32 %v5704, 16
      %v5797 = vrot.slane %v5795, 3
      %v5798 = vshll.u32 %v5704, 16
      %v5800 = vrot.slane %v5798, 4
      %v5801 = vor.u32 %v5797, %v5800
      %v5802 = vsel %vm5306, %v5792, %v5801
      %v5804 = vshrl.u32 %v5705, 16
      %v5806 = vrot.slane %v5804, 3
      %v5807 = vshll.u32 %v5705, 16
      %v5809 = vrot.slane %v5807, 4
      %v5810 = vor.u32 %v5806, %v5809
      %v5811 = vsel %vm5306, %v5801, %v5810
      %v5813 = vshrl.u32 %v5706, 16
      %v5815 = vrot.slane %v5813, 3
      %v5816 = vshll.u32 %v5706, 16
      %v5818 = vrot.slane %v5816, 4
      %v5819 = vor.u32 %v5815, %v5818
      %v5820 = vsel %vm5306, %v5810, %v5819
      %v5822 = vshrl.u32 %v5707, 16
      %v5824 = vrot.slane %v5822, 3
      %v5825 = vshll.u32 %v5707, 16
      %v5827 = vrot.slane %v5825, 4
      %v5828 = vor.u32 %v5824, %v5827
      %v5829 = vsel %vm5306, %v5819, %v5828
      %v5831 = vshrl.u32 %v5708, 16
      %v5833 = vrot.slane %v5831, 3
      %v5834 = vshll.u32 %v5708, 16
      %v5836 = vrot.slane %v5834, 4
      %v5837 = vor.u32 %v5833, %v5836
      %v5838 = vsel %vm5306, %v5828, %v5837
      %v5840 = vshrl.u32 %v5709, 16
      %v5842 = vrot.slane %v5840, 3
      %v5843 = vshll.u32 %v5709, 16
      %v5845 = vrot.slane %v5843, 4
      %v5846 = vor.u32 %v5842, %v5845
      %v5847 = vsel %vm5306, %v5837, %v5846
      %v5849 = vshrl.u32 %v5710, 16
      %v5851 = vrot.slane %v5849, 3
      %v5852 = vshll.u32 %v5710, 16
      %v5854 = vrot.slane %v5852, 4
      %v5855 = vor.u32 %v5851, %v5854
      %v5856 = vsel %vm5306, %v5846, %v5855
      %v5858 = vshrl.u32 %v5711, 16
      %v5860 = vrot.slane %v5858, 3
      %v5861 = vshll.u32 %v5711, 16
      %v5863 = vrot.slane %v5861, 4
      %v5864 = vor.u32 %v5860, %v5863
      %v5865 = vsel %vm5306, %v5855, %v5864
      %v5867 = vshrl.u32 %v5712, 16
      %v5869 = vrot.slane %v5867, 3
      %v5870 = vshll.u32 %v5712, 16
      %v5872 = vrot.slane %v5870, 4
      %v5873 = vor.u32 %v5869, %v5872
      %v5874 = vsel %vm5306, %v5864, %v5873
      %v5876 = vshrl.u32 %v5713, 16
      %v5878 = vrot.slane %v5876, 3
      %v5879 = vshll.u32 %v5713, 16
      %v5881 = vrot.slane %v5879, 4
      %v5882 = vor.u32 %v5878, %v5881
      %v5883 = vsel %vm5306, %v5873, %v5882
      %v5885 = vsel %vm470, %v5730, 0
      %v5888 = vsel %vm470, %v5739, 0
      %v5891 = vsel %vm470, %v5748, 0
      %v5894 = vsel %vm470, %v5757, 0
      %v5897 = vsel %vm470, %v5766, 0
      %v5900 = vsel %vm470, %v5775, 0
      %v5903 = vsel %vm470, %v5784, 0
      %v5906 = vsel %vm470, %v5793, 0
      %v5909 = vsel %vm470, %v5802, 0
      %v5912 = vsel %vm470, %v5811, 0
      %v5915 = vsel %vm470, %v5820, 0
      %v5918 = vsel %vm470, %v5829, 0
      %v5921 = vsel %vm470, %v5838, 0
      %v5924 = vsel %vm470, %v5847, 0
      %v5927 = vsel %vm470, %v5856, 0
      %v5930 = vsel %vm470, %v5865, 0
      %v5933 = vsel %vm470, %v5874, 0
      %v5936 = vsel %vm470, %v5883, 0
      %v5939 = vsel %vm439, %v597, 0
      %5941 = vmatpush.bf16.msra.mxu0 0
      %5942 = vmatpush.bf16.msra.mxu0 0
      %5943 = vmatpush.bf16.msra.mxu0 0
      %5944 = vmatpush.bf16.msra.mxu0 0
      %5945 = vmatpush.bf16.msra.mxu0 0
      %5946 = vmatpush.bf16.msra.mxu0 0
      %5947 = vmatpush.bf16.msra.mxu0 0
      %5948 = vmatpush.bf16.msra.mxu0 %v5939
      %5949 = vmatmul.bf16.gmra.mxu0 %v5885
      %v5950 = vpop.f32.mrf.mxu0
      %v5951 = vadd.f32 0.0, %v5950
      %v5952 = vpop.f32.mrf.mxu0
      %v5953 = vadd.f32 0.0, %v5952
      %5954 = vmatmul.bf16.gmra.mxu0 %v5888
      %v5955 = vpop.f32.mrf.mxu0
      %v5956 = vadd.f32 0.0, %v5955
      %v5957 = vpop.f32.mrf.mxu0
      %v5958 = vadd.f32 0.0, %v5957
      %5959 = vmatmul.bf16.gmra.mxu0 %v5891
      %v5960 = vpop.f32.mrf.mxu0
      %v5961 = vadd.f32 0.0, %v5960
      %v5962 = vpop.f32.mrf.mxu0
      %v5963 = vadd.f32 0.0, %v5962
      %5964 = vmatmul.bf16.gmra.mxu0 %v5894
      %v5965 = vpop.f32.mrf.mxu0
      %v5966 = vadd.f32 0.0, %v5965
      %v5967 = vpop.f32.mrf.mxu0
      %v5968 = vadd.f32 0.0, %v5967
      %5969 = vmatmul.bf16.gmra.mxu0 %v5897
      %v5970 = vpop.f32.mrf.mxu0
      %v5971 = vadd.f32 0.0, %v5970
      %v5972 = vpop.f32.mrf.mxu0
      %v5973 = vadd.f32 0.0, %v5972
      %5974 = vmatmul.bf16.gmra.mxu0 %v5900
      %v5975 = vpop.f32.mrf.mxu0
      %v5976 = vadd.f32 0.0, %v5975
      %v5977 = vpop.f32.mrf.mxu0
      %v5978 = vadd.f32 0.0, %v5977
      %5979 = vmatmul.bf16.gmra.mxu0 %v5903
      %v5980 = vpop.f32.mrf.mxu0
      %v5981 = vadd.f32 0.0, %v5980
      %v5982 = vpop.f32.mrf.mxu0
      %v5983 = vadd.f32 0.0, %v5982
      %5984 = vmatmul.bf16.gmra.mxu0 %v5906
      %v5985 = vpop.f32.mrf.mxu0
      %v5986 = vadd.f32 0.0, %v5985
      %v5987 = vpop.f32.mrf.mxu0
      %v5988 = vadd.f32 0.0, %v5987
      %5989 = vmatmul.bf16.gmra.mxu0 %v5909
      %v5990 = vpop.f32.mrf.mxu0
      %v5991 = vadd.f32 0.0, %v5990
      %v5992 = vpop.f32.mrf.mxu0
      %v5993 = vadd.f32 0.0, %v5992
      %5994 = vmatmul.bf16.gmra.mxu0 %v5912
      %v5995 = vpop.f32.mrf.mxu0
      %v5996 = vadd.f32 0.0, %v5995
      %v5997 = vpop.f32.mrf.mxu0
      %v5998 = vadd.f32 0.0, %v5997
      %5999 = vmatmul.bf16.gmra.mxu0 %v5915
      %v6000 = vpop.f32.mrf.mxu0
      %v6001 = vadd.f32 0.0, %v6000
      %v6002 = vpop.f32.mrf.mxu0
      %v6003 = vadd.f32 0.0, %v6002
      %6004 = vmatmul.bf16.gmra.mxu0 %v5918
      %v6005 = vpop.f32.mrf.mxu0
      %v6006 = vadd.f32 0.0, %v6005
      %v6007 = vpop.f32.mrf.mxu0
      %v6008 = vadd.f32 0.0, %v6007
      %6009 = vmatmul.bf16.gmra.mxu0 %v5921
      %v6010 = vpop.f32.mrf.mxu0
      %v6011 = vadd.f32 0.0, %v6010
      %v6012 = vpop.f32.mrf.mxu0
      %v6013 = vadd.f32 0.0, %v6012
      %6014 = vmatmul.bf16.gmra.mxu0 %v5924
      %v6015 = vpop.f32.mrf.mxu0
      %v6016 = vadd.f32 0.0, %v6015
      %v6017 = vpop.f32.mrf.mxu0
      %v6018 = vadd.f32 0.0, %v6017
      %6019 = vmatmul.bf16.gmra.mxu0 %v5927
      %v6020 = vpop.f32.mrf.mxu0
      %v6021 = vadd.f32 0.0, %v6020
      %v6022 = vpop.f32.mrf.mxu0
      %v6023 = vadd.f32 0.0, %v6022
      %6024 = vmatmul.bf16.gmra.mxu0 %v5930
      %v6025 = vpop.f32.mrf.mxu0
      %v6026 = vadd.f32 0.0, %v6025
      %v6027 = vpop.f32.mrf.mxu0
      %v6028 = vadd.f32 0.0, %v6027
      %6029 = vmatmul.bf16.gmra.mxu0 %v5933
      %v6030 = vpop.f32.mrf.mxu0
      %v6031 = vadd.f32 0.0, %v6030
      %v6032 = vpop.f32.mrf.mxu0
      %v6033 = vadd.f32 0.0, %v6032
      %6034 = vmatmul.bf16.gmra.mxu0 %v5936
      %v6035 = vpop.f32.mrf.mxu0
      %v6036 = vadd.f32 0.0, %v6035
      %v6037 = vpop.f32.mrf.mxu0
      %v6038 = vadd.f32 0.0, %v6037
      %6039 = vdwg.mxu0
      %v6040 = vadd.f32 %v5548, %v5951
      %v6041 = vadd.f32 %v5549, %v5953
      %v6042 = vadd.f32 %v5550, %v5956
      %v6043 = vadd.f32 %v5551, %v5958
      %v6044 = vadd.f32 %v5552, %v5961
      %v6045 = vadd.f32 %v5553, %v5963
      %v6046 = vadd.f32 %v5554, %v5966
      %v6047 = vadd.f32 %v5555, %v5968
      %v6048 = vadd.f32 %v5556, %v5971
      %v6049 = vadd.f32 %v5557, %v5973
      %v6050 = vadd.f32 %v5558, %v5976
      %v6051 = vadd.f32 %v5559, %v5978
      %v6052 = vadd.f32 %v5560, %v5981
      %v6053 = vadd.f32 %v5561, %v5983
      %v6054 = vadd.f32 %v5562, %v5986
      %v6055 = vadd.f32 %v5563, %v5988
      %v6056 = vadd.f32 %v5564, %v5991
      %v6057 = vadd.f32 %v5565, %v5993
      %v6058 = vadd.f32 %v5566, %v5996
      %v6059 = vadd.f32 %v5567, %v5998
      %v6060 = vadd.f32 %v5568, %v6001
      %v6061 = vadd.f32 %v5569, %v6003
      %v6062 = vadd.f32 %v5570, %v6006
      %v6063 = vadd.f32 %v5571, %v6008
      %v6064 = vadd.f32 %v5572, %v6011
      %v6065 = vadd.f32 %v5573, %v6013
      %v6066 = vadd.f32 %v5574, %v6016
      %v6067 = vadd.f32 %v5575, %v6018
      %v6068 = vadd.f32 %v5576, %v6021
      %v6069 = vadd.f32 %v5577, %v6023
      %v6070 = vadd.f32 %v5578, %v6026
      %v6071 = vadd.f32 %v5579, %v6028
      %v6072 = vadd.f32 %v5580, %v6031
      %v6073 = vadd.f32 %v5581, %v6033
      %v6074 = vadd.f32 %v5582, %v6036
      %v6075 = vadd.f32 %v5583, %v6038
      %v6076 = vpack.c.b16 %v5660, %v5659
      %v6077 = vpack.c.b16 %v5662, %v5661
      %v6078 = vpack.c.b16 %v5664, %v5663
      %v6079 = vpack.c.b16 %v5666, %v5665
      %v6080 = vpack.c.b16 %v5668, %v5667
      %v6081 = vpack.c.b16 %v5670, %v5669
      %v6082 = vpack.c.b16 %v5672, %v5671
      %v6083 = vpack.c.b16 %v5674, %v5673
      %v6084 = vpack.c.b16 %v5676, %v5675
      %v6085 = vpack.c.b16 %v5678, %v5677
      %v6086 = vpack.c.b16 %v5680, %v5679
      %v6087 = vpack.c.b16 %v5682, %v5681
      %v6088 = vpack.c.b16 %v5684, %v5683
      %v6089 = vpack.c.b16 %v5686, %v5685
      %v6090 = vpack.c.b16 %v5688, %v5687
      %v6091 = vpack.c.b16 %v5690, %v5689
      %v6092 = vpack.c.b16 %v5692, %v5691
      %v6093 = vpack.c.b16 %v5694, %v5693
      %v6095 = vsel %vm470, %v6076, 0
      %v6098 = vsel %vm470, %v6077, 0
      %v6101 = vsel %vm470, %v6078, 0
      %v6104 = vsel %vm470, %v6079, 0
      %v6107 = vsel %vm470, %v6080, 0
      %v6110 = vsel %vm470, %v6081, 0
      %v6113 = vsel %vm470, %v6082, 0
      %v6116 = vsel %vm470, %v6083, 0
      %v6119 = vsel %vm470, %v6084, 0
      %v6122 = vsel %vm470, %v6085, 0
      %v6125 = vsel %vm470, %v6086, 0
      %v6128 = vsel %vm470, %v6087, 0
      %v6131 = vsel %vm470, %v6088, 0
      %v6134 = vsel %vm470, %v6089, 0
      %v6137 = vsel %vm470, %v6090, 0
      %v6140 = vsel %vm470, %v6091, 0
      %v6143 = vsel %vm470, %v6092, 0
      %v6146 = vsel %vm470, %v6093, 0
      %v6149 = vsel %vm439, %v598, 0
      %6151 = vmatpush.bf16.msra.mxu0 0
      %6152 = vmatpush.bf16.msra.mxu0 0
      %6153 = vmatpush.bf16.msra.mxu0 0
      %6154 = vmatpush.bf16.msra.mxu0 0
      %6155 = vmatpush.bf16.msra.mxu0 0
      %6156 = vmatpush.bf16.msra.mxu0 0
      %6157 = vmatpush.bf16.msra.mxu0 0
      %6158 = vmatpush.bf16.msra.mxu0 %v6149
      %6159 = vmatmul.bf16.gmra.mxu0 %v6095
      %v6160 = vpop.f32.mrf.mxu0
      %v6161 = vadd.f32 0.0, %v6160
      %v6162 = vpop.f32.mrf.mxu0
      %v6163 = vadd.f32 0.0, %v6162
      %6164 = vmatmul.bf16.gmra.mxu0 %v6098
      %v6165 = vpop.f32.mrf.mxu0
      %v6166 = vadd.f32 0.0, %v6165
      %v6167 = vpop.f32.mrf.mxu0
      %v6168 = vadd.f32 0.0, %v6167
      %6169 = vmatmul.bf16.gmra.mxu0 %v6101
      %v6170 = vpop.f32.mrf.mxu0
      %v6171 = vadd.f32 0.0, %v6170
      %v6172 = vpop.f32.mrf.mxu0
      %v6173 = vadd.f32 0.0, %v6172
      %6174 = vmatmul.bf16.gmra.mxu0 %v6104
      %v6175 = vpop.f32.mrf.mxu0
      %v6176 = vadd.f32 0.0, %v6175
      %v6177 = vpop.f32.mrf.mxu0
      %v6178 = vadd.f32 0.0, %v6177
      %6179 = vmatmul.bf16.gmra.mxu0 %v6107
      %v6180 = vpop.f32.mrf.mxu0
      %v6181 = vadd.f32 0.0, %v6180
      %v6182 = vpop.f32.mrf.mxu0
      %v6183 = vadd.f32 0.0, %v6182
      %6184 = vmatmul.bf16.gmra.mxu0 %v6110
      %v6185 = vpop.f32.mrf.mxu0
      %v6186 = vadd.f32 0.0, %v6185
      %v6187 = vpop.f32.mrf.mxu0
      %v6188 = vadd.f32 0.0, %v6187
      %6189 = vmatmul.bf16.gmra.mxu0 %v6113
      %v6190 = vpop.f32.mrf.mxu0
      %v6191 = vadd.f32 0.0, %v6190
      %v6192 = vpop.f32.mrf.mxu0
      %v6193 = vadd.f32 0.0, %v6192
      %6194 = vmatmul.bf16.gmra.mxu0 %v6116
      %v6195 = vpop.f32.mrf.mxu0
      %v6196 = vadd.f32 0.0, %v6195
      %v6197 = vpop.f32.mrf.mxu0
      %v6198 = vadd.f32 0.0, %v6197
      %6199 = vmatmul.bf16.gmra.mxu0 %v6119
      %v6200 = vpop.f32.mrf.mxu0
      %v6201 = vadd.f32 0.0, %v6200
      %v6202 = vpop.f32.mrf.mxu0
      %v6203 = vadd.f32 0.0, %v6202
      %6204 = vmatmul.bf16.gmra.mxu0 %v6122
      %v6205 = vpop.f32.mrf.mxu0
      %v6206 = vadd.f32 0.0, %v6205
      %v6207 = vpop.f32.mrf.mxu0
      %v6208 = vadd.f32 0.0, %v6207
      %6209 = vmatmul.bf16.gmra.mxu0 %v6125
      %v6210 = vpop.f32.mrf.mxu0
      %v6211 = vadd.f32 0.0, %v6210
      %v6212 = vpop.f32.mrf.mxu0
      %v6213 = vadd.f32 0.0, %v6212
      %6214 = vmatmul.bf16.gmra.mxu0 %v6128
      %v6215 = vpop.f32.mrf.mxu0
      %v6216 = vadd.f32 0.0, %v6215
      %v6217 = vpop.f32.mrf.mxu0
      %v6218 = vadd.f32 0.0, %v6217
      %6219 = vmatmul.bf16.gmra.mxu0 %v6131
      %v6220 = vpop.f32.mrf.mxu0
      %v6221 = vadd.f32 0.0, %v6220
      %v6222 = vpop.f32.mrf.mxu0
      %v6223 = vadd.f32 0.0, %v6222
      %6224 = vmatmul.bf16.gmra.mxu0 %v6134
      %v6225 = vpop.f32.mrf.mxu0
      %v6226 = vadd.f32 0.0, %v6225
      %v6227 = vpop.f32.mrf.mxu0
      %v6228 = vadd.f32 0.0, %v6227
      %6229 = vmatmul.bf16.gmra.mxu0 %v6137
      %v6230 = vpop.f32.mrf.mxu0
      %v6231 = vadd.f32 0.0, %v6230
      %v6232 = vpop.f32.mrf.mxu0
      %v6233 = vadd.f32 0.0, %v6232
      %6234 = vmatmul.bf16.gmra.mxu0 %v6140
      %v6235 = vpop.f32.mrf.mxu0
      %v6236 = vadd.f32 0.0, %v6235
      %v6237 = vpop.f32.mrf.mxu0
      %v6238 = vadd.f32 0.0, %v6237
      %6239 = vmatmul.bf16.gmra.mxu0 %v6143
      %v6240 = vpop.f32.mrf.mxu0
      %v6241 = vadd.f32 0.0, %v6240
      %v6242 = vpop.f32.mrf.mxu0
      %v6243 = vadd.f32 0.0, %v6242
      %6244 = vmatmul.bf16.gmra.mxu0 %v6146
      %v6245 = vpop.f32.mrf.mxu0
      %v6246 = vadd.f32 0.0, %v6245
      %v6247 = vpop.f32.mrf.mxu0
      %v6248 = vadd.f32 0.0, %v6247
      %6249 = vdwg.mxu0
      %v6250 = vadd.f32 %v6040, %v6161
      %v6251 = vadd.f32 %v6041, %v6163
      %v6252 = vadd.f32 %v6042, %v6166
      %v6253 = vadd.f32 %v6043, %v6168
      %v6254 = vadd.f32 %v6044, %v6171
      %v6255 = vadd.f32 %v6045, %v6173
      %v6256 = vadd.f32 %v6046, %v6176
      %v6257 = vadd.f32 %v6047, %v6178
      %v6258 = vadd.f32 %v6048, %v6181
      %v6259 = vadd.f32 %v6049, %v6183
      %v6260 = vadd.f32 %v6050, %v6186
      %v6261 = vadd.f32 %v6051, %v6188
      %v6262 = vadd.f32 %v6052, %v6191
      %v6263 = vadd.f32 %v6053, %v6193
      %v6264 = vadd.f32 %v6054, %v6196
      %v6265 = vadd.f32 %v6055, %v6198
      %v6266 = vadd.f32 %v6056, %v6201
      %v6267 = vadd.f32 %v6057, %v6203
      %v6268 = vadd.f32 %v6058, %v6206
      %v6269 = vadd.f32 %v6059, %v6208
      %v6270 = vadd.f32 %v6060, %v6211
      %v6271 = vadd.f32 %v6061, %v6213
      %v6272 = vadd.f32 %v6062, %v6216
      %v6273 = vadd.f32 %v6063, %v6218
      %v6274 = vadd.f32 %v6064, %v6221
      %v6275 = vadd.f32 %v6065, %v6223
      %v6276 = vadd.f32 %v6066, %v6226
      %v6277 = vadd.f32 %v6067, %v6228
      %v6278 = vadd.f32 %v6068, %v6231
      %v6279 = vadd.f32 %v6069, %v6233
      %v6280 = vadd.f32 %v6070, %v6236
      %v6281 = vadd.f32 %v6071, %v6238
      %v6282 = vadd.f32 %v6072, %v6241
      %v6283 = vadd.f32 %v6073, %v6243
      %v6284 = vadd.f32 %v6074, %v6246
      %v6285 = vadd.f32 %v6075, %v6248
      %v6286 = vld [vmem:[#allocation2 + $0x10] sm:$0xf]
      %v6287 = vld [vmem:[#allocation2 + $0x14] sm:$0xf]
      %v6288 = vld [vmem:[#allocation2 + $0x18] sm:$0xf]
      %v6289 = vld [vmem:[#allocation2 + $0x1c] sm:$0xf]
      %v6290 = vld [vmem:[#allocation2 + $0x20] sm:$0xf]
      %v6291 = vld [vmem:[#allocation2 + $0x24] sm:$0xf]
      %v6292 = vld [vmem:[#allocation2 + $0x28] sm:$0xf]
      %v6293 = vld [vmem:[#allocation2 + $0x2c] sm:$0xf]
      %v6294 = vld [vmem:[#allocation2 + $0x30] sm:$0xf]
      %v6295 = vld [vmem:[#allocation2 + $0x34] sm:$0xf]
      %v6296 = vld [vmem:[#allocation2 + $0x38] sm:$0xf]
      %v6297 = vld [vmem:[#allocation2 + $0x3c] sm:$0xf]
      %v6298 = vld [vmem:[#allocation2 + $0x40] sm:$0xf]
      %v6299 = vld [vmem:[#allocation2 + $0x44] sm:$0xf]
      %v6300 = vld [vmem:[#allocation2 + $0x48] sm:$0xf]
      %v6301 = vld [vmem:[#allocation2 + $0x4c] sm:$0xf]
      %v6302 = vld [vmem:[#allocation2 + $0x50] sm:$0xf]
      %v6303 = vld [vmem:[#allocation2 + $0x54] sm:$0xf]
      %v6304 = vld [vmem:[#allocation2 + $0x58] sm:$0xf]
      %v6305 = vld [vmem:[#allocation2 + $0x5c] sm:$0xf]
      %v6306 = vld [vmem:[#allocation2 + $0x60] sm:$0xf]
      %v6307 = vld [vmem:[#allocation2 + $0x64] sm:$0xf]
      %v6308 = vld [vmem:[#allocation2 + $0x68] sm:$0xf]
      %v6309 = vld [vmem:[#allocation2 + $0x6c] sm:$0xf]
      %v6310 = vld [vmem:[#allocation2 + $0x70] sm:$0xf]
      %v6311 = vld [vmem:[#allocation2 + $0x74] sm:$0xf]
      %v6312 = vld [vmem:[#allocation2 + $0x78] sm:$0xf]
      %v6313 = vld [vmem:[#allocation2 + $0x7c] sm:$0xf]
      %v6314 = vld [vmem:[#allocation2 + $0x80] sm:$0xf]
      %v6315 = vld [vmem:[#allocation2 + $0x84] sm:$0xf]
      %v6316 = vld [vmem:[#allocation2 + $0x88] sm:$0xf]
      %v6317 = vld [vmem:[#allocation2 + $0x8c] sm:$0xf]
      %v6318 = vld [vmem:[#allocation2 + $0x90] sm:$0xf]
      %v6319 = vld [vmem:[#allocation2 + $0x94] sm:$0xf]
      %v6320 = vld [vmem:[#allocation2 + $0x98] sm:$0xf]
      %v6321 = vld [vmem:[#allocation2 + $0x9c] sm:$0xf]
      %v6322 = vld [vmem:[#allocation2 + $0xa0] sm:$0x1]
      %v6360 = vunpack.c.l.b16 %v6286
      %v6361 = vunpack.c.l.b16 %v6287
      %v6362 = vunpack.c.l.b16 %v6288
      %v6363 = vunpack.c.l.b16 %v6289
      %v6364 = vunpack.c.l.b16 %v6290
      %v6365 = vunpack.c.l.b16 %v6291
      %v6366 = vunpack.c.l.b16 %v6292
      %v6367 = vunpack.c.l.b16 %v6293
      %v6368 = vunpack.c.l.b16 %v6294
      %v6369 = vunpack.c.l.b16 %v6295
      %v6370 = vunpack.c.l.b16 %v6296
      %v6371 = vunpack.c.l.b16 %v6297
      %v6372 = vunpack.c.l.b16 %v6298
      %v6373 = vunpack.c.l.b16 %v6299
      %v6374 = vunpack.c.l.b16 %v6300
      %v6375 = vunpack.c.l.b16 %v6301
      %v6376 = vunpack.c.l.b16 %v6302
      %v6377 = vunpack.c.l.b16 %v6303
      %v6378 = vunpack.c.l.b16 %v6304
      %v6379 = vunpack.c.l.b16 %v6305
      %v6380 = vunpack.c.l.b16 %v6306
      %v6381 = vunpack.c.l.b16 %v6307
      %v6382 = vunpack.c.l.b16 %v6308
      %v6383 = vunpack.c.l.b16 %v6309
      %v6384 = vunpack.c.l.b16 %v6310
      %v6385 = vunpack.c.l.b16 %v6311
      %v6386 = vunpack.c.l.b16 %v6312
      %v6387 = vunpack.c.l.b16 %v6313
      %v6388 = vunpack.c.l.b16 %v6314
      %v6389 = vunpack.c.l.b16 %v6315
      %v6390 = vunpack.c.l.b16 %v6316
      %v6391 = vunpack.c.l.b16 %v6317
      %v6392 = vunpack.c.l.b16 %v6318
      %v6393 = vunpack.c.l.b16 %v6319
      %v6394 = vunpack.c.l.b16 %v6320
      %v6395 = vunpack.c.l.b16 %v6321
      %v6396 = vunpack.c.l.b16 %v6322
      %v6397 = vpack.c.b16 %v6361, %v6360
      %v6398 = vpack.c.b16 %v6363, %v6362
      %v6399 = vpack.c.b16 %v6365, %v6364
      %v6400 = vpack.c.b16 %v6367, %v6366
      %v6401 = vpack.c.b16 %v6369, %v6368
      %v6402 = vpack.c.b16 %v6371, %v6370
      %v6403 = vpack.c.b16 %v6373, %v6372
      %v6404 = vpack.c.b16 %v6375, %v6374
      %v6405 = vpack.c.b16 %v6377, %v6376
      %v6406 = vpack.c.b16 %v6379, %v6378
      %v6407 = vpack.c.b16 %v6381, %v6380
      %v6408 = vpack.c.b16 %v6383, %v6382
      %v6409 = vpack.c.b16 %v6385, %v6384
      %v6410 = vpack.c.b16 %v6387, %v6386
      %v6411 = vpack.c.b16 %v6389, %v6388
      %v6412 = vpack.c.b16 %v6391, %v6390
      %v6413 = vpack.c.b16 %v6393, %v6392
      %v6414 = vpack.c.b16 %v6395, %v6394
      %v6415 = vpack.c.b16 %v6396, %v6396
      %v6417 = vshrl.u32 %v6397, 16
      %v6419 = vshll.u32 %v6397, 16
      %v6421 = vrot.slane %v6419, 1
      %v6422 = vor.u32 %v6417, %v6421
      %v6424 = vshll.u32 %v6398, 16
      %v6426 = vrot.slane %v6424, 1
      %v6427 = vsel %vm744, %v6422, %v6426
      %v6428 = vshrl.u32 %v6398, 16
      %v6430 = vor.u32 %v6428, %v6426
      %v6432 = vshll.u32 %v6399, 16
      %v6434 = vrot.slane %v6432, 1
      %v6435 = vsel %vm744, %v6430, %v6434
      %v6436 = vshrl.u32 %v6399, 16
      %v6438 = vor.u32 %v6436, %v6434
      %v6440 = vshll.u32 %v6400, 16
      %v6442 = vrot.slane %v6440, 1
      %v6443 = vsel %vm744, %v6438, %v6442
      %v6444 = vshrl.u32 %v6400, 16
      %v6446 = vor.u32 %v6444, %v6442
      %v6448 = vshll.u32 %v6401, 16
      %v6450 = vrot.slane %v6448, 1
      %v6451 = vsel %vm744, %v6446, %v6450
      %v6452 = vshrl.u32 %v6401, 16
      %v6454 = vor.u32 %v6452, %v6450
      %v6456 = vshll.u32 %v6402, 16
      %v6458 = vrot.slane %v6456, 1
      %v6459 = vsel %vm744, %v6454, %v6458
      %v6460 = vshrl.u32 %v6402, 16
      %v6462 = vor.u32 %v6460, %v6458
      %v6464 = vshll.u32 %v6403, 16
      %v6466 = vrot.slane %v6464, 1
      %v6467 = vsel %vm744, %v6462, %v6466
      %v6468 = vshrl.u32 %v6403, 16
      %v6470 = vor.u32 %v6468, %v6466
      %v6472 = vshll.u32 %v6404, 16
      %v6474 = vrot.slane %v6472, 1
      %v6475 = vsel %vm744, %v6470, %v6474
      %v6476 = vshrl.u32 %v6404, 16
      %v6478 = vor.u32 %v6476, %v6474
      %v6480 = vshll.u32 %v6405, 16
      %v6482 = vrot.slane %v6480, 1
      %v6483 = vsel %vm744, %v6478, %v6482
      %v6484 = vshrl.u32 %v6405, 16
      %v6486 = vor.u32 %v6484, %v6482
      %v6488 = vshll.u32 %v6406, 16
      %v6490 = vrot.slane %v6488, 1
      %v6491 = vsel %vm744, %v6486, %v6490
      %v6492 = vshrl.u32 %v6406, 16
      %v6494 = vor.u32 %v6492, %v6490
      %v6496 = vshll.u32 %v6407, 16
      %v6498 = vrot.slane %v6496, 1
      %v6499 = vsel %vm744, %v6494, %v6498
      %v6500 = vshrl.u32 %v6407, 16
      %v6502 = vor.u32 %v6500, %v6498
      %v6504 = vshll.u32 %v6408, 16
      %v6506 = vrot.slane %v6504, 1
      %v6507 = vsel %vm744, %v6502, %v6506
      %v6508 = vshrl.u32 %v6408, 16
      %v6510 = vor.u32 %v6508, %v6506
      %v6512 = vshll.u32 %v6409, 16
      %v6514 = vrot.slane %v6512, 1
      %v6515 = vsel %vm744, %v6510, %v6514
      %v6516 = vshrl.u32 %v6409, 16
      %v6518 = vor.u32 %v6516, %v6514
      %v6520 = vshll.u32 %v6410, 16
      %v6522 = vrot.slane %v6520, 1
      %v6523 = vsel %vm744, %v6518, %v6522
      %v6524 = vshrl.u32 %v6410, 16
      %v6526 = vor.u32 %v6524, %v6522
      %v6528 = vshll.u32 %v6411, 16
      %v6530 = vrot.slane %v6528, 1
      %v6531 = vsel %vm744, %v6526, %v6530
      %v6532 = vshrl.u32 %v6411, 16
      %v6534 = vor.u32 %v6532, %v6530
      %v6536 = vshll.u32 %v6412, 16
      %v6538 = vrot.slane %v6536, 1
      %v6539 = vsel %vm744, %v6534, %v6538
      %v6540 = vshrl.u32 %v6412, 16
      %v6542 = vor.u32 %v6540, %v6538
      %v6544 = vshll.u32 %v6413, 16
      %v6546 = vrot.slane %v6544, 1
      %v6547 = vsel %vm744, %v6542, %v6546
      %v6548 = vshrl.u32 %v6413, 16
      %v6550 = vor.u32 %v6548, %v6546
      %v6552 = vshll.u32 %v6414, 16
      %v6554 = vrot.slane %v6552, 1
      %v6555 = vsel %vm744, %v6550, %v6554
      %v6556 = vshrl.u32 %v6414, 16
      %v6558 = vor.u32 %v6556, %v6554
      %v6560 = vshll.u32 %v6415, 16
      %v6562 = vrot.slane %v6560, 1
      %v6563 = vsel %vm744, %v6558, %v6562
      %v6565 = vsel %vm470, %v6427, 0
      %v6568 = vsel %vm470, %v6435, 0
      %v6571 = vsel %vm470, %v6443, 0
      %v6574 = vsel %vm470, %v6451, 0
      %v6577 = vsel %vm470, %v6459, 0
      %v6580 = vsel %vm470, %v6467, 0
      %v6583 = vsel %vm470, %v6475, 0
      %v6586 = vsel %vm470, %v6483, 0
      %v6589 = vsel %vm470, %v6491, 0
      %v6592 = vsel %vm470, %v6499, 0
      %v6595 = vsel %vm470, %v6507, 0
      %v6598 = vsel %vm470, %v6515, 0
      %v6601 = vsel %vm470, %v6523, 0
      %v6604 = vsel %vm470, %v6531, 0
      %v6607 = vsel %vm470, %v6539, 0
      %v6610 = vsel %vm470, %v6547, 0
      %v6613 = vsel %vm470, %v6555, 0
      %v6616 = vsel %vm470, %v6563, 0
      %v6619 = vsel %vm439, %v599, 0
      %6621 = vmatpush.bf16.msra.mxu0 0
      %6622 = vmatpush.bf16.msra.mxu0 0
      %6623 = vmatpush.bf16.msra.mxu0 0
      %6624 = vmatpush.bf16.msra.mxu0 0
      %6625 = vmatpush.bf16.msra.mxu0 0
      %6626 = vmatpush.bf16.msra.mxu0 0
      %6627 = vmatpush.bf16.msra.mxu0 0
      %6628 = vmatpush.bf16.msra.mxu0 %v6619
      %6629 = vmatmul.bf16.gmra.mxu0 %v6565
      %v6630 = vpop.f32.mrf.mxu0
      %v6631 = vadd.f32 0.0, %v6630
      %v6632 = vpop.f32.mrf.mxu0
      %v6633 = vadd.f32 0.0, %v6632
      %6634 = vmatmul.bf16.gmra.mxu0 %v6568
      %v6635 = vpop.f32.mrf.mxu0
      %v6636 = vadd.f32 0.0, %v6635
      %v6637 = vpop.f32.mrf.mxu0
      %v6638 = vadd.f32 0.0, %v6637
      %6639 = vmatmul.bf16.gmra.mxu0 %v6571
      %v6640 = vpop.f32.mrf.mxu0
      %v6641 = vadd.f32 0.0, %v6640
      %v6642 = vpop.f32.mrf.mxu0
      %v6643 = vadd.f32 0.0, %v6642
      %6644 = vmatmul.bf16.gmra.mxu0 %v6574
      %v6645 = vpop.f32.mrf.mxu0
      %v6646 = vadd.f32 0.0, %v6645
      %v6647 = vpop.f32.mrf.mxu0
      %v6648 = vadd.f32 0.0, %v6647
      %6649 = vmatmul.bf16.gmra.mxu0 %v6577
      %v6650 = vpop.f32.mrf.mxu0
      %v6651 = vadd.f32 0.0, %v6650
      %v6652 = vpop.f32.mrf.mxu0
      %v6653 = vadd.f32 0.0, %v6652
      %6654 = vmatmul.bf16.gmra.mxu0 %v6580
      %v6655 = vpop.f32.mrf.mxu0
      %v6656 = vadd.f32 0.0, %v6655
      %v6657 = vpop.f32.mrf.mxu0
      %v6658 = vadd.f32 0.0, %v6657
      %6659 = vmatmul.bf16.gmra.mxu0 %v6583
      %v6660 = vpop.f32.mrf.mxu0
      %v6661 = vadd.f32 0.0, %v6660
      %v6662 = vpop.f32.mrf.mxu0
      %v6663 = vadd.f32 0.0, %v6662
      %6664 = vmatmul.bf16.gmra.mxu0 %v6586
      %v6665 = vpop.f32.mrf.mxu0
      %v6666 = vadd.f32 0.0, %v6665
      %v6667 = vpop.f32.mrf.mxu0
      %v6668 = vadd.f32 0.0, %v6667
      %6669 = vmatmul.bf16.gmra.mxu0 %v6589
      %v6670 = vpop.f32.mrf.mxu0
      %v6671 = vadd.f32 0.0, %v6670
      %v6672 = vpop.f32.mrf.mxu0
      %v6673 = vadd.f32 0.0, %v6672
      %6674 = vmatmul.bf16.gmra.mxu0 %v6592
      %v6675 = vpop.f32.mrf.mxu0
      %v6676 = vadd.f32 0.0, %v6675
      %v6677 = vpop.f32.mrf.mxu0
      %v6678 = vadd.f32 0.0, %v6677
      %6679 = vmatmul.bf16.gmra.mxu0 %v6595
      %v6680 = vpop.f32.mrf.mxu0
      %v6681 = vadd.f32 0.0, %v6680
      %v6682 = vpop.f32.mrf.mxu0
      %v6683 = vadd.f32 0.0, %v6682
      %6684 = vmatmul.bf16.gmra.mxu0 %v6598
      %v6685 = vpop.f32.mrf.mxu0
      %v6686 = vadd.f32 0.0, %v6685
      %v6687 = vpop.f32.mrf.mxu0
      %v6688 = vadd.f32 0.0, %v6687
      %6689 = vmatmul.bf16.gmra.mxu0 %v6601
      %v6690 = vpop.f32.mrf.mxu0
      %v6691 = vadd.f32 0.0, %v6690
      %v6692 = vpop.f32.mrf.mxu0
      %v6693 = vadd.f32 0.0, %v6692
      %6694 = vmatmul.bf16.gmra.mxu0 %v6604
      %v6695 = vpop.f32.mrf.mxu0
      %v6696 = vadd.f32 0.0, %v6695
      %v6697 = vpop.f32.mrf.mxu0
      %v6698 = vadd.f32 0.0, %v6697
      %6699 = vmatmul.bf16.gmra.mxu0 %v6607
      %v6700 = vpop.f32.mrf.mxu0
      %v6701 = vadd.f32 0.0, %v6700
      %v6702 = vpop.f32.mrf.mxu0
      %v6703 = vadd.f32 0.0, %v6702
      %6704 = vmatmul.bf16.gmra.mxu0 %v6610
      %v6705 = vpop.f32.mrf.mxu0
      %v6706 = vadd.f32 0.0, %v6705
      %v6707 = vpop.f32.mrf.mxu0
      %v6708 = vadd.f32 0.0, %v6707
      %6709 = vmatmul.bf16.gmra.mxu0 %v6613
      %v6710 = vpop.f32.mrf.mxu0
      %v6711 = vadd.f32 0.0, %v6710
      %v6712 = vpop.f32.mrf.mxu0
      %v6713 = vadd.f32 0.0, %v6712
      %6714 = vmatmul.bf16.gmra.mxu0 %v6616
      %v6715 = vpop.f32.mrf.mxu0
      %v6716 = vadd.f32 0.0, %v6715
      %v6717 = vpop.f32.mrf.mxu0
      %v6718 = vadd.f32 0.0, %v6717
      %6719 = vdwg.mxu0
      %v6720 = vadd.f32 %v6250, %v6631
      %v6721 = vadd.f32 %v6251, %v6633
      %v6722 = vadd.f32 %v6252, %v6636
      %v6723 = vadd.f32 %v6253, %v6638
      %v6724 = vadd.f32 %v6254, %v6641
      %v6725 = vadd.f32 %v6255, %v6643
      %v6726 = vadd.f32 %v6256, %v6646
      %v6727 = vadd.f32 %v6257, %v6648
      %v6728 = vadd.f32 %v6258, %v6651
      %v6729 = vadd.f32 %v6259, %v6653
      %v6730 = vadd.f32 %v6260, %v6656
      %v6731 = vadd.f32 %v6261, %v6658
      %v6732 = vadd.f32 %v6262, %v6661
      %v6733 = vadd.f32 %v6263, %v6663
      %v6734 = vadd.f32 %v6264, %v6666
      %v6735 = vadd.f32 %v6265, %v6668
      %v6736 = vadd.f32 %v6266, %v6671
      %v6737 = vadd.f32 %v6267, %v6673
      %v6738 = vadd.f32 %v6268, %v6676
      %v6739 = vadd.f32 %v6269, %v6678
      %v6740 = vadd.f32 %v6270, %v6681
      %v6741 = vadd.f32 %v6271, %v6683
      %v6742 = vadd.f32 %v6272, %v6686
      %v6743 = vadd.f32 %v6273, %v6688
      %v6744 = vadd.f32 %v6274, %v6691
      %v6745 = vadd.f32 %v6275, %v6693
      %v6746 = vadd.f32 %v6276, %v6696
      %v6747 = vadd.f32 %v6277, %v6698
      %v6748 = vadd.f32 %v6278, %v6701
      %v6749 = vadd.f32 %v6279, %v6703
      %v6750 = vadd.f32 %v6280, %v6706
      %v6751 = vadd.f32 %v6281, %v6708
      %v6752 = vadd.f32 %v6282, %v6711
      %v6753 = vadd.f32 %v6283, %v6713
      %v6754 = vadd.f32 %v6284, %v6716
      %v6755 = vadd.f32 %v6285, %v6718
      %v6756 = vld [vmem:[#allocation2 + $0x18] sm:$0xf]
      %v6757 = vld [vmem:[#allocation2 + $0x1c] sm:$0xf]
      %v6758 = vld [vmem:[#allocation2 + $0x20] sm:$0xf]
      %v6759 = vld [vmem:[#allocation2 + $0x24] sm:$0xf]
      %v6760 = vld [vmem:[#allocation2 + $0x28] sm:$0xf]
      %v6761 = vld [vmem:[#allocation2 + $0x2c] sm:$0xf]
      %v6762 = vld [vmem:[#allocation2 + $0x30] sm:$0xf]
      %v6763 = vld [vmem:[#allocation2 + $0x34] sm:$0xf]
      %v6764 = vld [vmem:[#allocation2 + $0x38] sm:$0xf]
      %v6765 = vld [vmem:[#allocation2 + $0x3c] sm:$0xf]
      %v6766 = vld [vmem:[#allocation2 + $0x40] sm:$0xf]
      %v6767 = vld [vmem:[#allocation2 + $0x44] sm:$0xf]
      %v6768 = vld [vmem:[#allocation2 + $0x48] sm:$0xf]
      %v6769 = vld [vmem:[#allocation2 + $0x4c] sm:$0xf]
      %v6770 = vld [vmem:[#allocation2 + $0x50] sm:$0xf]
      %v6771 = vld [vmem:[#allocation2 + $0x54] sm:$0xf]
      %v6772 = vld [vmem:[#allocation2 + $0x58] sm:$0xf]
      %v6773 = vld [vmem:[#allocation2 + $0x5c] sm:$0xf]
      %v6774 = vld [vmem:[#allocation2 + $0x60] sm:$0xf]
      %v6775 = vld [vmem:[#allocation2 + $0x64] sm:$0xf]
      %v6776 = vld [vmem:[#allocation2 + $0x68] sm:$0xf]
      %v6777 = vld [vmem:[#allocation2 + $0x6c] sm:$0xf]
      %v6778 = vld [vmem:[#allocation2 + $0x70] sm:$0xf]
      %v6779 = vld [vmem:[#allocation2 + $0x74] sm:$0xf]
      %v6780 = vld [vmem:[#allocation2 + $0x78] sm:$0xf]
      %v6781 = vld [vmem:[#allocation2 + $0x7c] sm:$0xf]
      %v6782 = vld [vmem:[#allocation2 + $0x80] sm:$0xf]
      %v6783 = vld [vmem:[#allocation2 + $0x84] sm:$0xf]
      %v6784 = vld [vmem:[#allocation2 + $0x88] sm:$0xf]
      %v6785 = vld [vmem:[#allocation2 + $0x8c] sm:$0xf]
      %v6786 = vld [vmem:[#allocation2 + $0x90] sm:$0xf]
      %v6787 = vld [vmem:[#allocation2 + $0x94] sm:$0xf]
      %v6788 = vld [vmem:[#allocation2 + $0x98] sm:$0xf]
      %v6789 = vld [vmem:[#allocation2 + $0x9c] sm:$0xf]
      %v6790 = vld [vmem:[#allocation2 + $0xa0] sm:$0xf]
      %v6791 = vld [vmem:[#allocation2 + $0xa4] sm:$0xf]
      %v6792 = vld [vmem:[#allocation2 + $0xa8] sm:$0x1]
      %v6830 = vunpack.c.l.b16 %v6756
      %v6831 = vunpack.c.l.b16 %v6757
      %v6832 = vunpack.c.l.b16 %v6758
      %v6833 = vunpack.c.l.b16 %v6759
      %v6834 = vunpack.c.l.b16 %v6760
      %v6835 = vunpack.c.l.b16 %v6761
      %v6836 = vunpack.c.l.b16 %v6762
      %v6837 = vunpack.c.l.b16 %v6763
      %v6838 = vunpack.c.l.b16 %v6764
      %v6839 = vunpack.c.l.b16 %v6765
      %v6840 = vunpack.c.l.b16 %v6766
      %v6841 = vunpack.c.l.b16 %v6767
      %v6842 = vunpack.c.l.b16 %v6768
      %v6843 = vunpack.c.l.b16 %v6769
      %v6844 = vunpack.c.l.b16 %v6770
      %v6845 = vunpack.c.l.b16 %v6771
      %v6846 = vunpack.c.l.b16 %v6772
      %v6847 = vunpack.c.l.b16 %v6773
      %v6848 = vunpack.c.l.b16 %v6774
      %v6849 = vunpack.c.l.b16 %v6775
      %v6850 = vunpack.c.l.b16 %v6776
      %v6851 = vunpack.c.l.b16 %v6777
      %v6852 = vunpack.c.l.b16 %v6778
      %v6853 = vunpack.c.l.b16 %v6779
      %v6854 = vunpack.c.l.b16 %v6780
      %v6855 = vunpack.c.l.b16 %v6781
      %v6856 = vunpack.c.l.b16 %v6782
      %v6857 = vunpack.c.l.b16 %v6783
      %v6858 = vunpack.c.l.b16 %v6784
      %v6859 = vunpack.c.l.b16 %v6785
      %v6860 = vunpack.c.l.b16 %v6786
      %v6861 = vunpack.c.l.b16 %v6787
      %v6862 = vunpack.c.l.b16 %v6788
      %v6863 = vunpack.c.l.b16 %v6789
      %v6864 = vunpack.c.l.b16 %v6790
      %v6865 = vunpack.c.l.b16 %v6791
      %v6866 = vunpack.c.l.b16 %v6792
      %v6867 = vpack.c.b16 %v6831, %v6830
      %v6868 = vpack.c.b16 %v6833, %v6832
      %v6869 = vpack.c.b16 %v6835, %v6834
      %v6870 = vpack.c.b16 %v6837, %v6836
      %v6871 = vpack.c.b16 %v6839, %v6838
      %v6872 = vpack.c.b16 %v6841, %v6840
      %v6873 = vpack.c.b16 %v6843, %v6842
      %v6874 = vpack.c.b16 %v6845, %v6844
      %v6875 = vpack.c.b16 %v6847, %v6846
      %v6876 = vpack.c.b16 %v6849, %v6848
      %v6877 = vpack.c.b16 %v6851, %v6850
      %v6878 = vpack.c.b16 %v6853, %v6852
      %v6879 = vpack.c.b16 %v6855, %v6854
      %v6880 = vpack.c.b16 %v6857, %v6856
      %v6881 = vpack.c.b16 %v6859, %v6858
      %v6882 = vpack.c.b16 %v6861, %v6860
      %v6883 = vpack.c.b16 %v6863, %v6862
      %v6884 = vpack.c.b16 %v6865, %v6864
      %v6885 = vpack.c.b16 %v6866, %v6866
      %v6887 = vshrl.u32 %v6867, 16
      %v6889 = vshll.u32 %v6867, 16
      %v6891 = vrot.slane %v6889, 1
      %v6892 = vor.u32 %v6887, %v6891
      %v6894 = vshll.u32 %v6868, 16
      %v6896 = vrot.slane %v6894, 1
      %v6897 = vsel %vm744, %v6892, %v6896
      %v6898 = vshrl.u32 %v6868, 16
      %v6900 = vor.u32 %v6898, %v6896
      %v6902 = vshll.u32 %v6869, 16
      %v6904 = vrot.slane %v6902, 1
      %v6905 = vsel %vm744, %v6900, %v6904
      %v6906 = vshrl.u32 %v6869, 16
      %v6908 = vor.u32 %v6906, %v6904
      %v6910 = vshll.u32 %v6870, 16
      %v6912 = vrot.slane %v6910, 1
      %v6913 = vsel %vm744, %v6908, %v6912
      %v6914 = vshrl.u32 %v6870, 16
      %v6916 = vor.u32 %v6914, %v6912
      %v6918 = vshll.u32 %v6871, 16
      %v6920 = vrot.slane %v6918, 1
      %v6921 = vsel %vm744, %v6916, %v6920
      %v6922 = vshrl.u32 %v6871, 16
      %v6924 = vor.u32 %v6922, %v6920
      %v6926 = vshll.u32 %v6872, 16
      %v6928 = vrot.slane %v6926, 1
      %v6929 = vsel %vm744, %v6924, %v6928
      %v6930 = vshrl.u32 %v6872, 16
      %v6932 = vor.u32 %v6930, %v6928
      %v6934 = vshll.u32 %v6873, 16
      %v6936 = vrot.slane %v6934, 1
      %v6937 = vsel %vm744, %v6932, %v6936
      %v6938 = vshrl.u32 %v6873, 16
      %v6940 = vor.u32 %v6938, %v6936
      %v6942 = vshll.u32 %v6874, 16
      %v6944 = vrot.slane %v6942, 1
      %v6945 = vsel %vm744, %v6940, %v6944
      %v6946 = vshrl.u32 %v6874, 16
      %v6948 = vor.u32 %v6946, %v6944
      %v6950 = vshll.u32 %v6875, 16
      %v6952 = vrot.slane %v6950, 1
      %v6953 = vsel %vm744, %v6948, %v6952
      %v6954 = vshrl.u32 %v6875, 16
      %v6956 = vor.u32 %v6954, %v6952
      %v6958 = vshll.u32 %v6876, 16
      %v6960 = vrot.slane %v6958, 1
      %v6961 = vsel %vm744, %v6956, %v6960
      %v6962 = vshrl.u32 %v6876, 16
      %v6964 = vor.u32 %v6962, %v6960
      %v6966 = vshll.u32 %v6877, 16
      %v6968 = vrot.slane %v6966, 1
      %v6969 = vsel %vm744, %v6964, %v6968
      %v6970 = vshrl.u32 %v6877, 16
      %v6972 = vor.u32 %v6970, %v6968
      %v6974 = vshll.u32 %v6878, 16
      %v6976 = vrot.slane %v6974, 1
      %v6977 = vsel %vm744, %v6972, %v6976
      %v6978 = vshrl.u32 %v6878, 16
      %v6980 = vor.u32 %v6978, %v6976
      %v6982 = vshll.u32 %v6879, 16
      %v6984 = vrot.slane %v6982, 1
      %v6985 = vsel %vm744, %v6980, %v6984
      %v6986 = vshrl.u32 %v6879, 16
      %v6988 = vor.u32 %v6986, %v6984
      %v6990 = vshll.u32 %v6880, 16
      %v6992 = vrot.slane %v6990, 1
      %v6993 = vsel %vm744, %v6988, %v6992
      %v6994 = vshrl.u32 %v6880, 16
      %v6996 = vor.u32 %v6994, %v6992
      %v6998 = vshll.u32 %v6881, 16
      %v7000 = vrot.slane %v6998, 1
      %v7001 = vsel %vm744, %v6996, %v7000
      %v7002 = vshrl.u32 %v6881, 16
      %v7004 = vor.u32 %v7002, %v7000
      %v7006 = vshll.u32 %v6882, 16
      %v7008 = vrot.slane %v7006, 1
      %v7009 = vsel %vm744, %v7004, %v7008
      %v7010 = vshrl.u32 %v6882, 16
      %v7012 = vor.u32 %v7010, %v7008
      %v7014 = vshll.u32 %v6883, 16
      %v7016 = vrot.slane %v7014, 1
      %v7017 = vsel %vm744, %v7012, %v7016
      %v7018 = vshrl.u32 %v6883, 16
      %v7020 = vor.u32 %v7018, %v7016
      %v7022 = vshll.u32 %v6884, 16
      %v7024 = vrot.slane %v7022, 1
      %v7025 = vsel %vm744, %v7020, %v7024
      %v7026 = vshrl.u32 %v6884, 16
      %v7028 = vor.u32 %v7026, %v7024
      %v7030 = vshll.u32 %v6885, 16
      %v7032 = vrot.slane %v7030, 1
      %v7033 = vsel %vm744, %v7028, %v7032
      %v7035 = vsel %vm470, %v6897, 0
      %v7038 = vsel %vm470, %v6905, 0
      %v7041 = vsel %vm470, %v6913, 0
      %v7044 = vsel %vm470, %v6921, 0
      %v7047 = vsel %vm470, %v6929, 0
      %v7050 = vsel %vm470, %v6937, 0
      %v7053 = vsel %vm470, %v6945, 0
      %v7056 = vsel %vm470, %v6953, 0
      %v7059 = vsel %vm470, %v6961, 0
      %v7062 = vsel %vm470, %v6969, 0
      %v7065 = vsel %vm470, %v6977, 0
      %v7068 = vsel %vm470, %v6985, 0
      %v7071 = vsel %vm470, %v6993, 0
      %v7074 = vsel %vm470, %v7001, 0
      %v7077 = vsel %vm470, %v7009, 0
      %v7080 = vsel %vm470, %v7017, 0
      %v7083 = vsel %vm470, %v7025, 0
      %v7086 = vsel %vm470, %v7033, 0
      %v7089 = vsel %vm439, %v600, 0
      %7091 = vmatpush.bf16.msra.mxu0 0
      %7092 = vmatpush.bf16.msra.mxu0 0
      %7093 = vmatpush.bf16.msra.mxu0 0
      %7094 = vmatpush.bf16.msra.mxu0 0
      %7095 = vmatpush.bf16.msra.mxu0 0
      %7096 = vmatpush.bf16.msra.mxu0 0
      %7097 = vmatpush.bf16.msra.mxu0 0
      %7098 = vmatpush.bf16.msra.mxu0 %v7089
      %7099 = vmatmul.bf16.gmra.mxu0 %v7035
      %v7100 = vpop.f32.mrf.mxu0
      %v7101 = vadd.f32 0.0, %v7100
      %v7102 = vpop.f32.mrf.mxu0
      %v7103 = vadd.f32 0.0, %v7102
      %7104 = vmatmul.bf16.gmra.mxu0 %v7038
      %v7105 = vpop.f32.mrf.mxu0
      %v7106 = vadd.f32 0.0, %v7105
      %v7107 = vpop.f32.mrf.mxu0
      %v7108 = vadd.f32 0.0, %v7107
      %7109 = vmatmul.bf16.gmra.mxu0 %v7041
      %v7110 = vpop.f32.mrf.mxu0
      %v7111 = vadd.f32 0.0, %v7110
      %v7112 = vpop.f32.mrf.mxu0
      %v7113 = vadd.f32 0.0, %v7112
      %7114 = vmatmul.bf16.gmra.mxu0 %v7044
      %v7115 = vpop.f32.mrf.mxu0
      %v7116 = vadd.f32 0.0, %v7115
      %v7117 = vpop.f32.mrf.mxu0
      %v7118 = vadd.f32 0.0, %v7117
      %7119 = vmatmul.bf16.gmra.mxu0 %v7047
      %v7120 = vpop.f32.mrf.mxu0
      %v7121 = vadd.f32 0.0, %v7120
      %v7122 = vpop.f32.mrf.mxu0
      %v7123 = vadd.f32 0.0, %v7122
      %7124 = vmatmul.bf16.gmra.mxu0 %v7050
      %v7125 = vpop.f32.mrf.mxu0
      %v7126 = vadd.f32 0.0, %v7125
      %v7127 = vpop.f32.mrf.mxu0
      %v7128 = vadd.f32 0.0, %v7127
      %7129 = vmatmul.bf16.gmra.mxu0 %v7053
      %v7130 = vpop.f32.mrf.mxu0
      %v7131 = vadd.f32 0.0, %v7130
      %v7132 = vpop.f32.mrf.mxu0
      %v7133 = vadd.f32 0.0, %v7132
      %7134 = vmatmul.bf16.gmra.mxu0 %v7056
      %v7135 = vpop.f32.mrf.mxu0
      %v7136 = vadd.f32 0.0, %v7135
      %v7137 = vpop.f32.mrf.mxu0
      %v7138 = vadd.f32 0.0, %v7137
      %7139 = vmatmul.bf16.gmra.mxu0 %v7059
      %v7140 = vpop.f32.mrf.mxu0
      %v7141 = vadd.f32 0.0, %v7140
      %v7142 = vpop.f32.mrf.mxu0
      %v7143 = vadd.f32 0.0, %v7142
      %7144 = vmatmul.bf16.gmra.mxu0 %v7062
      %v7145 = vpop.f32.mrf.mxu0
      %v7146 = vadd.f32 0.0, %v7145
      %v7147 = vpop.f32.mrf.mxu0
      %v7148 = vadd.f32 0.0, %v7147
      %7149 = vmatmul.bf16.gmra.mxu0 %v7065
      %v7150 = vpop.f32.mrf.mxu0
      %v7151 = vadd.f32 0.0, %v7150
      %v7152 = vpop.f32.mrf.mxu0
      %v7153 = vadd.f32 0.0, %v7152
      %7154 = vmatmul.bf16.gmra.mxu0 %v7068
      %v7155 = vpop.f32.mrf.mxu0
      %v7156 = vadd.f32 0.0, %v7155
      %v7157 = vpop.f32.mrf.mxu0
      %v7158 = vadd.f32 0.0, %v7157
      %7159 = vmatmul.bf16.gmra.mxu0 %v7071
      %v7160 = vpop.f32.mrf.mxu0
      %v7161 = vadd.f32 0.0, %v7160
      %v7162 = vpop.f32.mrf.mxu0
      %v7163 = vadd.f32 0.0, %v7162
      %7164 = vmatmul.bf16.gmra.mxu0 %v7074
      %v7165 = vpop.f32.mrf.mxu0
      %v7166 = vadd.f32 0.0, %v7165
      %v7167 = vpop.f32.mrf.mxu0
      %v7168 = vadd.f32 0.0, %v7167
      %7169 = vmatmul.bf16.gmra.mxu0 %v7077
      %v7170 = vpop.f32.mrf.mxu0
      %v7171 = vadd.f32 0.0, %v7170
      %v7172 = vpop.f32.mrf.mxu0
      %v7173 = vadd.f32 0.0, %v7172
      %7174 = vmatmul.bf16.gmra.mxu0 %v7080
      %v7175 = vpop.f32.mrf.mxu0
      %v7176 = vadd.f32 0.0, %v7175
      %v7177 = vpop.f32.mrf.mxu0
      %v7178 = vadd.f32 0.0, %v7177
      %7179 = vmatmul.bf16.gmra.mxu0 %v7083
      %v7180 = vpop.f32.mrf.mxu0
      %v7181 = vadd.f32 0.0, %v7180
      %v7182 = vpop.f32.mrf.mxu0
      %v7183 = vadd.f32 0.0, %v7182
      %7184 = vmatmul.bf16.gmra.mxu0 %v7086
      %v7185 = vpop.f32.mrf.mxu0
      %v7186 = vadd.f32 0.0, %v7185
      %v7187 = vpop.f32.mrf.mxu0
      %v7188 = vadd.f32 0.0, %v7187
      %7189 = vdwg.mxu0
      %v7190 = vadd.f32 %v6720, %v7101
      %v7191 = vadd.f32 %v6721, %v7103
      %v7192 = vadd.f32 %v6722, %v7106
      %v7193 = vadd.f32 %v6723, %v7108
      %v7194 = vadd.f32 %v6724, %v7111
      %v7195 = vadd.f32 %v6725, %v7113
      %v7196 = vadd.f32 %v6726, %v7116
      %v7197 = vadd.f32 %v6727, %v7118
      %v7198 = vadd.f32 %v6728, %v7121
      %v7199 = vadd.f32 %v6729, %v7123
      %v7200 = vadd.f32 %v6730, %v7126
      %v7201 = vadd.f32 %v6731, %v7128
      %v7202 = vadd.f32 %v6732, %v7131
      %v7203 = vadd.f32 %v6733, %v7133
      %v7204 = vadd.f32 %v6734, %v7136
      %v7205 = vadd.f32 %v6735, %v7138
      %v7206 = vadd.f32 %v6736, %v7141
      %v7207 = vadd.f32 %v6737, %v7143
      %v7208 = vadd.f32 %v6738, %v7146
      %v7209 = vadd.f32 %v6739, %v7148
      %v7210 = vadd.f32 %v6740, %v7151
      %v7211 = vadd.f32 %v6741, %v7153
      %v7212 = vadd.f32 %v6742, %v7156
      %v7213 = vadd.f32 %v6743, %v7158
      %v7214 = vadd.f32 %v6744, %v7161
      %v7215 = vadd.f32 %v6745, %v7163
      %v7216 = vadd.f32 %v6746, %v7166
      %v7217 = vadd.f32 %v6747, %v7168
      %v7218 = vadd.f32 %v6748, %v7171
      %v7219 = vadd.f32 %v6749, %v7173
      %v7220 = vadd.f32 %v6750, %v7176
      %v7221 = vadd.f32 %v6751, %v7178
      %v7222 = vadd.f32 %v6752, %v7181
      %v7223 = vadd.f32 %v6753, %v7183
      %v7224 = vadd.f32 %v6754, %v7186
      %v7225 = vadd.f32 %v6755, %v7188
      %v7226 = vld [vmem:[#allocation2 + $0x18] sm:$0xe]
      %v7228 = vunpack.c.l.b16 %v7226
      %v7229 = vpack.c.b16 %v6831, %v7228
      %v7230 = vrot.slane %v7229, 1
      %v7231 = vrot.slane %v6868, 1
      %v7232 = vsel %vm1197, %v7230, %v7231
      %v7233 = vrot.slane %v6869, 1
      %v7234 = vsel %vm1197, %v7231, %v7233
      %v7235 = vrot.slane %v6870, 1
      %v7236 = vsel %vm1197, %v7233, %v7235
      %v7237 = vrot.slane %v6871, 1
      %v7238 = vsel %vm1197, %v7235, %v7237
      %v7239 = vrot.slane %v6872, 1
      %v7240 = vsel %vm1197, %v7237, %v7239
      %v7241 = vrot.slane %v6873, 1
      %v7242 = vsel %vm1197, %v7239, %v7241
      %v7243 = vrot.slane %v6874, 1
      %v7244 = vsel %vm1197, %v7241, %v7243
      %v7245 = vrot.slane %v6875, 1
      %v7246 = vsel %vm1197, %v7243, %v7245
      %v7247 = vrot.slane %v6876, 1
      %v7248 = vsel %vm1197, %v7245, %v7247
      %v7249 = vrot.slane %v6877, 1
      %v7250 = vsel %vm1197, %v7247, %v7249
      %v7251 = vrot.slane %v6878, 1
      %v7252 = vsel %vm1197, %v7249, %v7251
      %v7253 = vrot.slane %v6879, 1
      %v7254 = vsel %vm1197, %v7251, %v7253
      %v7255 = vrot.slane %v6880, 1
      %v7256 = vsel %vm1197, %v7253, %v7255
      %v7257 = vrot.slane %v6881, 1
      %v7258 = vsel %vm1197, %v7255, %v7257
      %v7259 = vrot.slane %v6882, 1
      %v7260 = vsel %vm1197, %v7257, %v7259
      %v7261 = vrot.slane %v6883, 1
      %v7262 = vsel %vm1197, %v7259, %v7261
      %v7263 = vrot.slane %v6884, 1
      %v7264 = vsel %vm1197, %v7261, %v7263
      %v7265 = vrot.slane %v6885, 1
      %v7266 = vsel %vm1197, %v7263, %v7265
      %v7268 = vsel %vm470, %v7232, 0
      %v7271 = vsel %vm470, %v7234, 0
      %v7274 = vsel %vm470, %v7236, 0
      %v7277 = vsel %vm470, %v7238, 0
      %v7280 = vsel %vm470, %v7240, 0
      %v7283 = vsel %vm470, %v7242, 0
      %v7286 = vsel %vm470, %v7244, 0
      %v7289 = vsel %vm470, %v7246, 0
      %v7292 = vsel %vm470, %v7248, 0
      %v7295 = vsel %vm470, %v7250, 0
      %v7298 = vsel %vm470, %v7252, 0
      %v7301 = vsel %vm470, %v7254, 0
      %v7304 = vsel %vm470, %v7256, 0
      %v7307 = vsel %vm470, %v7258, 0
      %v7310 = vsel %vm470, %v7260, 0
      %v7313 = vsel %vm470, %v7262, 0
      %v7316 = vsel %vm470, %v7264, 0
      %v7319 = vsel %vm470, %v7266, 0
      %v7322 = vsel %vm439, %v601, 0
      %7324 = vmatpush.bf16.msra.mxu0 0
      %7325 = vmatpush.bf16.msra.mxu0 0
      %7326 = vmatpush.bf16.msra.mxu0 0
      %7327 = vmatpush.bf16.msra.mxu0 0
      %7328 = vmatpush.bf16.msra.mxu0 0
      %7329 = vmatpush.bf16.msra.mxu0 0
      %7330 = vmatpush.bf16.msra.mxu0 0
      %7331 = vmatpush.bf16.msra.mxu0 %v7322
      %7332 = vmatmul.bf16.gmra.mxu0 %v7268
      %v7333 = vpop.f32.mrf.mxu0
      %v7334 = vadd.f32 0.0, %v7333
      %v7335 = vpop.f32.mrf.mxu0
      %v7336 = vadd.f32 0.0, %v7335
      %7337 = vmatmul.bf16.gmra.mxu0 %v7271
      %v7338 = vpop.f32.mrf.mxu0
      %v7339 = vadd.f32 0.0, %v7338
      %v7340 = vpop.f32.mrf.mxu0
      %v7341 = vadd.f32 0.0, %v7340
      %7342 = vmatmul.bf16.gmra.mxu0 %v7274
      %v7343 = vpop.f32.mrf.mxu0
      %v7344 = vadd.f32 0.0, %v7343
      %v7345 = vpop.f32.mrf.mxu0
      %v7346 = vadd.f32 0.0, %v7345
      %7347 = vmatmul.bf16.gmra.mxu0 %v7277
      %v7348 = vpop.f32.mrf.mxu0
      %v7349 = vadd.f32 0.0, %v7348
      %v7350 = vpop.f32.mrf.mxu0
      %v7351 = vadd.f32 0.0, %v7350
      %7352 = vmatmul.bf16.gmra.mxu0 %v7280
      %v7353 = vpop.f32.mrf.mxu0
      %v7354 = vadd.f32 0.0, %v7353
      %v7355 = vpop.f32.mrf.mxu0
      %v7356 = vadd.f32 0.0, %v7355
      %7357 = vmatmul.bf16.gmra.mxu0 %v7283
      %v7358 = vpop.f32.mrf.mxu0
      %v7359 = vadd.f32 0.0, %v7358
      %v7360 = vpop.f32.mrf.mxu0
      %v7361 = vadd.f32 0.0, %v7360
      %7362 = vmatmul.bf16.gmra.mxu0 %v7286
      %v7363 = vpop.f32.mrf.mxu0
      %v7364 = vadd.f32 0.0, %v7363
      %v7365 = vpop.f32.mrf.mxu0
      %v7366 = vadd.f32 0.0, %v7365
      %7367 = vmatmul.bf16.gmra.mxu0 %v7289
      %v7368 = vpop.f32.mrf.mxu0
      %v7369 = vadd.f32 0.0, %v7368
      %v7370 = vpop.f32.mrf.mxu0
      %v7371 = vadd.f32 0.0, %v7370
      %7372 = vmatmul.bf16.gmra.mxu0 %v7292
      %v7373 = vpop.f32.mrf.mxu0
      %v7374 = vadd.f32 0.0, %v7373
      %v7375 = vpop.f32.mrf.mxu0
      %v7376 = vadd.f32 0.0, %v7375
      %7377 = vmatmul.bf16.gmra.mxu0 %v7295
      %v7378 = vpop.f32.mrf.mxu0
      %v7379 = vadd.f32 0.0, %v7378
      %v7380 = vpop.f32.mrf.mxu0
      %v7381 = vadd.f32 0.0, %v7380
      %7382 = vmatmul.bf16.gmra.mxu0 %v7298
      %v7383 = vpop.f32.mrf.mxu0
      %v7384 = vadd.f32 0.0, %v7383
      %v7385 = vpop.f32.mrf.mxu0
      %v7386 = vadd.f32 0.0, %v7385
      %7387 = vmatmul.bf16.gmra.mxu0 %v7301
      %v7388 = vpop.f32.mrf.mxu0
      %v7389 = vadd.f32 0.0, %v7388
      %v7390 = vpop.f32.mrf.mxu0
      %v7391 = vadd.f32 0.0, %v7390
      %7392 = vmatmul.bf16.gmra.mxu0 %v7304
      %v7393 = vpop.f32.mrf.mxu0
      %v7394 = vadd.f32 0.0, %v7393
      %v7395 = vpop.f32.mrf.mxu0
      %v7396 = vadd.f32 0.0, %v7395
      %7397 = vmatmul.bf16.gmra.mxu0 %v7307
      %v7398 = vpop.f32.mrf.mxu0
      %v7399 = vadd.f32 0.0, %v7398
      %v7400 = vpop.f32.mrf.mxu0
      %v7401 = vadd.f32 0.0, %v7400
      %7402 = vmatmul.bf16.gmra.mxu0 %v7310
      %v7403 = vpop.f32.mrf.mxu0
      %v7404 = vadd.f32 0.0, %v7403
      %v7405 = vpop.f32.mrf.mxu0
      %v7406 = vadd.f32 0.0, %v7405
      %7407 = vmatmul.bf16.gmra.mxu0 %v7313
      %v7408 = vpop.f32.mrf.mxu0
      %v7409 = vadd.f32 0.0, %v7408
      %v7410 = vpop.f32.mrf.mxu0
      %v7411 = vadd.f32 0.0, %v7410
      %7412 = vmatmul.bf16.gmra.mxu0 %v7316
      %v7413 = vpop.f32.mrf.mxu0
      %v7414 = vadd.f32 0.0, %v7413
      %v7415 = vpop.f32.mrf.mxu0
      %v7416 = vadd.f32 0.0, %v7415
      %7417 = vmatmul.bf16.gmra.mxu0 %v7319
      %v7418 = vpop.f32.mrf.mxu0
      %v7419 = vadd.f32 0.0, %v7418
      %v7420 = vpop.f32.mrf.mxu0
      %v7421 = vadd.f32 0.0, %v7420
      %7422 = vdwg.mxu0
      %v7423 = vadd.f32 %v7190, %v7334
      %v7424 = vadd.f32 %v7191, %v7336
      %v7425 = vadd.f32 %v7192, %v7339
      %v7426 = vadd.f32 %v7193, %v7341
      %v7427 = vadd.f32 %v7194, %v7344
      %v7428 = vadd.f32 %v7195, %v7346
      %v7429 = vadd.f32 %v7196, %v7349
      %v7430 = vadd.f32 %v7197, %v7351
      %v7431 = vadd.f32 %v7198, %v7354
      %v7432 = vadd.f32 %v7199, %v7356
      %v7433 = vadd.f32 %v7200, %v7359
      %v7434 = vadd.f32 %v7201, %v7361
      %v7435 = vadd.f32 %v7202, %v7364
      %v7436 = vadd.f32 %v7203, %v7366
      %v7437 = vadd.f32 %v7204, %v7369
      %v7438 = vadd.f32 %v7205, %v7371
      %v7439 = vadd.f32 %v7206, %v7374
      %v7440 = vadd.f32 %v7207, %v7376
      %v7441 = vadd.f32 %v7208, %v7379
      %v7442 = vadd.f32 %v7209, %v7381
      %v7443 = vadd.f32 %v7210, %v7384
      %v7444 = vadd.f32 %v7211, %v7386
      %v7445 = vadd.f32 %v7212, %v7389
      %v7446 = vadd.f32 %v7213, %v7391
      %v7447 = vadd.f32 %v7214, %v7394
      %v7448 = vadd.f32 %v7215, %v7396
      %v7449 = vadd.f32 %v7216, %v7399
      %v7450 = vadd.f32 %v7217, %v7401
      %v7451 = vadd.f32 %v7218, %v7404
      %v7452 = vadd.f32 %v7219, %v7406
      %v7453 = vadd.f32 %v7220, %v7409
      %v7454 = vadd.f32 %v7221, %v7411
      %v7455 = vadd.f32 %v7222, %v7414
      %v7456 = vadd.f32 %v7223, %v7416
      %v7457 = vadd.f32 %v7224, %v7419
      %v7458 = vadd.f32 %v7225, %v7421
      %v7459 = vld [vmem:[#allocation2 + $0xa8] sm:$0x3]
      %v7461 = vunpack.c.l.b16 %v7459
      %v7462 = vpack.c.b16 %v7461, %v7461
      %v7464 = vshrl.u32 %v7229, 16
      %v7466 = vrot.slane %v7464, 1
      %v7467 = vshll.u32 %v7229, 16
      %v7469 = vrot.slane %v7467, 2
      %v7470 = vor.u32 %v7466, %v7469
      %v7471 = vrot.slane %v6898, 1
      %v7472 = vrot.slane %v6894, 2
      %v7473 = vor.u32 %v7471, %v7472
      %v7474 = vsel %vm1794, %v7470, %v7473
      %v7475 = vrot.slane %v6906, 1
      %v7476 = vrot.slane %v6902, 2
      %v7477 = vor.u32 %v7475, %v7476
      %v7478 = vsel %vm1794, %v7473, %v7477
      %v7479 = vrot.slane %v6914, 1
      %v7480 = vrot.slane %v6910, 2
      %v7481 = vor.u32 %v7479, %v7480
      %v7482 = vsel %vm1794, %v7477, %v7481
      %v7483 = vrot.slane %v6922, 1
      %v7484 = vrot.slane %v6918, 2
      %v7485 = vor.u32 %v7483, %v7484
      %v7486 = vsel %vm1794, %v7481, %v7485
      %v7487 = vrot.slane %v6930, 1
      %v7488 = vrot.slane %v6926, 2
      %v7489 = vor.u32 %v7487, %v7488
      %v7490 = vsel %vm1794, %v7485, %v7489
      %v7491 = vrot.slane %v6938, 1
      %v7492 = vrot.slane %v6934, 2
      %v7493 = vor.u32 %v7491, %v7492
      %v7494 = vsel %vm1794, %v7489, %v7493
      %v7495 = vrot.slane %v6946, 1
      %v7496 = vrot.slane %v6942, 2
      %v7497 = vor.u32 %v7495, %v7496
      %v7498 = vsel %vm1794, %v7493, %v7497
      %v7499 = vrot.slane %v6954, 1
      %v7500 = vrot.slane %v6950, 2
      %v7501 = vor.u32 %v7499, %v7500
      %v7502 = vsel %vm1794, %v7497, %v7501
      %v7503 = vrot.slane %v6962, 1
      %v7504 = vrot.slane %v6958, 2
      %v7505 = vor.u32 %v7503, %v7504
      %v7506 = vsel %vm1794, %v7501, %v7505
      %v7507 = vrot.slane %v6970, 1
      %v7508 = vrot.slane %v6966, 2
      %v7509 = vor.u32 %v7507, %v7508
      %v7510 = vsel %vm1794, %v7505, %v7509
      %v7511 = vrot.slane %v6978, 1
      %v7512 = vrot.slane %v6974, 2
      %v7513 = vor.u32 %v7511, %v7512
      %v7514 = vsel %vm1794, %v7509, %v7513
      %v7515 = vrot.slane %v6986, 1
      %v7516 = vrot.slane %v6982, 2
      %v7517 = vor.u32 %v7515, %v7516
      %v7518 = vsel %vm1794, %v7513, %v7517
      %v7519 = vrot.slane %v6994, 1
      %v7520 = vrot.slane %v6990, 2
      %v7521 = vor.u32 %v7519, %v7520
      %v7522 = vsel %vm1794, %v7517, %v7521
      %v7523 = vrot.slane %v7002, 1
      %v7524 = vrot.slane %v6998, 2
      %v7525 = vor.u32 %v7523, %v7524
      %v7526 = vsel %vm1794, %v7521, %v7525
      %v7527 = vrot.slane %v7010, 1
      %v7528 = vrot.slane %v7006, 2
      %v7529 = vor.u32 %v7527, %v7528
      %v7530 = vsel %vm1794, %v7525, %v7529
      %v7531 = vrot.slane %v7018, 1
      %v7532 = vrot.slane %v7014, 2
      %v7533 = vor.u32 %v7531, %v7532
      %v7534 = vsel %vm1794, %v7529, %v7533
      %v7535 = vrot.slane %v7026, 1
      %v7536 = vrot.slane %v7022, 2
      %v7537 = vor.u32 %v7535, %v7536
      %v7538 = vsel %vm1794, %v7533, %v7537
      %v7540 = vshrl.u32 %v7462, 16
      %v7542 = vrot.slane %v7540, 1
      %v7543 = vshll.u32 %v7462, 16
      %v7545 = vrot.slane %v7543, 2
      %v7546 = vor.u32 %v7542, %v7545
      %v7547 = vsel %vm1794, %v7537, %v7546
      %v7549 = vsel %vm470, %v7474, 0
      %v7552 = vsel %vm470, %v7478, 0
      %v7555 = vsel %vm470, %v7482, 0
      %v7558 = vsel %vm470, %v7486, 0
      %v7561 = vsel %vm470, %v7490, 0
      %v7564 = vsel %vm470, %v7494, 0
      %v7567 = vsel %vm470, %v7498, 0
      %v7570 = vsel %vm470, %v7502, 0
      %v7573 = vsel %vm470, %v7506, 0
      %v7576 = vsel %vm470, %v7510, 0
      %v7579 = vsel %vm470, %v7514, 0
      %v7582 = vsel %vm470, %v7518, 0
      %v7585 = vsel %vm470, %v7522, 0
      %v7588 = vsel %vm470, %v7526, 0
      %v7591 = vsel %vm470, %v7530, 0
      %v7594 = vsel %vm470, %v7534, 0
      %v7597 = vsel %vm470, %v7538, 0
      %v7600 = vsel %vm470, %v7547, 0
      %v7603 = vsel %vm439, %v602, 0
      %7605 = vmatpush.bf16.msra.mxu0 0
      %7606 = vmatpush.bf16.msra.mxu0 0
      %7607 = vmatpush.bf16.msra.mxu0 0
      %7608 = vmatpush.bf16.msra.mxu0 0
      %7609 = vmatpush.bf16.msra.mxu0 0
      %7610 = vmatpush.bf16.msra.mxu0 0
      %7611 = vmatpush.bf16.msra.mxu0 0
      %7612 = vmatpush.bf16.msra.mxu0 %v7603
      %7613 = vmatmul.bf16.gmra.mxu0 %v7549
      %v7614 = vpop.f32.mrf.mxu0
      %v7615 = vadd.f32 0.0, %v7614
      %v7616 = vpop.f32.mrf.mxu0
      %v7617 = vadd.f32 0.0, %v7616
      %7618 = vmatmul.bf16.gmra.mxu0 %v7552
      %v7619 = vpop.f32.mrf.mxu0
      %v7620 = vadd.f32 0.0, %v7619
      %v7621 = vpop.f32.mrf.mxu0
      %v7622 = vadd.f32 0.0, %v7621
      %7623 = vmatmul.bf16.gmra.mxu0 %v7555
      %v7624 = vpop.f32.mrf.mxu0
      %v7625 = vadd.f32 0.0, %v7624
      %v7626 = vpop.f32.mrf.mxu0
      %v7627 = vadd.f32 0.0, %v7626
      %7628 = vmatmul.bf16.gmra.mxu0 %v7558
      %v7629 = vpop.f32.mrf.mxu0
      %v7630 = vadd.f32 0.0, %v7629
      %v7631 = vpop.f32.mrf.mxu0
      %v7632 = vadd.f32 0.0, %v7631
      %7633 = vmatmul.bf16.gmra.mxu0 %v7561
      %v7634 = vpop.f32.mrf.mxu0
      %v7635 = vadd.f32 0.0, %v7634
      %v7636 = vpop.f32.mrf.mxu0
      %v7637 = vadd.f32 0.0, %v7636
      %7638 = vmatmul.bf16.gmra.mxu0 %v7564
      %v7639 = vpop.f32.mrf.mxu0
      %v7640 = vadd.f32 0.0, %v7639
      %v7641 = vpop.f32.mrf.mxu0
      %v7642 = vadd.f32 0.0, %v7641
      %7643 = vmatmul.bf16.gmra.mxu0 %v7567
      %v7644 = vpop.f32.mrf.mxu0
      %v7645 = vadd.f32 0.0, %v7644
      %v7646 = vpop.f32.mrf.mxu0
      %v7647 = vadd.f32 0.0, %v7646
      %7648 = vmatmul.bf16.gmra.mxu0 %v7570
      %v7649 = vpop.f32.mrf.mxu0
      %v7650 = vadd.f32 0.0, %v7649
      %v7651 = vpop.f32.mrf.mxu0
      %v7652 = vadd.f32 0.0, %v7651
      %7653 = vmatmul.bf16.gmra.mxu0 %v7573
      %v7654 = vpop.f32.mrf.mxu0
      %v7655 = vadd.f32 0.0, %v7654
      %v7656 = vpop.f32.mrf.mxu0
      %v7657 = vadd.f32 0.0, %v7656
      %7658 = vmatmul.bf16.gmra.mxu0 %v7576
      %v7659 = vpop.f32.mrf.mxu0
      %v7660 = vadd.f32 0.0, %v7659
      %v7661 = vpop.f32.mrf.mxu0
      %v7662 = vadd.f32 0.0, %v7661
      %7663 = vmatmul.bf16.gmra.mxu0 %v7579
      %v7664 = vpop.f32.mrf.mxu0
      %v7665 = vadd.f32 0.0, %v7664
      %v7666 = vpop.f32.mrf.mxu0
      %v7667 = vadd.f32 0.0, %v7666
      %7668 = vmatmul.bf16.gmra.mxu0 %v7582
      %v7669 = vpop.f32.mrf.mxu0
      %v7670 = vadd.f32 0.0, %v7669
      %v7671 = vpop.f32.mrf.mxu0
      %v7672 = vadd.f32 0.0, %v7671
      %7673 = vmatmul.bf16.gmra.mxu0 %v7585
      %v7674 = vpop.f32.mrf.mxu0
      %v7675 = vadd.f32 0.0, %v7674
      %v7676 = vpop.f32.mrf.mxu0
      %v7677 = vadd.f32 0.0, %v7676
      %7678 = vmatmul.bf16.gmra.mxu0 %v7588
      %v7679 = vpop.f32.mrf.mxu0
      %v7680 = vadd.f32 0.0, %v7679
      %v7681 = vpop.f32.mrf.mxu0
      %v7682 = vadd.f32 0.0, %v7681
      %7683 = vmatmul.bf16.gmra.mxu0 %v7591
      %v7684 = vpop.f32.mrf.mxu0
      %v7685 = vadd.f32 0.0, %v7684
      %v7686 = vpop.f32.mrf.mxu0
      %v7687 = vadd.f32 0.0, %v7686
      %7688 = vmatmul.bf16.gmra.mxu0 %v7594
      %v7689 = vpop.f32.mrf.mxu0
      %v7690 = vadd.f32 0.0, %v7689
      %v7691 = vpop.f32.mrf.mxu0
      %v7692 = vadd.f32 0.0, %v7691
      %7693 = vmatmul.bf16.gmra.mxu0 %v7597
      %v7694 = vpop.f32.mrf.mxu0
      %v7695 = vadd.f32 0.0, %v7694
      %v7696 = vpop.f32.mrf.mxu0
      %v7697 = vadd.f32 0.0, %v7696
      %7698 = vmatmul.bf16.gmra.mxu0 %v7600
      %v7699 = vpop.f32.mrf.mxu0
      %v7700 = vadd.f32 0.0, %v7699
      %v7701 = vpop.f32.mrf.mxu0
      %v7702 = vadd.f32 0.0, %v7701
      %7703 = vdwg.mxu0
      %v7704 = vadd.f32 %v7423, %v7615
      %v7705 = vadd.f32 %v7424, %v7617
      %v7706 = vadd.f32 %v7425, %v7620
      %v7707 = vadd.f32 %v7426, %v7622
      %v7708 = vadd.f32 %v7427, %v7625
      %v7709 = vadd.f32 %v7428, %v7627
      %v7710 = vadd.f32 %v7429, %v7630
      %v7711 = vadd.f32 %v7430, %v7632
      %v7712 = vadd.f32 %v7431, %v7635
      %v7713 = vadd.f32 %v7432, %v7637
      %v7714 = vadd.f32 %v7433, %v7640
      %v7715 = vadd.f32 %v7434, %v7642
      %v7716 = vadd.f32 %v7435, %v7645
      %v7717 = vadd.f32 %v7436, %v7647
      %v7718 = vadd.f32 %v7437, %v7650
      %v7719 = vadd.f32 %v7438, %v7652
      %v7720 = vadd.f32 %v7439, %v7655
      %v7721 = vadd.f32 %v7440, %v7657
      %v7722 = vadd.f32 %v7441, %v7660
      %v7723 = vadd.f32 %v7442, %v7662
      %v7724 = vadd.f32 %v7443, %v7665
      %v7725 = vadd.f32 %v7444, %v7667
      %v7726 = vadd.f32 %v7445, %v7670
      %v7727 = vadd.f32 %v7446, %v7672
      %v7728 = vadd.f32 %v7447, %v7675
      %v7729 = vadd.f32 %v7448, %v7677
      %v7730 = vadd.f32 %v7449, %v7680
      %v7731 = vadd.f32 %v7450, %v7682
      %v7732 = vadd.f32 %v7451, %v7685
      %v7733 = vadd.f32 %v7452, %v7687
      %v7734 = vadd.f32 %v7453, %v7690
      %v7735 = vadd.f32 %v7454, %v7692
      %v7736 = vadd.f32 %v7455, %v7695
      %v7737 = vadd.f32 %v7456, %v7697
      %v7738 = vadd.f32 %v7457, %v7700
      %v7739 = vadd.f32 %v7458, %v7702
      %v7741 = vperm.slane %v604, 0
      %v7743 = vadd.f32 %v7704, %v7741
      %v7744 = vadd.f32 %v7705, %v7741
      %v7745 = vadd.f32 %v7706, %v7741
      %v7746 = vadd.f32 %v7707, %v7741
      %v7747 = vadd.f32 %v7708, %v7741
      %v7748 = vadd.f32 %v7709, %v7741
      %v7749 = vadd.f32 %v7710, %v7741
      %v7750 = vadd.f32 %v7711, %v7741
      %v7751 = vadd.f32 %v7712, %v7741
      %v7752 = vadd.f32 %v7713, %v7741
      %v7753 = vadd.f32 %v7714, %v7741
      %v7754 = vadd.f32 %v7715, %v7741
      %v7755 = vadd.f32 %v7716, %v7741
      %v7756 = vadd.f32 %v7717, %v7741
      %v7757 = vadd.f32 %v7718, %v7741
      %v7758 = vadd.f32 %v7719, %v7741
      %v7759 = vadd.f32 %v7720, %v7741
      %v7760 = vadd.f32 %v7721, %v7741
      %v7761 = vadd.f32 %v7722, %v7741
      %v7762 = vadd.f32 %v7723, %v7741
      %v7763 = vadd.f32 %v7724, %v7741
      %v7764 = vadd.f32 %v7725, %v7741
      %v7765 = vadd.f32 %v7726, %v7741
      %v7766 = vadd.f32 %v7727, %v7741
      %v7767 = vadd.f32 %v7728, %v7741
      %v7768 = vadd.f32 %v7729, %v7741
      %v7769 = vadd.f32 %v7730, %v7741
      %v7770 = vadd.f32 %v7731, %v7741
      %v7771 = vadd.f32 %v7732, %v7741
      %v7772 = vadd.f32 %v7733, %v7741
      %v7773 = vadd.f32 %v7734, %v7741
      %v7774 = vadd.f32 %v7735, %v7741
      %v7775 = vadd.f32 %v7736, %v7741
      %v7776 = vadd.f32 %v7737, %v7741
      %v7777 = vadd.f32 %v7738, %v7741
      %v7778 = vadd.f32 %v7739, %v7741
      %v7779 = vld [vmem:[%s428] sm:$0xff]
      %v7780 = vld [vmem:[%s428 + $0x8] sm:$0xff]
      %v7781 = vld [vmem:[%s428 + $0x10] sm:$0xff]
      %v7782 = vld [vmem:[%s428 + $0x18] sm:$0xff]
      %v7783 = vld [vmem:[%s428 + $0x20] sm:$0xff]
      %v7784 = vld [vmem:[%s428 + $0x28] sm:$0xff]
      %v7785 = vld [vmem:[%s428 + $0x30] sm:$0xff]
      %v7786 = vld [vmem:[%s428 + $0x38] sm:$0xff]
      %v7787 = vld [vmem:[%s428 + $0x40] sm:$0xff]
      %v7788 = vld [vmem:[%s428 + $0x48] sm:$0xff]
      %v7789 = vld [vmem:[%s428 + $0x50] sm:$0xff]
      %v7790 = vld [vmem:[%s428 + $0x58] sm:$0xff]
      %v7791 = vld [vmem:[%s428 + $0x60] sm:$0xff]
      %v7792 = vld [vmem:[%s428 + $0x68] sm:$0xff]
      %v7793 = vld [vmem:[%s428 + $0x70] sm:$0xff]
      %v7794 = vld [vmem:[%s428 + $0x78] sm:$0xff]
      %v7795 = vld [vmem:[%s428 + $0x80] sm:$0xff]
      %v7796 = vld [vmem:[%s428 + $0x88] sm:$0xff]
      %v7797 = vld [vmem:[%s428 + $0x90] sm:$0xff]
      %v7798 = vld [vmem:[%s428 + $0x98] sm:$0xff]
      %v7799 = vld [vmem:[%s428 + $0xa0] sm:$0xff]
      %v7800 = vld [vmem:[%s428 + $0xa8] sm:$0xff]
      %v7801 = vld [vmem:[%s428 + $0xb0] sm:$0xff]
      %v7802 = vld [vmem:[%s428 + $0xb8] sm:$0xff]
      %v7803 = vld [vmem:[%s428 + $0xc0] sm:$0xff]
      %v7804 = vld [vmem:[%s428 + $0xc8] sm:$0xff]
      %v7805 = vld [vmem:[%s428 + $0xd0] sm:$0xff]
      %v7806 = vld [vmem:[%s428 + $0xd8] sm:$0xff]
      %v7807 = vld [vmem:[%s428 + $0xe0] sm:$0xff]
      %v7808 = vld [vmem:[%s428 + $0xe8] sm:$0xff]
      %v7809 = vld [vmem:[%s428 + $0xf0] sm:$0xff]
      %v7810 = vld [vmem:[%s428 + $0xf8] sm:$0xff]
      %v7811 = vld [vmem:[%s428 + $0x100] sm:$0xff]
      %v7812 = vld [vmem:[%s428 + $0x108] sm:$0xff]
      %v7813 = vld [vmem:[%s428 + $0x110] sm:$0xff]
      %v7814 = vld [vmem:[%s428 + $0x118] sm:$0xff]
      %7816 = vset.pattern.permute.xlu0 0
      %7817 = vperm.xlu0 %7816, %v7779
      %v7818 = vpop.permute.xlu0 %7817
      %7821 = vset.pattern.permute.xlu0 0
      %7822 = vperm.xlu0 %7821, %v7780
      %v7823 = vpop.permute.xlu0 %7822
      %7826 = vset.pattern.permute.xlu0 0
      %7827 = vperm.xlu0 %7826, %v7781
      %v7828 = vpop.permute.xlu0 %7827
      %7831 = vset.pattern.permute.xlu0 0
      %7832 = vperm.xlu0 %7831, %v7782
      %v7833 = vpop.permute.xlu0 %7832
      %7836 = vset.pattern.permute.xlu0 0
      %7837 = vperm.xlu0 %7836, %v7783
      %v7838 = vpop.permute.xlu0 %7837
      %7841 = vset.pattern.permute.xlu0 0
      %7842 = vperm.xlu0 %7841, %v7784
      %v7843 = vpop.permute.xlu0 %7842
      %7846 = vset.pattern.permute.xlu0 0
      %7847 = vperm.xlu0 %7846, %v7785
      %v7848 = vpop.permute.xlu0 %7847
      %7851 = vset.pattern.permute.xlu0 0
      %7852 = vperm.xlu0 %7851, %v7786
      %v7853 = vpop.permute.xlu0 %7852
      %7856 = vset.pattern.permute.xlu0 0
      %7857 = vperm.xlu0 %7856, %v7787
      %v7858 = vpop.permute.xlu0 %7857
      %7861 = vset.pattern.permute.xlu0 0
      %7862 = vperm.xlu0 %7861, %v7788
      %v7863 = vpop.permute.xlu0 %7862
      %7866 = vset.pattern.permute.xlu0 0
      %7867 = vperm.xlu0 %7866, %v7789
      %v7868 = vpop.permute.xlu0 %7867
      %7871 = vset.pattern.permute.xlu0 0
      %7872 = vperm.xlu0 %7871, %v7790
      %v7873 = vpop.permute.xlu0 %7872
      %7876 = vset.pattern.permute.xlu0 0
      %7877 = vperm.xlu0 %7876, %v7791
      %v7878 = vpop.permute.xlu0 %7877
      %7881 = vset.pattern.permute.xlu0 0
      %7882 = vperm.xlu0 %7881, %v7792
      %v7883 = vpop.permute.xlu0 %7882
      %7886 = vset.pattern.permute.xlu0 0
      %7887 = vperm.xlu0 %7886, %v7793
      %v7888 = vpop.permute.xlu0 %7887
      %7891 = vset.pattern.permute.xlu0 0
      %7892 = vperm.xlu0 %7891, %v7794
      %v7893 = vpop.permute.xlu0 %7892
      %7896 = vset.pattern.permute.xlu0 0
      %7897 = vperm.xlu0 %7896, %v7795
      %v7898 = vpop.permute.xlu0 %7897
      %7901 = vset.pattern.permute.xlu0 0
      %7902 = vperm.xlu0 %7901, %v7796
      %v7903 = vpop.permute.xlu0 %7902
      %7906 = vset.pattern.permute.xlu0 0
      %7907 = vperm.xlu0 %7906, %v7797
      %v7908 = vpop.permute.xlu0 %7907
      %7911 = vset.pattern.permute.xlu0 0
      %7912 = vperm.xlu0 %7911, %v7798
      %v7913 = vpop.permute.xlu0 %7912
      %7916 = vset.pattern.permute.xlu0 0
      %7917 = vperm.xlu0 %7916, %v7799
      %v7918 = vpop.permute.xlu0 %7917
      %7921 = vset.pattern.permute.xlu0 0
      %7922 = vperm.xlu0 %7921, %v7800
      %v7923 = vpop.permute.xlu0 %7922
      %7926 = vset.pattern.permute.xlu0 0
      %7927 = vperm.xlu0 %7926, %v7801
      %v7928 = vpop.permute.xlu0 %7927
      %7931 = vset.pattern.permute.xlu0 0
      %7932 = vperm.xlu0 %7931, %v7802
      %v7933 = vpop.permute.xlu0 %7932
      %7936 = vset.pattern.permute.xlu0 0
      %7937 = vperm.xlu0 %7936, %v7803
      %v7938 = vpop.permute.xlu0 %7937
      %7941 = vset.pattern.permute.xlu0 0
      %7942 = vperm.xlu0 %7941, %v7804
      %v7943 = vpop.permute.xlu0 %7942
      %7946 = vset.pattern.permute.xlu0 0
      %7947 = vperm.xlu0 %7946, %v7805
      %v7948 = vpop.permute.xlu0 %7947
      %7951 = vset.pattern.permute.xlu0 0
      %7952 = vperm.xlu0 %7951, %v7806
      %v7953 = vpop.permute.xlu0 %7952
      %7956 = vset.pattern.permute.xlu0 0
      %7957 = vperm.xlu0 %7956, %v7807
      %v7958 = vpop.permute.xlu0 %7957
      %7961 = vset.pattern.permute.xlu0 0
      %7962 = vperm.xlu0 %7961, %v7808
      %v7963 = vpop.permute.xlu0 %7962
      %7966 = vset.pattern.permute.xlu0 0
      %7967 = vperm.xlu0 %7966, %v7809
      %v7968 = vpop.permute.xlu0 %7967
      %7971 = vset.pattern.permute.xlu0 0
      %7972 = vperm.xlu0 %7971, %v7810
      %v7973 = vpop.permute.xlu0 %7972
      %7976 = vset.pattern.permute.xlu0 0
      %7977 = vperm.xlu0 %7976, %v7811
      %v7978 = vpop.permute.xlu0 %7977
      %7981 = vset.pattern.permute.xlu0 0
      %7982 = vperm.xlu0 %7981, %v7812
      %v7983 = vpop.permute.xlu0 %7982
      %7986 = vset.pattern.permute.xlu0 0
      %7987 = vperm.xlu0 %7986, %v7813
      %v7988 = vpop.permute.xlu0 %7987
      %7991 = vset.pattern.permute.xlu0 0
      %7992 = vperm.xlu0 %7991, %v7814
      %v7993 = vpop.permute.xlu0 %7992
      %v7995 = vadd.f32 %v7743, %v7818
      %v7996 = vadd.f32 %v7744, %v7823
      %v7997 = vadd.f32 %v7745, %v7828
      %v7998 = vadd.f32 %v7746, %v7833
      %v7999 = vadd.f32 %v7747, %v7838
      %v8000 = vadd.f32 %v7748, %v7843
      %v8001 = vadd.f32 %v7749, %v7848
      %v8002 = vadd.f32 %v7750, %v7853
      %v8003 = vadd.f32 %v7751, %v7858
      %v8004 = vadd.f32 %v7752, %v7863
      %v8005 = vadd.f32 %v7753, %v7868
      %v8006 = vadd.f32 %v7754, %v7873
      %v8007 = vadd.f32 %v7755, %v7878
      %v8008 = vadd.f32 %v7756, %v7883
      %v8009 = vadd.f32 %v7757, %v7888
      %v8010 = vadd.f32 %v7758, %v7893
      %v8011 = vadd.f32 %v7759, %v7898
      %v8012 = vadd.f32 %v7760, %v7903
      %v8013 = vadd.f32 %v7761, %v7908
      %v8014 = vadd.f32 %v7762, %v7913
      %v8015 = vadd.f32 %v7763, %v7918
      %v8016 = vadd.f32 %v7764, %v7923
      %v8017 = vadd.f32 %v7765, %v7928
      %v8018 = vadd.f32 %v7766, %v7933
      %v8019 = vadd.f32 %v7767, %v7938
      %v8020 = vadd.f32 %v7768, %v7943
      %v8021 = vadd.f32 %v7769, %v7948
      %v8022 = vadd.f32 %v7770, %v7953
      %v8023 = vadd.f32 %v7771, %v7958
      %v8024 = vadd.f32 %v7772, %v7963
      %v8025 = vadd.f32 %v7773, %v7968
      %v8026 = vadd.f32 %v7774, %v7973
      %v8027 = vadd.f32 %v7775, %v7978
      %v8028 = vadd.f32 %v7776, %v7983
      %v8029 = vadd.f32 %v7777, %v7988
      %v8030 = vadd.f32 %v7778, %v7993
      %vm8031 = vcmp.ge.f32.partialorder %v7995, 0.0
      %vm8032 = vcmp.ge.f32.partialorder %v7996, 0.0
      %vm8033 = vcmp.ge.f32.partialorder %v7997, 0.0
      %vm8034 = vcmp.ge.f32.partialorder %v7998, 0.0
      %vm8035 = vcmp.ge.f32.partialorder %v7999, 0.0
      %vm8036 = vcmp.ge.f32.partialorder %v8000, 0.0
      %vm8037 = vcmp.ge.f32.partialorder %v8001, 0.0
      %vm8038 = vcmp.ge.f32.partialorder %v8002, 0.0
      %vm8039 = vcmp.ge.f32.partialorder %v8003, 0.0
      %vm8040 = vcmp.ge.f32.partialorder %v8004, 0.0
      %vm8041 = vcmp.ge.f32.partialorder %v8005, 0.0
      %vm8042 = vcmp.ge.f32.partialorder %v8006, 0.0
      %vm8043 = vcmp.ge.f32.partialorder %v8007, 0.0
      %vm8044 = vcmp.ge.f32.partialorder %v8008, 0.0
      %vm8045 = vcmp.ge.f32.partialorder %v8009, 0.0
      %vm8046 = vcmp.ge.f32.partialorder %v8010, 0.0
      %vm8047 = vcmp.ge.f32.partialorder %v8011, 0.0
      %vm8048 = vcmp.ge.f32.partialorder %v8012, 0.0
      %vm8049 = vcmp.ge.f32.partialorder %v8013, 0.0
      %vm8050 = vcmp.ge.f32.partialorder %v8014, 0.0
      %vm8051 = vcmp.ge.f32.partialorder %v8015, 0.0
      %vm8052 = vcmp.ge.f32.partialorder %v8016, 0.0
      %vm8053 = vcmp.ge.f32.partialorder %v8017, 0.0
      %vm8054 = vcmp.ge.f32.partialorder %v8018, 0.0
      %vm8055 = vcmp.ge.f32.partialorder %v8019, 0.0
      %vm8056 = vcmp.ge.f32.partialorder %v8020, 0.0
      %vm8057 = vcmp.ge.f32.partialorder %v8021, 0.0
      %vm8058 = vcmp.ge.f32.partialorder %v8022, 0.0
      %vm8059 = vcmp.ge.f32.partialorder %v8023, 0.0
      %vm8060 = vcmp.ge.f32.partialorder %v8024, 0.0
      %vm8061 = vcmp.ge.f32.partialorder %v8025, 0.0
      %vm8062 = vcmp.ge.f32.partialorder %v8026, 0.0
      %vm8063 = vcmp.ge.f32.partialorder %v8027, 0.0
      %vm8064 = vcmp.ge.f32.partialorder %v8028, 0.0
      %vm8065 = vcmp.ge.f32.partialorder %v8029, 0.0
      %vm8066 = vcmp.ge.f32.partialorder %v8030, 0.0
      %v8067 = vmul.f32 %v7995, 0.2
      %v8068 = vmul.f32 %v7996, 0.2
      %v8069 = vmul.f32 %v7997, 0.2
      %v8070 = vmul.f32 %v7998, 0.2
      %v8071 = vmul.f32 %v7999, 0.2
      %v8072 = vmul.f32 %v8000, 0.2
      %v8073 = vmul.f32 %v8001, 0.2
      %v8074 = vmul.f32 %v8002, 0.2
      %v8075 = vmul.f32 %v8003, 0.2
      %v8076 = vmul.f32 %v8004, 0.2
      %v8077 = vmul.f32 %v8005, 0.2
      %v8078 = vmul.f32 %v8006, 0.2
      %v8079 = vmul.f32 %v8007, 0.2
      %v8080 = vmul.f32 %v8008, 0.2
      %v8081 = vmul.f32 %v8009, 0.2
      %v8082 = vmul.f32 %v8010, 0.2
      %v8083 = vmul.f32 %v8011, 0.2
      %v8084 = vmul.f32 %v8012, 0.2
      %v8085 = vmul.f32 %v8013, 0.2
      %v8086 = vmul.f32 %v8014, 0.2
      %v8087 = vmul.f32 %v8015, 0.2
      %v8088 = vmul.f32 %v8016, 0.2
      %v8089 = vmul.f32 %v8017, 0.2
      %v8090 = vmul.f32 %v8018, 0.2
      %v8091 = vmul.f32 %v8019, 0.2
      %v8092 = vmul.f32 %v8020, 0.2
      %v8093 = vmul.f32 %v8021, 0.2
      %v8094 = vmul.f32 %v8022, 0.2
      %v8095 = vmul.f32 %v8023, 0.2
      %v8096 = vmul.f32 %v8024, 0.2
      %v8097 = vmul.f32 %v8025, 0.2
      %v8098 = vmul.f32 %v8026, 0.2
      %v8099 = vmul.f32 %v8027, 0.2
      %v8100 = vmul.f32 %v8028, 0.2
      %v8101 = vmul.f32 %v8029, 0.2
      %v8102 = vmul.f32 %v8030, 0.2
      %v8103 = vsel %vm8031, %v7995, %v8067
      %v8104 = vsel %vm8032, %v7996, %v8068
      %v8105 = vsel %vm8033, %v7997, %v8069
      %v8106 = vsel %vm8034, %v7998, %v8070
      %v8107 = vsel %vm8035, %v7999, %v8071
      %v8108 = vsel %vm8036, %v8000, %v8072
      %v8109 = vsel %vm8037, %v8001, %v8073
      %v8110 = vsel %vm8038, %v8002, %v8074
      %v8111 = vsel %vm8039, %v8003, %v8075
      %v8112 = vsel %vm8040, %v8004, %v8076
      %v8113 = vsel %vm8041, %v8005, %v8077
      %v8114 = vsel %vm8042, %v8006, %v8078
      %v8115 = vsel %vm8043, %v8007, %v8079
      %v8116 = vsel %vm8044, %v8008, %v8080
      %v8117 = vsel %vm8045, %v8009, %v8081
      %v8118 = vsel %vm8046, %v8010, %v8082
      %v8119 = vsel %vm8047, %v8011, %v8083
      %v8120 = vsel %vm8048, %v8012, %v8084
      %v8121 = vsel %vm8049, %v8013, %v8085
      %v8122 = vsel %vm8050, %v8014, %v8086
      %v8123 = vsel %vm8051, %v8015, %v8087
      %v8124 = vsel %vm8052, %v8016, %v8088
      %v8125 = vsel %vm8053, %v8017, %v8089
      %v8126 = vsel %vm8054, %v8018, %v8090
      %v8127 = vsel %vm8055, %v8019, %v8091
      %v8128 = vsel %vm8056, %v8020, %v8092
      %v8129 = vsel %vm8057, %v8021, %v8093
      %v8130 = vsel %vm8058, %v8022, %v8094
      %v8131 = vsel %vm8059, %v8023, %v8095
      %v8132 = vsel %vm8060, %v8024, %v8096
      %v8133 = vsel %vm8061, %v8025, %v8097
      %v8134 = vsel %vm8062, %v8026, %v8098
      %v8135 = vsel %vm8063, %v8027, %v8099
      %v8136 = vsel %vm8064, %v8028, %v8100
      %v8137 = vsel %vm8065, %v8029, %v8101
      %v8138 = vsel %vm8066, %v8030, %v8102
      %v8139 = vld [vmem:[%s410 + $0x8] sm:$0xe]
      %v8140 = vld [vmem:[%s410 + $0xc] sm:$0xf]
      %v8141 = vld [vmem:[%s410 + $0x10] sm:$0xf]
      %v8142 = vld [vmem:[%s410 + $0x14] sm:$0xf]
      %v8143 = vld [vmem:[%s410 + $0x18] sm:$0xf]
      %v8144 = vld [vmem:[%s410 + $0x1c] sm:$0xf]
      %v8145 = vld [vmem:[%s410 + $0x20] sm:$0xf]
      %v8146 = vld [vmem:[%s410 + $0x24] sm:$0xf]
      %v8147 = vld [vmem:[%s410 + $0x28] sm:$0xf]
      %v8148 = vld [vmem:[%s410 + $0x2c] sm:$0xf]
      %v8149 = vld [vmem:[%s410 + $0x30] sm:$0xf]
      %v8150 = vld [vmem:[%s410 + $0x34] sm:$0xf]
      %v8151 = vld [vmem:[%s410 + $0x38] sm:$0xf]
      %v8152 = vld [vmem:[%s410 + $0x3c] sm:$0xf]
      %v8153 = vld [vmem:[%s410 + $0x40] sm:$0xf]
      %v8154 = vld [vmem:[%s410 + $0x44] sm:$0xf]
      %v8155 = vld [vmem:[%s410 + $0x48] sm:$0xf]
      %v8156 = vld [vmem:[%s410 + $0x4c] sm:$0xf]
      %v8157 = vld [vmem:[%s410 + $0x50] sm:$0xf]
      %v8158 = vld [vmem:[%s410 + $0x54] sm:$0xf]
      %v8159 = vld [vmem:[%s410 + $0x58] sm:$0xf]
      %v8160 = vld [vmem:[%s410 + $0x5c] sm:$0xf]
      %v8161 = vld [vmem:[%s410 + $0x60] sm:$0xf]
      %v8162 = vld [vmem:[%s410 + $0x64] sm:$0xf]
      %v8163 = vld [vmem:[%s410 + $0x68] sm:$0xf]
      %v8164 = vld [vmem:[%s410 + $0x6c] sm:$0xf]
      %v8165 = vld [vmem:[%s410 + $0x70] sm:$0xf]
      %v8166 = vld [vmem:[%s410 + $0x74] sm:$0xf]
      %v8167 = vld [vmem:[%s410 + $0x78] sm:$0xf]
      %v8168 = vld [vmem:[%s410 + $0x7c] sm:$0xf]
      %v8169 = vld [vmem:[%s410 + $0x80] sm:$0xf]
      %v8170 = vld [vmem:[%s410 + $0x84] sm:$0xf]
      %v8171 = vld [vmem:[%s410 + $0x88] sm:$0xf]
      %v8172 = vld [vmem:[%s410 + $0x8c] sm:$0xf]
      %v8173 = vld [vmem:[%s410 + $0x90] sm:$0xf]
      %v8174 = vld [vmem:[%s410 + $0x94] sm:$0xf]
      %v8175 = vld [vmem:[%s410 + $0x98] sm:$0x3]
      %v8213 = vunpack.c.l.b16 %v8139
      %v8214 = vunpack.c.l.b16 %v8140
      %v8215 = vunpack.c.l.b16 %v8141
      %v8216 = vunpack.c.l.b16 %v8142
      %v8217 = vunpack.c.l.b16 %v8143
      %v8218 = vunpack.c.l.b16 %v8144
      %v8219 = vunpack.c.l.b16 %v8145
      %v8220 = vunpack.c.l.b16 %v8146
      %v8221 = vunpack.c.l.b16 %v8147
      %v8222 = vunpack.c.l.b16 %v8148
      %v8223 = vunpack.c.l.b16 %v8149
      %v8224 = vunpack.c.l.b16 %v8150
      %v8225 = vunpack.c.l.b16 %v8151
      %v8226 = vunpack.c.l.b16 %v8152
      %v8227 = vunpack.c.l.b16 %v8153
      %v8228 = vunpack.c.l.b16 %v8154
      %v8229 = vunpack.c.l.b16 %v8155
      %v8230 = vunpack.c.l.b16 %v8156
      %v8231 = vunpack.c.l.b16 %v8157
      %v8232 = vunpack.c.l.b16 %v8158
      %v8233 = vunpack.c.l.b16 %v8159
      %v8234 = vunpack.c.l.b16 %v8160
      %v8235 = vunpack.c.l.b16 %v8161
      %v8236 = vunpack.c.l.b16 %v8162
      %v8237 = vunpack.c.l.b16 %v8163
      %v8238 = vunpack.c.l.b16 %v8164
      %v8239 = vunpack.c.l.b16 %v8165
      %v8240 = vunpack.c.l.b16 %v8166
      %v8241 = vunpack.c.l.b16 %v8167
      %v8242 = vunpack.c.l.b16 %v8168
      %v8243 = vunpack.c.l.b16 %v8169
      %v8244 = vunpack.c.l.b16 %v8170
      %v8245 = vunpack.c.l.b16 %v8171
      %v8246 = vunpack.c.l.b16 %v8172
      %v8247 = vunpack.c.l.b16 %v8173
      %v8248 = vunpack.c.l.b16 %v8174
      %v8249 = vunpack.c.l.b16 %v8175
      %v8250 = vpack.c.b16 %v8214, %v8213
      %v8251 = vpack.c.b16 %v8216, %v8215
      %v8252 = vpack.c.b16 %v8218, %v8217
      %v8253 = vpack.c.b16 %v8220, %v8219
      %v8254 = vpack.c.b16 %v8222, %v8221
      %v8255 = vpack.c.b16 %v8224, %v8223
      %v8256 = vpack.c.b16 %v8226, %v8225
      %v8257 = vpack.c.b16 %v8228, %v8227
      %v8258 = vpack.c.b16 %v8230, %v8229
      %v8259 = vpack.c.b16 %v8232, %v8231
      %v8260 = vpack.c.b16 %v8234, %v8233
      %v8261 = vpack.c.b16 %v8236, %v8235
      %v8262 = vpack.c.b16 %v8238, %v8237
      %v8263 = vpack.c.b16 %v8240, %v8239
      %v8264 = vpack.c.b16 %v8242, %v8241
      %v8265 = vpack.c.b16 %v8244, %v8243
      %v8266 = vpack.c.b16 %v8246, %v8245
      %v8267 = vpack.c.b16 %v8248, %v8247
      %v8268 = vpack.c.b16 %v8249, %v8249
      %v8270 = vshrl.u32 %v8250, 16
      %v8272 = vrot.slane %v8270, 1
      %v8273 = vshll.u32 %v8250, 16
      %v8275 = vrot.slane %v8273, 2
      %v8276 = vor.u32 %v8272, %v8275
      %v8278 = vshrl.u32 %v8251, 16
      %v8280 = vrot.slane %v8278, 1
      %v8281 = vshll.u32 %v8251, 16
      %v8283 = vrot.slane %v8281, 2
      %v8284 = vor.u32 %v8280, %v8283
      %v8285 = vsel %vm1794, %v8276, %v8284
      %v8287 = vshrl.u32 %v8252, 16
      %v8289 = vrot.slane %v8287, 1
      %v8290 = vshll.u32 %v8252, 16
      %v8292 = vrot.slane %v8290, 2
      %v8293 = vor.u32 %v8289, %v8292
      %v8294 = vsel %vm1794, %v8284, %v8293
      %v8296 = vshrl.u32 %v8253, 16
      %v8298 = vrot.slane %v8296, 1
      %v8299 = vshll.u32 %v8253, 16
      %v8301 = vrot.slane %v8299, 2
      %v8302 = vor.u32 %v8298, %v8301
      %v8303 = vsel %vm1794, %v8293, %v8302
      %v8305 = vshrl.u32 %v8254, 16
      %v8307 = vrot.slane %v8305, 1
      %v8308 = vshll.u32 %v8254, 16
      %v8310 = vrot.slane %v8308, 2
      %v8311 = vor.u32 %v8307, %v8310
      %v8312 = vsel %vm1794, %v8302, %v8311
      %v8314 = vshrl.u32 %v8255, 16
      %v8316 = vrot.slane %v8314, 1
      %v8317 = vshll.u32 %v8255, 16
      %v8319 = vrot.slane %v8317, 2
      %v8320 = vor.u32 %v8316, %v8319
      %v8321 = vsel %vm1794, %v8311, %v8320
      %v8323 = vshrl.u32 %v8256, 16
      %v8325 = vrot.slane %v8323, 1
      %v8326 = vshll.u32 %v8256, 16
      %v8328 = vrot.slane %v8326, 2
      %v8329 = vor.u32 %v8325, %v8328
      %v8330 = vsel %vm1794, %v8320, %v8329
      %v8332 = vshrl.u32 %v8257, 16
      %v8334 = vrot.slane %v8332, 1
      %v8335 = vshll.u32 %v8257, 16
      %v8337 = vrot.slane %v8335, 2
      %v8338 = vor.u32 %v8334, %v8337
      %v8339 = vsel %vm1794, %v8329, %v8338
      %v8341 = vshrl.u32 %v8258, 16
      %v8343 = vrot.slane %v8341, 1
      %v8344 = vshll.u32 %v8258, 16
      %v8346 = vrot.slane %v8344, 2
      %v8347 = vor.u32 %v8343, %v8346
      %v8348 = vsel %vm1794, %v8338, %v8347
      %v8350 = vshrl.u32 %v8259, 16
      %v8352 = vrot.slane %v8350, 1
      %v8353 = vshll.u32 %v8259, 16
      %v8355 = vrot.slane %v8353, 2
      %v8356 = vor.u32 %v8352, %v8355
      %v8357 = vsel %vm1794, %v8347, %v8356
      %v8359 = vshrl.u32 %v8260, 16
      %v8361 = vrot.slane %v8359, 1
      %v8362 = vshll.u32 %v8260, 16
      %v8364 = vrot.slane %v8362, 2
      %v8365 = vor.u32 %v8361, %v8364
      %v8366 = vsel %vm1794, %v8356, %v8365
      %v8368 = vshrl.u32 %v8261, 16
      %v8370 = vrot.slane %v8368, 1
      %v8371 = vshll.u32 %v8261, 16
      %v8373 = vrot.slane %v8371, 2
      %v8374 = vor.u32 %v8370, %v8373
      %v8375 = vsel %vm1794, %v8365, %v8374
      %v8377 = vshrl.u32 %v8262, 16
      %v8379 = vrot.slane %v8377, 1
      %v8380 = vshll.u32 %v8262, 16
      %v8382 = vrot.slane %v8380, 2
      %v8383 = vor.u32 %v8379, %v8382
      %v8384 = vsel %vm1794, %v8374, %v8383
      %v8386 = vshrl.u32 %v8263, 16
      %v8388 = vrot.slane %v8386, 1
      %v8389 = vshll.u32 %v8263, 16
      %v8391 = vrot.slane %v8389, 2
      %v8392 = vor.u32 %v8388, %v8391
      %v8393 = vsel %vm1794, %v8383, %v8392
      %v8395 = vshrl.u32 %v8264, 16
      %v8397 = vrot.slane %v8395, 1
      %v8398 = vshll.u32 %v8264, 16
      %v8400 = vrot.slane %v8398, 2
      %v8401 = vor.u32 %v8397, %v8400
      %v8402 = vsel %vm1794, %v8392, %v8401
      %v8404 = vshrl.u32 %v8265, 16
      %v8406 = vrot.slane %v8404, 1
      %v8407 = vshll.u32 %v8265, 16
      %v8409 = vrot.slane %v8407, 2
      %v8410 = vor.u32 %v8406, %v8409
      %v8411 = vsel %vm1794, %v8401, %v8410
      %v8413 = vshrl.u32 %v8266, 16
      %v8415 = vrot.slane %v8413, 1
      %v8416 = vshll.u32 %v8266, 16
      %v8418 = vrot.slane %v8416, 2
      %v8419 = vor.u32 %v8415, %v8418
      %v8420 = vsel %vm1794, %v8410, %v8419
      %v8422 = vshrl.u32 %v8267, 16
      %v8424 = vrot.slane %v8422, 1
      %v8425 = vshll.u32 %v8267, 16
      %v8427 = vrot.slane %v8425, 2
      %v8428 = vor.u32 %v8424, %v8427
      %v8429 = vsel %vm1794, %v8419, %v8428
      %v8431 = vshrl.u32 %v8268, 16
      %v8433 = vrot.slane %v8431, 1
      %v8434 = vshll.u32 %v8268, 16
      %v8436 = vrot.slane %v8434, 2
      %v8437 = vor.u32 %v8433, %v8436
      %v8438 = vsel %vm1794, %v8428, %v8437
      %v8440 = vsel %vm897, %v8285, 0
      %v8443 = vsel %vm897, %v8294, 0
      %v8446 = vsel %vm897, %v8303, 0
      %v8449 = vsel %vm897, %v8312, 0
      %v8452 = vsel %vm897, %v8321, 0
      %v8455 = vsel %vm897, %v8330, 0
      %v8458 = vsel %vm897, %v8339, 0
      %v8461 = vsel %vm897, %v8348, 0
      %v8464 = vsel %vm897, %v8357, 0
      %v8467 = vsel %vm897, %v8366, 0
      %v8470 = vsel %vm897, %v8375, 0
      %v8473 = vsel %vm897, %v8384, 0
      %v8476 = vsel %vm897, %v8393, 0
      %v8479 = vsel %vm897, %v8402, 0
      %v8482 = vsel %vm897, %v8411, 0
      %v8485 = vsel %vm897, %v8420, 0
      %v8488 = vsel %vm897, %v8429, 0
      %v8491 = vsel %vm897, %v8438, 0
      %v8494 = vsel %vm952, %v605, 0
      %8496 = vmatpush.bf16.msra.mxu0 0
      %8497 = vmatpush.bf16.msra.mxu0 0
      %8498 = vmatpush.bf16.msra.mxu0 0
      %8499 = vmatpush.bf16.msra.mxu0 0
      %8500 = vmatpush.bf16.msra.mxu0 0
      %8501 = vmatpush.bf16.msra.mxu0 0
      %8502 = vmatpush.bf16.msra.mxu0 0
      %8503 = vmatpush.bf16.msra.mxu0 %v8494
      %8504 = vmatmul.bf16.gmra.mxu0 %v8440
      %v8505 = vpop.f32.mrf.mxu0
      %v8506 = vadd.f32 %v8103, %v8505
      %v8507 = vpop.f32.mrf.mxu0
      %v8508 = vadd.f32 %v8104, %v8507
      %8509 = vmatmul.bf16.gmra.mxu0 %v8443
      %v8510 = vpop.f32.mrf.mxu0
      %v8511 = vadd.f32 %v8105, %v8510
      %v8512 = vpop.f32.mrf.mxu0
      %v8513 = vadd.f32 %v8106, %v8512
      %8514 = vmatmul.bf16.gmra.mxu0 %v8446
      %v8515 = vpop.f32.mrf.mxu0
      %v8516 = vadd.f32 %v8107, %v8515
      %v8517 = vpop.f32.mrf.mxu0
      %v8518 = vadd.f32 %v8108, %v8517
      %8519 = vmatmul.bf16.gmra.mxu0 %v8449
      %v8520 = vpop.f32.mrf.mxu0
      %v8521 = vadd.f32 %v8109, %v8520
      %v8522 = vpop.f32.mrf.mxu0
      %v8523 = vadd.f32 %v8110, %v8522
      %8524 = vmatmul.bf16.gmra.mxu0 %v8452
      %v8525 = vpop.f32.mrf.mxu0
      %v8526 = vadd.f32 %v8111, %v8525
      %v8527 = vpop.f32.mrf.mxu0
      %v8528 = vadd.f32 %v8112, %v8527
      %8529 = vmatmul.bf16.gmra.mxu0 %v8455
      %v8530 = vpop.f32.mrf.mxu0
      %v8531 = vadd.f32 %v8113, %v8530
      %v8532 = vpop.f32.mrf.mxu0
      %v8533 = vadd.f32 %v8114, %v8532
      %8534 = vmatmul.bf16.gmra.mxu0 %v8458
      %v8535 = vpop.f32.mrf.mxu0
      %v8536 = vadd.f32 %v8115, %v8535
      %v8537 = vpop.f32.mrf.mxu0
      %v8538 = vadd.f32 %v8116, %v8537
      %8539 = vmatmul.bf16.gmra.mxu0 %v8461
      %v8540 = vpop.f32.mrf.mxu0
      %v8541 = vadd.f32 %v8117, %v8540
      %v8542 = vpop.f32.mrf.mxu0
      %v8543 = vadd.f32 %v8118, %v8542
      %8544 = vmatmul.bf16.gmra.mxu0 %v8464
      %v8545 = vpop.f32.mrf.mxu0
      %v8546 = vadd.f32 %v8119, %v8545
      %v8547 = vpop.f32.mrf.mxu0
      %v8548 = vadd.f32 %v8120, %v8547
      %8549 = vmatmul.bf16.gmra.mxu0 %v8467
      %v8550 = vpop.f32.mrf.mxu0
      %v8551 = vadd.f32 %v8121, %v8550
      %v8552 = vpop.f32.mrf.mxu0
      %v8553 = vadd.f32 %v8122, %v8552
      %8554 = vmatmul.bf16.gmra.mxu0 %v8470
      %v8555 = vpop.f32.mrf.mxu0
      %v8556 = vadd.f32 %v8123, %v8555
      %v8557 = vpop.f32.mrf.mxu0
      %v8558 = vadd.f32 %v8124, %v8557
      %8559 = vmatmul.bf16.gmra.mxu0 %v8473
      %v8560 = vpop.f32.mrf.mxu0
      %v8561 = vadd.f32 %v8125, %v8560
      %v8562 = vpop.f32.mrf.mxu0
      %v8563 = vadd.f32 %v8126, %v8562
      %8564 = vmatmul.bf16.gmra.mxu0 %v8476
      %v8565 = vpop.f32.mrf.mxu0
      %v8566 = vadd.f32 %v8127, %v8565
      %v8567 = vpop.f32.mrf.mxu0
      %v8568 = vadd.f32 %v8128, %v8567
      %8569 = vmatmul.bf16.gmra.mxu0 %v8479
      %v8570 = vpop.f32.mrf.mxu0
      %v8571 = vadd.f32 %v8129, %v8570
      %v8572 = vpop.f32.mrf.mxu0
      %v8573 = vadd.f32 %v8130, %v8572
      %8574 = vmatmul.bf16.gmra.mxu0 %v8482
      %v8575 = vpop.f32.mrf.mxu0
      %v8576 = vadd.f32 %v8131, %v8575
      %v8577 = vpop.f32.mrf.mxu0
      %v8578 = vadd.f32 %v8132, %v8577
      %8579 = vmatmul.bf16.gmra.mxu0 %v8485
      %v8580 = vpop.f32.mrf.mxu0
      %v8581 = vadd.f32 %v8133, %v8580
      %v8582 = vpop.f32.mrf.mxu0
      %v8583 = vadd.f32 %v8134, %v8582
      %8584 = vmatmul.bf16.gmra.mxu0 %v8488
      %v8585 = vpop.f32.mrf.mxu0
      %v8586 = vadd.f32 %v8135, %v8585
      %v8587 = vpop.f32.mrf.mxu0
      %v8588 = vadd.f32 %v8136, %v8587
      %8589 = vmatmul.bf16.gmra.mxu0 %v8491
      %v8590 = vpop.f32.mrf.mxu0
      %v8591 = vadd.f32 %v8137, %v8590
      %v8592 = vpop.f32.mrf.mxu0
      %v8593 = vadd.f32 %v8138, %v8592
      %8594 = vdwg.mxu0
      %v8631 = vrot.slane %v8506, 2
      %v8632 = vrot.slane %v8506, 4
      %v8633 = vrot.slane %v8506, 6
      %v8634 = vrot.slane %v8508, 2
      %v8635 = vrot.slane %v8508, 4
      %v8636 = vrot.slane %v8508, 6
      %v8637 = vrot.slane %v8511, 2
      %v8638 = vrot.slane %v8511, 4
      %v8639 = vrot.slane %v8511, 6
      %v8640 = vrot.slane %v8513, 2
      %v8641 = vrot.slane %v8513, 4
      %v8642 = vrot.slane %v8513, 6
      %v8643 = vrot.slane %v8516, 4
      %v8644 = vrot.slane %v8516, 6
      %v8645 = vrot.slane %v8518, 2
      %v8646 = vrot.slane %v8518, 4
      %v8647 = vrot.slane %v8518, 6
      %v8648 = vrot.slane %v8521, 2
      %v8649 = vrot.slane %v8521, 6
      %v8650 = vrot.slane %v8523, 2
      %v8651 = vrot.slane %v8523, 4
      %v8652 = vrot.slane %v8523, 6
      %v8653 = vrot.slane %v8526, 2
      %v8654 = vrot.slane %v8526, 4
      %v8655 = vrot.slane %v8528, 2
      %v8656 = vrot.slane %v8528, 4
      %v8657 = vrot.slane %v8528, 6
      %v8658 = vrot.slane %v8531, 2
      %v8659 = vrot.slane %v8531, 4
      %v8660 = vrot.slane %v8531, 6
      %v8661 = vrot.slane %v8533, 2
      %v8662 = vrot.slane %v8533, 4
      %v8663 = vrot.slane %v8533, 6
      %v8664 = vrot.slane %v8536, 2
      %v8665 = vrot.slane %v8536, 4
      %v8666 = vrot.slane %v8536, 6
      %v8667 = vrot.slane %v8538, 4
      %v8668 = vrot.slane %v8538, 6
      %v8669 = vrot.slane %v8541, 2
      %v8670 = vrot.slane %v8541, 4
      %v8671 = vrot.slane %v8541, 6
      %v8672 = vrot.slane %v8543, 2
      %v8673 = vrot.slane %v8543, 6
      %v8674 = vrot.slane %v8546, 2
      %v8675 = vrot.slane %v8546, 4
      %v8676 = vrot.slane %v8546, 6
      %v8677 = vrot.slane %v8548, 2
      %v8678 = vrot.slane %v8548, 4
      %v8679 = vrot.slane %v8551, 2
      %v8680 = vrot.slane %v8551, 4
      %v8681 = vrot.slane %v8551, 6
      %v8682 = vrot.slane %v8553, 2
      %v8683 = vrot.slane %v8553, 4
      %v8684 = vrot.slane %v8553, 6
      %v8685 = vrot.slane %v8556, 2
      %v8686 = vrot.slane %v8556, 4
      %v8687 = vrot.slane %v8556, 6
      %v8688 = vrot.slane %v8558, 2
      %v8689 = vrot.slane %v8558, 4
      %v8690 = vrot.slane %v8558, 6
      %v8691 = vrot.slane %v8561, 4
      %v8692 = vrot.slane %v8561, 6
      %v8693 = vrot.slane %v8563, 2
      %v8694 = vrot.slane %v8563, 4
      %v8695 = vrot.slane %v8563, 6
      %v8696 = vrot.slane %v8566, 2
      %v8697 = vrot.slane %v8566, 6
      %v8698 = vrot.slane %v8568, 2
      %v8699 = vrot.slane %v8568, 4
      %v8700 = vrot.slane %v8568, 6
      %v8701 = vrot.slane %v8571, 2
      %v8702 = vrot.slane %v8571, 4
      %v8703 = vrot.slane %v8573, 2
      %v8704 = vrot.slane %v8573, 4
      %v8705 = vrot.slane %v8573, 6
      %v8706 = vrot.slane %v8576, 2
      %v8707 = vrot.slane %v8576, 4
      %v8708 = vrot.slane %v8576, 6
      %v8709 = vrot.slane %v8578, 2
      %v8710 = vrot.slane %v8578, 4
      %v8711 = vrot.slane %v8578, 6
      %v8712 = vrot.slane %v8581, 2
      %v8713 = vrot.slane %v8581, 4
      %v8714 = vrot.slane %v8581, 6
      %v8715 = vrot.slane %v8583, 4
      %v8716 = vrot.slane %v8583, 6
      %v8717 = vrot.slane %v8586, 2
      %v8718 = vrot.slane %v8586, 4
      %v8719 = vrot.slane %v8586, 6
      %v8720 = vrot.slane %v8588, 2
      %v8721 = vrot.slane %v8588, 6
      %v8722 = vrot.slane %v8591, 2
      %v8723 = vrot.slane %v8591, 4
      %v8724 = vrot.slane %v8591, 6
      %v8725 = vrot.slane %v8593, 2
      %v8726 = vrot.slane %v8593, 4
      %8727 = vst [vmem:[#allocation1] ss:$4 sm:$0xff] %v8506
      %s8728 = scalar_lea.vmem [#allocation1], 1
      %8729 = vst [vmem:[%s8728] ss:$4 sm:$0xff] %v8631
      %s8730 = scalar_lea.vmem [#allocation1], 2
      %8731 = vst [vmem:[%s8730] ss:$4 sm:$0xff] %v8632
      %s8732 = scalar_lea.vmem [#allocation1], 3
      %8733 = vst [vmem:[%s8732] ss:$4 sm:$0xff] %v8633
      %s8734 = scalar_lea.vmem [#allocation1], 32
      %8735 = vst [vmem:[%s8734] ss:$4 sm:$0xff] %v8508
      %s8736 = scalar_lea.vmem [#allocation1], 33
      %8737 = vst [vmem:[%s8736] ss:$4 sm:$0xff] %v8634
      %s8738 = scalar_lea.vmem [#allocation1], 34
      %8739 = vst [vmem:[%s8738] ss:$4 sm:$0xff] %v8635
      %s8740 = scalar_lea.vmem [#allocation1], 35
      %8741 = vst [vmem:[%s8740] ss:$4 sm:$0xff] %v8636
      %v8742 = vld.sshfl [vmem:[#allocation1] sm:$0xff pattern:$0x73625140]
      %v8743 = vld.sshfl [vmem:[#allocation1 + $0x20] sm:$0xff pattern:$0x73625140]
      %8744 = vst [vmem:[#allocation1] ss:$4 sm:$0xff] %v8637
      %8745 = vst [vmem:[%s8728] ss:$4 sm:$0xff] %v8638
      %8746 = vst [vmem:[%s8730] ss:$4 sm:$0xff] %v8639
      %8747 = vst [vmem:[%s8732] ss:$4 sm:$0xff] %v8513
      %8748 = vst [vmem:[%s8734] ss:$4 sm:$0xff] %v8640
      %8749 = vst [vmem:[%s8736] ss:$4 sm:$0xff] %v8641
      %8750 = vst [vmem:[%s8738] ss:$4 sm:$0xff] %v8642
      %8751 = vst [vmem:[%s8740] ss:$4 sm:$0xff] %v8516
      %v8752 = vld.sshfl [vmem:[#allocation1] sm:$0xff pattern:$0x73625140]
      %v8753 = vld.sshfl [vmem:[#allocation1 + $0x20] sm:$0xff pattern:$0x73625140]
      %8754 = vst [vmem:[#allocation1] ss:$4 sm:$0xff] %v8643
      %8755 = vst [vmem:[%s8728] ss:$4 sm:$0xff] %v8644
      %8756 = vst [vmem:[%s8730] ss:$4 sm:$0xff] %v8518
      %8757 = vst [vmem:[%s8732] ss:$4 sm:$0xff] %v8645
      %8758 = vst [vmem:[%s8734] ss:$4 sm:$0xff] %v8646
      %8759 = vst [vmem:[%s8736] ss:$4 sm:$0xff] %v8647
      %8760 = vst [vmem:[%s8738] ss:$4 sm:$0xff] %v8521
      %8761 = vst [vmem:[%s8740] ss:$4 sm:$0xff] %v8648
      %v8762 = vld.sshfl [vmem:[#allocation1] sm:$0xff pattern:$0x73625140]
      %v8763 = vld.sshfl [vmem:[#allocation1 + $0x20] sm:$0xff pattern:$0x73625140]
      %8764 = vst [vmem:[#allocation1] ss:$4 sm:$0xff] %v8649
      %8765 = vst [vmem:[%s8728] ss:$4 sm:$0xff] %v8523
      %8766 = vst [vmem:[%s8730] ss:$4 sm:$0xff] %v8650
      %8767 = vst [vmem:[%s8732] ss:$4 sm:$0xff] %v8651
      %8768 = vst [vmem:[%s8734] ss:$4 sm:$0xff] %v8652
      %8769 = vst [vmem:[%s8736] ss:$4 sm:$0xff] %v8526
      %8770 = vst [vmem:[%s8738] ss:$4 sm:$0xff] %v8653
      %8771 = vst [vmem:[%s8740] ss:$4 sm:$0xff] %v8654
      %v8772 = vld.sshfl [vmem:[#allocation1] sm:$0xff pattern:$0x73625140]
      %v8773 = vld.sshfl [vmem:[#allocation1 + $0x20] sm:$0xff pattern:$0x73625140]
      %8774 = vst [vmem:[#allocation1] ss:$4 sm:$0xff] %v8528
      %8775 = vst [vmem:[%s8728] ss:$4 sm:$0xff] %v8655
      %8776 = vst [vmem:[%s8730] ss:$4 sm:$0xff] %v8656
      %8777 = vst [vmem:[%s8732] ss:$4 sm:$0xff] %v8657
      %8778 = vst [vmem:[%s8734] ss:$4 sm:$0xff] %v8531
      %8779 = vst [vmem:[%s8736] ss:$4 sm:$0xff] %v8658
      %8780 = vst [vmem:[%s8738] ss:$4 sm:$0xff] %v8659
      %8781 = vst [vmem:[%s8740] ss:$4 sm:$0xff] %v8660
      %v8782 = vld.sshfl [vmem:[#allocation1] sm:$0xff pattern:$0x73625140]
      %v8783 = vld.sshfl [vmem:[#allocation1 + $0x20] sm:$0xff pattern:$0x73625140]
      %8784 = vst [vmem:[#allocation1] ss:$4 sm:$0xff] %v8661
      %8785 = vst [vmem:[%s8728] ss:$4 sm:$0xff] %v8662
      %8786 = vst [vmem:[%s8730] ss:$4 sm:$0xff] %v8663
      %8787 = vst [vmem:[%s8732] ss:$4 sm:$0xff] %v8536
      %8788 = vst [vmem:[%s8734] ss:$4 sm:$0xff] %v8664
      %8789 = vst [vmem:[%s8736] ss:$4 sm:$0xff] %v8665
      %8790 = vst [vmem:[%s8738] ss:$4 sm:$0xff] %v8666
      %8791 = vst [vmem:[%s8740] ss:$4 sm:$0xff] %v8538
      %v8792 = vld.sshfl [vmem:[#allocation1] sm:$0xff pattern:$0x73625140]
      %v8793 = vld.sshfl [vmem:[#allocation1 + $0x20] sm:$0xff pattern:$0x73625140]
      %8794 = vst [vmem:[#allocation1] ss:$4 sm:$0xff] %v8667
      %8795 = vst [vmem:[%s8728] ss:$4 sm:$0xff] %v8668
      %8796 = vst [vmem:[%s8730] ss:$4 sm:$0xff] %v8541
      %8797 = vst [vmem:[%s8732] ss:$4 sm:$0xff] %v8669
      %8798 = vst [vmem:[%s8734] ss:$4 sm:$0xff] %v8670
      %8799 = vst [vmem:[%s8736] ss:$4 sm:$0xff] %v8671
      %8800 = vst [vmem:[%s8738] ss:$4 sm:$0xff] %v8543
      %8801 = vst [vmem:[%s8740] ss:$4 sm:$0xff] %v8672
      %v8802 = vld.sshfl [vmem:[#allocation1] sm:$0xff pattern:$0x73625140]
      %v8803 = vld.sshfl [vmem:[#allocation1 + $0x20] sm:$0xff pattern:$0x73625140]
      %8804 = vst [vmem:[#allocation1] ss:$4 sm:$0xff] %v8673
      %8805 = vst [vmem:[%s8728] ss:$4 sm:$0xff] %v8546
      %8806 = vst [vmem:[%s8730] ss:$4 sm:$0xff] %v8674
      %8807 = vst [vmem:[%s8732] ss:$4 sm:$0xff] %v8675
      %8808 = vst [vmem:[%s8734] ss:$4 sm:$0xff] %v8676
      %8809 = vst [vmem:[%s8736] ss:$4 sm:$0xff] %v8548
      %8810 = vst [vmem:[%s8738] ss:$4 sm:$0xff] %v8677
      %8811 = vst [vmem:[%s8740] ss:$4 sm:$0xff] %v8678
      %v8812 = vld.sshfl [vmem:[#allocation1] sm:$0xff pattern:$0x73625140]
      %v8813 = vld.sshfl [vmem:[#allocation1 + $0x20] sm:$0xff pattern:$0x73625140]
      %8814 = vst [vmem:[#allocation1] ss:$4 sm:$0xff] %v8551
      %8815 = vst [vmem:[%s8728] ss:$4 sm:$0xff] %v8679
      %8816 = vst [vmem:[%s8730] ss:$4 sm:$0xff] %v8680
      %8817 = vst [vmem:[%s8732] ss:$4 sm:$0xff] %v8681
      %8818 = vst [vmem:[%s8734] ss:$4 sm:$0xff] %v8553
      %8819 = vst [vmem:[%s8736] ss:$4 sm:$0xff] %v8682
      %8820 = vst [vmem:[%s8738] ss:$4 sm:$0xff] %v8683
      %8821 = vst [vmem:[%s8740] ss:$4 sm:$0xff] %v8684
      %v8822 = vld.sshfl [vmem:[#allocation1] sm:$0xff pattern:$0x73625140]
      %v8823 = vld.sshfl [vmem:[#allocation1 + $0x20] sm:$0xff pattern:$0x73625140]
      %8824 = vst [vmem:[#allocation1] ss:$4 sm:$0xff] %v8685
      %8825 = vst [vmem:[%s8728] ss:$4 sm:$0xff] %v8686
      %8826 = vst [vmem:[%s8730] ss:$4 sm:$0xff] %v8687
      %8827 = vst [vmem:[%s8732] ss:$4 sm:$0xff] %v8558
      %8828 = vst [vmem:[%s8734] ss:$4 sm:$0xff] %v8688
      %8829 = vst [vmem:[%s8736] ss:$4 sm:$0xff] %v8689
      %8830 = vst [vmem:[%s8738] ss:$4 sm:$0xff] %v8690
      %8831 = vst [vmem:[%s8740] ss:$4 sm:$0xff] %v8561
      %v8832 = vld.sshfl [vmem:[#allocation1] sm:$0xff pattern:$0x73625140]
      %v8833 = vld.sshfl [vmem:[#allocation1 + $0x20] sm:$0xff pattern:$0x73625140]
      %8834 = vst [vmem:[#allocation1] ss:$4 sm:$0xff] %v8691
      %8835 = vst [vmem:[%s8728] ss:$4 sm:$0xff] %v8692
      %8836 = vst [vmem:[%s8730] ss:$4 sm:$0xff] %v8563
      %8837 = vst [vmem:[%s8732] ss:$4 sm:$0xff] %v8693
      %8838 = vst [vmem:[%s8734] ss:$4 sm:$0xff] %v8694
      %8839 = vst [vmem:[%s8736] ss:$4 sm:$0xff] %v8695
      %8840 = vst [vmem:[%s8738] ss:$4 sm:$0xff] %v8566
      %8841 = vst [vmem:[%s8740] ss:$4 sm:$0xff] %v8696
      %v8842 = vld.sshfl [vmem:[#allocation1] sm:$0xff pattern:$0x73625140]
      %v8843 = vld.sshfl [vmem:[#allocation1 + $0x20] sm:$0xff pattern:$0x73625140]
      %8844 = vst [vmem:[#allocation1] ss:$4 sm:$0xff] %v8697
      %8845 = vst [vmem:[%s8728] ss:$4 sm:$0xff] %v8568
      %8846 = vst [vmem:[%s8730] ss:$4 sm:$0xff] %v8698
      %8847 = vst [vmem:[%s8732] ss:$4 sm:$0xff] %v8699
      %8848 = vst [vmem:[%s8734] ss:$4 sm:$0xff] %v8700
      %8849 = vst [vmem:[%s8736] ss:$4 sm:$0xff] %v8571
      %8850 = vst [vmem:[%s8738] ss:$4 sm:$0xff] %v8701
      %8851 = vst [vmem:[%s8740] ss:$4 sm:$0xff] %v8702
      %v8852 = vld.sshfl [vmem:[#allocation1] sm:$0xff pattern:$0x73625140]
      %v8853 = vld.sshfl [vmem:[#allocation1 + $0x20] sm:$0xff pattern:$0x73625140]
      %8854 = vst [vmem:[#allocation1] ss:$4 sm:$0xff] %v8573
      %8855 = vst [vmem:[%s8728] ss:$4 sm:$0xff] %v8703
      %8856 = vst [vmem:[%s8730] ss:$4 sm:$0xff] %v8704
      %8857 = vst [vmem:[%s8732] ss:$4 sm:$0xff] %v8705
      %8858 = vst [vmem:[%s8734] ss:$4 sm:$0xff] %v8576
      %8859 = vst [vmem:[%s8736] ss:$4 sm:$0xff] %v8706
      %8860 = vst [vmem:[%s8738] ss:$4 sm:$0xff] %v8707
      %8861 = vst [vmem:[%s8740] ss:$4 sm:$0xff] %v8708
      %v8862 = vld.sshfl [vmem:[#allocation1] sm:$0xff pattern:$0x73625140]
      %v8863 = vld.sshfl [vmem:[#allocation1 + $0x20] sm:$0xff pattern:$0x73625140]
      %8864 = vst [vmem:[#allocation1] ss:$4 sm:$0xff] %v8709
      %8865 = vst [vmem:[%s8728] ss:$4 sm:$0xff] %v8710
      %8866 = vst [vmem:[%s8730] ss:$4 sm:$0xff] %v8711
      %8867 = vst [vmem:[%s8732] ss:$4 sm:$0xff] %v8581
      %8868 = vst [vmem:[%s8734] ss:$4 sm:$0xff] %v8712
      %8869 = vst [vmem:[%s8736] ss:$4 sm:$0xff] %v8713
      %8870 = vst [vmem:[%s8738] ss:$4 sm:$0xff] %v8714
      %8871 = vst [vmem:[%s8740] ss:$4 sm:$0xff] %v8583
      %v8872 = vld.sshfl [vmem:[#allocation1] sm:$0xff pattern:$0x73625140]
      %v8873 = vld.sshfl [vmem:[#allocation1 + $0x20] sm:$0xff pattern:$0x73625140]
      %8874 = vst [vmem:[#allocation1] ss:$4 sm:$0xff] %v8715
      %8875 = vst [vmem:[%s8728] ss:$4 sm:$0xff] %v8716
      %8876 = vst [vmem:[%s8730] ss:$4 sm:$0xff] %v8586
      %8877 = vst [vmem:[%s8732] ss:$4 sm:$0xff] %v8717
      %8878 = vst [vmem:[%s8734] ss:$4 sm:$0xff] %v8718
      %8879 = vst [vmem:[%s8736] ss:$4 sm:$0xff] %v8719
      %8880 = vst [vmem:[%s8738] ss:$4 sm:$0xff] %v8588
      %8881 = vst [vmem:[%s8740] ss:$4 sm:$0xff] %v8720
      %v8882 = vld.sshfl [vmem:[#allocation1] sm:$0xff pattern:$0x73625140]
      %v8883 = vld.sshfl [vmem:[#allocation1 + $0x20] sm:$0xff pattern:$0x73625140]
      %8884 = vst [vmem:[#allocation1] ss:$4 sm:$0xff] %v8721
      %8885 = vst [vmem:[%s8728] ss:$4 sm:$0xff] %v8591
      %8886 = vst [vmem:[%s8730] ss:$4 sm:$0xff] %v8722
      %8887 = vst [vmem:[%s8732] ss:$4 sm:$0xff] %v8723
      %8888 = vst [vmem:[%s8734] ss:$4 sm:$0xff] %v8724
      %8889 = vst [vmem:[%s8736] ss:$4 sm:$0xff] %v8593
      %8890 = vst [vmem:[%s8738] ss:$4 sm:$0xff] %v8725
      %8891 = vst [vmem:[%s8740] ss:$4 sm:$0xff] %v8726
      %v8892 = vld.sshfl [vmem:[#allocation1] sm:$0xff pattern:$0x73625140]
      %v8893 = vld.sshfl [vmem:[#allocation1 + $0x20] sm:$0xff pattern:$0x73625140]
      %8926 = vst.msk [vmem:[%s433] sm:$0xff] %vm470, %v8742
      %8927 = vst.msk [vmem:[%s433 + $0x8] sm:$0xff] %vm470, %v8743
      %8928 = vst.msk [vmem:[%s433 + $0x10] sm:$0xff] %vm470, %v8752
      %8929 = vst.msk [vmem:[%s433 + $0x18] sm:$0xff] %vm470, %v8753
      %8930 = vst.msk [vmem:[%s433 + $0x20] sm:$0xff] %vm470, %v8762
      %8931 = vst.msk [vmem:[%s433 + $0x28] sm:$0xff] %vm470, %v8763
      %8932 = vst.msk [vmem:[%s433 + $0x30] sm:$0xff] %vm470, %v8772
      %8933 = vst.msk [vmem:[%s433 + $0x38] sm:$0xff] %vm470, %v8773
      %8934 = vst.msk [vmem:[%s433 + $0x40] sm:$0xff] %vm470, %v8782
      %8935 = vst.msk [vmem:[%s433 + $0x48] sm:$0xff] %vm470, %v8783
      %8936 = vst.msk [vmem:[%s433 + $0x50] sm:$0xff] %vm470, %v8792
      %8937 = vst.msk [vmem:[%s433 + $0x58] sm:$0xff] %vm470, %v8793
      %8938 = vst.msk [vmem:[%s433 + $0x60] sm:$0xff] %vm470, %v8802
      %8939 = vst.msk [vmem:[%s433 + $0x68] sm:$0xff] %vm470, %v8803
      %8940 = vst.msk [vmem:[%s433 + $0x70] sm:$0xff] %vm470, %v8812
      %8941 = vst.msk [vmem:[%s433 + $0x78] sm:$0xff] %vm470, %v8813
      %8942 = vst.msk [vmem:[%s433 + $0x80] sm:$0xff] %vm470, %v8822
      %8943 = vst.msk [vmem:[%s433 + $0x88] sm:$0xff] %vm470, %v8823
      %8944 = vst.msk [vmem:[%s433 + $0x90] sm:$0xff] %vm470, %v8832
      %8945 = vst.msk [vmem:[%s433 + $0x98] sm:$0xff] %vm470, %v8833
      %8946 = vst.msk [vmem:[%s433 + $0xa0] sm:$0xff] %vm470, %v8842
      %8947 = vst.msk [vmem:[%s433 + $0xa8] sm:$0xff] %vm470, %v8843
      %8948 = vst.msk [vmem:[%s433 + $0xb0] sm:$0xff] %vm470, %v8852
      %8949 = vst.msk [vmem:[%s433 + $0xb8] sm:$0xff] %vm470, %v8853
      %8950 = vst.msk [vmem:[%s433 + $0xc0] sm:$0xff] %vm470, %v8862
      %8951 = vst.msk [vmem:[%s433 + $0xc8] sm:$0xff] %vm470, %v8863
      %8952 = vst.msk [vmem:[%s433 + $0xd0] sm:$0xff] %vm470, %v8872
      %8953 = vst.msk [vmem:[%s433 + $0xd8] sm:$0xff] %vm470, %v8873
      %8954 = vst.msk [vmem:[%s433 + $0xe0] sm:$0xff] %vm470, %v8882
      %8955 = vst.msk [vmem:[%s433 + $0xe8] sm:$0xff] %vm470, %v8883
      %8956 = vst.msk [vmem:[%s433 + $0xf0] sm:$0xff] %vm470, %v8892
      %8957 = vst.msk [vmem:[%s433 + $0xf8] sm:$0xff] %vm470, %v8893
      %p8958 = scmp.lt.s32.totalorder %s21, 1
      %s8959 = scalar_select %p8958, %s21, 1
      %s8960 = smul.addr %s8959, 32
      %s8961 = smul.addr %s8960, 8
      %s8962 = scalar_lea.vmem %s10, %s8961
      // Predicated region
      $region61: #{resnet_block_forward.1} parent=59 // pred_check
        %p8963 = pneg %p274
      $region62: #{resnet_block_forward.1} parent=59 // pred_check_branch
        %8965 = sbr.rel (%p8963) target = $region64
      $region63: #{resnet_block_forward.1} parent=59 // pred_region
        _
      $region64: #{resnet_block_forward.1} parent=59 // pred_fallthru
        _
    $region60: #{resnet_block_forward.1} parent=5 // pred_fallthru
      _
    %p8966 = scmp.le.s32.totalorder 2, %s16
    // Predicated region
    $region65: #{resnet_block_forward.1} parent=5 // pred_check
      %p8967 = pneg %p8966
    $region66: #{resnet_block_forward.1} parent=5 // pred_check_branch
      %8969 = sbr.rel (%p8967) target = $region68
    $region67: #{resnet_block_forward.1} parent=5 // pred_region
      %s8970 = ssub.s32 %s16, 2
      // Predicated region
      $region69: #{resnet_block_forward.1} parent=67 // pred_check
        %p8971 = pneg %p280
      $region70: #{resnet_block_forward.1} parent=67 // pred_check_branch
        %8973 = sbr.rel (%p8971) target = $region72
      $region71: #{resnet_block_forward.1} parent=67 // pred_region
        %p8974 = scmp.lt.s32.totalorder %s22, 1
        %s8975 = scalar_select %p8974, %s22, 1
        %s8976 = smul.addr %s8975, 32
        %s8977 = smul.addr %s8976, 8
        %s8978 = scalar_lea.vmem %s10, %s8977
      $region72: #{resnet_block_forward.1} parent=67 // pred_fallthru
        _
    $region68: #{resnet_block_forward.1} parent=5 // pred_fallthru
      _
  $region6: #{resnet_block_forward.1} parent=0 // loop_footer
    %s20 = sadd.s32 1, %s16
  $region7: #{resnet_block_forward.1} parent=0 // loop_footer_branch
    %15 = sbr.rel target = $region3
  $region8: #{resnet_block_forward.1} parent=0 // loop_exit
    _

</llo_original>
